<compile_context>
chip_gen: v5e
topology: v5e:2x2
jax: 0.10.0
libtpu: 0.0.40
codegen_flags: <defaults>
</compile_context>

<pallas_src>
import functools
import math

import numpy as np
import jax
import jax.numpy as jnp
from jax import lax
from jax.experimental import pallas as pl
from jax.experimental.pallas import tpu as pltpu


# ----------------------------------------------------------------------------
# CreateWeights (verbatim semantics of the PyTorch helper; stored, unused in fwd)
# ----------------------------------------------------------------------------
def create_weights(start_weight, end_weight, count, curve_weight):
    weights = np.linspace(start_weight, end_weight, count)
    for i in range(len(weights)):
        weights[i] = math.pow(weights[i], curve_weight)
    return weights


# ----------------------------------------------------------------------------
# Fused Pallas kernel: all conv layers of the backbone in one launch
# ----------------------------------------------------------------------------
def _make_felix_kernel(H, W, channels):
    """channels = (Cin, C1, ..., CL).  Builds a kernel processing ONE image."""
    L = len(channels) - 1

    def conv3x3(src_ref, w_ref, b_ref):
        # src_ref : (H+2, W+2, cin)  padded activation resident in VMEM
        # w_ref   : (9, cin, cout)   taps, index = kh*3 + kw
        # b_ref   : (1, cout)
        cin = src_ref.shape[-1]
        acc = None
        for kh in range(3):
            for kw in range(3):
                # Shifted window ("in-kernel im2col"): (H, W, cin) -> (H*W, cin)
                tap = src_ref[kh:kh + H, kw:kw + W, :].reshape(H * W, cin)
                part = jnp.dot(tap, w_ref[kh * 3 + kw],
                               preferred_element_type=jnp.float32)
                acc = part if acc is None else acc + part
        return acc + b_ref[...]

    def kernel(*refs):
        xpad_ref = refs[0]
        wb_refs = refs[1:1 + 2 * L]                 # w0, b0, w1, b1, ...
        pre_refs = refs[1 + 2 * L:1 + 3 * L]        # hooked pre-ReLU outputs
        act_refs = refs[1 + 3 * L:]                 # padded VMEM intermediates

        src = xpad_ref
        for l in range(L):
            w_ref, b_ref = wb_refs[2 * l], wb_refs[2 * l + 1]
            y = conv3x3(src, w_ref, b_ref)          # (H*W, channels[l+1]) f32
            pre_refs[l][...] = y                    # hook: Conv2d output
            if l < L - 1:
                act = act_refs[l]
                act[...] = jnp.zeros_like(act)      # zero halo = SAME padding
                act[1:H + 1, 1:W + 1, :] = jnp.maximum(y, 0.0).reshape(
                    H, W, channels[l + 1])          # ReLU stays in VMEM
                src = act

    return kernel


def _felix_fused_pallas(xpad, wb_flat, H, W, channels):
    """xpad: (N, H+2, W+2, Cin) f32; wb_flat: [w0,b0,w1,b1,...] with
    w: (9, cin, cout) taps and b: (1, cout)."""
    N = xpad.shape[0]
    L = len(channels) - 1
    couts = list(channels[1:])

    in_specs = [pl.BlockSpec((None, H + 2, W + 2, channels[0]),
                             lambda n: (n, 0, 0, 0))]
    for l in range(L):
        cin, cout = channels[l], channels[l + 1]
        in_specs.append(pl.BlockSpec((9, cin, cout), lambda n: (0, 0, 0)))
        in_specs.append(pl.BlockSpec((1, cout), lambda n: (0, 0)))

    # One (H*W, Cout) slab per image per layer; blocks equal the full trailing
    # dims so no (8,128)-divisibility constraint on odd spatial sizes.
    out_shape = tuple(jax.ShapeDtypeStruct((N, H * W, c), jnp.float32)
                      for c in couts)
    out_specs = [pl.BlockSpec((None, H * W, c), lambda n: (n, 0, 0))
                 for c in couts]
    # Padded intermediate activations never leave VMEM.
    scratch_shapes = [pltpu.VMEM((H + 2, W + 2, c), jnp.float32)
                      for c in couts[:-1]]

    kernel = _make_felix_kernel(H, W, channels)
    return pl.pallas_call(
        kernel,
        out_shape=out_shape,
        grid_spec=pltpu.PrefetchScalarGridSpec(
            num_scalar_prefetch=0,
            grid=(N,),                               # one image per grid step
            in_specs=in_specs,
            out_specs=out_specs,
            scratch_shapes=scratch_shapes,
        ),
        compiler_params=pltpu.CompilerParams(
            dimension_semantics=("parallel",),       # megacore: images split
        ),
    )(xpad, *wb_flat)


# ----------------------------------------------------------------------------
# Normalization folding + jitted forward wrapper
# ----------------------------------------------------------------------------
def _fold_normalization_into_conv(w_oihw, b, mean, std):
    """(x - mean)/std feeding a 3x3 SAME conv == conv with rescaled weights and
    adjusted bias, PROVIDED the raw input's spatial border is padded with
    `mean` (then border taps contribute exactly 0, matching zero-padding of the
    normalized input)."""
    invstd = 1.0 / std
    w_f = w_oihw * invstd[None, :, None, None]
    b_f = b - jnp.sum(w_oihw * (mean * invstd)[None, :, None, None],
                      axis=(1, 2, 3))
    return w_f, b_f


def _forward_impl(x_nchw, wb_flat, mean, *, channels):
    N, Cin, H, W = x_nchw.shape
    x_nhwc = jnp.transpose(x_nchw, (0, 2, 3, 1)).astype(jnp.float32)
    # Pad raw input with per-channel mean (see _fold_normalization_into_conv).
    xpad = jnp.broadcast_to(mean.astype(jnp.float32), (N, H + 2, W + 2, Cin))
    xpad = xpad.at[:, 1:H + 1, 1:W + 1, :].set(x_nhwc)
    pres = _felix_fused_pallas(xpad, wb_flat, H, W, channels)
    # Hooked activations in NCHW, like the PyTorch forward hooks capture them.
    # (Transposes stay inside this single jit so XLA fuses the layout plumbing.)
    return [jnp.transpose(p.reshape(N, H, W, -1), (0, 3, 1, 2)) for p in pres]


# ----------------------------------------------------------------------------
# FelixExtractor equivalent
# ----------------------------------------------------------------------------
class FelixExtractorPallas:
    """JAX/Pallas port of FelixExtractor with a concrete synthetic backbone.

    The PyTorch version registers forward hooks via runtime module traversal;
    here the hooked layers are the static list of Conv2d layers and their
    pre-ReLU outputs are returned explicitly by the fused kernel.
    """

    def __init__(self, conv_params, mean, std,
                 start_weight=1.0, end_weight=1.0, curve_weight=1, verbose=True):
        if curve_weight < 1:
            raise Exception("Curve can't be smaller than 1")
        self.activations = []
        count = len(conv_params)
        if verbose:
            print("Loading model")
            for w, _ in conv_params:
                print(f"-> Conv2d({w.shape[1]}, {w.shape[0]}, "
                      f"kernel_size=(3, 3), padding=(1, 1))")
            print(f"Total Layers: {count}")
        self.weights = create_weights(start_weight, end_weight, count, curve_weight)
        self.mean = jnp.asarray(mean, jnp.float32)
        self.std = jnp.asarray(std, jnp.float32)

        # Static channel plan: (Cin, C1, ..., CL)
        channels = [int(conv_params[0][0].shape[1])] + \
                   [int(w.shape[0]) for w, _ in conv_params]
        self.channels = tuple(channels)

        # Fold `transforms` into conv-1 and re-layout every conv's weights for
        # the in-kernel 9-tap matmul: (Cout, Cin, 3, 3) -> (9, Cin, Cout).
        wb_flat = []
        for idx, (w, b) in enumerate(conv_params):
            w = jnp.asarray(w, jnp.float32)
            b = jnp.asarray(b, jnp.float32)
            if idx == 0:
                w, b = _fold_normalization_into_conv(w, b, self.mean, self.std)
            w_taps = jnp.transpose(w, (2, 3, 1, 0)).reshape(9, w.shape[1], w.shape[0])
            wb_flat.append(w_taps)
            wb_flat.append(b.reshape(1, -1))
        self.wb_flat = wb_flat

        self._forward = jax.jit(
            functools.partial(_forward_impl, channels=self.channels))

    def forward(self, x_nchw):
        # transforms(X) is folded into the kernel; hooks == returned pre-ReLU outputs.
        self.activations = list(self._forward(x_nchw, self.wb_flat, self.mean))
        return self.activations

    __call__ = forward


# ----------------------------------------------------------------------------
# Reference (plain XLA) for sanity checking
# ----------------------------------------------------------------------------
def reference_forward(x_nchw, conv_params, mean, std):
    x = (x_nchw - mean[None, :, None, None]) / std[None, :, None, None]
    acts = []
    h = x
    for w, b in conv_params:
        y = lax.conv_general_dilated(
            h, w, window_strides=(1, 1), padding="SAME",
            dimension_numbers=("NCHW", "OIHW", "NCHW"),
            precision=lax.Precision.HIGHEST,
        ) + b[None, :, None, None]
        acts.append(y)
        h = jnp.maximum(y, 0.0)
    return acts


# ----------------------------------------------------------------------------
# Main
# ----------------------------------------------------------------------------
if __name__ == "__main__":
    key = jax.random.PRNGKey(0)
    N, C, H, W = 2, 4, 16, 16
    channels = [C, 8, 16, 16]                    # 3 hooked Conv2d layers

    # Deterministic synthetic parameters (He-style init).
    conv_params = []
    for li in range(len(channels) - 1):
        key, kw, kb = jax.random.split(key, 3)
        cin, cout = channels[li], channels[li + 1]
        fan_in = cin * 9
        w = jax.random.normal(kw, (cout, cin, 3, 3), jnp.float32) * np.sqrt(2.0 / fan_in)
        b = jax.random.normal(kb, (cout,), jnp.float32) * 0.01
        conv_params.append((w, b))

    mean = jnp.array([0.485, 0.456, 0.406, 0.5], jnp.float32)
    std = jnp.array([0.229, 0.224, 0.225, 0.25], jnp.float32)

    key, kx = jax.random.split(key)
    x = jax.random.normal(kx, (N, C, H, W), jnp.float32)

    extractor = FelixExtractorPallas(conv_params, mean, std,
                                     start_weight=1.0, end_weight=2.0,
                                     curve_weight=1, verbose=False)

    activations = extractor(x)
    activations = [jax.block_until_ready(a) for a in activations]

    # Sanity check against a plain-XLA reference (f32 path -> tight tolerance).
    ref_acts = reference_forward(x, conv_params, mean, std)
    assert len(activations) == len(ref_acts) == len(conv_params)
    for a, r, cout in zip(activations, ref_acts, channels[1:]):
        assert a.shape == (N, cout, H, W), a.shape
        assert a.dtype == jnp.float32
        err = float(jnp.max(jnp.abs(a - r)))
        assert jnp.allclose(a, r, atol=5e-3, rtol=5e-3), err

    print("KERNEL_OK")
</pallas_src>

<mosaic_0001>
module attributes {stable_mosaic.version = 11 : i64} {
  func.func @kernel(%arg0: i32, %arg1: memref<1x18x18x4xf32, #tpu.memory_space<vmem>>, %arg2: memref<9x4x8xf32, #tpu.memory_space<vmem>>, %arg3: memref<1x8xf32, #tpu.memory_space<vmem>>, %arg4: memref<9x8x16xf32, #tpu.memory_space<vmem>>, %arg5: memref<1x16xf32, #tpu.memory_space<vmem>>, %arg6: memref<9x16x16xf32, #tpu.memory_space<vmem>>, %arg7: memref<1x16xf32, #tpu.memory_space<vmem>>, %arg8: memref<1x256x8xf32, #tpu.memory_space<vmem>>, %arg9: memref<1x256x16xf32, #tpu.memory_space<vmem>>, %arg10: memref<1x256x16xf32, #tpu.memory_space<vmem>>, %arg11: memref<18x18x8xf32, #tpu.memory_space<vmem>>, %arg12: memref<18x18x16xf32, #tpu.memory_space<vmem>>) attributes {dimension_semantics = [#tpu.dimension_semantics<parallel>], iteration_bounds = array<i64: 2>, scalar_prefetch = 0 : i64, scratch_operands = 2 : i64, tpu.core_type = #tpu.core_type<tc>, window_params = [{transform_indices = @transform_0, window_bounds = array<i64: 1, 18, 18, 4>}, {pipeline_mode = #tpu.pipeline_mode<synchronous>, transform_indices = @transform_1, window_bounds = array<i64: 9, 4, 8>}, {pipeline_mode = #tpu.pipeline_mode<synchronous>, transform_indices = @transform_2, window_bounds = array<i64: 1, 8>}, {pipeline_mode = #tpu.pipeline_mode<synchronous>, transform_indices = @transform_3, window_bounds = array<i64: 9, 8, 16>}, {pipeline_mode = #tpu.pipeline_mode<synchronous>, transform_indices = @transform_4, window_bounds = array<i64: 1, 16>}, {pipeline_mode = #tpu.pipeline_mode<synchronous>, transform_indices = @transform_5, window_bounds = array<i64: 9, 16, 16>}, {pipeline_mode = #tpu.pipeline_mode<synchronous>, transform_indices = @transform_6, window_bounds = array<i64: 1, 16>}, {transform_indices = @transform_7, window_bounds = array<i64: 1, 256, 8>}, {transform_indices = @transform_8, window_bounds = array<i64: 1, 256, 16>}, {transform_indices = @transform_9, window_bounds = array<i64: 1, 256, 16>}]} {
    %c0 = arith.constant 0 : index
    %c0_0 = arith.constant 0 : index
    %c0_1 = arith.constant 0 : index
    %c0_2 = arith.constant 0 : index
    %0 = vector.load %arg1[%c0, %c0_0, %c0_1, %c0_2] : memref<1x18x18x4xf32, #tpu.memory_space<vmem>>, vector<1x16x16x4xf32>
    %1 = vector.shape_cast %0 : vector<1x16x16x4xf32> to vector<16x16x4xf32>
    %2 = vector.shape_cast %1 : vector<16x16x4xf32> to vector<256x4xf32>
    %c0_3 = arith.constant 0 : index
    %c0_4 = arith.constant 0 : index
    %c0_5 = arith.constant 0 : index
    %3 = vector.load %arg2[%c0_3, %c0_4, %c0_5] : memref<9x4x8xf32, #tpu.memory_space<vmem>>, vector<1x4x8xf32>
    %4 = vector.shape_cast %3 : vector<1x4x8xf32> to vector<4x8xf32>
    %cst = arith.constant dense<0.000000e+00> : vector<256x8xf32>
    %5 = tpu.matmul %2, %4, %cst {dimension_numbers = #tpu.dot_dimension_numbers<[1], [0], [0], [1], [0, 0, 1, 1], [], []>} : vector<256x4xf32>, vector<4x8xf32>, vector<256x8xf32> -> vector<256x8xf32>
    %c0_6 = arith.constant 0 : index
    %c0_7 = arith.constant 0 : index
    %c1 = arith.constant 1 : index
    %c0_8 = arith.constant 0 : index
    %6 = vector.load %arg1[%c0_6, %c0_7, %c1, %c0_8] : memref<1x18x18x4xf32, #tpu.memory_space<vmem>>, vector<1x16x16x4xf32>
    %7 = vector.shape_cast %6 : vector<1x16x16x4xf32> to vector<16x16x4xf32>
    %8 = vector.shape_cast %7 : vector<16x16x4xf32> to vector<256x4xf32>
    %c1_9 = arith.constant 1 : index
    %c0_10 = arith.constant 0 : index
    %c0_11 = arith.constant 0 : index
    %9 = vector.load %arg2[%c1_9, %c0_10, %c0_11] : memref<9x4x8xf32, #tpu.memory_space<vmem>>, vector<1x4x8xf32>
    %10 = vector.shape_cast %9 : vector<1x4x8xf32> to vector<4x8xf32>
    %cst_12 = arith.constant dense<0.000000e+00> : vector<256x8xf32>
    %11 = tpu.matmul %8, %10, %cst_12 {dimension_numbers = #tpu.dot_dimension_numbers<[1], [0], [0], [1], [0, 0, 1, 1], [], []>} : vector<256x4xf32>, vector<4x8xf32>, vector<256x8xf32> -> vector<256x8xf32>
    %12 = arith.addf %5, %11 : vector<256x8xf32>
    %c0_13 = arith.constant 0 : index
    %c0_14 = arith.constant 0 : index
    %c2 = arith.constant 2 : index
    %c0_15 = arith.constant 0 : index
    %13 = vector.load %arg1[%c0_13, %c0_14, %c2, %c0_15] : memref<1x18x18x4xf32, #tpu.memory_space<vmem>>, vector<1x16x16x4xf32>
    %14 = vector.shape_cast %13 : vector<1x16x16x4xf32> to vector<16x16x4xf32>
    %15 = vector.shape_cast %14 : vector<16x16x4xf32> to vector<256x4xf32>
    %c2_16 = arith.constant 2 : index
    %c0_17 = arith.constant 0 : index
    %c0_18 = arith.constant 0 : index
    %16 = vector.load %arg2[%c2_16, %c0_17, %c0_18] : memref<9x4x8xf32, #tpu.memory_space<vmem>>, vector<1x4x8xf32>
    %17 = vector.shape_cast %16 : vector<1x4x8xf32> to vector<4x8xf32>
    %cst_19 = arith.constant dense<0.000000e+00> : vector<256x8xf32>
    %18 = tpu.matmul %15, %17, %cst_19 {dimension_numbers = #tpu.dot_dimension_numbers<[1], [0], [0], [1], [0, 0, 1, 1], [], []>} : vector<256x4xf32>, vector<4x8xf32>, vector<256x8xf32> -> vector<256x8xf32>
    %19 = arith.addf %12, %18 : vector<256x8xf32>
    %c0_20 = arith.constant 0 : index
    %c1_21 = arith.constant 1 : index
    %c0_22 = arith.constant 0 : index
    %c0_23 = arith.constant 0 : index
    %20 = vector.load %arg1[%c0_20, %c1_21, %c0_22, %c0_23] : memref<1x18x18x4xf32, #tpu.memory_space<vmem>>, vector<1x16x16x4xf32>
    %21 = vector.shape_cast %20 : vector<1x16x16x4xf32> to vector<16x16x4xf32>
    %22 = vector.shape_cast %21 : vector<16x16x4xf32> to vector<256x4xf32>
    %c3 = arith.constant 3 : index
    %c0_24 = arith.constant 0 : index
    %c0_25 = arith.constant 0 : index
    %23 = vector.load %arg2[%c3, %c0_24, %c0_25] : memref<9x4x8xf32, #tpu.memory_space<vmem>>, vector<1x4x8xf32>
    %24 = vector.shape_cast %23 : vector<1x4x8xf32> to vector<4x8xf32>
    %cst_26 = arith.constant dense<0.000000e+00> : vector<256x8xf32>
    %25 = tpu.matmul %22, %24, %cst_26 {dimension_numbers = #tpu.dot_dimension_numbers<[1], [0], [0], [1], [0, 0, 1, 1], [], []>} : vector<256x4xf32>, vector<4x8xf32>, vector<256x8xf32> -> vector<256x8xf32>
    %26 = arith.addf %19, %25 : vector<256x8xf32>
    %c0_27 = arith.constant 0 : index
    %c1_28 = arith.constant 1 : index
    %c1_29 = arith.constant 1 : index
    %c0_30 = arith.constant 0 : index
    %27 = vector.load %arg1[%c0_27, %c1_28, %c1_29, %c0_30] : memref<1x18x18x4xf32, #tpu.memory_space<vmem>>, vector<1x16x16x4xf32>
    %28 = vector.shape_cast %27 : vector<1x16x16x4xf32> to vector<16x16x4xf32>
    %29 = vector.shape_cast %28 : vector<16x16x4xf32> to vector<256x4xf32>
    %c4 = arith.constant 4 : index
    %c0_31 = arith.constant 0 : index
    %c0_32 = arith.constant 0 : index
    %30 = vector.load %arg2[%c4, %c0_31, %c0_32] : memref<9x4x8xf32, #tpu.memory_space<vmem>>, vector<1x4x8xf32>
    %31 = vector.shape_cast %30 : vector<1x4x8xf32> to vector<4x8xf32>
    %cst_33 = arith.constant dense<0.000000e+00> : vector<256x8xf32>
    %32 = tpu.matmul %29, %31, %cst_33 {dimension_numbers = #tpu.dot_dimension_numbers<[1], [0], [0], [1], [0, 0, 1, 1], [], []>} : vector<256x4xf32>, vector<4x8xf32>, vector<256x8xf32> -> vector<256x8xf32>
    %33 = arith.addf %26, %32 : vector<256x8xf32>
    %c0_34 = arith.constant 0 : index
    %c1_35 = arith.constant 1 : index
    %c2_36 = arith.constant 2 : index
    %c0_37 = arith.constant 0 : index
    %34 = vector.load %arg1[%c0_34, %c1_35, %c2_36, %c0_37] : memref<1x18x18x4xf32, #tpu.memory_space<vmem>>, vector<1x16x16x4xf32>
    %35 = vector.shape_cast %34 : vector<1x16x16x4xf32> to vector<16x16x4xf32>
    %36 = vector.shape_cast %35 : vector<16x16x4xf32> to vector<256x4xf32>
    %c5 = arith.constant 5 : index
    %c0_38 = arith.constant 0 : index
    %c0_39 = arith.constant 0 : index
    %37 = vector.load %arg2[%c5, %c0_38, %c0_39] : memref<9x4x8xf32, #tpu.memory_space<vmem>>, vector<1x4x8xf32>
    %38 = vector.shape_cast %37 : vector<1x4x8xf32> to vector<4x8xf32>
    %cst_40 = arith.constant dense<0.000000e+00> : vector<256x8xf32>
    %39 = tpu.matmul %36, %38, %cst_40 {dimension_numbers = #tpu.dot_dimension_numbers<[1], [0], [0], [1], [0, 0, 1, 1], [], []>} : vector<256x4xf32>, vector<4x8xf32>, vector<256x8xf32> -> vector<256x8xf32>
    %40 = arith.addf %33, %39 : vector<256x8xf32>
    %c0_41 = arith.constant 0 : index
    %c2_42 = arith.constant 2 : index
    %c0_43 = arith.constant 0 : index
    %c0_44 = arith.constant 0 : index
    %41 = vector.load %arg1[%c0_41, %c2_42, %c0_43, %c0_44] : memref<1x18x18x4xf32, #tpu.memory_space<vmem>>, vector<1x16x16x4xf32>
    %42 = vector.shape_cast %41 : vector<1x16x16x4xf32> to vector<16x16x4xf32>
    %43 = vector.shape_cast %42 : vector<16x16x4xf32> to vector<256x4xf32>
    %c6 = arith.constant 6 : index
    %c0_45 = arith.constant 0 : index
    %c0_46 = arith.constant 0 : index
    %44 = vector.load %arg2[%c6, %c0_45, %c0_46] : memref<9x4x8xf32, #tpu.memory_space<vmem>>, vector<1x4x8xf32>
    %45 = vector.shape_cast %44 : vector<1x4x8xf32> to vector<4x8xf32>
    %cst_47 = arith.constant dense<0.000000e+00> : vector<256x8xf32>
    %46 = tpu.matmul %43, %45, %cst_47 {dimension_numbers = #tpu.dot_dimension_numbers<[1], [0], [0], [1], [0, 0, 1, 1], [], []>} : vector<256x4xf32>, vector<4x8xf32>, vector<256x8xf32> -> vector<256x8xf32>
    %47 = arith.addf %40, %46 : vector<256x8xf32>
    %c0_48 = arith.constant 0 : index
    %c2_49 = arith.constant 2 : index
    %c1_50 = arith.constant 1 : index
    %c0_51 = arith.constant 0 : index
    %48 = vector.load %arg1[%c0_48, %c2_49, %c1_50, %c0_51] : memref<1x18x18x4xf32, #tpu.memory_space<vmem>>, vector<1x16x16x4xf32>
    %49 = vector.shape_cast %48 : vector<1x16x16x4xf32> to vector<16x16x4xf32>
    %50 = vector.shape_cast %49 : vector<16x16x4xf32> to vector<256x4xf32>
    %c7 = arith.constant 7 : index
    %c0_52 = arith.constant 0 : index
    %c0_53 = arith.constant 0 : index
    %51 = vector.load %arg2[%c7, %c0_52, %c0_53] : memref<9x4x8xf32, #tpu.memory_space<vmem>>, vector<1x4x8xf32>
    %52 = vector.shape_cast %51 : vector<1x4x8xf32> to vector<4x8xf32>
    %cst_54 = arith.constant dense<0.000000e+00> : vector<256x8xf32>
    %53 = tpu.matmul %50, %52, %cst_54 {dimension_numbers = #tpu.dot_dimension_numbers<[1], [0], [0], [1], [0, 0, 1, 1], [], []>} : vector<256x4xf32>, vector<4x8xf32>, vector<256x8xf32> -> vector<256x8xf32>
    %54 = arith.addf %47, %53 : vector<256x8xf32>
    %c0_55 = arith.constant 0 : index
    %c2_56 = arith.constant 2 : index
    %c2_57 = arith.constant 2 : index
    %c0_58 = arith.constant 0 : index
    %55 = vector.load %arg1[%c0_55, %c2_56, %c2_57, %c0_58] : memref<1x18x18x4xf32, #tpu.memory_space<vmem>>, vector<1x16x16x4xf32>
    %56 = vector.shape_cast %55 : vector<1x16x16x4xf32> to vector<16x16x4xf32>
    %57 = vector.shape_cast %56 : vector<16x16x4xf32> to vector<256x4xf32>
    %c8 = arith.constant 8 : index
    %c0_59 = arith.constant 0 : index
    %c0_60 = arith.constant 0 : index
    %58 = vector.load %arg2[%c8, %c0_59, %c0_60] : memref<9x4x8xf32, #tpu.memory_space<vmem>>, vector<1x4x8xf32>
    %59 = vector.shape_cast %58 : vector<1x4x8xf32> to vector<4x8xf32>
    %cst_61 = arith.constant dense<0.000000e+00> : vector<256x8xf32>
    %60 = tpu.matmul %57, %59, %cst_61 {dimension_numbers = #tpu.dot_dimension_numbers<[1], [0], [0], [1], [0, 0, 1, 1], [], []>} : vector<256x4xf32>, vector<4x8xf32>, vector<256x8xf32> -> vector<256x8xf32>
    %61 = arith.addf %54, %60 : vector<256x8xf32>
    %c0_62 = arith.constant 0 : index
    %c0_63 = arith.constant 0 : index
    %62 = vector.load %arg3[%c0_62, %c0_63] : memref<1x8xf32, #tpu.memory_space<vmem>>, vector<1x8xf32>
    %63 = vector.broadcast %62 : vector<1x8xf32> to vector<256x8xf32>
    %64 = arith.addf %61, %63 : vector<256x8xf32>
    %c0_64 = arith.constant 0 : index
    %c0_65 = arith.constant 0 : index
    %c0_66 = arith.constant 0 : index
    %65 = vector.load %arg8[%c0_64, %c0_65, %c0_66] : memref<1x256x8xf32, #tpu.memory_space<vmem>>, vector<1x256x8xf32>
    %66 = vector.shape_cast %65 : vector<1x256x8xf32> to vector<256x8xf32>
    %67 = vector.shape_cast %64 : vector<256x8xf32> to vector<1x256x8xf32>
    tpu.vector_store %arg8[%c0_64, %c0_65, %c0_66], %67 {strides = array<i32>} : memref<1x256x8xf32, #tpu.memory_space<vmem>>, vector<1x256x8xf32>,
    %cst_67 = arith.constant 0.000000e+00 : f32
    %68 = vector.broadcast %cst_67 : f32 to vector<18x18x8xf32>
    %c0_68 = arith.constant 0 : index
    %c0_69 = arith.constant 0 : index
    %c0_70 = arith.constant 0 : index
    %69 = vector.load %arg11[%c0_68, %c0_69, %c0_70] : memref<18x18x8xf32, #tpu.memory_space<vmem>>, vector<18x18x8xf32>
    tpu.vector_store %arg11[%c0_68, %c0_69, %c0_70], %68 {strides = array<i32>} : memref<18x18x8xf32, #tpu.memory_space<vmem>>, vector<18x18x8xf32>,
    %cst_71 = arith.constant 0.000000e+00 : f32
    %70 = vector.broadcast %cst_71 : f32 to vector<256x8xf32>
    %71 = arith.maximumf %64, %70 : vector<256x8xf32>
    %72 = vector.shape_cast %71 : vector<256x8xf32> to vector<16x16x8xf32>
    %c1_72 = arith.constant 1 : index
    %c1_73 = arith.constant 1 : index
    %c0_74 = arith.constant 0 : index
    %73 = vector.load %arg11[%c1_72, %c1_73, %c0_74] : memref<18x18x8xf32, #tpu.memory_space<vmem>>, vector<16x16x8xf32>
    tpu.vector_store %arg11[%c1_72, %c1_73, %c0_74], %72 {strides = array<i32>} : memref<18x18x8xf32, #tpu.memory_space<vmem>>, vector<16x16x8xf32>,
    %c0_75 = arith.constant 0 : index
    %c0_76 = arith.constant 0 : index
    %c0_77 = arith.constant 0 : index
    %74 = vector.load %arg11[%c0_75, %c0_76, %c0_77] : memref<18x18x8xf32, #tpu.memory_space<vmem>>, vector<16x16x8xf32>
    %75 = vector.shape_cast %74 : vector<16x16x8xf32> to vector<256x8xf32>
    %c0_78 = arith.constant 0 : index
    %c0_79 = arith.constant 0 : index
    %c0_80 = arith.constant 0 : index
    %76 = vector.load %arg4[%c0_78, %c0_79, %c0_80] : memref<9x8x16xf32, #tpu.memory_space<vmem>>, vector<1x8x16xf32>
    %77 = vector.shape_cast %76 : vector<1x8x16xf32> to vector<8x16xf32>
    %cst_81 = arith.constant dense<0.000000e+00> : vector<256x16xf32>
    %78 = tpu.matmul %75, %77, %cst_81 {dimension_numbers = #tpu.dot_dimension_numbers<[1], [0], [0], [1], [0, 0, 1, 1], [], []>} : vector<256x8xf32>, vector<8x16xf32>, vector<256x16xf32> -> vector<256x16xf32>
    %c0_82 = arith.constant 0 : index
    %c1_83 = arith.constant 1 : index
    %c0_84 = arith.constant 0 : index
    %79 = vector.load %arg11[%c0_82, %c1_83, %c0_84] : memref<18x18x8xf32, #tpu.memory_space<vmem>>, vector<16x16x8xf32>
    %80 = vector.shape_cast %79 : vector<16x16x8xf32> to vector<256x8xf32>
    %c1_85 = arith.constant 1 : index
    %c0_86 = arith.constant 0 : index
    %c0_87 = arith.constant 0 : index
    %81 = vector.load %arg4[%c1_85, %c0_86, %c0_87] : memref<9x8x16xf32, #tpu.memory_space<vmem>>, vector<1x8x16xf32>
    %82 = vector.shape_cast %81 : vector<1x8x16xf32> to vector<8x16xf32>
    %cst_88 = arith.constant dense<0.000000e+00> : vector<256x16xf32>
    %83 = tpu.matmul %80, %82, %cst_88 {dimension_numbers = #tpu.dot_dimension_numbers<[1], [0], [0], [1], [0, 0, 1, 1], [], []>} : vector<256x8xf32>, vector<8x16xf32>, vector<256x16xf32> -> vector<256x16xf32>
    %84 = arith.addf %78, %83 : vector<256x16xf32>
    %c0_89 = arith.constant 0 : index
    %c2_90 = arith.constant 2 : index
    %c0_91 = arith.constant 0 : index
    %85 = vector.load %arg11[%c0_89, %c2_90, %c0_91] : memref<18x18x8xf32, #tpu.memory_space<vmem>>, vector<16x16x8xf32>
    %86 = vector.shape_cast %85 : vector<16x16x8xf32> to vector<256x8xf32>
    %c2_92 = arith.constant 2 : index
    %c0_93 = arith.constant 0 : index
    %c0_94 = arith.constant 0 : index
    %87 = vector.load %arg4[%c2_92, %c0_93, %c0_94] : memref<9x8x16xf32, #tpu.memory_space<vmem>>, vector<1x8x16xf32>
    %88 = vector.shape_cast %87 : vector<1x8x16xf32> to vector<8x16xf32>
    %cst_95 = arith.constant dense<0.000000e+00> : vector<256x16xf32>
    %89 = tpu.matmul %86, %88, %cst_95 {dimension_numbers = #tpu.dot_dimension_numbers<[1], [0], [0], [1], [0, 0, 1, 1], [], []>} : vector<256x8xf32>, vector<8x16xf32>, vector<256x16xf32> -> vector<256x16xf32>
    %90 = arith.addf %84, %89 : vector<256x16xf32>
    %c1_96 = arith.constant 1 : index
    %c0_97 = arith.constant 0 : index
    %c0_98 = arith.constant 0 : index
    %91 = vector.load %arg11[%c1_96, %c0_97, %c0_98] : memref<18x18x8xf32, #tpu.memory_space<vmem>>, vector<16x16x8xf32>
    %92 = vector.shape_cast %91 : vector<16x16x8xf32> to vector<256x8xf32>
    %c3_99 = arith.constant 3 : index
    %c0_100 = arith.constant 0 : index
    %c0_101 = arith.constant 0 : index
    %93 = vector.load %arg4[%c3_99, %c0_100, %c0_101] : memref<9x8x16xf32, #tpu.memory_space<vmem>>, vector<1x8x16xf32>
    %94 = vector.shape_cast %93 : vector<1x8x16xf32> to vector<8x16xf32>
    %cst_102 = arith.constant dense<0.000000e+00> : vector<256x16xf32>
    %95 = tpu.matmul %92, %94, %cst_102 {dimension_numbers = #tpu.dot_dimension_numbers<[1], [0], [0], [1], [0, 0, 1, 1], [], []>} : vector<256x8xf32>, vector<8x16xf32>, vector<256x16xf32> -> vector<256x16xf32>
    %96 = arith.addf %90, %95 : vector<256x16xf32>
    %c1_103 = arith.constant 1 : index
    %c1_104 = arith.constant 1 : index
    %c0_105 = arith.constant 0 : index
    %97 = vector.load %arg11[%c1_103, %c1_104, %c0_105] : memref<18x18x8xf32, #tpu.memory_space<vmem>>, vector<16x16x8xf32>
    %98 = vector.shape_cast %97 : vector<16x16x8xf32> to vector<256x8xf32>
    %c4_106 = arith.constant 4 : index
    %c0_107 = arith.constant 0 : index
    %c0_108 = arith.constant 0 : index
    %99 = vector.load %arg4[%c4_106, %c0_107, %c0_108] : memref<9x8x16xf32, #tpu.memory_space<vmem>>, vector<1x8x16xf32>
    %100 = vector.shape_cast %99 : vector<1x8x16xf32> to vector<8x16xf32>
    %cst_109 = arith.constant dense<0.000000e+00> : vector<256x16xf32>
    %101 = tpu.matmul %98, %100, %cst_109 {dimension_numbers = #tpu.dot_dimension_numbers<[1], [0], [0], [1], [0, 0, 1, 1], [], []>} : vector<256x8xf32>, vector<8x16xf32>, vector<256x16xf32> -> vector<256x16xf32>
    %102 = arith.addf %96, %101 : vector<256x16xf32>
    %c1_110 = arith.constant 1 : index
    %c2_111 = arith.constant 2 : index
    %c0_112 = arith.constant 0 : index
    %103 = vector.load %arg11[%c1_110, %c2_111, %c0_112] : memref<18x18x8xf32, #tpu.memory_space<vmem>>, vector<16x16x8xf32>
    %104 = vector.shape_cast %103 : vector<16x16x8xf32> to vector<256x8xf32>
    %c5_113 = arith.constant 5 : index
    %c0_114 = arith.constant 0 : index
    %c0_115 = arith.constant 0 : index
    %105 = vector.load %arg4[%c5_113, %c0_114, %c0_115] : memref<9x8x16xf32, #tpu.memory_space<vmem>>, vector<1x8x16xf32>
    %106 = vector.shape_cast %105 : vector<1x8x16xf32> to vector<8x16xf32>
    %cst_116 = arith.constant dense<0.000000e+00> : vector<256x16xf32>
    %107 = tpu.matmul %104, %106, %cst_116 {dimension_numbers = #tpu.dot_dimension_numbers<[1], [0], [0], [1], [0, 0, 1, 1], [], []>} : vector<256x8xf32>, vector<8x16xf32>, vector<256x16xf32> -> vector<256x16xf32>
    %108 = arith.addf %102, %107 : vector<256x16xf32>
    %c2_117 = arith.constant 2 : index
    %c0_118 = arith.constant 0 : index
    %c0_119 = arith.constant 0 : index
    %109 = vector.load %arg11[%c2_117, %c0_118, %c0_119] : memref<18x18x8xf32, #tpu.memory_space<vmem>>, vector<16x16x8xf32>
    %110 = vector.shape_cast %109 : vector<16x16x8xf32> to vector<256x8xf32>
    %c6_120 = arith.constant 6 : index
    %c0_121 = arith.constant 0 : index
    %c0_122 = arith.constant 0 : index
    %111 = vector.load %arg4[%c6_120, %c0_121, %c0_122] : memref<9x8x16xf32, #tpu.memory_space<vmem>>, vector<1x8x16xf32>
    %112 = vector.shape_cast %111 : vector<1x8x16xf32> to vector<8x16xf32>
    %cst_123 = arith.constant dense<0.000000e+00> : vector<256x16xf32>
    %113 = tpu.matmul %110, %112, %cst_123 {dimension_numbers = #tpu.dot_dimension_numbers<[1], [0], [0], [1], [0, 0, 1, 1], [], []>} : vector<256x8xf32>, vector<8x16xf32>, vector<256x16xf32> -> vector<256x16xf32>
    %114 = arith.addf %108, %113 : vector<256x16xf32>
    %c2_124 = arith.constant 2 : index
    %c1_125 = arith.constant 1 : index
    %c0_126 = arith.constant 0 : index
    %115 = vector.load %arg11[%c2_124, %c1_125, %c0_126] : memref<18x18x8xf32, #tpu.memory_space<vmem>>, vector<16x16x8xf32>
    %116 = vector.shape_cast %115 : vector<16x16x8xf32> to vector<256x8xf32>
    %c7_127 = arith.constant 7 : index
    %c0_128 = arith.constant 0 : index
    %c0_129 = arith.constant 0 : index
    %117 = vector.load %arg4[%c7_127, %c0_128, %c0_129] : memref<9x8x16xf32, #tpu.memory_space<vmem>>, vector<1x8x16xf32>
    %118 = vector.shape_cast %117 : vector<1x8x16xf32> to vector<8x16xf32>
    %cst_130 = arith.constant dense<0.000000e+00> : vector<256x16xf32>
    %119 = tpu.matmul %116, %118, %cst_130 {dimension_numbers = #tpu.dot_dimension_numbers<[1], [0], [0], [1], [0, 0, 1, 1], [], []>} : vector<256x8xf32>, vector<8x16xf32>, vector<256x16xf32> -> vector<256x16xf32>
    %120 = arith.addf %114, %119 : vector<256x16xf32>
    %c2_131 = arith.constant 2 : index
    %c2_132 = arith.constant 2 : index
    %c0_133 = arith.constant 0 : index
    %121 = vector.load %arg11[%c2_131, %c2_132, %c0_133] : memref<18x18x8xf32, #tpu.memory_space<vmem>>, vector<16x16x8xf32>
    %122 = vector.shape_cast %121 : vector<16x16x8xf32> to vector<256x8xf32>
    %c8_134 = arith.constant 8 : index
    %c0_135 = arith.constant 0 : index
    %c0_136 = arith.constant 0 : index
    %123 = vector.load %arg4[%c8_134, %c0_135, %c0_136] : memref<9x8x16xf32, #tpu.memory_space<vmem>>, vector<1x8x16xf32>
    %124 = vector.shape_cast %123 : vector<1x8x16xf32> to vector<8x16xf32>
    %cst_137 = arith.constant dense<0.000000e+00> : vector<256x16xf32>
    %125 = tpu.matmul %122, %124, %cst_137 {dimension_numbers = #tpu.dot_dimension_numbers<[1], [0], [0], [1], [0, 0, 1, 1], [], []>} : vector<256x8xf32>, vector<8x16xf32>, vector<256x16xf32> -> vector<256x16xf32>
    %126 = arith.addf %120, %125 : vector<256x16xf32>
    %c0_138 = arith.constant 0 : index
    %c0_139 = arith.constant 0 : index
    %127 = vector.load %arg5[%c0_138, %c0_139] : memref<1x16xf32, #tpu.memory_space<vmem>>, vector<1x16xf32>
    %128 = vector.broadcast %127 : vector<1x16xf32> to vector<256x16xf32>
    %129 = arith.addf %126, %128 : vector<256x16xf32>
    %c0_140 = arith.constant 0 : index
    %c0_141 = arith.constant 0 : index
    %c0_142 = arith.constant 0 : index
    %130 = vector.load %arg9[%c0_140, %c0_141, %c0_142] : memref<1x256x16xf32, #tpu.memory_space<vmem>>, vector<1x256x16xf32>
    %131 = vector.shape_cast %130 : vector<1x256x16xf32> to vector<256x16xf32>
    %132 = vector.shape_cast %129 : vector<256x16xf32> to vector<1x256x16xf32>
    tpu.vector_store %arg9[%c0_140, %c0_141, %c0_142], %132 {strides = array<i32>} : memref<1x256x16xf32, #tpu.memory_space<vmem>>, vector<1x256x16xf32>,
    %cst_143 = arith.constant 0.000000e+00 : f32
    %133 = vector.broadcast %cst_143 : f32 to vector<18x18x16xf32>
    %c0_144 = arith.constant 0 : index
    %c0_145 = arith.constant 0 : index
    %c0_146 = arith.constant 0 : index
    %134 = vector.load %arg12[%c0_144, %c0_145, %c0_146] : memref<18x18x16xf32, #tpu.memory_space<vmem>>, vector<18x18x16xf32>
    tpu.vector_store %arg12[%c0_144, %c0_145, %c0_146], %133 {strides = array<i32>} : memref<18x18x16xf32, #tpu.memory_space<vmem>>, vector<18x18x16xf32>,
    %cst_147 = arith.constant 0.000000e+00 : f32
    %135 = vector.broadcast %cst_147 : f32 to vector<256x16xf32>
    %136 = arith.maximumf %129, %135 : vector<256x16xf32>
    %137 = vector.shape_cast %136 : vector<256x16xf32> to vector<16x16x16xf32>
    %c1_148 = arith.constant 1 : index
    %c1_149 = arith.constant 1 : index
    %c0_150 = arith.constant 0 : index
    %138 = vector.load %arg12[%c1_148, %c1_149, %c0_150] : memref<18x18x16xf32, #tpu.memory_space<vmem>>, vector<16x16x16xf32>
    tpu.vector_store %arg12[%c1_148, %c1_149, %c0_150], %137 {strides = array<i32>} : memref<18x18x16xf32, #tpu.memory_space<vmem>>, vector<16x16x16xf32>,
    %c0_151 = arith.constant 0 : index
    %c0_152 = arith.constant 0 : index
    %c0_153 = arith.constant 0 : index
    %139 = vector.load %arg12[%c0_151, %c0_152, %c0_153] : memref<18x18x16xf32, #tpu.memory_space<vmem>>, vector<16x16x16xf32>
    %140 = vector.shape_cast %139 : vector<16x16x16xf32> to vector<256x16xf32>
    %c0_154 = arith.constant 0 : index
    %c0_155 = arith.constant 0 : index
    %c0_156 = arith.constant 0 : index
    %141 = vector.load %arg6[%c0_154, %c0_155, %c0_156] : memref<9x16x16xf32, #tpu.memory_space<vmem>>, vector<1x16x16xf32>
    %142 = vector.shape_cast %141 : vector<1x16x16xf32> to vector<16x16xf32>
    %cst_157 = arith.constant dense<0.000000e+00> : vector<256x16xf32>
    %143 = tpu.matmul %140, %142, %cst_157 {dimension_numbers = #tpu.dot_dimension_numbers<[1], [0], [0], [1], [0, 0, 1, 1], [], []>} : vector<256x16xf32>, vector<16x16xf32>, vector<256x16xf32> -> vector<256x16xf32>
    %c0_158 = arith.constant 0 : index
    %c1_159 = arith.constant 1 : index
    %c0_160 = arith.constant 0 : index
    %144 = vector.load %arg12[%c0_158, %c1_159, %c0_160] : memref<18x18x16xf32, #tpu.memory_space<vmem>>, vector<16x16x16xf32>
    %145 = vector.shape_cast %144 : vector<16x16x16xf32> to vector<256x16xf32>
    %c1_161 = arith.constant 1 : index
    %c0_162 = arith.constant 0 : index
    %c0_163 = arith.constant 0 : index
    %146 = vector.load %arg6[%c1_161, %c0_162, %c0_163] : memref<9x16x16xf32, #tpu.memory_space<vmem>>, vector<1x16x16xf32>
    %147 = vector.shape_cast %146 : vector<1x16x16xf32> to vector<16x16xf32>
    %cst_164 = arith.constant dense<0.000000e+00> : vector<256x16xf32>
    %148 = tpu.matmul %145, %147, %cst_164 {dimension_numbers = #tpu.dot_dimension_numbers<[1], [0], [0], [1], [0, 0, 1, 1], [], []>} : vector<256x16xf32>, vector<16x16xf32>, vector<256x16xf32> -> vector<256x16xf32>
    %149 = arith.addf %143, %148 : vector<256x16xf32>
    %c0_165 = arith.constant 0 : index
    %c2_166 = arith.constant 2 : index
    %c0_167 = arith.constant 0 : index
    %150 = vector.load %arg12[%c0_165, %c2_166, %c0_167] : memref<18x18x16xf32, #tpu.memory_space<vmem>>, vector<16x16x16xf32>
    %151 = vector.shape_cast %150 : vector<16x16x16xf32> to vector<256x16xf32>
    %c2_168 = arith.constant 2 : index
    %c0_169 = arith.constant 0 : index
    %c0_170 = arith.constant 0 : index
    %152 = vector.load %arg6[%c2_168, %c0_169, %c0_170] : memref<9x16x16xf32, #tpu.memory_space<vmem>>, vector<1x16x16xf32>
    %153 = vector.shape_cast %152 : vector<1x16x16xf32> to vector<16x16xf32>
    %cst_171 = arith.constant dense<0.000000e+00> : vector<256x16xf32>
    %154 = tpu.matmul %151, %153, %cst_171 {dimension_numbers = #tpu.dot_dimension_numbers<[1], [0], [0], [1], [0, 0, 1, 1], [], []>} : vector<256x16xf32>, vector<16x16xf32>, vector<256x16xf32> -> vector<256x16xf32>
    %155 = arith.addf %149, %154 : vector<256x16xf32>
    %c1_172 = arith.constant 1 : index
    %c0_173 = arith.constant 0 : index
    %c0_174 = arith.constant 0 : index
    %156 = vector.load %arg12[%c1_172, %c0_173, %c0_174] : memref<18x18x16xf32, #tpu.memory_space<vmem>>, vector<16x16x16xf32>
    %157 = vector.shape_cast %156 : vector<16x16x16xf32> to vector<256x16xf32>
    %c3_175 = arith.constant 3 : index
    %c0_176 = arith.constant 0 : index
    %c0_177 = arith.constant 0 : index
    %158 = vector.load %arg6[%c3_175, %c0_176, %c0_177] : memref<9x16x16xf32, #tpu.memory_space<vmem>>, vector<1x16x16xf32>
    %159 = vector.shape_cast %158 : vector<1x16x16xf32> to vector<16x16xf32>
    %cst_178 = arith.constant dense<0.000000e+00> : vector<256x16xf32>
    %160 = tpu.matmul %157, %159, %cst_178 {dimension_numbers = #tpu.dot_dimension_numbers<[1], [0], [0], [1], [0, 0, 1, 1], [], []>} : vector<256x16xf32>, vector<16x16xf32>, vector<256x16xf32> -> vector<256x16xf32>
    %161 = arith.addf %155, %160 : vector<256x16xf32>
    %c1_179 = arith.constant 1 : index
    %c1_180 = arith.constant 1 : index
    %c0_181 = arith.constant 0 : index
    %162 = vector.load %arg12[%c1_179, %c1_180, %c0_181] : memref<18x18x16xf32, #tpu.memory_space<vmem>>, vector<16x16x16xf32>
    %163 = vector.shape_cast %162 : vector<16x16x16xf32> to vector<256x16xf32>
    %c4_182 = arith.constant 4 : index
    %c0_183 = arith.constant 0 : index
    %c0_184 = arith.constant 0 : index
    %164 = vector.load %arg6[%c4_182, %c0_183, %c0_184] : memref<9x16x16xf32, #tpu.memory_space<vmem>>, vector<1x16x16xf32>
    %165 = vector.shape_cast %164 : vector<1x16x16xf32> to vector<16x16xf32>
    %cst_185 = arith.constant dense<0.000000e+00> : vector<256x16xf32>
    %166 = tpu.matmul %163, %165, %cst_185 {dimension_numbers = #tpu.dot_dimension_numbers<[1], [0], [0], [1], [0, 0, 1, 1], [], []>} : vector<256x16xf32>, vector<16x16xf32>, vector<256x16xf32> -> vector<256x16xf32>
    %167 = arith.addf %161, %166 : vector<256x16xf32>
    %c1_186 = arith.constant 1 : index
    %c2_187 = arith.constant 2 : index
    %c0_188 = arith.constant 0 : index
    %168 = vector.load %arg12[%c1_186, %c2_187, %c0_188] : memref<18x18x16xf32, #tpu.memory_space<vmem>>, vector<16x16x16xf32>
    %169 = vector.shape_cast %168 : vector<16x16x16xf32> to vector<256x16xf32>
    %c5_189 = arith.constant 5 : index
    %c0_190 = arith.constant 0 : index
    %c0_191 = arith.constant 0 : index
    %170 = vector.load %arg6[%c5_189, %c0_190, %c0_191] : memref<9x16x16xf32, #tpu.memory_space<vmem>>, vector<1x16x16xf32>
    %171 = vector.shape_cast %170 : vector<1x16x16xf32> to vector<16x16xf32>
    %cst_192 = arith.constant dense<0.000000e+00> : vector<256x16xf32>
    %172 = tpu.matmul %169, %171, %cst_192 {dimension_numbers = #tpu.dot_dimension_numbers<[1], [0], [0], [1], [0, 0, 1, 1], [], []>} : vector<256x16xf32>, vector<16x16xf32>, vector<256x16xf32> -> vector<256x16xf32>
    %173 = arith.addf %167, %172 : vector<256x16xf32>
    %c2_193 = arith.constant 2 : index
    %c0_194 = arith.constant 0 : index
    %c0_195 = arith.constant 0 : index
    %174 = vector.load %arg12[%c2_193, %c0_194, %c0_195] : memref<18x18x16xf32, #tpu.memory_space<vmem>>, vector<16x16x16xf32>
    %175 = vector.shape_cast %174 : vector<16x16x16xf32> to vector<256x16xf32>
    %c6_196 = arith.constant 6 : index
    %c0_197 = arith.constant 0 : index
    %c0_198 = arith.constant 0 : index
    %176 = vector.load %arg6[%c6_196, %c0_197, %c0_198] : memref<9x16x16xf32, #tpu.memory_space<vmem>>, vector<1x16x16xf32>
    %177 = vector.shape_cast %176 : vector<1x16x16xf32> to vector<16x16xf32>
    %cst_199 = arith.constant dense<0.000000e+00> : vector<256x16xf32>
    %178 = tpu.matmul %175, %177, %cst_199 {dimension_numbers = #tpu.dot_dimension_numbers<[1], [0], [0], [1], [0, 0, 1, 1], [], []>} : vector<256x16xf32>, vector<16x16xf32>, vector<256x16xf32> -> vector<256x16xf32>
    %179 = arith.addf %173, %178 : vector<256x16xf32>
    %c2_200 = arith.constant 2 : index
    %c1_201 = arith.constant 1 : index
    %c0_202 = arith.constant 0 : index
    %180 = vector.load %arg12[%c2_200, %c1_201, %c0_202] : memref<18x18x16xf32, #tpu.memory_space<vmem>>, vector<16x16x16xf32>
    %181 = vector.shape_cast %180 : vector<16x16x16xf32> to vector<256x16xf32>
    %c7_203 = arith.constant 7 : index
    %c0_204 = arith.constant 0 : index
    %c0_205 = arith.constant 0 : index
    %182 = vector.load %arg6[%c7_203, %c0_204, %c0_205] : memref<9x16x16xf32, #tpu.memory_space<vmem>>, vector<1x16x16xf32>
    %183 = vector.shape_cast %182 : vector<1x16x16xf32> to vector<16x16xf32>
    %cst_206 = arith.constant dense<0.000000e+00> : vector<256x16xf32>
    %184 = tpu.matmul %181, %183, %cst_206 {dimension_numbers = #tpu.dot_dimension_numbers<[1], [0], [0], [1], [0, 0, 1, 1], [], []>} : vector<256x16xf32>, vector<16x16xf32>, vector<256x16xf32> -> vector<256x16xf32>
    %185 = arith.addf %179, %184 : vector<256x16xf32>
    %c2_207 = arith.constant 2 : index
    %c2_208 = arith.constant 2 : index
    %c0_209 = arith.constant 0 : index
    %186 = vector.load %arg12[%c2_207, %c2_208, %c0_209] : memref<18x18x16xf32, #tpu.memory_space<vmem>>, vector<16x16x16xf32>
    %187 = vector.shape_cast %186 : vector<16x16x16xf32> to vector<256x16xf32>
    %c8_210 = arith.constant 8 : index
    %c0_211 = arith.constant 0 : index
    %c0_212 = arith.constant 0 : index
    %188 = vector.load %arg6[%c8_210, %c0_211, %c0_212] : memref<9x16x16xf32, #tpu.memory_space<vmem>>, vector<1x16x16xf32>
    %189 = vector.shape_cast %188 : vector<1x16x16xf32> to vector<16x16xf32>
    %cst_213 = arith.constant dense<0.000000e+00> : vector<256x16xf32>
    %190 = tpu.matmul %187, %189, %cst_213 {dimension_numbers = #tpu.dot_dimension_numbers<[1], [0], [0], [1], [0, 0, 1, 1], [], []>} : vector<256x16xf32>, vector<16x16xf32>, vector<256x16xf32> -> vector<256x16xf32>
    %191 = arith.addf %185, %190 : vector<256x16xf32>
    %c0_214 = arith.constant 0 : index
    %c0_215 = arith.constant 0 : index
    %192 = vector.load %arg7[%c0_214, %c0_215] : memref<1x16xf32, #tpu.memory_space<vmem>>, vector<1x16xf32>
    %193 = vector.broadcast %192 : vector<1x16xf32> to vector<256x16xf32>
    %194 = arith.addf %191, %193 : vector<256x16xf32>
    %c0_216 = arith.constant 0 : index
    %c0_217 = arith.constant 0 : index
    %c0_218 = arith.constant 0 : index
    %195 = vector.load %arg10[%c0_216, %c0_217, %c0_218] : memref<1x256x16xf32, #tpu.memory_space<vmem>>, vector<1x256x16xf32>
    %196 = vector.shape_cast %195 : vector<1x256x16xf32> to vector<256x16xf32>
    %197 = vector.shape_cast %194 : vector<256x16xf32> to vector<1x256x16xf32>
    tpu.vector_store %arg10[%c0_216, %c0_217, %c0_218], %197 {strides = array<i32>} : memref<1x256x16xf32, #tpu.memory_space<vmem>>, vector<1x256x16xf32>,
    return
  }
  func.func @transform_0(%arg0: i32) -> (i32, i32, i32, i32) {
    %c0_i32 = arith.constant 0 : i32
    %c0_i32_0 = arith.constant 0 : i32
    %c0_i32_1 = arith.constant 0 : i32
    %c0_i32_2 = arith.constant 0 : i32
    return %arg0, %c0_i32, %c0_i32_0, %c0_i32_1 : i32, i32, i32, i32
  }
  func.func @transform_1(%arg0: i32) -> (i32, i32, i32) {
    %c0_i32 = arith.constant 0 : i32
    %c0_i32_0 = arith.constant 0 : i32
    %c0_i32_1 = arith.constant 0 : i32
    %c0_i32_2 = arith.constant 0 : i32
    return %c0_i32, %c0_i32_0, %c0_i32_1 : i32, i32, i32
  }
  func.func @transform_2(%arg0: i32) -> (i32, i32) {
    %c0_i32 = arith.constant 0 : i32
    %c0_i32_0 = arith.constant 0 : i32
    %c0_i32_1 = arith.constant 0 : i32
    return %c0_i32, %c0_i32_0 : i32, i32
  }
  func.func @transform_3(%arg0: i32) -> (i32, i32, i32) {
    %c0_i32 = arith.constant 0 : i32
    %c0_i32_0 = arith.constant 0 : i32
    %c0_i32_1 = arith.constant 0 : i32
    %c0_i32_2 = arith.constant 0 : i32
    return %c0_i32, %c0_i32_0, %c0_i32_1 : i32, i32, i32
  }
  func.func @transform_4(%arg0: i32) -> (i32, i32) {
    %c0_i32 = arith.constant 0 : i32
    %c0_i32_0 = arith.constant 0 : i32
    %c0_i32_1 = arith.constant 0 : i32
    return %c0_i32, %c0_i32_0 : i32, i32
  }
  func.func @transform_5(%arg0: i32) -> (i32, i32, i32) {
    %c0_i32 = arith.constant 0 : i32
    %c0_i32_0 = arith.constant 0 : i32
    %c0_i32_1 = arith.constant 0 : i32
    %c0_i32_2 = arith.constant 0 : i32
    return %c0_i32, %c0_i32_0, %c0_i32_1 : i32, i32, i32
  }
  func.func @transform_6(%arg0: i32) -> (i32, i32) {
    %c0_i32 = arith.constant 0 : i32
    %c0_i32_0 = arith.constant 0 : i32
    %c0_i32_1 = arith.constant 0 : i32
    return %c0_i32, %c0_i32_0 : i32, i32
  }
  func.func @transform_7(%arg0: i32) -> (i32, i32, i32) {
    %c0_i32 = arith.constant 0 : i32
    %c0_i32_0 = arith.constant 0 : i32
    %c0_i32_1 = arith.constant 0 : i32
    return %arg0, %c0_i32, %c0_i32_0 : i32, i32, i32
  }
  func.func @transform_8(%arg0: i32) -> (i32, i32, i32) {
    %c0_i32 = arith.constant 0 : i32
    %c0_i32_0 = arith.constant 0 : i32
    %c0_i32_1 = arith.constant 0 : i32
    return %arg0, %c0_i32, %c0_i32_0 : i32, i32, i32
  }
  func.func @transform_9(%arg0: i32) -> (i32, i32, i32) {
    %c0_i32 = arith.constant 0 : i32
    %c0_i32_0 = arith.constant 0 : i32
    %c0_i32_1 = arith.constant 0 : i32
    return %arg0, %c0_i32, %c0_i32_0 : i32, i32, i32
  }
}

</mosaic_0001>

<llo_original>
// kernel: _forward_impl.1
$region0: #{_forward_impl.1}
  #allocation0 [shape = 'u32[]', space=smem, size = 0x4, offset = 0x4, fixed_abs, tag = 'smem constant byte address 0x4 - core index']
  #allocation1 [shape = 'u32[72,128]{1,0:T(1,128)}', space=vmem, size = 0x9000, scoped, tag = 'internal scratch']
  #allocation2 [shape = 'f32[18,18,8]{2,1,0:T(8,128)}', space=vmem, size = 0x36000, scoped, tag = 'scratch operand']
  #allocation3 [shape = 'f32[18,18,16]{2,1,0:T(8,128)}', space=vmem, size = 0x36000, scoped, tag = 'scratch operand']
  %s0 = inlined_call_operand.vmem [shape: f32[2,18,18,4], index: 0, kind: input, shape index: {}]
  %s1 = inlined_call_operand.vmem [shape: f32[9,4,8], index: 1, kind: input, shape index: {}]
  %s2 = inlined_call_operand.vmem [shape: f32[1,8], index: 2, kind: input, shape index: {}]
  %s3 = inlined_call_operand.vmem [shape: f32[9,8,16], index: 3, kind: input, shape index: {}]
  %s4 = inlined_call_operand.vmem [shape: f32[1,16], index: 4, kind: input, shape index: {}]
  %s5 = inlined_call_operand.vmem [shape: f32[9,16,16], index: 5, kind: input, shape index: {}]
  %s6 = inlined_call_operand.vmem [shape: f32[1,16], index: 6, kind: input, shape index: {}]
  %s7 = inlined_call_operand.vmem [shape: f32[2,256,8], index: 7, kind: output, shape index: {0}]
  %s8 = inlined_call_operand.vmem [shape: f32[2,256,16], index: 8, kind: output, shape index: {1}]
  %s9 = inlined_call_operand.vmem [shape: f32[2,256,16], index: 9, kind: output, shape index: {2}]
  %10 = xla_tuple %s7, %s8, %s9
  %s11 = sld [smem:[#allocation0]]
  $region77: #{_forward_impl.1} parent=0
    _
  %s13 = ssub.s32 1, %s11
  %s14 = scalar_select 0, %s13, %s11
  loop: start=0, step=1, limit=4
  $region2: #{_forward_impl.1} parent=0 // loop_pre_header
    _
  $region3: #{_forward_impl.1} parent=0 // loop_header
    %s16 = sphi 0, %s20
    %p17 = scmp.ge.s32.totalorder %s16, 4
    %s26 = sphi 0, %s28
    %s29 = sphi 0, %s26
    %s30 = sphi 0, %s29
    %s46 = sphi 0, %s30
    %s50 = sphi 0, %s50
    %s52 = sphi 0, %s50
    %s53 = sphi 0, %s52
    %s67 = sphi 0, %s53
    %s71 = sphi 0, %s71
    %s73 = sphi 0, %s71
    %s74 = sphi 0, %s73
    %s88 = sphi 0, %s74
    %s92 = sphi 0, %s92
    %s94 = sphi 0, %s92
    %s95 = sphi 0, %s94
    %s109 = sphi 0, %s95
    %s113 = sphi 0, %s113
    %s115 = sphi 0, %s113
    %s116 = sphi 0, %s115
    %s130 = sphi 0, %s116
    %s134 = sphi 0, %s134
    %s136 = sphi 0, %s134
    %s137 = sphi 0, %s136
    %s151 = sphi 0, %s137
    %s155 = sphi 0, %s155
    %s157 = sphi 0, %s155
    %s158 = sphi 0, %s157
    %s172 = sphi 0, %s158
    %s178 = sphi 0, %s180
    %s181 = sphi 0, %s178
    %s182 = sphi 0, %s181
    %s198 = sphi 0, %s182
    %s204 = sphi 0, %s206
    %s207 = sphi 0, %s204
    %s208 = sphi 0, %s207
    %s224 = sphi 0, %s208
    %s230 = sphi 0, %s232
    %s233 = sphi 0, %s230
    %s234 = sphi 0, %s233
    %s250 = sphi 0, %s234
  $region4: #{_forward_impl.1} parent=0 // loop_header_branch
    %19 = sbr.rel (%p17) target = $region8
  $region5: #{_forward_impl.1} parent=0 // loop_body
    %s21 = ssub.s32 %s16, 1
    %s22 = ssub.s32 %s16, 2
    %s23 = sadd.s32 %s16, 1
    %s24 = ssub.s32 %s16, %s23
    %p25 = scmp.eq.s32.totalorder %s24, 0
    %s27 = sadd.s32 %s26, 1
    %s28 = scalar_select %p25, %s26, %s27
    %p31 = pneg %p25
    %p32 = scmp.eq.s32.totalorder %s16, 1
    %p33 = por %p31, %p32
    %p34 = scmp.ne.s32.totalorder %s26, %s29
    %p35 = scmp.eq.s32.totalorder %s16, 0
    %p36 = por %p34, %p35
    %p37 = scmp.ne.s32.totalorder %s26, %s29
    %p38 = scmp.eq.s32.totalorder %s21, 1
    %p39 = por %p37, %p38
    %p40 = scmp.ne.s32.totalorder %s29, %s30
    %p41 = scmp.eq.s32.totalorder %s21, 0
    %p42 = por %p40, %p41
    %p43 = scmp.ne.s32.totalorder %s29, %s30
    %p44 = scmp.eq.s32.totalorder %s22, 1
    %p45 = por %p43, %p44
    %p47 = scmp.ne.s32.totalorder %s30, %s46
    %p48 = scmp.eq.s32.totalorder %s22, 0
    %p49 = por %p47, %p48
    %s51 = sadd.s32 %s50, 1
    %p54 = scmp.eq.s32.totalorder %s16, 1
    %p55 = scmp.ne.s32.totalorder %s50, %s52
    %p56 = scmp.eq.s32.totalorder %s16, 0
    %p57 = por %p55, %p56
    %p58 = scmp.ne.s32.totalorder %s50, %s52
    %p59 = scmp.eq.s32.totalorder %s21, 1
    %p60 = por %p58, %p59
    %p61 = scmp.ne.s32.totalorder %s52, %s53
    %p62 = scmp.eq.s32.totalorder %s21, 0
    %p63 = por %p61, %p62
    %p64 = scmp.ne.s32.totalorder %s52, %s53
    %p65 = scmp.eq.s32.totalorder %s22, 1
    %p66 = por %p64, %p65
    %p68 = scmp.ne.s32.totalorder %s53, %s67
    %p69 = scmp.eq.s32.totalorder %s22, 0
    %p70 = por %p68, %p69
    %s72 = sadd.s32 %s71, 1
    %p75 = scmp.eq.s32.totalorder %s16, 1
    %p76 = scmp.ne.s32.totalorder %s71, %s73
    %p77 = scmp.eq.s32.totalorder %s16, 0
    %p78 = por %p76, %p77
    %p79 = scmp.ne.s32.totalorder %s71, %s73
    %p80 = scmp.eq.s32.totalorder %s21, 1
    %p81 = por %p79, %p80
    %p82 = scmp.ne.s32.totalorder %s73, %s74
    %p83 = scmp.eq.s32.totalorder %s21, 0
    %p84 = por %p82, %p83
    %p85 = scmp.ne.s32.totalorder %s73, %s74
    %p86 = scmp.eq.s32.totalorder %s22, 1
    %p87 = por %p85, %p86
    %p89 = scmp.ne.s32.totalorder %s74, %s88
    %p90 = scmp.eq.s32.totalorder %s22, 0
    %p91 = por %p89, %p90
    %s93 = sadd.s32 %s92, 1
    %p96 = scmp.eq.s32.totalorder %s16, 1
    %p97 = scmp.ne.s32.totalorder %s92, %s94
    %p98 = scmp.eq.s32.totalorder %s16, 0
    %p99 = por %p97, %p98
    %p100 = scmp.ne.s32.totalorder %s92, %s94
    %p101 = scmp.eq.s32.totalorder %s21, 1
    %p102 = por %p100, %p101
    %p103 = scmp.ne.s32.totalorder %s94, %s95
    %p104 = scmp.eq.s32.totalorder %s21, 0
    %p105 = por %p103, %p104
    %p106 = scmp.ne.s32.totalorder %s94, %s95
    %p107 = scmp.eq.s32.totalorder %s22, 1
    %p108 = por %p106, %p107
    %p110 = scmp.ne.s32.totalorder %s95, %s109
    %p111 = scmp.eq.s32.totalorder %s22, 0
    %p112 = por %p110, %p111
    %s114 = sadd.s32 %s113, 1
    %p117 = scmp.eq.s32.totalorder %s16, 1
    %p118 = scmp.ne.s32.totalorder %s113, %s115
    %p119 = scmp.eq.s32.totalorder %s16, 0
    %p120 = por %p118, %p119
    %p121 = scmp.ne.s32.totalorder %s113, %s115
    %p122 = scmp.eq.s32.totalorder %s21, 1
    %p123 = por %p121, %p122
    %p124 = scmp.ne.s32.totalorder %s115, %s116
    %p125 = scmp.eq.s32.totalorder %s21, 0
    %p126 = por %p124, %p125
    %p127 = scmp.ne.s32.totalorder %s115, %s116
    %p128 = scmp.eq.s32.totalorder %s22, 1
    %p129 = por %p127, %p128
    %p131 = scmp.ne.s32.totalorder %s116, %s130
    %p132 = scmp.eq.s32.totalorder %s22, 0
    %p133 = por %p131, %p132
    %s135 = sadd.s32 %s134, 1
    %p138 = scmp.eq.s32.totalorder %s16, 1
    %p139 = scmp.ne.s32.totalorder %s134, %s136
    %p140 = scmp.eq.s32.totalorder %s16, 0
    %p141 = por %p139, %p140
    %p142 = scmp.ne.s32.totalorder %s134, %s136
    %p143 = scmp.eq.s32.totalorder %s21, 1
    %p144 = por %p142, %p143
    %p145 = scmp.ne.s32.totalorder %s136, %s137
    %p146 = scmp.eq.s32.totalorder %s21, 0
    %p147 = por %p145, %p146
    %p148 = scmp.ne.s32.totalorder %s136, %s137
    %p149 = scmp.eq.s32.totalorder %s22, 1
    %p150 = por %p148, %p149
    %p152 = scmp.ne.s32.totalorder %s137, %s151
    %p153 = scmp.eq.s32.totalorder %s22, 0
    %p154 = por %p152, %p153
    %s156 = sadd.s32 %s155, 1
    %p159 = scmp.eq.s32.totalorder %s16, 1
    %p160 = scmp.ne.s32.totalorder %s155, %s157
    %p161 = scmp.eq.s32.totalorder %s16, 0
    %p162 = por %p160, %p161
    %p163 = scmp.ne.s32.totalorder %s155, %s157
    %p164 = scmp.eq.s32.totalorder %s21, 1
    %p165 = por %p163, %p164
    %p166 = scmp.ne.s32.totalorder %s157, %s158
    %p167 = scmp.eq.s32.totalorder %s21, 0
    %p168 = por %p166, %p167
    %p169 = scmp.ne.s32.totalorder %s157, %s158
    %p170 = scmp.eq.s32.totalorder %s22, 1
    %p171 = por %p169, %p170
    %p173 = scmp.ne.s32.totalorder %s158, %s172
    %p174 = scmp.eq.s32.totalorder %s22, 0
    %p175 = por %p173, %p174
    %s176 = ssub.s32 %s16, %s23
    %p177 = scmp.eq.s32.totalorder %s176, 0
    %s179 = sadd.s32 %s178, 1
    %s180 = scalar_select %p177, %s178, %s179
    %p183 = pneg %p177
    %p184 = scmp.eq.s32.totalorder %s16, 1
    %p185 = por %p183, %p184
    %p186 = scmp.ne.s32.totalorder %s178, %s181
    %p187 = scmp.eq.s32.totalorder %s16, 0
    %p188 = por %p186, %p187
    %p189 = scmp.ne.s32.totalorder %s178, %s181
    %p190 = scmp.eq.s32.totalorder %s21, 1
    %p191 = por %p189, %p190
    %p192 = scmp.ne.s32.totalorder %s181, %s182
    %p193 = scmp.eq.s32.totalorder %s21, 0
    %p194 = por %p192, %p193
    %p195 = scmp.ne.s32.totalorder %s181, %s182
    %p196 = scmp.eq.s32.totalorder %s22, 1
    %p197 = por %p195, %p196
    %p199 = scmp.ne.s32.totalorder %s182, %s198
    %p200 = scmp.eq.s32.totalorder %s22, 0
    %p201 = por %p199, %p200
    %s202 = ssub.s32 %s16, %s23
    %p203 = scmp.eq.s32.totalorder %s202, 0
    %s205 = sadd.s32 %s204, 1
    %s206 = scalar_select %p203, %s204, %s205
    %p209 = pneg %p203
    %p210 = scmp.eq.s32.totalorder %s16, 1
    %p211 = por %p209, %p210
    %p212 = scmp.ne.s32.totalorder %s204, %s207
    %p213 = scmp.eq.s32.totalorder %s16, 0
    %p214 = por %p212, %p213
    %p215 = scmp.ne.s32.totalorder %s204, %s207
    %p216 = scmp.eq.s32.totalorder %s21, 1
    %p217 = por %p215, %p216
    %p218 = scmp.ne.s32.totalorder %s207, %s208
    %p219 = scmp.eq.s32.totalorder %s21, 0
    %p220 = por %p218, %p219
    %p221 = scmp.ne.s32.totalorder %s207, %s208
    %p222 = scmp.eq.s32.totalorder %s22, 1
    %p223 = por %p221, %p222
    %p225 = scmp.ne.s32.totalorder %s208, %s224
    %p226 = scmp.eq.s32.totalorder %s22, 0
    %p227 = por %p225, %p226
    %s228 = ssub.s32 %s16, %s23
    %p229 = scmp.eq.s32.totalorder %s228, 0
    %s231 = sadd.s32 %s230, 1
    %s232 = scalar_select %p229, %s230, %s231
    %p235 = pneg %p229
    %p236 = scmp.eq.s32.totalorder %s16, 1
    %p237 = por %p235, %p236
    %p238 = scmp.ne.s32.totalorder %s230, %s233
    %p239 = scmp.eq.s32.totalorder %s16, 0
    %p240 = por %p238, %p239
    %p241 = scmp.ne.s32.totalorder %s230, %s233
    %p242 = scmp.eq.s32.totalorder %s21, 1
    %p243 = por %p241, %p242
    %p244 = scmp.ne.s32.totalorder %s233, %s234
    %p245 = scmp.eq.s32.totalorder %s21, 0
    %p246 = por %p244, %p245
    %p247 = scmp.ne.s32.totalorder %s233, %s234
    %p248 = scmp.eq.s32.totalorder %s22, 1
    %p249 = por %p247, %p248
    %p251 = scmp.ne.s32.totalorder %s234, %s250
    %p252 = scmp.eq.s32.totalorder %s22, 0
    %p253 = por %p251, %p252
    %p254 = scmp.le.s32.totalorder 1, %s16
    %p255 = scmp.lt.s32.totalorder %s16, 3
    %p256 = pnand %p254, %p255
    %p257 = pneg %p256
    // Predicated region
    $region9: #{_forward_impl.1} parent=5 // pred_check
      _
    $region10: #{_forward_impl.1} parent=5 // pred_check_branch
      %259 = sbr.rel (%p256) target = $region12
    $region11: #{_forward_impl.1} parent=5 // pred_region
      %s260 = ssub.s32 %s16, 1
      // Predicated region
      $region13: #{_forward_impl.1} parent=11 // pred_check
        %p261 = pneg %p63
      $region14: #{_forward_impl.1} parent=11 // pred_check_branch
        %263 = sbr.rel (%p261) target = $region16
      $region15: #{_forward_impl.1} parent=11 // pred_region
        _
      $region16: #{_forward_impl.1} parent=11 // pred_fallthru
        _
      // Predicated region
      $region17: #{_forward_impl.1} parent=11 // pred_check
        %p264 = pneg %p84
      $region18: #{_forward_impl.1} parent=11 // pred_check_branch
        %266 = sbr.rel (%p264) target = $region20
      $region19: #{_forward_impl.1} parent=11 // pred_region
        _
      $region20: #{_forward_impl.1} parent=11 // pred_fallthru
        _
      // Predicated region
      $region21: #{_forward_impl.1} parent=11 // pred_check
        %p267 = pneg %p105
      $region22: #{_forward_impl.1} parent=11 // pred_check_branch
        %269 = sbr.rel (%p267) target = $region24
      $region23: #{_forward_impl.1} parent=11 // pred_region
        _
      $region24: #{_forward_impl.1} parent=11 // pred_fallthru
        _
      // Predicated region
      $region25: #{_forward_impl.1} parent=11 // pred_check
        %p270 = pneg %p126
      $region26: #{_forward_impl.1} parent=11 // pred_check_branch
        %272 = sbr.rel (%p270) target = $region28
      $region27: #{_forward_impl.1} parent=11 // pred_region
        _
      $region28: #{_forward_impl.1} parent=11 // pred_fallthru
        _
      // Predicated region
      $region29: #{_forward_impl.1} parent=11 // pred_check
        %p273 = pneg %p147
      $region30: #{_forward_impl.1} parent=11 // pred_check_branch
        %275 = sbr.rel (%p273) target = $region32
      $region31: #{_forward_impl.1} parent=11 // pred_region
        _
      $region32: #{_forward_impl.1} parent=11 // pred_fallthru
        _
      // Predicated region
      $region33: #{_forward_impl.1} parent=11 // pred_check
        %p276 = pneg %p168
      $region34: #{_forward_impl.1} parent=11 // pred_check_branch
        %278 = sbr.rel (%p276) target = $region36
      $region35: #{_forward_impl.1} parent=11 // pred_region
        _
      $region36: #{_forward_impl.1} parent=11 // pred_fallthru
        _
    $region12: #{_forward_impl.1} parent=5 // pred_fallthru
      _
    %p279 = scmp.lt.s32.totalorder %s16, 2
    // Predicated region
    $region37: #{_forward_impl.1} parent=5 // pred_check
      %p280 = pneg %p279
    $region38: #{_forward_impl.1} parent=5 // pred_check_branch
      %282 = sbr.rel (%p280) target = $region40
    $region39: #{_forward_impl.1} parent=5 // pred_region
      // Predicated region
      $region41: #{_forward_impl.1} parent=39 // pred_check
        %p283 = pneg %p36
      $region42: #{_forward_impl.1} parent=39 // pred_check_branch
        %285 = sbr.rel (%p283) target = $region44
      $region43: #{_forward_impl.1} parent=39 // pred_region
        %p286 = scmp.lt.s32.totalorder %s16, 1
        %s287 = scalar_select %p286, %s16, 1
        %s288 = smul.addr %s287, 54
        %s289 = smul.addr %s288, 8
        %s290 = scalar_lea.vmem %s0, %s289
      $region44: #{_forward_impl.1} parent=39 // pred_fallthru
        _
    $region40: #{_forward_impl.1} parent=5 // pred_fallthru
      _
    %p291 = scmp.le.s32.totalorder 1, %s16
    %p292 = scmp.lt.s32.totalorder %s16, 3
    %p293 = pnand %p291, %p292
    %p294 = pneg %p293
    // Predicated region
    $region45: #{_forward_impl.1} parent=5 // pred_check
      _
    $region46: #{_forward_impl.1} parent=5 // pred_check_branch
      %296 = sbr.rel (%p293) target = $region48
    $region47: #{_forward_impl.1} parent=5 // pred_region
      %s297 = ssub.s32 %s16, 1
      %p298 = scmp.lt.s32.totalorder %s21, 1
      %s299 = scalar_select %p298, %s21, 1
      %s300 = smul.addr %s299, 54
      %s301 = smul.addr %s300, 8
      %s302 = scalar_lea.vmem %s0, %s301
      %p303 = pneg %p42
      %p304 = pneg %p39
      %p305 = pneg %p63
      %p306 = pneg %p60
      %p307 = pneg %p84
      %p308 = pneg %p81
      %p309 = pneg %p105
      %p310 = pneg %p102
      %p311 = pneg %p126
      %p312 = pneg %p123
      %p313 = pneg %p147
      %p314 = pneg %p144
      %p315 = pneg %p168
      %p316 = pneg %p165
      %p317 = pneg %p194
      %p318 = pneg %p191
      %p319 = scmp.lt.s32.totalorder %s21, 1
      %s320 = scalar_select %p319, %s21, 1
      %s321 = smul.addr %s320, 32
      %s322 = smul.addr %s321, 8
      %s323 = scalar_lea.vmem %s7, %s322
      %p324 = pneg %p220
      %p325 = pneg %p217
      %p326 = scmp.lt.s32.totalorder %s21, 1
      %s327 = scalar_select %p326, %s21, 1
      %s328 = smul.addr %s327, 32
      %s329 = smul.addr %s328, 8
      %s330 = scalar_lea.vmem %s8, %s329
      %p331 = pneg %p246
      %p332 = pneg %p243
      %p333 = scmp.lt.s32.totalorder %s21, 1
      %s334 = scalar_select %p333, %s21, 1
      %s335 = smul.addr %s334, 32
      %s336 = smul.addr %s335, 8
      %s337 = scalar_lea.vmem %s9, %s336
      %p338 = scmp.lt.s32.totalorder %s21, 1
      %s339 = scalar_select %p338, %s21, 1
      %s340 = smul.addr %s339, 54
      %s341 = smul.addr %s340, 8
      %s342 = scalar_lea.vmem %s0, %s341
      %p343 = scmp.lt.s32.totalorder %s21, 1
      %s344 = scalar_select %p343, %s21, 1
      %s345 = smul.addr %s344, 32
      %s346 = smul.addr %s345, 8
      %s347 = scalar_lea.vmem %s7, %s346
      %p348 = scmp.lt.s32.totalorder %s21, 1
      %s349 = scalar_select %p348, %s21, 1
      %s350 = smul.addr %s349, 32
      %s351 = smul.addr %s350, 8
      %s352 = scalar_lea.vmem %s8, %s351
      %p353 = scmp.lt.s32.totalorder %s21, 1
      %s354 = scalar_select %p353, %s21, 1
      %s355 = smul.addr %s354, 32
      %s356 = smul.addr %s355, 8
      %s357 = scalar_lea.vmem %s9, %s356
      %v358 = vld [vmem:[%s342] sm:$0xff]
      %v359 = vld [vmem:[%s342 + $0x8] sm:$0xff]
      %v360 = vld [vmem:[%s342 + $0x18] sm:$0xff]
      %v361 = vld [vmem:[%s342 + $0x20] sm:$0xff]
      %v362 = vld [vmem:[%s342 + $0x30] sm:$0xff]
      %v363 = vld [vmem:[%s342 + $0x38] sm:$0xff]
      %v364 = vld [vmem:[%s342 + $0x48] sm:$0xff]
      %v365 = vld [vmem:[%s342 + $0x50] sm:$0xff]
      %v366 = vld [vmem:[%s342 + $0x60] sm:$0xff]
      %v367 = vld [vmem:[%s342 + $0x68] sm:$0xff]
      %v368 = vld [vmem:[%s342 + $0x78] sm:$0xff]
      %v369 = vld [vmem:[%s342 + $0x80] sm:$0xff]
      %v370 = vld [vmem:[%s342 + $0x90] sm:$0xff]
      %v371 = vld [vmem:[%s342 + $0x98] sm:$0xff]
      %v372 = vld [vmem:[%s342 + $0xa8] sm:$0xff]
      %v373 = vld [vmem:[%s342 + $0xb0] sm:$0xff]
      %v374 = vld [vmem:[%s342 + $0xc0] sm:$0xff]
      %v375 = vld [vmem:[%s342 + $0xc8] sm:$0xff]
      %v376 = vld [vmem:[%s342 + $0xd8] sm:$0xff]
      %v377 = vld [vmem:[%s342 + $0xe0] sm:$0xff]
      %v378 = vld [vmem:[%s342 + $0xf0] sm:$0xff]
      %v379 = vld [vmem:[%s342 + $0xf8] sm:$0xff]
      %v380 = vld [vmem:[%s342 + $0x108] sm:$0xff]
      %v381 = vld [vmem:[%s342 + $0x110] sm:$0xff]
      %v382 = vld [vmem:[%s342 + $0x120] sm:$0xff]
      %v383 = vld [vmem:[%s342 + $0x128] sm:$0xff]
      %v384 = vld [vmem:[%s342 + $0x138] sm:$0xff]
      %v385 = vld [vmem:[%s342 + $0x140] sm:$0xff]
      %v386 = vld [vmem:[%s342 + $0x150] sm:$0xff]
      %v387 = vld [vmem:[%s342 + $0x158] sm:$0xff]
      %v388 = vld [vmem:[%s342 + $0x168] sm:$0xff]
      %v389 = vld [vmem:[%s342 + $0x170] sm:$0xff]
      %v390 = vld [vmem:[%s1] sm:$0xf]
      %v391 = vld [vmem:[%s342 + $0x1] sm:$0xff]
      %v392 = vld [vmem:[%s342 + $0x9] sm:$0xff]
      %v393 = vld [vmem:[%s342 + $0x19] sm:$0xff]
      %v394 = vld [vmem:[%s342 + $0x21] sm:$0xff]
      %v395 = vld [vmem:[%s342 + $0x31] sm:$0xff]
      %v396 = vld [vmem:[%s342 + $0x39] sm:$0xff]
      %v397 = vld [vmem:[%s342 + $0x49] sm:$0xff]
      %v398 = vld [vmem:[%s342 + $0x51] sm:$0xff]
      %v399 = vld [vmem:[%s342 + $0x61] sm:$0xff]
      %v400 = vld [vmem:[%s342 + $0x69] sm:$0xff]
      %v401 = vld [vmem:[%s342 + $0x79] sm:$0xff]
      %v402 = vld [vmem:[%s342 + $0x81] sm:$0xff]
      %v403 = vld [vmem:[%s342 + $0x91] sm:$0xff]
      %v404 = vld [vmem:[%s342 + $0x99] sm:$0xff]
      %v405 = vld [vmem:[%s342 + $0xa9] sm:$0xff]
      %v406 = vld [vmem:[%s342 + $0xb1] sm:$0xff]
      %v407 = vld [vmem:[%s342 + $0xc1] sm:$0xff]
      %v408 = vld [vmem:[%s342 + $0xc9] sm:$0xff]
      %v409 = vld [vmem:[%s342 + $0xd9] sm:$0xff]
      %v410 = vld [vmem:[%s342 + $0xe1] sm:$0xff]
      %v411 = vld [vmem:[%s342 + $0xf1] sm:$0xff]
      %v412 = vld [vmem:[%s342 + $0xf9] sm:$0xff]
      %v413 = vld [vmem:[%s342 + $0x109] sm:$0xff]
      %v414 = vld [vmem:[%s342 + $0x111] sm:$0xff]
      %v415 = vld [vmem:[%s342 + $0x121] sm:$0xff]
      %v416 = vld [vmem:[%s342 + $0x129] sm:$0xff]
      %v417 = vld [vmem:[%s342 + $0x139] sm:$0xff]
      %v418 = vld [vmem:[%s342 + $0x141] sm:$0xff]
      %v419 = vld [vmem:[%s342 + $0x151] sm:$0xff]
      %v420 = vld [vmem:[%s342 + $0x159] sm:$0xff]
      %v421 = vld [vmem:[%s342 + $0x169] sm:$0xff]
      %v422 = vld [vmem:[%s342 + $0x171] sm:$0xff]
      %s423 = scalar_lea.vmem %s1, 4
      %v424 = vld [vmem:[%s423] sm:$0xf]
      %vm425 = vcmask 31744
      %v427 = vsel %vm425, %v391, 0
      %v430 = vsel %vm425, %v392, 0
      %v433 = vsel %vm425, %v393, 0
      %v436 = vsel %vm425, %v394, 0
      %v439 = vsel %vm425, %v395, 0
      %v442 = vsel %vm425, %v396, 0
      %v445 = vsel %vm425, %v397, 0
      %v448 = vsel %vm425, %v398, 0
      %v451 = vsel %vm425, %v399, 0
      %v454 = vsel %vm425, %v400, 0
      %v457 = vsel %vm425, %v401, 0
      %v460 = vsel %vm425, %v402, 0
      %v463 = vsel %vm425, %v403, 0
      %v466 = vsel %vm425, %v404, 0
      %v469 = vsel %vm425, %v405, 0
      %v472 = vsel %vm425, %v406, 0
      %v475 = vsel %vm425, %v407, 0
      %v478 = vsel %vm425, %v408, 0
      %v481 = vsel %vm425, %v409, 0
      %v484 = vsel %vm425, %v410, 0
      %v487 = vsel %vm425, %v411, 0
      %v490 = vsel %vm425, %v412, 0
      %v493 = vsel %vm425, %v413, 0
      %v496 = vsel %vm425, %v414, 0
      %v499 = vsel %vm425, %v415, 0
      %v502 = vsel %vm425, %v416, 0
      %v505 = vsel %vm425, %v417, 0
      %v508 = vsel %vm425, %v418, 0
      %v511 = vsel %vm425, %v419, 0
      %v514 = vsel %vm425, %v420, 0
      %v517 = vsel %vm425, %v421, 0
      %v520 = vsel %vm425, %v422, 0
      %vm522 = vcmask 1043456
      %v524 = vsel %vm522, %v424, 0
      %526 = vmatpush.msra.mxu0 0.0
      %527 = vmatpush.msra.mxu0 0.0
      %528 = vmatpush.msra.mxu0 0.0
      %529 = vmatpush.msra.mxu0 0.0
      %530 = vmatpush.msra.mxu0 0.0
      %531 = vmatpush.msra.mxu0 0.0
      %532 = vmatpush.msra.mxu0 0.0
      %533 = vmatpush.msra.mxu0 0.0
      %534 = vmatpush.msra.mxu0 0.0
      %535 = vmatpush.msra.mxu0 0.0
      %536 = vmatpush.msra.mxu0 0.0
      %537 = vmatpush.msra.mxu0 0.0
      %538 = vmatpush.msra.mxu0 0.0
      %539 = vmatpush.msra.mxu0 0.0
      %540 = vmatpush.msra.mxu0 0.0
      %541 = vmatpush.msra.mxu0 %v524
      %542 = vmatmul.f32.gmra.mxu0 %v427
      %v543 = vpop.f32.mrf.mxu0
      %v544 = vadd.f32 0.0, %v543
      %545 = vmatmul.f32.gmra.mxu0 %v430
      %v546 = vpop.f32.mrf.mxu0
      %v547 = vadd.f32 0.0, %v546
      %548 = vmatmul.f32.gmra.mxu0 %v433
      %v549 = vpop.f32.mrf.mxu0
      %v550 = vadd.f32 0.0, %v549
      %551 = vmatmul.f32.gmra.mxu0 %v436
      %v552 = vpop.f32.mrf.mxu0
      %v553 = vadd.f32 0.0, %v552
      %554 = vmatmul.f32.gmra.mxu0 %v439
      %v555 = vpop.f32.mrf.mxu0
      %v556 = vadd.f32 0.0, %v555
      %557 = vmatmul.f32.gmra.mxu0 %v442
      %v558 = vpop.f32.mrf.mxu0
      %v559 = vadd.f32 0.0, %v558
      %560 = vmatmul.f32.gmra.mxu0 %v445
      %v561 = vpop.f32.mrf.mxu0
      %v562 = vadd.f32 0.0, %v561
      %563 = vmatmul.f32.gmra.mxu0 %v448
      %v564 = vpop.f32.mrf.mxu0
      %v565 = vadd.f32 0.0, %v564
      %566 = vmatmul.f32.gmra.mxu0 %v451
      %v567 = vpop.f32.mrf.mxu0
      %v568 = vadd.f32 0.0, %v567
      %569 = vmatmul.f32.gmra.mxu0 %v454
      %v570 = vpop.f32.mrf.mxu0
      %v571 = vadd.f32 0.0, %v570
      %572 = vmatmul.f32.gmra.mxu0 %v457
      %v573 = vpop.f32.mrf.mxu0
      %v574 = vadd.f32 0.0, %v573
      %575 = vmatmul.f32.gmra.mxu0 %v460
      %v576 = vpop.f32.mrf.mxu0
      %v577 = vadd.f32 0.0, %v576
      %578 = vmatmul.f32.gmra.mxu0 %v463
      %v579 = vpop.f32.mrf.mxu0
      %v580 = vadd.f32 0.0, %v579
      %581 = vmatmul.f32.gmra.mxu0 %v466
      %v582 = vpop.f32.mrf.mxu0
      %v583 = vadd.f32 0.0, %v582
      %584 = vmatmul.f32.gmra.mxu0 %v469
      %v585 = vpop.f32.mrf.mxu0
      %v586 = vadd.f32 0.0, %v585
      %587 = vmatmul.f32.gmra.mxu0 %v472
      %v588 = vpop.f32.mrf.mxu0
      %v589 = vadd.f32 0.0, %v588
      %590 = vmatmul.f32.gmra.mxu0 %v475
      %v591 = vpop.f32.mrf.mxu0
      %v592 = vadd.f32 0.0, %v591
      %593 = vmatmul.f32.gmra.mxu0 %v478
      %v594 = vpop.f32.mrf.mxu0
      %v595 = vadd.f32 0.0, %v594
      %596 = vmatmul.f32.gmra.mxu0 %v481
      %v597 = vpop.f32.mrf.mxu0
      %v598 = vadd.f32 0.0, %v597
      %599 = vmatmul.f32.gmra.mxu0 %v484
      %v600 = vpop.f32.mrf.mxu0
      %v601 = vadd.f32 0.0, %v600
      %602 = vmatmul.f32.gmra.mxu0 %v487
      %v603 = vpop.f32.mrf.mxu0
      %v604 = vadd.f32 0.0, %v603
      %605 = vmatmul.f32.gmra.mxu0 %v490
      %v606 = vpop.f32.mrf.mxu0
      %v607 = vadd.f32 0.0, %v606
      %608 = vmatmul.f32.gmra.mxu0 %v493
      %v609 = vpop.f32.mrf.mxu0
      %v610 = vadd.f32 0.0, %v609
      %611 = vmatmul.f32.gmra.mxu0 %v496
      %v612 = vpop.f32.mrf.mxu0
      %v613 = vadd.f32 0.0, %v612
      %614 = vmatmul.f32.gmra.mxu0 %v499
      %v615 = vpop.f32.mrf.mxu0
      %v616 = vadd.f32 0.0, %v615
      %617 = vmatmul.f32.gmra.mxu0 %v502
      %v618 = vpop.f32.mrf.mxu0
      %v619 = vadd.f32 0.0, %v618
      %620 = vmatmul.f32.gmra.mxu0 %v505
      %v621 = vpop.f32.mrf.mxu0
      %v622 = vadd.f32 0.0, %v621
      %623 = vmatmul.f32.gmra.mxu0 %v508
      %v624 = vpop.f32.mrf.mxu0
      %v625 = vadd.f32 0.0, %v624
      %626 = vmatmul.f32.gmra.mxu0 %v511
      %v627 = vpop.f32.mrf.mxu0
      %v628 = vadd.f32 0.0, %v627
      %629 = vmatmul.f32.gmra.mxu0 %v514
      %v630 = vpop.f32.mrf.mxu0
      %v631 = vadd.f32 0.0, %v630
      %632 = vmatmul.f32.gmra.mxu0 %v517
      %v633 = vpop.f32.mrf.mxu0
      %v634 = vadd.f32 0.0, %v633
      %635 = vmatmul.f32.gmra.mxu0 %v520
      %v636 = vpop.f32.mrf.mxu0
      %v637 = vadd.f32 0.0, %v636
      %638 = vdwg.mxu0
      %v640 = vsel %vm425, %v358, 0
      %v643 = vsel %vm425, %v359, 0
      %v646 = vsel %vm425, %v360, 0
      %v649 = vsel %vm425, %v361, 0
      %v652 = vsel %vm425, %v362, 0
      %v655 = vsel %vm425, %v363, 0
      %v658 = vsel %vm425, %v364, 0
      %v661 = vsel %vm425, %v365, 0
      %v664 = vsel %vm425, %v366, 0
      %v667 = vsel %vm425, %v367, 0
      %v670 = vsel %vm425, %v368, 0
      %v673 = vsel %vm425, %v369, 0
      %v676 = vsel %vm425, %v370, 0
      %v679 = vsel %vm425, %v371, 0
      %v682 = vsel %vm425, %v372, 0
      %v685 = vsel %vm425, %v373, 0
      %v688 = vsel %vm425, %v374, 0
      %v691 = vsel %vm425, %v375, 0
      %v694 = vsel %vm425, %v376, 0
      %v697 = vsel %vm425, %v377, 0
      %v700 = vsel %vm425, %v378, 0
      %v703 = vsel %vm425, %v379, 0
      %v706 = vsel %vm425, %v380, 0
      %v709 = vsel %vm425, %v381, 0
      %v712 = vsel %vm425, %v382, 0
      %v715 = vsel %vm425, %v383, 0
      %v718 = vsel %vm425, %v384, 0
      %v721 = vsel %vm425, %v385, 0
      %v724 = vsel %vm425, %v386, 0
      %v727 = vsel %vm425, %v387, 0
      %v730 = vsel %vm425, %v388, 0
      %v733 = vsel %vm425, %v389, 0
      %v736 = vsel %vm522, %v390, 0
      %738 = vmatpush.msra.mxu0 0.0
      %739 = vmatpush.msra.mxu0 0.0
      %740 = vmatpush.msra.mxu0 0.0
      %741 = vmatpush.msra.mxu0 0.0
      %742 = vmatpush.msra.mxu0 0.0
      %743 = vmatpush.msra.mxu0 0.0
      %744 = vmatpush.msra.mxu0 0.0
      %745 = vmatpush.msra.mxu0 0.0
      %746 = vmatpush.msra.mxu0 0.0
      %747 = vmatpush.msra.mxu0 0.0
      %748 = vmatpush.msra.mxu0 0.0
      %749 = vmatpush.msra.mxu0 0.0
      %750 = vmatpush.msra.mxu0 0.0
      %751 = vmatpush.msra.mxu0 0.0
      %752 = vmatpush.msra.mxu0 0.0
      %753 = vmatpush.msra.mxu0 %v736
      %754 = vmatmul.f32.gmra.mxu0 %v640
      %v755 = vpop.f32.mrf.mxu0
      %v756 = vadd.f32 %v544, %v755
      %757 = vmatmul.f32.gmra.mxu0 %v643
      %v758 = vpop.f32.mrf.mxu0
      %v759 = vadd.f32 %v547, %v758
      %760 = vmatmul.f32.gmra.mxu0 %v646
      %v761 = vpop.f32.mrf.mxu0
      %v762 = vadd.f32 %v550, %v761
      %763 = vmatmul.f32.gmra.mxu0 %v649
      %v764 = vpop.f32.mrf.mxu0
      %v765 = vadd.f32 %v553, %v764
      %766 = vmatmul.f32.gmra.mxu0 %v652
      %v767 = vpop.f32.mrf.mxu0
      %v768 = vadd.f32 %v556, %v767
      %769 = vmatmul.f32.gmra.mxu0 %v655
      %v770 = vpop.f32.mrf.mxu0
      %v771 = vadd.f32 %v559, %v770
      %772 = vmatmul.f32.gmra.mxu0 %v658
      %v773 = vpop.f32.mrf.mxu0
      %v774 = vadd.f32 %v562, %v773
      %775 = vmatmul.f32.gmra.mxu0 %v661
      %v776 = vpop.f32.mrf.mxu0
      %v777 = vadd.f32 %v565, %v776
      %778 = vmatmul.f32.gmra.mxu0 %v664
      %v779 = vpop.f32.mrf.mxu0
      %v780 = vadd.f32 %v568, %v779
      %781 = vmatmul.f32.gmra.mxu0 %v667
      %v782 = vpop.f32.mrf.mxu0
      %v783 = vadd.f32 %v571, %v782
      %784 = vmatmul.f32.gmra.mxu0 %v670
      %v785 = vpop.f32.mrf.mxu0
      %v786 = vadd.f32 %v574, %v785
      %787 = vmatmul.f32.gmra.mxu0 %v673
      %v788 = vpop.f32.mrf.mxu0
      %v789 = vadd.f32 %v577, %v788
      %790 = vmatmul.f32.gmra.mxu0 %v676
      %v791 = vpop.f32.mrf.mxu0
      %v792 = vadd.f32 %v580, %v791
      %793 = vmatmul.f32.gmra.mxu0 %v679
      %v794 = vpop.f32.mrf.mxu0
      %v795 = vadd.f32 %v583, %v794
      %796 = vmatmul.f32.gmra.mxu0 %v682
      %v797 = vpop.f32.mrf.mxu0
      %v798 = vadd.f32 %v586, %v797
      %799 = vmatmul.f32.gmra.mxu0 %v685
      %v800 = vpop.f32.mrf.mxu0
      %v801 = vadd.f32 %v589, %v800
      %802 = vmatmul.f32.gmra.mxu0 %v688
      %v803 = vpop.f32.mrf.mxu0
      %v804 = vadd.f32 %v592, %v803
      %805 = vmatmul.f32.gmra.mxu0 %v691
      %v806 = vpop.f32.mrf.mxu0
      %v807 = vadd.f32 %v595, %v806
      %808 = vmatmul.f32.gmra.mxu0 %v694
      %v809 = vpop.f32.mrf.mxu0
      %v810 = vadd.f32 %v598, %v809
      %811 = vmatmul.f32.gmra.mxu0 %v697
      %v812 = vpop.f32.mrf.mxu0
      %v813 = vadd.f32 %v601, %v812
      %814 = vmatmul.f32.gmra.mxu0 %v700
      %v815 = vpop.f32.mrf.mxu0
      %v816 = vadd.f32 %v604, %v815
      %817 = vmatmul.f32.gmra.mxu0 %v703
      %v818 = vpop.f32.mrf.mxu0
      %v819 = vadd.f32 %v607, %v818
      %820 = vmatmul.f32.gmra.mxu0 %v706
      %v821 = vpop.f32.mrf.mxu0
      %v822 = vadd.f32 %v610, %v821
      %823 = vmatmul.f32.gmra.mxu0 %v709
      %v824 = vpop.f32.mrf.mxu0
      %v825 = vadd.f32 %v613, %v824
      %826 = vmatmul.f32.gmra.mxu0 %v712
      %v827 = vpop.f32.mrf.mxu0
      %v828 = vadd.f32 %v616, %v827
      %829 = vmatmul.f32.gmra.mxu0 %v715
      %v830 = vpop.f32.mrf.mxu0
      %v831 = vadd.f32 %v619, %v830
      %832 = vmatmul.f32.gmra.mxu0 %v718
      %v833 = vpop.f32.mrf.mxu0
      %v834 = vadd.f32 %v622, %v833
      %835 = vmatmul.f32.gmra.mxu0 %v721
      %v836 = vpop.f32.mrf.mxu0
      %v837 = vadd.f32 %v625, %v836
      %838 = vmatmul.f32.gmra.mxu0 %v724
      %v839 = vpop.f32.mrf.mxu0
      %v840 = vadd.f32 %v628, %v839
      %841 = vmatmul.f32.gmra.mxu0 %v727
      %v842 = vpop.f32.mrf.mxu0
      %v843 = vadd.f32 %v631, %v842
      %844 = vmatmul.f32.gmra.mxu0 %v730
      %v845 = vpop.f32.mrf.mxu0
      %v846 = vadd.f32 %v634, %v845
      %847 = vmatmul.f32.gmra.mxu0 %v733
      %v848 = vpop.f32.mrf.mxu0
      %v849 = vadd.f32 %v637, %v848
      %850 = vdwg.mxu0
      %v851 = vld [vmem:[%s342 + $0x2] sm:$0xff]
      %v852 = vld [vmem:[%s342 + $0xa] sm:$0xff]
      %v853 = vld [vmem:[%s342 + $0x1a] sm:$0xff]
      %v854 = vld [vmem:[%s342 + $0x22] sm:$0xff]
      %v855 = vld [vmem:[%s342 + $0x32] sm:$0xff]
      %v856 = vld [vmem:[%s342 + $0x3a] sm:$0xff]
      %v857 = vld [vmem:[%s342 + $0x4a] sm:$0xff]
      %v858 = vld [vmem:[%s342 + $0x52] sm:$0xff]
      %v859 = vld [vmem:[%s342 + $0x62] sm:$0xff]
      %v860 = vld [vmem:[%s342 + $0x6a] sm:$0xff]
      %v861 = vld [vmem:[%s342 + $0x7a] sm:$0xff]
      %v862 = vld [vmem:[%s342 + $0x82] sm:$0xff]
      %v863 = vld [vmem:[%s342 + $0x92] sm:$0xff]
      %v864 = vld [vmem:[%s342 + $0x9a] sm:$0xff]
      %v865 = vld [vmem:[%s342 + $0xaa] sm:$0xff]
      %v866 = vld [vmem:[%s342 + $0xb2] sm:$0xff]
      %v867 = vld [vmem:[%s342 + $0xc2] sm:$0xff]
      %v868 = vld [vmem:[%s342 + $0xca] sm:$0xff]
      %v869 = vld [vmem:[%s342 + $0xda] sm:$0xff]
      %v870 = vld [vmem:[%s342 + $0xe2] sm:$0xff]
      %v871 = vld [vmem:[%s342 + $0xf2] sm:$0xff]
      %v872 = vld [vmem:[%s342 + $0xfa] sm:$0xff]
      %v873 = vld [vmem:[%s342 + $0x10a] sm:$0xff]
      %v874 = vld [vmem:[%s342 + $0x112] sm:$0xff]
      %v875 = vld [vmem:[%s342 + $0x122] sm:$0xff]
      %v876 = vld [vmem:[%s342 + $0x12a] sm:$0xff]
      %v877 = vld [vmem:[%s342 + $0x13a] sm:$0xff]
      %v878 = vld [vmem:[%s342 + $0x142] sm:$0xff]
      %v879 = vld [vmem:[%s342 + $0x152] sm:$0xff]
      %v880 = vld [vmem:[%s342 + $0x15a] sm:$0xff]
      %v881 = vld [vmem:[%s342 + $0x16a] sm:$0xff]
      %v882 = vld [vmem:[%s342 + $0x172] sm:$0xff]
      %s883 = scalar_lea.vmem %s1, 8
      %v884 = vld [vmem:[%s883] sm:$0xf]
      %v886 = vsel %vm425, %v851, 0
      %v889 = vsel %vm425, %v852, 0
      %v892 = vsel %vm425, %v853, 0
      %v895 = vsel %vm425, %v854, 0
      %v898 = vsel %vm425, %v855, 0
      %v901 = vsel %vm425, %v856, 0
      %v904 = vsel %vm425, %v857, 0
      %v907 = vsel %vm425, %v858, 0
      %v910 = vsel %vm425, %v859, 0
      %v913 = vsel %vm425, %v860, 0
      %v916 = vsel %vm425, %v861, 0
      %v919 = vsel %vm425, %v862, 0
      %v922 = vsel %vm425, %v863, 0
      %v925 = vsel %vm425, %v864, 0
      %v928 = vsel %vm425, %v865, 0
      %v931 = vsel %vm425, %v866, 0
      %v934 = vsel %vm425, %v867, 0
      %v937 = vsel %vm425, %v868, 0
      %v940 = vsel %vm425, %v869, 0
      %v943 = vsel %vm425, %v870, 0
      %v946 = vsel %vm425, %v871, 0
      %v949 = vsel %vm425, %v872, 0
      %v952 = vsel %vm425, %v873, 0
      %v955 = vsel %vm425, %v874, 0
      %v958 = vsel %vm425, %v875, 0
      %v961 = vsel %vm425, %v876, 0
      %v964 = vsel %vm425, %v877, 0
      %v967 = vsel %vm425, %v878, 0
      %v970 = vsel %vm425, %v879, 0
      %v973 = vsel %vm425, %v880, 0
      %v976 = vsel %vm425, %v881, 0
      %v979 = vsel %vm425, %v882, 0
      %v982 = vsel %vm522, %v884, 0
      %984 = vmatpush.msra.mxu0 0.0
      %985 = vmatpush.msra.mxu0 0.0
      %986 = vmatpush.msra.mxu0 0.0
      %987 = vmatpush.msra.mxu0 0.0
      %988 = vmatpush.msra.mxu0 0.0
      %989 = vmatpush.msra.mxu0 0.0
      %990 = vmatpush.msra.mxu0 0.0
      %991 = vmatpush.msra.mxu0 0.0
      %992 = vmatpush.msra.mxu0 0.0
      %993 = vmatpush.msra.mxu0 0.0
      %994 = vmatpush.msra.mxu0 0.0
      %995 = vmatpush.msra.mxu0 0.0
      %996 = vmatpush.msra.mxu0 0.0
      %997 = vmatpush.msra.mxu0 0.0
      %998 = vmatpush.msra.mxu0 0.0
      %999 = vmatpush.msra.mxu0 %v982
      %1000 = vmatmul.f32.gmra.mxu0 %v886
      %v1001 = vpop.f32.mrf.mxu0
      %v1002 = vadd.f32 0.0, %v1001
      %1003 = vmatmul.f32.gmra.mxu0 %v889
      %v1004 = vpop.f32.mrf.mxu0
      %v1005 = vadd.f32 0.0, %v1004
      %1006 = vmatmul.f32.gmra.mxu0 %v892
      %v1007 = vpop.f32.mrf.mxu0
      %v1008 = vadd.f32 0.0, %v1007
      %1009 = vmatmul.f32.gmra.mxu0 %v895
      %v1010 = vpop.f32.mrf.mxu0
      %v1011 = vadd.f32 0.0, %v1010
      %1012 = vmatmul.f32.gmra.mxu0 %v898
      %v1013 = vpop.f32.mrf.mxu0
      %v1014 = vadd.f32 0.0, %v1013
      %1015 = vmatmul.f32.gmra.mxu0 %v901
      %v1016 = vpop.f32.mrf.mxu0
      %v1017 = vadd.f32 0.0, %v1016
      %1018 = vmatmul.f32.gmra.mxu0 %v904
      %v1019 = vpop.f32.mrf.mxu0
      %v1020 = vadd.f32 0.0, %v1019
      %1021 = vmatmul.f32.gmra.mxu0 %v907
      %v1022 = vpop.f32.mrf.mxu0
      %v1023 = vadd.f32 0.0, %v1022
      %1024 = vmatmul.f32.gmra.mxu0 %v910
      %v1025 = vpop.f32.mrf.mxu0
      %v1026 = vadd.f32 0.0, %v1025
      %1027 = vmatmul.f32.gmra.mxu0 %v913
      %v1028 = vpop.f32.mrf.mxu0
      %v1029 = vadd.f32 0.0, %v1028
      %1030 = vmatmul.f32.gmra.mxu0 %v916
      %v1031 = vpop.f32.mrf.mxu0
      %v1032 = vadd.f32 0.0, %v1031
      %1033 = vmatmul.f32.gmra.mxu0 %v919
      %v1034 = vpop.f32.mrf.mxu0
      %v1035 = vadd.f32 0.0, %v1034
      %1036 = vmatmul.f32.gmra.mxu0 %v922
      %v1037 = vpop.f32.mrf.mxu0
      %v1038 = vadd.f32 0.0, %v1037
      %1039 = vmatmul.f32.gmra.mxu0 %v925
      %v1040 = vpop.f32.mrf.mxu0
      %v1041 = vadd.f32 0.0, %v1040
      %1042 = vmatmul.f32.gmra.mxu0 %v928
      %v1043 = vpop.f32.mrf.mxu0
      %v1044 = vadd.f32 0.0, %v1043
      %1045 = vmatmul.f32.gmra.mxu0 %v931
      %v1046 = vpop.f32.mrf.mxu0
      %v1047 = vadd.f32 0.0, %v1046
      %1048 = vmatmul.f32.gmra.mxu0 %v934
      %v1049 = vpop.f32.mrf.mxu0
      %v1050 = vadd.f32 0.0, %v1049
      %1051 = vmatmul.f32.gmra.mxu0 %v937
      %v1052 = vpop.f32.mrf.mxu0
      %v1053 = vadd.f32 0.0, %v1052
      %1054 = vmatmul.f32.gmra.mxu0 %v940
      %v1055 = vpop.f32.mrf.mxu0
      %v1056 = vadd.f32 0.0, %v1055
      %1057 = vmatmul.f32.gmra.mxu0 %v943
      %v1058 = vpop.f32.mrf.mxu0
      %v1059 = vadd.f32 0.0, %v1058
      %1060 = vmatmul.f32.gmra.mxu0 %v946
      %v1061 = vpop.f32.mrf.mxu0
      %v1062 = vadd.f32 0.0, %v1061
      %1063 = vmatmul.f32.gmra.mxu0 %v949
      %v1064 = vpop.f32.mrf.mxu0
      %v1065 = vadd.f32 0.0, %v1064
      %1066 = vmatmul.f32.gmra.mxu0 %v952
      %v1067 = vpop.f32.mrf.mxu0
      %v1068 = vadd.f32 0.0, %v1067
      %1069 = vmatmul.f32.gmra.mxu0 %v955
      %v1070 = vpop.f32.mrf.mxu0
      %v1071 = vadd.f32 0.0, %v1070
      %1072 = vmatmul.f32.gmra.mxu0 %v958
      %v1073 = vpop.f32.mrf.mxu0
      %v1074 = vadd.f32 0.0, %v1073
      %1075 = vmatmul.f32.gmra.mxu0 %v961
      %v1076 = vpop.f32.mrf.mxu0
      %v1077 = vadd.f32 0.0, %v1076
      %1078 = vmatmul.f32.gmra.mxu0 %v964
      %v1079 = vpop.f32.mrf.mxu0
      %v1080 = vadd.f32 0.0, %v1079
      %1081 = vmatmul.f32.gmra.mxu0 %v967
      %v1082 = vpop.f32.mrf.mxu0
      %v1083 = vadd.f32 0.0, %v1082
      %1084 = vmatmul.f32.gmra.mxu0 %v970
      %v1085 = vpop.f32.mrf.mxu0
      %v1086 = vadd.f32 0.0, %v1085
      %1087 = vmatmul.f32.gmra.mxu0 %v973
      %v1088 = vpop.f32.mrf.mxu0
      %v1089 = vadd.f32 0.0, %v1088
      %1090 = vmatmul.f32.gmra.mxu0 %v976
      %v1091 = vpop.f32.mrf.mxu0
      %v1092 = vadd.f32 0.0, %v1091
      %1093 = vmatmul.f32.gmra.mxu0 %v979
      %v1094 = vpop.f32.mrf.mxu0
      %v1095 = vadd.f32 0.0, %v1094
      %1096 = vdwg.mxu0
      %v1097 = vadd.f32 %v756, %v1002
      %v1098 = vadd.f32 %v759, %v1005
      %v1099 = vadd.f32 %v762, %v1008
      %v1100 = vadd.f32 %v765, %v1011
      %v1101 = vadd.f32 %v768, %v1014
      %v1102 = vadd.f32 %v771, %v1017
      %v1103 = vadd.f32 %v774, %v1020
      %v1104 = vadd.f32 %v777, %v1023
      %v1105 = vadd.f32 %v780, %v1026
      %v1106 = vadd.f32 %v783, %v1029
      %v1107 = vadd.f32 %v786, %v1032
      %v1108 = vadd.f32 %v789, %v1035
      %v1109 = vadd.f32 %v792, %v1038
      %v1110 = vadd.f32 %v795, %v1041
      %v1111 = vadd.f32 %v798, %v1044
      %v1112 = vadd.f32 %v801, %v1047
      %v1113 = vadd.f32 %v804, %v1050
      %v1114 = vadd.f32 %v807, %v1053
      %v1115 = vadd.f32 %v810, %v1056
      %v1116 = vadd.f32 %v813, %v1059
      %v1117 = vadd.f32 %v816, %v1062
      %v1118 = vadd.f32 %v819, %v1065
      %v1119 = vadd.f32 %v822, %v1068
      %v1120 = vadd.f32 %v825, %v1071
      %v1121 = vadd.f32 %v828, %v1074
      %v1122 = vadd.f32 %v831, %v1077
      %v1123 = vadd.f32 %v834, %v1080
      %v1124 = vadd.f32 %v837, %v1083
      %v1125 = vadd.f32 %v840, %v1086
      %v1126 = vadd.f32 %v843, %v1089
      %v1127 = vadd.f32 %v846, %v1092
      %v1128 = vadd.f32 %v849, %v1095
      %s1129 = scalar_lea.vmem %s342, 24
      %v1130 = vld [vmem:[%s1129] sm:$0xff]
      %v1131 = vld [vmem:[%s1129 + $0x8] sm:$0xff]
      %v1132 = vld [vmem:[%s1129 + $0x18] sm:$0xff]
      %v1133 = vld [vmem:[%s1129 + $0x20] sm:$0xff]
      %v1134 = vld [vmem:[%s1129 + $0x30] sm:$0xff]
      %v1135 = vld [vmem:[%s1129 + $0x38] sm:$0xff]
      %v1136 = vld [vmem:[%s1129 + $0x48] sm:$0xff]
      %v1137 = vld [vmem:[%s1129 + $0x50] sm:$0xff]
      %v1138 = vld [vmem:[%s1129 + $0x60] sm:$0xff]
      %v1139 = vld [vmem:[%s1129 + $0x68] sm:$0xff]
      %v1140 = vld [vmem:[%s1129 + $0x78] sm:$0xff]
      %v1141 = vld [vmem:[%s1129 + $0x80] sm:$0xff]
      %v1142 = vld [vmem:[%s1129 + $0x90] sm:$0xff]
      %v1143 = vld [vmem:[%s1129 + $0x98] sm:$0xff]
      %v1144 = vld [vmem:[%s1129 + $0xa8] sm:$0xff]
      %v1145 = vld [vmem:[%s1129 + $0xb0] sm:$0xff]
      %v1146 = vld [vmem:[%s1129 + $0xc0] sm:$0xff]
      %v1147 = vld [vmem:[%s1129 + $0xc8] sm:$0xff]
      %v1148 = vld [vmem:[%s1129 + $0xd8] sm:$0xff]
      %v1149 = vld [vmem:[%s1129 + $0xe0] sm:$0xff]
      %v1150 = vld [vmem:[%s1129 + $0xf0] sm:$0xff]
      %v1151 = vld [vmem:[%s1129 + $0xf8] sm:$0xff]
      %v1152 = vld [vmem:[%s1129 + $0x108] sm:$0xff]
      %v1153 = vld [vmem:[%s1129 + $0x110] sm:$0xff]
      %v1154 = vld [vmem:[%s1129 + $0x120] sm:$0xff]
      %v1155 = vld [vmem:[%s1129 + $0x128] sm:$0xff]
      %v1156 = vld [vmem:[%s1129 + $0x138] sm:$0xff]
      %v1157 = vld [vmem:[%s1129 + $0x140] sm:$0xff]
      %v1158 = vld [vmem:[%s1129 + $0x150] sm:$0xff]
      %v1159 = vld [vmem:[%s1129 + $0x158] sm:$0xff]
      %v1160 = vld [vmem:[%s1129 + $0x168] sm:$0xff]
      %v1161 = vld [vmem:[%s1129 + $0x170] sm:$0xff]
      %s1162 = scalar_lea.vmem %s1, 12
      %v1163 = vld [vmem:[%s1162] sm:$0xf]
      %v1165 = vsel %vm425, %v1130, 0
      %v1168 = vsel %vm425, %v1131, 0
      %v1171 = vsel %vm425, %v1132, 0
      %v1174 = vsel %vm425, %v1133, 0
      %v1177 = vsel %vm425, %v1134, 0
      %v1180 = vsel %vm425, %v1135, 0
      %v1183 = vsel %vm425, %v1136, 0
      %v1186 = vsel %vm425, %v1137, 0
      %v1189 = vsel %vm425, %v1138, 0
      %v1192 = vsel %vm425, %v1139, 0
      %v1195 = vsel %vm425, %v1140, 0
      %v1198 = vsel %vm425, %v1141, 0
      %v1201 = vsel %vm425, %v1142, 0
      %v1204 = vsel %vm425, %v1143, 0
      %v1207 = vsel %vm425, %v1144, 0
      %v1210 = vsel %vm425, %v1145, 0
      %v1213 = vsel %vm425, %v1146, 0
      %v1216 = vsel %vm425, %v1147, 0
      %v1219 = vsel %vm425, %v1148, 0
      %v1222 = vsel %vm425, %v1149, 0
      %v1225 = vsel %vm425, %v1150, 0
      %v1228 = vsel %vm425, %v1151, 0
      %v1231 = vsel %vm425, %v1152, 0
      %v1234 = vsel %vm425, %v1153, 0
      %v1237 = vsel %vm425, %v1154, 0
      %v1240 = vsel %vm425, %v1155, 0
      %v1243 = vsel %vm425, %v1156, 0
      %v1246 = vsel %vm425, %v1157, 0
      %v1249 = vsel %vm425, %v1158, 0
      %v1252 = vsel %vm425, %v1159, 0
      %v1255 = vsel %vm425, %v1160, 0
      %v1258 = vsel %vm425, %v1161, 0
      %v1261 = vsel %vm522, %v1163, 0
      %1263 = vmatpush.msra.mxu0 0.0
      %1264 = vmatpush.msra.mxu0 0.0
      %1265 = vmatpush.msra.mxu0 0.0
      %1266 = vmatpush.msra.mxu0 0.0
      %1267 = vmatpush.msra.mxu0 0.0
      %1268 = vmatpush.msra.mxu0 0.0
      %1269 = vmatpush.msra.mxu0 0.0
      %1270 = vmatpush.msra.mxu0 0.0
      %1271 = vmatpush.msra.mxu0 0.0
      %1272 = vmatpush.msra.mxu0 0.0
      %1273 = vmatpush.msra.mxu0 0.0
      %1274 = vmatpush.msra.mxu0 0.0
      %1275 = vmatpush.msra.mxu0 0.0
      %1276 = vmatpush.msra.mxu0 0.0
      %1277 = vmatpush.msra.mxu0 0.0
      %1278 = vmatpush.msra.mxu0 %v1261
      %1279 = vmatmul.f32.gmra.mxu0 %v1165
      %v1280 = vpop.f32.mrf.mxu0
      %v1281 = vadd.f32 0.0, %v1280
      %1282 = vmatmul.f32.gmra.mxu0 %v1168
      %v1283 = vpop.f32.mrf.mxu0
      %v1284 = vadd.f32 0.0, %v1283
      %1285 = vmatmul.f32.gmra.mxu0 %v1171
      %v1286 = vpop.f32.mrf.mxu0
      %v1287 = vadd.f32 0.0, %v1286
      %1288 = vmatmul.f32.gmra.mxu0 %v1174
      %v1289 = vpop.f32.mrf.mxu0
      %v1290 = vadd.f32 0.0, %v1289
      %1291 = vmatmul.f32.gmra.mxu0 %v1177
      %v1292 = vpop.f32.mrf.mxu0
      %v1293 = vadd.f32 0.0, %v1292
      %1294 = vmatmul.f32.gmra.mxu0 %v1180
      %v1295 = vpop.f32.mrf.mxu0
      %v1296 = vadd.f32 0.0, %v1295
      %1297 = vmatmul.f32.gmra.mxu0 %v1183
      %v1298 = vpop.f32.mrf.mxu0
      %v1299 = vadd.f32 0.0, %v1298
      %1300 = vmatmul.f32.gmra.mxu0 %v1186
      %v1301 = vpop.f32.mrf.mxu0
      %v1302 = vadd.f32 0.0, %v1301
      %1303 = vmatmul.f32.gmra.mxu0 %v1189
      %v1304 = vpop.f32.mrf.mxu0
      %v1305 = vadd.f32 0.0, %v1304
      %1306 = vmatmul.f32.gmra.mxu0 %v1192
      %v1307 = vpop.f32.mrf.mxu0
      %v1308 = vadd.f32 0.0, %v1307
      %1309 = vmatmul.f32.gmra.mxu0 %v1195
      %v1310 = vpop.f32.mrf.mxu0
      %v1311 = vadd.f32 0.0, %v1310
      %1312 = vmatmul.f32.gmra.mxu0 %v1198
      %v1313 = vpop.f32.mrf.mxu0
      %v1314 = vadd.f32 0.0, %v1313
      %1315 = vmatmul.f32.gmra.mxu0 %v1201
      %v1316 = vpop.f32.mrf.mxu0
      %v1317 = vadd.f32 0.0, %v1316
      %1318 = vmatmul.f32.gmra.mxu0 %v1204
      %v1319 = vpop.f32.mrf.mxu0
      %v1320 = vadd.f32 0.0, %v1319
      %1321 = vmatmul.f32.gmra.mxu0 %v1207
      %v1322 = vpop.f32.mrf.mxu0
      %v1323 = vadd.f32 0.0, %v1322
      %1324 = vmatmul.f32.gmra.mxu0 %v1210
      %v1325 = vpop.f32.mrf.mxu0
      %v1326 = vadd.f32 0.0, %v1325
      %1327 = vmatmul.f32.gmra.mxu0 %v1213
      %v1328 = vpop.f32.mrf.mxu0
      %v1329 = vadd.f32 0.0, %v1328
      %1330 = vmatmul.f32.gmra.mxu0 %v1216
      %v1331 = vpop.f32.mrf.mxu0
      %v1332 = vadd.f32 0.0, %v1331
      %1333 = vmatmul.f32.gmra.mxu0 %v1219
      %v1334 = vpop.f32.mrf.mxu0
      %v1335 = vadd.f32 0.0, %v1334
      %1336 = vmatmul.f32.gmra.mxu0 %v1222
      %v1337 = vpop.f32.mrf.mxu0
      %v1338 = vadd.f32 0.0, %v1337
      %1339 = vmatmul.f32.gmra.mxu0 %v1225
      %v1340 = vpop.f32.mrf.mxu0
      %v1341 = vadd.f32 0.0, %v1340
      %1342 = vmatmul.f32.gmra.mxu0 %v1228
      %v1343 = vpop.f32.mrf.mxu0
      %v1344 = vadd.f32 0.0, %v1343
      %1345 = vmatmul.f32.gmra.mxu0 %v1231
      %v1346 = vpop.f32.mrf.mxu0
      %v1347 = vadd.f32 0.0, %v1346
      %1348 = vmatmul.f32.gmra.mxu0 %v1234
      %v1349 = vpop.f32.mrf.mxu0
      %v1350 = vadd.f32 0.0, %v1349
      %1351 = vmatmul.f32.gmra.mxu0 %v1237
      %v1352 = vpop.f32.mrf.mxu0
      %v1353 = vadd.f32 0.0, %v1352
      %1354 = vmatmul.f32.gmra.mxu0 %v1240
      %v1355 = vpop.f32.mrf.mxu0
      %v1356 = vadd.f32 0.0, %v1355
      %1357 = vmatmul.f32.gmra.mxu0 %v1243
      %v1358 = vpop.f32.mrf.mxu0
      %v1359 = vadd.f32 0.0, %v1358
      %1360 = vmatmul.f32.gmra.mxu0 %v1246
      %v1361 = vpop.f32.mrf.mxu0
      %v1362 = vadd.f32 0.0, %v1361
      %1363 = vmatmul.f32.gmra.mxu0 %v1249
      %v1364 = vpop.f32.mrf.mxu0
      %v1365 = vadd.f32 0.0, %v1364
      %1366 = vmatmul.f32.gmra.mxu0 %v1252
      %v1367 = vpop.f32.mrf.mxu0
      %v1368 = vadd.f32 0.0, %v1367
      %1369 = vmatmul.f32.gmra.mxu0 %v1255
      %v1370 = vpop.f32.mrf.mxu0
      %v1371 = vadd.f32 0.0, %v1370
      %1372 = vmatmul.f32.gmra.mxu0 %v1258
      %v1373 = vpop.f32.mrf.mxu0
      %v1374 = vadd.f32 0.0, %v1373
      %1375 = vdwg.mxu0
      %v1376 = vadd.f32 %v1097, %v1281
      %v1377 = vadd.f32 %v1098, %v1284
      %v1378 = vadd.f32 %v1099, %v1287
      %v1379 = vadd.f32 %v1100, %v1290
      %v1380 = vadd.f32 %v1101, %v1293
      %v1381 = vadd.f32 %v1102, %v1296
      %v1382 = vadd.f32 %v1103, %v1299
      %v1383 = vadd.f32 %v1104, %v1302
      %v1384 = vadd.f32 %v1105, %v1305
      %v1385 = vadd.f32 %v1106, %v1308
      %v1386 = vadd.f32 %v1107, %v1311
      %v1387 = vadd.f32 %v1108, %v1314
      %v1388 = vadd.f32 %v1109, %v1317
      %v1389 = vadd.f32 %v1110, %v1320
      %v1390 = vadd.f32 %v1111, %v1323
      %v1391 = vadd.f32 %v1112, %v1326
      %v1392 = vadd.f32 %v1113, %v1329
      %v1393 = vadd.f32 %v1114, %v1332
      %v1394 = vadd.f32 %v1115, %v1335
      %v1395 = vadd.f32 %v1116, %v1338
      %v1396 = vadd.f32 %v1117, %v1341
      %v1397 = vadd.f32 %v1118, %v1344
      %v1398 = vadd.f32 %v1119, %v1347
      %v1399 = vadd.f32 %v1120, %v1350
      %v1400 = vadd.f32 %v1121, %v1353
      %v1401 = vadd.f32 %v1122, %v1356
      %v1402 = vadd.f32 %v1123, %v1359
      %v1403 = vadd.f32 %v1124, %v1362
      %v1404 = vadd.f32 %v1125, %v1365
      %v1405 = vadd.f32 %v1126, %v1368
      %v1406 = vadd.f32 %v1127, %v1371
      %v1407 = vadd.f32 %v1128, %v1374
      %v1408 = vld [vmem:[%s1129 + $0x1] sm:$0xff]
      %v1409 = vld [vmem:[%s1129 + $0x9] sm:$0xff]
      %v1410 = vld [vmem:[%s1129 + $0x19] sm:$0xff]
      %v1411 = vld [vmem:[%s1129 + $0x21] sm:$0xff]
      %v1412 = vld [vmem:[%s1129 + $0x31] sm:$0xff]
      %v1413 = vld [vmem:[%s1129 + $0x39] sm:$0xff]
      %v1414 = vld [vmem:[%s1129 + $0x49] sm:$0xff]
      %v1415 = vld [vmem:[%s1129 + $0x51] sm:$0xff]
      %v1416 = vld [vmem:[%s1129 + $0x61] sm:$0xff]
      %v1417 = vld [vmem:[%s1129 + $0x69] sm:$0xff]
      %v1418 = vld [vmem:[%s1129 + $0x79] sm:$0xff]
      %v1419 = vld [vmem:[%s1129 + $0x81] sm:$0xff]
      %v1420 = vld [vmem:[%s1129 + $0x91] sm:$0xff]
      %v1421 = vld [vmem:[%s1129 + $0x99] sm:$0xff]
      %v1422 = vld [vmem:[%s1129 + $0xa9] sm:$0xff]
      %v1423 = vld [vmem:[%s1129 + $0xb1] sm:$0xff]
      %v1424 = vld [vmem:[%s1129 + $0xc1] sm:$0xff]
      %v1425 = vld [vmem:[%s1129 + $0xc9] sm:$0xff]
      %v1426 = vld [vmem:[%s1129 + $0xd9] sm:$0xff]
      %v1427 = vld [vmem:[%s1129 + $0xe1] sm:$0xff]
      %v1428 = vld [vmem:[%s1129 + $0xf1] sm:$0xff]
      %v1429 = vld [vmem:[%s1129 + $0xf9] sm:$0xff]
      %v1430 = vld [vmem:[%s1129 + $0x109] sm:$0xff]
      %v1431 = vld [vmem:[%s1129 + $0x111] sm:$0xff]
      %v1432 = vld [vmem:[%s1129 + $0x121] sm:$0xff]
      %v1433 = vld [vmem:[%s1129 + $0x129] sm:$0xff]
      %v1434 = vld [vmem:[%s1129 + $0x139] sm:$0xff]
      %v1435 = vld [vmem:[%s1129 + $0x141] sm:$0xff]
      %v1436 = vld [vmem:[%s1129 + $0x151] sm:$0xff]
      %v1437 = vld [vmem:[%s1129 + $0x159] sm:$0xff]
      %v1438 = vld [vmem:[%s1129 + $0x169] sm:$0xff]
      %v1439 = vld [vmem:[%s1129 + $0x171] sm:$0xff]
      %s1440 = scalar_lea.vmem %s1, 16
      %v1441 = vld [vmem:[%s1440] sm:$0xf]
      %v1443 = vsel %vm425, %v1408, 0
      %v1446 = vsel %vm425, %v1409, 0
      %v1449 = vsel %vm425, %v1410, 0
      %v1452 = vsel %vm425, %v1411, 0
      %v1455 = vsel %vm425, %v1412, 0
      %v1458 = vsel %vm425, %v1413, 0
      %v1461 = vsel %vm425, %v1414, 0
      %v1464 = vsel %vm425, %v1415, 0
      %v1467 = vsel %vm425, %v1416, 0
      %v1470 = vsel %vm425, %v1417, 0
      %v1473 = vsel %vm425, %v1418, 0
      %v1476 = vsel %vm425, %v1419, 0
      %v1479 = vsel %vm425, %v1420, 0
      %v1482 = vsel %vm425, %v1421, 0
      %v1485 = vsel %vm425, %v1422, 0
      %v1488 = vsel %vm425, %v1423, 0
      %v1491 = vsel %vm425, %v1424, 0
      %v1494 = vsel %vm425, %v1425, 0
      %v1497 = vsel %vm425, %v1426, 0
      %v1500 = vsel %vm425, %v1427, 0
      %v1503 = vsel %vm425, %v1428, 0
      %v1506 = vsel %vm425, %v1429, 0
      %v1509 = vsel %vm425, %v1430, 0
      %v1512 = vsel %vm425, %v1431, 0
      %v1515 = vsel %vm425, %v1432, 0
      %v1518 = vsel %vm425, %v1433, 0
      %v1521 = vsel %vm425, %v1434, 0
      %v1524 = vsel %vm425, %v1435, 0
      %v1527 = vsel %vm425, %v1436, 0
      %v1530 = vsel %vm425, %v1437, 0
      %v1533 = vsel %vm425, %v1438, 0
      %v1536 = vsel %vm425, %v1439, 0
      %v1539 = vsel %vm522, %v1441, 0
      %1541 = vmatpush.msra.mxu0 0.0
      %1542 = vmatpush.msra.mxu0 0.0
      %1543 = vmatpush.msra.mxu0 0.0
      %1544 = vmatpush.msra.mxu0 0.0
      %1545 = vmatpush.msra.mxu0 0.0
      %1546 = vmatpush.msra.mxu0 0.0
      %1547 = vmatpush.msra.mxu0 0.0
      %1548 = vmatpush.msra.mxu0 0.0
      %1549 = vmatpush.msra.mxu0 0.0
      %1550 = vmatpush.msra.mxu0 0.0
      %1551 = vmatpush.msra.mxu0 0.0
      %1552 = vmatpush.msra.mxu0 0.0
      %1553 = vmatpush.msra.mxu0 0.0
      %1554 = vmatpush.msra.mxu0 0.0
      %1555 = vmatpush.msra.mxu0 0.0
      %1556 = vmatpush.msra.mxu0 %v1539
      %1557 = vmatmul.f32.gmra.mxu0 %v1443
      %v1558 = vpop.f32.mrf.mxu0
      %v1559 = vadd.f32 0.0, %v1558
      %1560 = vmatmul.f32.gmra.mxu0 %v1446
      %v1561 = vpop.f32.mrf.mxu0
      %v1562 = vadd.f32 0.0, %v1561
      %1563 = vmatmul.f32.gmra.mxu0 %v1449
      %v1564 = vpop.f32.mrf.mxu0
      %v1565 = vadd.f32 0.0, %v1564
      %1566 = vmatmul.f32.gmra.mxu0 %v1452
      %v1567 = vpop.f32.mrf.mxu0
      %v1568 = vadd.f32 0.0, %v1567
      %1569 = vmatmul.f32.gmra.mxu0 %v1455
      %v1570 = vpop.f32.mrf.mxu0
      %v1571 = vadd.f32 0.0, %v1570
      %1572 = vmatmul.f32.gmra.mxu0 %v1458
      %v1573 = vpop.f32.mrf.mxu0
      %v1574 = vadd.f32 0.0, %v1573
      %1575 = vmatmul.f32.gmra.mxu0 %v1461
      %v1576 = vpop.f32.mrf.mxu0
      %v1577 = vadd.f32 0.0, %v1576
      %1578 = vmatmul.f32.gmra.mxu0 %v1464
      %v1579 = vpop.f32.mrf.mxu0
      %v1580 = vadd.f32 0.0, %v1579
      %1581 = vmatmul.f32.gmra.mxu0 %v1467
      %v1582 = vpop.f32.mrf.mxu0
      %v1583 = vadd.f32 0.0, %v1582
      %1584 = vmatmul.f32.gmra.mxu0 %v1470
      %v1585 = vpop.f32.mrf.mxu0
      %v1586 = vadd.f32 0.0, %v1585
      %1587 = vmatmul.f32.gmra.mxu0 %v1473
      %v1588 = vpop.f32.mrf.mxu0
      %v1589 = vadd.f32 0.0, %v1588
      %1590 = vmatmul.f32.gmra.mxu0 %v1476
      %v1591 = vpop.f32.mrf.mxu0
      %v1592 = vadd.f32 0.0, %v1591
      %1593 = vmatmul.f32.gmra.mxu0 %v1479
      %v1594 = vpop.f32.mrf.mxu0
      %v1595 = vadd.f32 0.0, %v1594
      %1596 = vmatmul.f32.gmra.mxu0 %v1482
      %v1597 = vpop.f32.mrf.mxu0
      %v1598 = vadd.f32 0.0, %v1597
      %1599 = vmatmul.f32.gmra.mxu0 %v1485
      %v1600 = vpop.f32.mrf.mxu0
      %v1601 = vadd.f32 0.0, %v1600
      %1602 = vmatmul.f32.gmra.mxu0 %v1488
      %v1603 = vpop.f32.mrf.mxu0
      %v1604 = vadd.f32 0.0, %v1603
      %1605 = vmatmul.f32.gmra.mxu0 %v1491
      %v1606 = vpop.f32.mrf.mxu0
      %v1607 = vadd.f32 0.0, %v1606
      %1608 = vmatmul.f32.gmra.mxu0 %v1494
      %v1609 = vpop.f32.mrf.mxu0
      %v1610 = vadd.f32 0.0, %v1609
      %1611 = vmatmul.f32.gmra.mxu0 %v1497
      %v1612 = vpop.f32.mrf.mxu0
      %v1613 = vadd.f32 0.0, %v1612
      %1614 = vmatmul.f32.gmra.mxu0 %v1500
      %v1615 = vpop.f32.mrf.mxu0
      %v1616 = vadd.f32 0.0, %v1615
      %1617 = vmatmul.f32.gmra.mxu0 %v1503
      %v1618 = vpop.f32.mrf.mxu0
      %v1619 = vadd.f32 0.0, %v1618
      %1620 = vmatmul.f32.gmra.mxu0 %v1506
      %v1621 = vpop.f32.mrf.mxu0
      %v1622 = vadd.f32 0.0, %v1621
      %1623 = vmatmul.f32.gmra.mxu0 %v1509
      %v1624 = vpop.f32.mrf.mxu0
      %v1625 = vadd.f32 0.0, %v1624
      %1626 = vmatmul.f32.gmra.mxu0 %v1512
      %v1627 = vpop.f32.mrf.mxu0
      %v1628 = vadd.f32 0.0, %v1627
      %1629 = vmatmul.f32.gmra.mxu0 %v1515
      %v1630 = vpop.f32.mrf.mxu0
      %v1631 = vadd.f32 0.0, %v1630
      %1632 = vmatmul.f32.gmra.mxu0 %v1518
      %v1633 = vpop.f32.mrf.mxu0
      %v1634 = vadd.f32 0.0, %v1633
      %1635 = vmatmul.f32.gmra.mxu0 %v1521
      %v1636 = vpop.f32.mrf.mxu0
      %v1637 = vadd.f32 0.0, %v1636
      %1638 = vmatmul.f32.gmra.mxu0 %v1524
      %v1639 = vpop.f32.mrf.mxu0
      %v1640 = vadd.f32 0.0, %v1639
      %1641 = vmatmul.f32.gmra.mxu0 %v1527
      %v1642 = vpop.f32.mrf.mxu0
      %v1643 = vadd.f32 0.0, %v1642
      %1644 = vmatmul.f32.gmra.mxu0 %v1530
      %v1645 = vpop.f32.mrf.mxu0
      %v1646 = vadd.f32 0.0, %v1645
      %1647 = vmatmul.f32.gmra.mxu0 %v1533
      %v1648 = vpop.f32.mrf.mxu0
      %v1649 = vadd.f32 0.0, %v1648
      %1650 = vmatmul.f32.gmra.mxu0 %v1536
      %v1651 = vpop.f32.mrf.mxu0
      %v1652 = vadd.f32 0.0, %v1651
      %1653 = vdwg.mxu0
      %v1654 = vadd.f32 %v1376, %v1559
      %v1655 = vadd.f32 %v1377, %v1562
      %v1656 = vadd.f32 %v1378, %v1565
      %v1657 = vadd.f32 %v1379, %v1568
      %v1658 = vadd.f32 %v1380, %v1571
      %v1659 = vadd.f32 %v1381, %v1574
      %v1660 = vadd.f32 %v1382, %v1577
      %v1661 = vadd.f32 %v1383, %v1580
      %v1662 = vadd.f32 %v1384, %v1583
      %v1663 = vadd.f32 %v1385, %v1586
      %v1664 = vadd.f32 %v1386, %v1589
      %v1665 = vadd.f32 %v1387, %v1592
      %v1666 = vadd.f32 %v1388, %v1595
      %v1667 = vadd.f32 %v1389, %v1598
      %v1668 = vadd.f32 %v1390, %v1601
      %v1669 = vadd.f32 %v1391, %v1604
      %v1670 = vadd.f32 %v1392, %v1607
      %v1671 = vadd.f32 %v1393, %v1610
      %v1672 = vadd.f32 %v1394, %v1613
      %v1673 = vadd.f32 %v1395, %v1616
      %v1674 = vadd.f32 %v1396, %v1619
      %v1675 = vadd.f32 %v1397, %v1622
      %v1676 = vadd.f32 %v1398, %v1625
      %v1677 = vadd.f32 %v1399, %v1628
      %v1678 = vadd.f32 %v1400, %v1631
      %v1679 = vadd.f32 %v1401, %v1634
      %v1680 = vadd.f32 %v1402, %v1637
      %v1681 = vadd.f32 %v1403, %v1640
      %v1682 = vadd.f32 %v1404, %v1643
      %v1683 = vadd.f32 %v1405, %v1646
      %v1684 = vadd.f32 %v1406, %v1649
      %v1685 = vadd.f32 %v1407, %v1652
      %v1686 = vld [vmem:[%s1129 + $0x2] sm:$0xff]
      %v1687 = vld [vmem:[%s1129 + $0xa] sm:$0xff]
      %v1688 = vld [vmem:[%s1129 + $0x1a] sm:$0xff]
      %v1689 = vld [vmem:[%s1129 + $0x22] sm:$0xff]
      %v1690 = vld [vmem:[%s1129 + $0x32] sm:$0xff]
      %v1691 = vld [vmem:[%s1129 + $0x3a] sm:$0xff]
      %v1692 = vld [vmem:[%s1129 + $0x4a] sm:$0xff]
      %v1693 = vld [vmem:[%s1129 + $0x52] sm:$0xff]
      %v1694 = vld [vmem:[%s1129 + $0x62] sm:$0xff]
      %v1695 = vld [vmem:[%s1129 + $0x6a] sm:$0xff]
      %v1696 = vld [vmem:[%s1129 + $0x7a] sm:$0xff]
      %v1697 = vld [vmem:[%s1129 + $0x82] sm:$0xff]
      %v1698 = vld [vmem:[%s1129 + $0x92] sm:$0xff]
      %v1699 = vld [vmem:[%s1129 + $0x9a] sm:$0xff]
      %v1700 = vld [vmem:[%s1129 + $0xaa] sm:$0xff]
      %v1701 = vld [vmem:[%s1129 + $0xb2] sm:$0xff]
      %v1702 = vld [vmem:[%s1129 + $0xc2] sm:$0xff]
      %v1703 = vld [vmem:[%s1129 + $0xca] sm:$0xff]
      %v1704 = vld [vmem:[%s1129 + $0xda] sm:$0xff]
      %v1705 = vld [vmem:[%s1129 + $0xe2] sm:$0xff]
      %v1706 = vld [vmem:[%s1129 + $0xf2] sm:$0xff]
      %v1707 = vld [vmem:[%s1129 + $0xfa] sm:$0xff]
      %v1708 = vld [vmem:[%s1129 + $0x10a] sm:$0xff]
      %v1709 = vld [vmem:[%s1129 + $0x112] sm:$0xff]
      %v1710 = vld [vmem:[%s1129 + $0x122] sm:$0xff]
      %v1711 = vld [vmem:[%s1129 + $0x12a] sm:$0xff]
      %v1712 = vld [vmem:[%s1129 + $0x13a] sm:$0xff]
      %v1713 = vld [vmem:[%s1129 + $0x142] sm:$0xff]
      %v1714 = vld [vmem:[%s1129 + $0x152] sm:$0xff]
      %v1715 = vld [vmem:[%s1129 + $0x15a] sm:$0xff]
      %v1716 = vld [vmem:[%s1129 + $0x16a] sm:$0xff]
      %v1717 = vld [vmem:[%s1129 + $0x172] sm:$0xff]
      %s1718 = scalar_lea.vmem %s1, 20
      %v1719 = vld [vmem:[%s1718] sm:$0xf]
      %v1721 = vsel %vm425, %v1686, 0
      %v1724 = vsel %vm425, %v1687, 0
      %v1727 = vsel %vm425, %v1688, 0
      %v1730 = vsel %vm425, %v1689, 0
      %v1733 = vsel %vm425, %v1690, 0
      %v1736 = vsel %vm425, %v1691, 0
      %v1739 = vsel %vm425, %v1692, 0
      %v1742 = vsel %vm425, %v1693, 0
      %v1745 = vsel %vm425, %v1694, 0
      %v1748 = vsel %vm425, %v1695, 0
      %v1751 = vsel %vm425, %v1696, 0
      %v1754 = vsel %vm425, %v1697, 0
      %v1757 = vsel %vm425, %v1698, 0
      %v1760 = vsel %vm425, %v1699, 0
      %v1763 = vsel %vm425, %v1700, 0
      %v1766 = vsel %vm425, %v1701, 0
      %v1769 = vsel %vm425, %v1702, 0
      %v1772 = vsel %vm425, %v1703, 0
      %v1775 = vsel %vm425, %v1704, 0
      %v1778 = vsel %vm425, %v1705, 0
      %v1781 = vsel %vm425, %v1706, 0
      %v1784 = vsel %vm425, %v1707, 0
      %v1787 = vsel %vm425, %v1708, 0
      %v1790 = vsel %vm425, %v1709, 0
      %v1793 = vsel %vm425, %v1710, 0
      %v1796 = vsel %vm425, %v1711, 0
      %v1799 = vsel %vm425, %v1712, 0
      %v1802 = vsel %vm425, %v1713, 0
      %v1805 = vsel %vm425, %v1714, 0
      %v1808 = vsel %vm425, %v1715, 0
      %v1811 = vsel %vm425, %v1716, 0
      %v1814 = vsel %vm425, %v1717, 0
      %v1817 = vsel %vm522, %v1719, 0
      %1819 = vmatpush.msra.mxu0 0.0
      %1820 = vmatpush.msra.mxu0 0.0
      %1821 = vmatpush.msra.mxu0 0.0
      %1822 = vmatpush.msra.mxu0 0.0
      %1823 = vmatpush.msra.mxu0 0.0
      %1824 = vmatpush.msra.mxu0 0.0
      %1825 = vmatpush.msra.mxu0 0.0
      %1826 = vmatpush.msra.mxu0 0.0
      %1827 = vmatpush.msra.mxu0 0.0
      %1828 = vmatpush.msra.mxu0 0.0
      %1829 = vmatpush.msra.mxu0 0.0
      %1830 = vmatpush.msra.mxu0 0.0
      %1831 = vmatpush.msra.mxu0 0.0
      %1832 = vmatpush.msra.mxu0 0.0
      %1833 = vmatpush.msra.mxu0 0.0
      %1834 = vmatpush.msra.mxu0 %v1817
      %1835 = vmatmul.f32.gmra.mxu0 %v1721
      %v1836 = vpop.f32.mrf.mxu0
      %v1837 = vadd.f32 0.0, %v1836
      %1838 = vmatmul.f32.gmra.mxu0 %v1724
      %v1839 = vpop.f32.mrf.mxu0
      %v1840 = vadd.f32 0.0, %v1839
      %1841 = vmatmul.f32.gmra.mxu0 %v1727
      %v1842 = vpop.f32.mrf.mxu0
      %v1843 = vadd.f32 0.0, %v1842
      %1844 = vmatmul.f32.gmra.mxu0 %v1730
      %v1845 = vpop.f32.mrf.mxu0
      %v1846 = vadd.f32 0.0, %v1845
      %1847 = vmatmul.f32.gmra.mxu0 %v1733
      %v1848 = vpop.f32.mrf.mxu0
      %v1849 = vadd.f32 0.0, %v1848
      %1850 = vmatmul.f32.gmra.mxu0 %v1736
      %v1851 = vpop.f32.mrf.mxu0
      %v1852 = vadd.f32 0.0, %v1851
      %1853 = vmatmul.f32.gmra.mxu0 %v1739
      %v1854 = vpop.f32.mrf.mxu0
      %v1855 = vadd.f32 0.0, %v1854
      %1856 = vmatmul.f32.gmra.mxu0 %v1742
      %v1857 = vpop.f32.mrf.mxu0
      %v1858 = vadd.f32 0.0, %v1857
      %1859 = vmatmul.f32.gmra.mxu0 %v1745
      %v1860 = vpop.f32.mrf.mxu0
      %v1861 = vadd.f32 0.0, %v1860
      %1862 = vmatmul.f32.gmra.mxu0 %v1748
      %v1863 = vpop.f32.mrf.mxu0
      %v1864 = vadd.f32 0.0, %v1863
      %1865 = vmatmul.f32.gmra.mxu0 %v1751
      %v1866 = vpop.f32.mrf.mxu0
      %v1867 = vadd.f32 0.0, %v1866
      %1868 = vmatmul.f32.gmra.mxu0 %v1754
      %v1869 = vpop.f32.mrf.mxu0
      %v1870 = vadd.f32 0.0, %v1869
      %1871 = vmatmul.f32.gmra.mxu0 %v1757
      %v1872 = vpop.f32.mrf.mxu0
      %v1873 = vadd.f32 0.0, %v1872
      %1874 = vmatmul.f32.gmra.mxu0 %v1760
      %v1875 = vpop.f32.mrf.mxu0
      %v1876 = vadd.f32 0.0, %v1875
      %1877 = vmatmul.f32.gmra.mxu0 %v1763
      %v1878 = vpop.f32.mrf.mxu0
      %v1879 = vadd.f32 0.0, %v1878
      %1880 = vmatmul.f32.gmra.mxu0 %v1766
      %v1881 = vpop.f32.mrf.mxu0
      %v1882 = vadd.f32 0.0, %v1881
      %1883 = vmatmul.f32.gmra.mxu0 %v1769
      %v1884 = vpop.f32.mrf.mxu0
      %v1885 = vadd.f32 0.0, %v1884
      %1886 = vmatmul.f32.gmra.mxu0 %v1772
      %v1887 = vpop.f32.mrf.mxu0
      %v1888 = vadd.f32 0.0, %v1887
      %1889 = vmatmul.f32.gmra.mxu0 %v1775
      %v1890 = vpop.f32.mrf.mxu0
      %v1891 = vadd.f32 0.0, %v1890
      %1892 = vmatmul.f32.gmra.mxu0 %v1778
      %v1893 = vpop.f32.mrf.mxu0
      %v1894 = vadd.f32 0.0, %v1893
      %1895 = vmatmul.f32.gmra.mxu0 %v1781
      %v1896 = vpop.f32.mrf.mxu0
      %v1897 = vadd.f32 0.0, %v1896
      %1898 = vmatmul.f32.gmra.mxu0 %v1784
      %v1899 = vpop.f32.mrf.mxu0
      %v1900 = vadd.f32 0.0, %v1899
      %1901 = vmatmul.f32.gmra.mxu0 %v1787
      %v1902 = vpop.f32.mrf.mxu0
      %v1903 = vadd.f32 0.0, %v1902
      %1904 = vmatmul.f32.gmra.mxu0 %v1790
      %v1905 = vpop.f32.mrf.mxu0
      %v1906 = vadd.f32 0.0, %v1905
      %1907 = vmatmul.f32.gmra.mxu0 %v1793
      %v1908 = vpop.f32.mrf.mxu0
      %v1909 = vadd.f32 0.0, %v1908
      %1910 = vmatmul.f32.gmra.mxu0 %v1796
      %v1911 = vpop.f32.mrf.mxu0
      %v1912 = vadd.f32 0.0, %v1911
      %1913 = vmatmul.f32.gmra.mxu0 %v1799
      %v1914 = vpop.f32.mrf.mxu0
      %v1915 = vadd.f32 0.0, %v1914
      %1916 = vmatmul.f32.gmra.mxu0 %v1802
      %v1917 = vpop.f32.mrf.mxu0
      %v1918 = vadd.f32 0.0, %v1917
      %1919 = vmatmul.f32.gmra.mxu0 %v1805
      %v1920 = vpop.f32.mrf.mxu0
      %v1921 = vadd.f32 0.0, %v1920
      %1922 = vmatmul.f32.gmra.mxu0 %v1808
      %v1923 = vpop.f32.mrf.mxu0
      %v1924 = vadd.f32 0.0, %v1923
      %1925 = vmatmul.f32.gmra.mxu0 %v1811
      %v1926 = vpop.f32.mrf.mxu0
      %v1927 = vadd.f32 0.0, %v1926
      %1928 = vmatmul.f32.gmra.mxu0 %v1814
      %v1929 = vpop.f32.mrf.mxu0
      %v1930 = vadd.f32 0.0, %v1929
      %1931 = vdwg.mxu0
      %v1932 = vadd.f32 %v1654, %v1837
      %v1933 = vadd.f32 %v1655, %v1840
      %v1934 = vadd.f32 %v1656, %v1843
      %v1935 = vadd.f32 %v1657, %v1846
      %v1936 = vadd.f32 %v1658, %v1849
      %v1937 = vadd.f32 %v1659, %v1852
      %v1938 = vadd.f32 %v1660, %v1855
      %v1939 = vadd.f32 %v1661, %v1858
      %v1940 = vadd.f32 %v1662, %v1861
      %v1941 = vadd.f32 %v1663, %v1864
      %v1942 = vadd.f32 %v1664, %v1867
      %v1943 = vadd.f32 %v1665, %v1870
      %v1944 = vadd.f32 %v1666, %v1873
      %v1945 = vadd.f32 %v1667, %v1876
      %v1946 = vadd.f32 %v1668, %v1879
      %v1947 = vadd.f32 %v1669, %v1882
      %v1948 = vadd.f32 %v1670, %v1885
      %v1949 = vadd.f32 %v1671, %v1888
      %v1950 = vadd.f32 %v1672, %v1891
      %v1951 = vadd.f32 %v1673, %v1894
      %v1952 = vadd.f32 %v1674, %v1897
      %v1953 = vadd.f32 %v1675, %v1900
      %v1954 = vadd.f32 %v1676, %v1903
      %v1955 = vadd.f32 %v1677, %v1906
      %v1956 = vadd.f32 %v1678, %v1909
      %v1957 = vadd.f32 %v1679, %v1912
      %v1958 = vadd.f32 %v1680, %v1915
      %v1959 = vadd.f32 %v1681, %v1918
      %v1960 = vadd.f32 %v1682, %v1921
      %v1961 = vadd.f32 %v1683, %v1924
      %v1962 = vadd.f32 %v1684, %v1927
      %v1963 = vadd.f32 %v1685, %v1930
      %s1964 = scalar_lea.vmem %s342, 48
      %v1965 = vld [vmem:[%s1964] sm:$0xff]
      %v1966 = vld [vmem:[%s1964 + $0x8] sm:$0xff]
      %v1967 = vld [vmem:[%s1964 + $0x18] sm:$0xff]
      %v1968 = vld [vmem:[%s1964 + $0x20] sm:$0xff]
      %v1969 = vld [vmem:[%s1964 + $0x30] sm:$0xff]
      %v1970 = vld [vmem:[%s1964 + $0x38] sm:$0xff]
      %v1971 = vld [vmem:[%s1964 + $0x48] sm:$0xff]
      %v1972 = vld [vmem:[%s1964 + $0x50] sm:$0xff]
      %v1973 = vld [vmem:[%s1964 + $0x60] sm:$0xff]
      %v1974 = vld [vmem:[%s1964 + $0x68] sm:$0xff]
      %v1975 = vld [vmem:[%s1964 + $0x78] sm:$0xff]
      %v1976 = vld [vmem:[%s1964 + $0x80] sm:$0xff]
      %v1977 = vld [vmem:[%s1964 + $0x90] sm:$0xff]
      %v1978 = vld [vmem:[%s1964 + $0x98] sm:$0xff]
      %v1979 = vld [vmem:[%s1964 + $0xa8] sm:$0xff]
      %v1980 = vld [vmem:[%s1964 + $0xb0] sm:$0xff]
      %v1981 = vld [vmem:[%s1964 + $0xc0] sm:$0xff]
      %v1982 = vld [vmem:[%s1964 + $0xc8] sm:$0xff]
      %v1983 = vld [vmem:[%s1964 + $0xd8] sm:$0xff]
      %v1984 = vld [vmem:[%s1964 + $0xe0] sm:$0xff]
      %v1985 = vld [vmem:[%s1964 + $0xf0] sm:$0xff]
      %v1986 = vld [vmem:[%s1964 + $0xf8] sm:$0xff]
      %v1987 = vld [vmem:[%s1964 + $0x108] sm:$0xff]
      %v1988 = vld [vmem:[%s1964 + $0x110] sm:$0xff]
      %v1989 = vld [vmem:[%s1964 + $0x120] sm:$0xff]
      %v1990 = vld [vmem:[%s1964 + $0x128] sm:$0xff]
      %v1991 = vld [vmem:[%s1964 + $0x138] sm:$0xff]
      %v1992 = vld [vmem:[%s1964 + $0x140] sm:$0xff]
      %v1993 = vld [vmem:[%s1964 + $0x150] sm:$0xff]
      %v1994 = vld [vmem:[%s1964 + $0x158] sm:$0xff]
      %v1995 = vld [vmem:[%s1964 + $0x168] sm:$0xff]
      %v1996 = vld [vmem:[%s1964 + $0x170] sm:$0xff]
      %s1997 = scalar_lea.vmem %s1, 24
      %v1998 = vld [vmem:[%s1997] sm:$0xf]
      %v2000 = vsel %vm425, %v1965, 0
      %v2003 = vsel %vm425, %v1966, 0
      %v2006 = vsel %vm425, %v1967, 0
      %v2009 = vsel %vm425, %v1968, 0
      %v2012 = vsel %vm425, %v1969, 0
      %v2015 = vsel %vm425, %v1970, 0
      %v2018 = vsel %vm425, %v1971, 0
      %v2021 = vsel %vm425, %v1972, 0
      %v2024 = vsel %vm425, %v1973, 0
      %v2027 = vsel %vm425, %v1974, 0
      %v2030 = vsel %vm425, %v1975, 0
      %v2033 = vsel %vm425, %v1976, 0
      %v2036 = vsel %vm425, %v1977, 0
      %v2039 = vsel %vm425, %v1978, 0
      %v2042 = vsel %vm425, %v1979, 0
      %v2045 = vsel %vm425, %v1980, 0
      %v2048 = vsel %vm425, %v1981, 0
      %v2051 = vsel %vm425, %v1982, 0
      %v2054 = vsel %vm425, %v1983, 0
      %v2057 = vsel %vm425, %v1984, 0
      %v2060 = vsel %vm425, %v1985, 0
      %v2063 = vsel %vm425, %v1986, 0
      %v2066 = vsel %vm425, %v1987, 0
      %v2069 = vsel %vm425, %v1988, 0
      %v2072 = vsel %vm425, %v1989, 0
      %v2075 = vsel %vm425, %v1990, 0
      %v2078 = vsel %vm425, %v1991, 0
      %v2081 = vsel %vm425, %v1992, 0
      %v2084 = vsel %vm425, %v1993, 0
      %v2087 = vsel %vm425, %v1994, 0
      %v2090 = vsel %vm425, %v1995, 0
      %v2093 = vsel %vm425, %v1996, 0
      %v2096 = vsel %vm522, %v1998, 0
      %2098 = vmatpush.msra.mxu0 0.0
      %2099 = vmatpush.msra.mxu0 0.0
      %2100 = vmatpush.msra.mxu0 0.0
      %2101 = vmatpush.msra.mxu0 0.0
      %2102 = vmatpush.msra.mxu0 0.0
      %2103 = vmatpush.msra.mxu0 0.0
      %2104 = vmatpush.msra.mxu0 0.0
      %2105 = vmatpush.msra.mxu0 0.0
      %2106 = vmatpush.msra.mxu0 0.0
      %2107 = vmatpush.msra.mxu0 0.0
      %2108 = vmatpush.msra.mxu0 0.0
      %2109 = vmatpush.msra.mxu0 0.0
      %2110 = vmatpush.msra.mxu0 0.0
      %2111 = vmatpush.msra.mxu0 0.0
      %2112 = vmatpush.msra.mxu0 0.0
      %2113 = vmatpush.msra.mxu0 %v2096
      %2114 = vmatmul.f32.gmra.mxu0 %v2000
      %v2115 = vpop.f32.mrf.mxu0
      %v2116 = vadd.f32 0.0, %v2115
      %2117 = vmatmul.f32.gmra.mxu0 %v2003
      %v2118 = vpop.f32.mrf.mxu0
      %v2119 = vadd.f32 0.0, %v2118
      %2120 = vmatmul.f32.gmra.mxu0 %v2006
      %v2121 = vpop.f32.mrf.mxu0
      %v2122 = vadd.f32 0.0, %v2121
      %2123 = vmatmul.f32.gmra.mxu0 %v2009
      %v2124 = vpop.f32.mrf.mxu0
      %v2125 = vadd.f32 0.0, %v2124
      %2126 = vmatmul.f32.gmra.mxu0 %v2012
      %v2127 = vpop.f32.mrf.mxu0
      %v2128 = vadd.f32 0.0, %v2127
      %2129 = vmatmul.f32.gmra.mxu0 %v2015
      %v2130 = vpop.f32.mrf.mxu0
      %v2131 = vadd.f32 0.0, %v2130
      %2132 = vmatmul.f32.gmra.mxu0 %v2018
      %v2133 = vpop.f32.mrf.mxu0
      %v2134 = vadd.f32 0.0, %v2133
      %2135 = vmatmul.f32.gmra.mxu0 %v2021
      %v2136 = vpop.f32.mrf.mxu0
      %v2137 = vadd.f32 0.0, %v2136
      %2138 = vmatmul.f32.gmra.mxu0 %v2024
      %v2139 = vpop.f32.mrf.mxu0
      %v2140 = vadd.f32 0.0, %v2139
      %2141 = vmatmul.f32.gmra.mxu0 %v2027
      %v2142 = vpop.f32.mrf.mxu0
      %v2143 = vadd.f32 0.0, %v2142
      %2144 = vmatmul.f32.gmra.mxu0 %v2030
      %v2145 = vpop.f32.mrf.mxu0
      %v2146 = vadd.f32 0.0, %v2145
      %2147 = vmatmul.f32.gmra.mxu0 %v2033
      %v2148 = vpop.f32.mrf.mxu0
      %v2149 = vadd.f32 0.0, %v2148
      %2150 = vmatmul.f32.gmra.mxu0 %v2036
      %v2151 = vpop.f32.mrf.mxu0
      %v2152 = vadd.f32 0.0, %v2151
      %2153 = vmatmul.f32.gmra.mxu0 %v2039
      %v2154 = vpop.f32.mrf.mxu0
      %v2155 = vadd.f32 0.0, %v2154
      %2156 = vmatmul.f32.gmra.mxu0 %v2042
      %v2157 = vpop.f32.mrf.mxu0
      %v2158 = vadd.f32 0.0, %v2157
      %2159 = vmatmul.f32.gmra.mxu0 %v2045
      %v2160 = vpop.f32.mrf.mxu0
      %v2161 = vadd.f32 0.0, %v2160
      %2162 = vmatmul.f32.gmra.mxu0 %v2048
      %v2163 = vpop.f32.mrf.mxu0
      %v2164 = vadd.f32 0.0, %v2163
      %2165 = vmatmul.f32.gmra.mxu0 %v2051
      %v2166 = vpop.f32.mrf.mxu0
      %v2167 = vadd.f32 0.0, %v2166
      %2168 = vmatmul.f32.gmra.mxu0 %v2054
      %v2169 = vpop.f32.mrf.mxu0
      %v2170 = vadd.f32 0.0, %v2169
      %2171 = vmatmul.f32.gmra.mxu0 %v2057
      %v2172 = vpop.f32.mrf.mxu0
      %v2173 = vadd.f32 0.0, %v2172
      %2174 = vmatmul.f32.gmra.mxu0 %v2060
      %v2175 = vpop.f32.mrf.mxu0
      %v2176 = vadd.f32 0.0, %v2175
      %2177 = vmatmul.f32.gmra.mxu0 %v2063
      %v2178 = vpop.f32.mrf.mxu0
      %v2179 = vadd.f32 0.0, %v2178
      %2180 = vmatmul.f32.gmra.mxu0 %v2066
      %v2181 = vpop.f32.mrf.mxu0
      %v2182 = vadd.f32 0.0, %v2181
      %2183 = vmatmul.f32.gmra.mxu0 %v2069
      %v2184 = vpop.f32.mrf.mxu0
      %v2185 = vadd.f32 0.0, %v2184
      %2186 = vmatmul.f32.gmra.mxu0 %v2072
      %v2187 = vpop.f32.mrf.mxu0
      %v2188 = vadd.f32 0.0, %v2187
      %2189 = vmatmul.f32.gmra.mxu0 %v2075
      %v2190 = vpop.f32.mrf.mxu0
      %v2191 = vadd.f32 0.0, %v2190
      %2192 = vmatmul.f32.gmra.mxu0 %v2078
      %v2193 = vpop.f32.mrf.mxu0
      %v2194 = vadd.f32 0.0, %v2193
      %2195 = vmatmul.f32.gmra.mxu0 %v2081
      %v2196 = vpop.f32.mrf.mxu0
      %v2197 = vadd.f32 0.0, %v2196
      %2198 = vmatmul.f32.gmra.mxu0 %v2084
      %v2199 = vpop.f32.mrf.mxu0
      %v2200 = vadd.f32 0.0, %v2199
      %2201 = vmatmul.f32.gmra.mxu0 %v2087
      %v2202 = vpop.f32.mrf.mxu0
      %v2203 = vadd.f32 0.0, %v2202
      %2204 = vmatmul.f32.gmra.mxu0 %v2090
      %v2205 = vpop.f32.mrf.mxu0
      %v2206 = vadd.f32 0.0, %v2205
      %2207 = vmatmul.f32.gmra.mxu0 %v2093
      %v2208 = vpop.f32.mrf.mxu0
      %v2209 = vadd.f32 0.0, %v2208
      %2210 = vdwg.mxu0
      %v2211 = vadd.f32 %v1932, %v2116
      %v2212 = vadd.f32 %v1933, %v2119
      %v2213 = vadd.f32 %v1934, %v2122
      %v2214 = vadd.f32 %v1935, %v2125
      %v2215 = vadd.f32 %v1936, %v2128
      %v2216 = vadd.f32 %v1937, %v2131
      %v2217 = vadd.f32 %v1938, %v2134
      %v2218 = vadd.f32 %v1939, %v2137
      %v2219 = vadd.f32 %v1940, %v2140
      %v2220 = vadd.f32 %v1941, %v2143
      %v2221 = vadd.f32 %v1942, %v2146
      %v2222 = vadd.f32 %v1943, %v2149
      %v2223 = vadd.f32 %v1944, %v2152
      %v2224 = vadd.f32 %v1945, %v2155
      %v2225 = vadd.f32 %v1946, %v2158
      %v2226 = vadd.f32 %v1947, %v2161
      %v2227 = vadd.f32 %v1948, %v2164
      %v2228 = vadd.f32 %v1949, %v2167
      %v2229 = vadd.f32 %v1950, %v2170
      %v2230 = vadd.f32 %v1951, %v2173
      %v2231 = vadd.f32 %v1952, %v2176
      %v2232 = vadd.f32 %v1953, %v2179
      %v2233 = vadd.f32 %v1954, %v2182
      %v2234 = vadd.f32 %v1955, %v2185
      %v2235 = vadd.f32 %v1956, %v2188
      %v2236 = vadd.f32 %v1957, %v2191
      %v2237 = vadd.f32 %v1958, %v2194
      %v2238 = vadd.f32 %v1959, %v2197
      %v2239 = vadd.f32 %v1960, %v2200
      %v2240 = vadd.f32 %v1961, %v2203
      %v2241 = vadd.f32 %v1962, %v2206
      %v2242 = vadd.f32 %v1963, %v2209
      %v2243 = vld [vmem:[%s1964 + $0x1] sm:$0xff]
      %v2244 = vld [vmem:[%s1964 + $0x9] sm:$0xff]
      %v2245 = vld [vmem:[%s1964 + $0x19] sm:$0xff]
      %v2246 = vld [vmem:[%s1964 + $0x21] sm:$0xff]
      %v2247 = vld [vmem:[%s1964 + $0x31] sm:$0xff]
      %v2248 = vld [vmem:[%s1964 + $0x39] sm:$0xff]
      %v2249 = vld [vmem:[%s1964 + $0x49] sm:$0xff]
      %v2250 = vld [vmem:[%s1964 + $0x51] sm:$0xff]
      %v2251 = vld [vmem:[%s1964 + $0x61] sm:$0xff]
      %v2252 = vld [vmem:[%s1964 + $0x69] sm:$0xff]
      %v2253 = vld [vmem:[%s1964 + $0x79] sm:$0xff]
      %v2254 = vld [vmem:[%s1964 + $0x81] sm:$0xff]
      %v2255 = vld [vmem:[%s1964 + $0x91] sm:$0xff]
      %v2256 = vld [vmem:[%s1964 + $0x99] sm:$0xff]
      %v2257 = vld [vmem:[%s1964 + $0xa9] sm:$0xff]
      %v2258 = vld [vmem:[%s1964 + $0xb1] sm:$0xff]
      %v2259 = vld [vmem:[%s1964 + $0xc1] sm:$0xff]
      %v2260 = vld [vmem:[%s1964 + $0xc9] sm:$0xff]
      %v2261 = vld [vmem:[%s1964 + $0xd9] sm:$0xff]
      %v2262 = vld [vmem:[%s1964 + $0xe1] sm:$0xff]
      %v2263 = vld [vmem:[%s1964 + $0xf1] sm:$0xff]
      %v2264 = vld [vmem:[%s1964 + $0xf9] sm:$0xff]
      %v2265 = vld [vmem:[%s1964 + $0x109] sm:$0xff]
      %v2266 = vld [vmem:[%s1964 + $0x111] sm:$0xff]
      %v2267 = vld [vmem:[%s1964 + $0x121] sm:$0xff]
      %v2268 = vld [vmem:[%s1964 + $0x129] sm:$0xff]
      %v2269 = vld [vmem:[%s1964 + $0x139] sm:$0xff]
      %v2270 = vld [vmem:[%s1964 + $0x141] sm:$0xff]
      %v2271 = vld [vmem:[%s1964 + $0x151] sm:$0xff]
      %v2272 = vld [vmem:[%s1964 + $0x159] sm:$0xff]
      %v2273 = vld [vmem:[%s1964 + $0x169] sm:$0xff]
      %v2274 = vld [vmem:[%s1964 + $0x171] sm:$0xff]
      %s2275 = scalar_lea.vmem %s1, 28
      %v2276 = vld [vmem:[%s2275] sm:$0xf]
      %v2278 = vsel %vm425, %v2243, 0
      %v2281 = vsel %vm425, %v2244, 0
      %v2284 = vsel %vm425, %v2245, 0
      %v2287 = vsel %vm425, %v2246, 0
      %v2290 = vsel %vm425, %v2247, 0
      %v2293 = vsel %vm425, %v2248, 0
      %v2296 = vsel %vm425, %v2249, 0
      %v2299 = vsel %vm425, %v2250, 0
      %v2302 = vsel %vm425, %v2251, 0
      %v2305 = vsel %vm425, %v2252, 0
      %v2308 = vsel %vm425, %v2253, 0
      %v2311 = vsel %vm425, %v2254, 0
      %v2314 = vsel %vm425, %v2255, 0
      %v2317 = vsel %vm425, %v2256, 0
      %v2320 = vsel %vm425, %v2257, 0
      %v2323 = vsel %vm425, %v2258, 0
      %v2326 = vsel %vm425, %v2259, 0
      %v2329 = vsel %vm425, %v2260, 0
      %v2332 = vsel %vm425, %v2261, 0
      %v2335 = vsel %vm425, %v2262, 0
      %v2338 = vsel %vm425, %v2263, 0
      %v2341 = vsel %vm425, %v2264, 0
      %v2344 = vsel %vm425, %v2265, 0
      %v2347 = vsel %vm425, %v2266, 0
      %v2350 = vsel %vm425, %v2267, 0
      %v2353 = vsel %vm425, %v2268, 0
      %v2356 = vsel %vm425, %v2269, 0
      %v2359 = vsel %vm425, %v2270, 0
      %v2362 = vsel %vm425, %v2271, 0
      %v2365 = vsel %vm425, %v2272, 0
      %v2368 = vsel %vm425, %v2273, 0
      %v2371 = vsel %vm425, %v2274, 0
      %v2374 = vsel %vm522, %v2276, 0
      %2376 = vmatpush.msra.mxu0 0.0
      %2377 = vmatpush.msra.mxu0 0.0
      %2378 = vmatpush.msra.mxu0 0.0
      %2379 = vmatpush.msra.mxu0 0.0
      %2380 = vmatpush.msra.mxu0 0.0
      %2381 = vmatpush.msra.mxu0 0.0
      %2382 = vmatpush.msra.mxu0 0.0
      %2383 = vmatpush.msra.mxu0 0.0
      %2384 = vmatpush.msra.mxu0 0.0
      %2385 = vmatpush.msra.mxu0 0.0
      %2386 = vmatpush.msra.mxu0 0.0
      %2387 = vmatpush.msra.mxu0 0.0
      %2388 = vmatpush.msra.mxu0 0.0
      %2389 = vmatpush.msra.mxu0 0.0
      %2390 = vmatpush.msra.mxu0 0.0
      %2391 = vmatpush.msra.mxu0 %v2374
      %2392 = vmatmul.f32.gmra.mxu0 %v2278
      %v2393 = vpop.f32.mrf.mxu0
      %v2394 = vadd.f32 0.0, %v2393
      %2395 = vmatmul.f32.gmra.mxu0 %v2281
      %v2396 = vpop.f32.mrf.mxu0
      %v2397 = vadd.f32 0.0, %v2396
      %2398 = vmatmul.f32.gmra.mxu0 %v2284
      %v2399 = vpop.f32.mrf.mxu0
      %v2400 = vadd.f32 0.0, %v2399
      %2401 = vmatmul.f32.gmra.mxu0 %v2287
      %v2402 = vpop.f32.mrf.mxu0
      %v2403 = vadd.f32 0.0, %v2402
      %2404 = vmatmul.f32.gmra.mxu0 %v2290
      %v2405 = vpop.f32.mrf.mxu0
      %v2406 = vadd.f32 0.0, %v2405
      %2407 = vmatmul.f32.gmra.mxu0 %v2293
      %v2408 = vpop.f32.mrf.mxu0
      %v2409 = vadd.f32 0.0, %v2408
      %2410 = vmatmul.f32.gmra.mxu0 %v2296
      %v2411 = vpop.f32.mrf.mxu0
      %v2412 = vadd.f32 0.0, %v2411
      %2413 = vmatmul.f32.gmra.mxu0 %v2299
      %v2414 = vpop.f32.mrf.mxu0
      %v2415 = vadd.f32 0.0, %v2414
      %2416 = vmatmul.f32.gmra.mxu0 %v2302
      %v2417 = vpop.f32.mrf.mxu0
      %v2418 = vadd.f32 0.0, %v2417
      %2419 = vmatmul.f32.gmra.mxu0 %v2305
      %v2420 = vpop.f32.mrf.mxu0
      %v2421 = vadd.f32 0.0, %v2420
      %2422 = vmatmul.f32.gmra.mxu0 %v2308
      %v2423 = vpop.f32.mrf.mxu0
      %v2424 = vadd.f32 0.0, %v2423
      %2425 = vmatmul.f32.gmra.mxu0 %v2311
      %v2426 = vpop.f32.mrf.mxu0
      %v2427 = vadd.f32 0.0, %v2426
      %2428 = vmatmul.f32.gmra.mxu0 %v2314
      %v2429 = vpop.f32.mrf.mxu0
      %v2430 = vadd.f32 0.0, %v2429
      %2431 = vmatmul.f32.gmra.mxu0 %v2317
      %v2432 = vpop.f32.mrf.mxu0
      %v2433 = vadd.f32 0.0, %v2432
      %2434 = vmatmul.f32.gmra.mxu0 %v2320
      %v2435 = vpop.f32.mrf.mxu0
      %v2436 = vadd.f32 0.0, %v2435
      %2437 = vmatmul.f32.gmra.mxu0 %v2323
      %v2438 = vpop.f32.mrf.mxu0
      %v2439 = vadd.f32 0.0, %v2438
      %2440 = vmatmul.f32.gmra.mxu0 %v2326
      %v2441 = vpop.f32.mrf.mxu0
      %v2442 = vadd.f32 0.0, %v2441
      %2443 = vmatmul.f32.gmra.mxu0 %v2329
      %v2444 = vpop.f32.mrf.mxu0
      %v2445 = vadd.f32 0.0, %v2444
      %2446 = vmatmul.f32.gmra.mxu0 %v2332
      %v2447 = vpop.f32.mrf.mxu0
      %v2448 = vadd.f32 0.0, %v2447
      %2449 = vmatmul.f32.gmra.mxu0 %v2335
      %v2450 = vpop.f32.mrf.mxu0
      %v2451 = vadd.f32 0.0, %v2450
      %2452 = vmatmul.f32.gmra.mxu0 %v2338
      %v2453 = vpop.f32.mrf.mxu0
      %v2454 = vadd.f32 0.0, %v2453
      %2455 = vmatmul.f32.gmra.mxu0 %v2341
      %v2456 = vpop.f32.mrf.mxu0
      %v2457 = vadd.f32 0.0, %v2456
      %2458 = vmatmul.f32.gmra.mxu0 %v2344
      %v2459 = vpop.f32.mrf.mxu0
      %v2460 = vadd.f32 0.0, %v2459
      %2461 = vmatmul.f32.gmra.mxu0 %v2347
      %v2462 = vpop.f32.mrf.mxu0
      %v2463 = vadd.f32 0.0, %v2462
      %2464 = vmatmul.f32.gmra.mxu0 %v2350
      %v2465 = vpop.f32.mrf.mxu0
      %v2466 = vadd.f32 0.0, %v2465
      %2467 = vmatmul.f32.gmra.mxu0 %v2353
      %v2468 = vpop.f32.mrf.mxu0
      %v2469 = vadd.f32 0.0, %v2468
      %2470 = vmatmul.f32.gmra.mxu0 %v2356
      %v2471 = vpop.f32.mrf.mxu0
      %v2472 = vadd.f32 0.0, %v2471
      %2473 = vmatmul.f32.gmra.mxu0 %v2359
      %v2474 = vpop.f32.mrf.mxu0
      %v2475 = vadd.f32 0.0, %v2474
      %2476 = vmatmul.f32.gmra.mxu0 %v2362
      %v2477 = vpop.f32.mrf.mxu0
      %v2478 = vadd.f32 0.0, %v2477
      %2479 = vmatmul.f32.gmra.mxu0 %v2365
      %v2480 = vpop.f32.mrf.mxu0
      %v2481 = vadd.f32 0.0, %v2480
      %2482 = vmatmul.f32.gmra.mxu0 %v2368
      %v2483 = vpop.f32.mrf.mxu0
      %v2484 = vadd.f32 0.0, %v2483
      %2485 = vmatmul.f32.gmra.mxu0 %v2371
      %v2486 = vpop.f32.mrf.mxu0
      %v2487 = vadd.f32 0.0, %v2486
      %2488 = vdwg.mxu0
      %v2489 = vadd.f32 %v2211, %v2394
      %v2490 = vadd.f32 %v2212, %v2397
      %v2491 = vadd.f32 %v2213, %v2400
      %v2492 = vadd.f32 %v2214, %v2403
      %v2493 = vadd.f32 %v2215, %v2406
      %v2494 = vadd.f32 %v2216, %v2409
      %v2495 = vadd.f32 %v2217, %v2412
      %v2496 = vadd.f32 %v2218, %v2415
      %v2497 = vadd.f32 %v2219, %v2418
      %v2498 = vadd.f32 %v2220, %v2421
      %v2499 = vadd.f32 %v2221, %v2424
      %v2500 = vadd.f32 %v2222, %v2427
      %v2501 = vadd.f32 %v2223, %v2430
      %v2502 = vadd.f32 %v2224, %v2433
      %v2503 = vadd.f32 %v2225, %v2436
      %v2504 = vadd.f32 %v2226, %v2439
      %v2505 = vadd.f32 %v2227, %v2442
      %v2506 = vadd.f32 %v2228, %v2445
      %v2507 = vadd.f32 %v2229, %v2448
      %v2508 = vadd.f32 %v2230, %v2451
      %v2509 = vadd.f32 %v2231, %v2454
      %v2510 = vadd.f32 %v2232, %v2457
      %v2511 = vadd.f32 %v2233, %v2460
      %v2512 = vadd.f32 %v2234, %v2463
      %v2513 = vadd.f32 %v2235, %v2466
      %v2514 = vadd.f32 %v2236, %v2469
      %v2515 = vadd.f32 %v2237, %v2472
      %v2516 = vadd.f32 %v2238, %v2475
      %v2517 = vadd.f32 %v2239, %v2478
      %v2518 = vadd.f32 %v2240, %v2481
      %v2519 = vadd.f32 %v2241, %v2484
      %v2520 = vadd.f32 %v2242, %v2487
      %v2521 = vld [vmem:[%s1964 + $0x2] sm:$0xff]
      %v2522 = vld [vmem:[%s1964 + $0xa] sm:$0xff]
      %v2523 = vld [vmem:[%s1964 + $0x1a] sm:$0xff]
      %v2524 = vld [vmem:[%s1964 + $0x22] sm:$0xff]
      %v2525 = vld [vmem:[%s1964 + $0x32] sm:$0xff]
      %v2526 = vld [vmem:[%s1964 + $0x3a] sm:$0xff]
      %v2527 = vld [vmem:[%s1964 + $0x4a] sm:$0xff]
      %v2528 = vld [vmem:[%s1964 + $0x52] sm:$0xff]
      %v2529 = vld [vmem:[%s1964 + $0x62] sm:$0xff]
      %v2530 = vld [vmem:[%s1964 + $0x6a] sm:$0xff]
      %v2531 = vld [vmem:[%s1964 + $0x7a] sm:$0xff]
      %v2532 = vld [vmem:[%s1964 + $0x82] sm:$0xff]
      %v2533 = vld [vmem:[%s1964 + $0x92] sm:$0xff]
      %v2534 = vld [vmem:[%s1964 + $0x9a] sm:$0xff]
      %v2535 = vld [vmem:[%s1964 + $0xaa] sm:$0xff]
      %v2536 = vld [vmem:[%s1964 + $0xb2] sm:$0xff]
      %v2537 = vld [vmem:[%s1964 + $0xc2] sm:$0xff]
      %v2538 = vld [vmem:[%s1964 + $0xca] sm:$0xff]
      %v2539 = vld [vmem:[%s1964 + $0xda] sm:$0xff]
      %v2540 = vld [vmem:[%s1964 + $0xe2] sm:$0xff]
      %v2541 = vld [vmem:[%s1964 + $0xf2] sm:$0xff]
      %v2542 = vld [vmem:[%s1964 + $0xfa] sm:$0xff]
      %v2543 = vld [vmem:[%s1964 + $0x10a] sm:$0xff]
      %v2544 = vld [vmem:[%s1964 + $0x112] sm:$0xff]
      %v2545 = vld [vmem:[%s1964 + $0x122] sm:$0xff]
      %v2546 = vld [vmem:[%s1964 + $0x12a] sm:$0xff]
      %v2547 = vld [vmem:[%s1964 + $0x13a] sm:$0xff]
      %v2548 = vld [vmem:[%s1964 + $0x142] sm:$0xff]
      %v2549 = vld [vmem:[%s1964 + $0x152] sm:$0xff]
      %v2550 = vld [vmem:[%s1964 + $0x15a] sm:$0xff]
      %v2551 = vld [vmem:[%s1964 + $0x16a] sm:$0xff]
      %v2552 = vld [vmem:[%s1964 + $0x172] sm:$0xff]
      %s2553 = scalar_lea.vmem %s1, 32
      %v2554 = vld [vmem:[%s2553] sm:$0xf]
      %v2556 = vsel %vm425, %v2521, 0
      %v2559 = vsel %vm425, %v2522, 0
      %v2562 = vsel %vm425, %v2523, 0
      %v2565 = vsel %vm425, %v2524, 0
      %v2568 = vsel %vm425, %v2525, 0
      %v2571 = vsel %vm425, %v2526, 0
      %v2574 = vsel %vm425, %v2527, 0
      %v2577 = vsel %vm425, %v2528, 0
      %v2580 = vsel %vm425, %v2529, 0
      %v2583 = vsel %vm425, %v2530, 0
      %v2586 = vsel %vm425, %v2531, 0
      %v2589 = vsel %vm425, %v2532, 0
      %v2592 = vsel %vm425, %v2533, 0
      %v2595 = vsel %vm425, %v2534, 0
      %v2598 = vsel %vm425, %v2535, 0
      %v2601 = vsel %vm425, %v2536, 0
      %v2604 = vsel %vm425, %v2537, 0
      %v2607 = vsel %vm425, %v2538, 0
      %v2610 = vsel %vm425, %v2539, 0
      %v2613 = vsel %vm425, %v2540, 0
      %v2616 = vsel %vm425, %v2541, 0
      %v2619 = vsel %vm425, %v2542, 0
      %v2622 = vsel %vm425, %v2543, 0
      %v2625 = vsel %vm425, %v2544, 0
      %v2628 = vsel %vm425, %v2545, 0
      %v2631 = vsel %vm425, %v2546, 0
      %v2634 = vsel %vm425, %v2547, 0
      %v2637 = vsel %vm425, %v2548, 0
      %v2640 = vsel %vm425, %v2549, 0
      %v2643 = vsel %vm425, %v2550, 0
      %v2646 = vsel %vm425, %v2551, 0
      %v2649 = vsel %vm425, %v2552, 0
      %v2652 = vsel %vm522, %v2554, 0
      %2654 = vmatpush.msra.mxu0 0.0
      %2655 = vmatpush.msra.mxu0 0.0
      %2656 = vmatpush.msra.mxu0 0.0
      %2657 = vmatpush.msra.mxu0 0.0
      %2658 = vmatpush.msra.mxu0 0.0
      %2659 = vmatpush.msra.mxu0 0.0
      %2660 = vmatpush.msra.mxu0 0.0
      %2661 = vmatpush.msra.mxu0 0.0
      %2662 = vmatpush.msra.mxu0 0.0
      %2663 = vmatpush.msra.mxu0 0.0
      %2664 = vmatpush.msra.mxu0 0.0
      %2665 = vmatpush.msra.mxu0 0.0
      %2666 = vmatpush.msra.mxu0 0.0
      %2667 = vmatpush.msra.mxu0 0.0
      %2668 = vmatpush.msra.mxu0 0.0
      %2669 = vmatpush.msra.mxu0 %v2652
      %2670 = vmatmul.f32.gmra.mxu0 %v2556
      %v2671 = vpop.f32.mrf.mxu0
      %v2672 = vadd.f32 0.0, %v2671
      %2673 = vmatmul.f32.gmra.mxu0 %v2559
      %v2674 = vpop.f32.mrf.mxu0
      %v2675 = vadd.f32 0.0, %v2674
      %2676 = vmatmul.f32.gmra.mxu0 %v2562
      %v2677 = vpop.f32.mrf.mxu0
      %v2678 = vadd.f32 0.0, %v2677
      %2679 = vmatmul.f32.gmra.mxu0 %v2565
      %v2680 = vpop.f32.mrf.mxu0
      %v2681 = vadd.f32 0.0, %v2680
      %2682 = vmatmul.f32.gmra.mxu0 %v2568
      %v2683 = vpop.f32.mrf.mxu0
      %v2684 = vadd.f32 0.0, %v2683
      %2685 = vmatmul.f32.gmra.mxu0 %v2571
      %v2686 = vpop.f32.mrf.mxu0
      %v2687 = vadd.f32 0.0, %v2686
      %2688 = vmatmul.f32.gmra.mxu0 %v2574
      %v2689 = vpop.f32.mrf.mxu0
      %v2690 = vadd.f32 0.0, %v2689
      %2691 = vmatmul.f32.gmra.mxu0 %v2577
      %v2692 = vpop.f32.mrf.mxu0
      %v2693 = vadd.f32 0.0, %v2692
      %2694 = vmatmul.f32.gmra.mxu0 %v2580
      %v2695 = vpop.f32.mrf.mxu0
      %v2696 = vadd.f32 0.0, %v2695
      %2697 = vmatmul.f32.gmra.mxu0 %v2583
      %v2698 = vpop.f32.mrf.mxu0
      %v2699 = vadd.f32 0.0, %v2698
      %2700 = vmatmul.f32.gmra.mxu0 %v2586
      %v2701 = vpop.f32.mrf.mxu0
      %v2702 = vadd.f32 0.0, %v2701
      %2703 = vmatmul.f32.gmra.mxu0 %v2589
      %v2704 = vpop.f32.mrf.mxu0
      %v2705 = vadd.f32 0.0, %v2704
      %2706 = vmatmul.f32.gmra.mxu0 %v2592
      %v2707 = vpop.f32.mrf.mxu0
      %v2708 = vadd.f32 0.0, %v2707
      %2709 = vmatmul.f32.gmra.mxu0 %v2595
      %v2710 = vpop.f32.mrf.mxu0
      %v2711 = vadd.f32 0.0, %v2710
      %2712 = vmatmul.f32.gmra.mxu0 %v2598
      %v2713 = vpop.f32.mrf.mxu0
      %v2714 = vadd.f32 0.0, %v2713
      %2715 = vmatmul.f32.gmra.mxu0 %v2601
      %v2716 = vpop.f32.mrf.mxu0
      %v2717 = vadd.f32 0.0, %v2716
      %2718 = vmatmul.f32.gmra.mxu0 %v2604
      %v2719 = vpop.f32.mrf.mxu0
      %v2720 = vadd.f32 0.0, %v2719
      %2721 = vmatmul.f32.gmra.mxu0 %v2607
      %v2722 = vpop.f32.mrf.mxu0
      %v2723 = vadd.f32 0.0, %v2722
      %2724 = vmatmul.f32.gmra.mxu0 %v2610
      %v2725 = vpop.f32.mrf.mxu0
      %v2726 = vadd.f32 0.0, %v2725
      %2727 = vmatmul.f32.gmra.mxu0 %v2613
      %v2728 = vpop.f32.mrf.mxu0
      %v2729 = vadd.f32 0.0, %v2728
      %2730 = vmatmul.f32.gmra.mxu0 %v2616
      %v2731 = vpop.f32.mrf.mxu0
      %v2732 = vadd.f32 0.0, %v2731
      %2733 = vmatmul.f32.gmra.mxu0 %v2619
      %v2734 = vpop.f32.mrf.mxu0
      %v2735 = vadd.f32 0.0, %v2734
      %2736 = vmatmul.f32.gmra.mxu0 %v2622
      %v2737 = vpop.f32.mrf.mxu0
      %v2738 = vadd.f32 0.0, %v2737
      %2739 = vmatmul.f32.gmra.mxu0 %v2625
      %v2740 = vpop.f32.mrf.mxu0
      %v2741 = vadd.f32 0.0, %v2740
      %2742 = vmatmul.f32.gmra.mxu0 %v2628
      %v2743 = vpop.f32.mrf.mxu0
      %v2744 = vadd.f32 0.0, %v2743
      %2745 = vmatmul.f32.gmra.mxu0 %v2631
      %v2746 = vpop.f32.mrf.mxu0
      %v2747 = vadd.f32 0.0, %v2746
      %2748 = vmatmul.f32.gmra.mxu0 %v2634
      %v2749 = vpop.f32.mrf.mxu0
      %v2750 = vadd.f32 0.0, %v2749
      %2751 = vmatmul.f32.gmra.mxu0 %v2637
      %v2752 = vpop.f32.mrf.mxu0
      %v2753 = vadd.f32 0.0, %v2752
      %2754 = vmatmul.f32.gmra.mxu0 %v2640
      %v2755 = vpop.f32.mrf.mxu0
      %v2756 = vadd.f32 0.0, %v2755
      %2757 = vmatmul.f32.gmra.mxu0 %v2643
      %v2758 = vpop.f32.mrf.mxu0
      %v2759 = vadd.f32 0.0, %v2758
      %2760 = vmatmul.f32.gmra.mxu0 %v2646
      %v2761 = vpop.f32.mrf.mxu0
      %v2762 = vadd.f32 0.0, %v2761
      %2763 = vmatmul.f32.gmra.mxu0 %v2649
      %v2764 = vpop.f32.mrf.mxu0
      %v2765 = vadd.f32 0.0, %v2764
      %2766 = vdwg.mxu0
      %v2767 = vadd.f32 %v2489, %v2672
      %v2768 = vadd.f32 %v2490, %v2675
      %v2769 = vadd.f32 %v2491, %v2678
      %v2770 = vadd.f32 %v2492, %v2681
      %v2771 = vadd.f32 %v2493, %v2684
      %v2772 = vadd.f32 %v2494, %v2687
      %v2773 = vadd.f32 %v2495, %v2690
      %v2774 = vadd.f32 %v2496, %v2693
      %v2775 = vadd.f32 %v2497, %v2696
      %v2776 = vadd.f32 %v2498, %v2699
      %v2777 = vadd.f32 %v2499, %v2702
      %v2778 = vadd.f32 %v2500, %v2705
      %v2779 = vadd.f32 %v2501, %v2708
      %v2780 = vadd.f32 %v2502, %v2711
      %v2781 = vadd.f32 %v2503, %v2714
      %v2782 = vadd.f32 %v2504, %v2717
      %v2783 = vadd.f32 %v2505, %v2720
      %v2784 = vadd.f32 %v2506, %v2723
      %v2785 = vadd.f32 %v2507, %v2726
      %v2786 = vadd.f32 %v2508, %v2729
      %v2787 = vadd.f32 %v2509, %v2732
      %v2788 = vadd.f32 %v2510, %v2735
      %v2789 = vadd.f32 %v2511, %v2738
      %v2790 = vadd.f32 %v2512, %v2741
      %v2791 = vadd.f32 %v2513, %v2744
      %v2792 = vadd.f32 %v2514, %v2747
      %v2793 = vadd.f32 %v2515, %v2750
      %v2794 = vadd.f32 %v2516, %v2753
      %v2795 = vadd.f32 %v2517, %v2756
      %v2796 = vadd.f32 %v2518, %v2759
      %v2797 = vadd.f32 %v2519, %v2762
      %v2798 = vadd.f32 %v2520, %v2765
      %v2799 = vld [vmem:[%s2] sm:$0x1]
      %v2801 = vperm.slane %v2799, 0
      %v2803 = vadd.f32 %v2767, %v2801
      %v2804 = vadd.f32 %v2768, %v2801
      %v2805 = vadd.f32 %v2769, %v2801
      %v2806 = vadd.f32 %v2770, %v2801
      %v2807 = vadd.f32 %v2771, %v2801
      %v2808 = vadd.f32 %v2772, %v2801
      %v2809 = vadd.f32 %v2773, %v2801
      %v2810 = vadd.f32 %v2774, %v2801
      %v2811 = vadd.f32 %v2775, %v2801
      %v2812 = vadd.f32 %v2776, %v2801
      %v2813 = vadd.f32 %v2777, %v2801
      %v2814 = vadd.f32 %v2778, %v2801
      %v2815 = vadd.f32 %v2779, %v2801
      %v2816 = vadd.f32 %v2780, %v2801
      %v2817 = vadd.f32 %v2781, %v2801
      %v2818 = vadd.f32 %v2782, %v2801
      %v2819 = vadd.f32 %v2783, %v2801
      %v2820 = vadd.f32 %v2784, %v2801
      %v2821 = vadd.f32 %v2785, %v2801
      %v2822 = vadd.f32 %v2786, %v2801
      %v2823 = vadd.f32 %v2787, %v2801
      %v2824 = vadd.f32 %v2788, %v2801
      %v2825 = vadd.f32 %v2789, %v2801
      %v2826 = vadd.f32 %v2790, %v2801
      %v2827 = vadd.f32 %v2791, %v2801
      %v2828 = vadd.f32 %v2792, %v2801
      %v2829 = vadd.f32 %v2793, %v2801
      %v2830 = vadd.f32 %v2794, %v2801
      %v2831 = vadd.f32 %v2795, %v2801
      %v2832 = vadd.f32 %v2796, %v2801
      %v2833 = vadd.f32 %v2797, %v2801
      %v2834 = vadd.f32 %v2798, %v2801
      %vm2835 = vcmask 64512
      %2836 = vst.msk [vmem:[%s347] sm:$0xff] %vm2835, %v2803
      %2837 = vst.msk [vmem:[%s347 + $0x8] sm:$0xff] %vm2835, %v2804
      %2838 = vst.msk [vmem:[%s347 + $0x10] sm:$0xff] %vm2835, %v2805
      %2839 = vst.msk [vmem:[%s347 + $0x18] sm:$0xff] %vm2835, %v2806
      %2840 = vst.msk [vmem:[%s347 + $0x20] sm:$0xff] %vm2835, %v2807
      %2841 = vst.msk [vmem:[%s347 + $0x28] sm:$0xff] %vm2835, %v2808
      %2842 = vst.msk [vmem:[%s347 + $0x30] sm:$0xff] %vm2835, %v2809
      %2843 = vst.msk [vmem:[%s347 + $0x38] sm:$0xff] %vm2835, %v2810
      %2844 = vst.msk [vmem:[%s347 + $0x40] sm:$0xff] %vm2835, %v2811
      %2845 = vst.msk [vmem:[%s347 + $0x48] sm:$0xff] %vm2835, %v2812
      %2846 = vst.msk [vmem:[%s347 + $0x50] sm:$0xff] %vm2835, %v2813
      %2847 = vst.msk [vmem:[%s347 + $0x58] sm:$0xff] %vm2835, %v2814
      %2848 = vst.msk [vmem:[%s347 + $0x60] sm:$0xff] %vm2835, %v2815
      %2849 = vst.msk [vmem:[%s347 + $0x68] sm:$0xff] %vm2835, %v2816
      %2850 = vst.msk [vmem:[%s347 + $0x70] sm:$0xff] %vm2835, %v2817
      %2851 = vst.msk [vmem:[%s347 + $0x78] sm:$0xff] %vm2835, %v2818
      %2852 = vst.msk [vmem:[%s347 + $0x80] sm:$0xff] %vm2835, %v2819
      %2853 = vst.msk [vmem:[%s347 + $0x88] sm:$0xff] %vm2835, %v2820
      %2854 = vst.msk [vmem:[%s347 + $0x90] sm:$0xff] %vm2835, %v2821
      %2855 = vst.msk [vmem:[%s347 + $0x98] sm:$0xff] %vm2835, %v2822
      %2856 = vst.msk [vmem:[%s347 + $0xa0] sm:$0xff] %vm2835, %v2823
      %2857 = vst.msk [vmem:[%s347 + $0xa8] sm:$0xff] %vm2835, %v2824
      %2858 = vst.msk [vmem:[%s347 + $0xb0] sm:$0xff] %vm2835, %v2825
      %2859 = vst.msk [vmem:[%s347 + $0xb8] sm:$0xff] %vm2835, %v2826
      %2860 = vst.msk [vmem:[%s347 + $0xc0] sm:$0xff] %vm2835, %v2827
      %2861 = vst.msk [vmem:[%s347 + $0xc8] sm:$0xff] %vm2835, %v2828
      %2862 = vst.msk [vmem:[%s347 + $0xd0] sm:$0xff] %vm2835, %v2829
      %2863 = vst.msk [vmem:[%s347 + $0xd8] sm:$0xff] %vm2835, %v2830
      %2864 = vst.msk [vmem:[%s347 + $0xe0] sm:$0xff] %vm2835, %v2831
      %2865 = vst.msk [vmem:[%s347 + $0xe8] sm:$0xff] %vm2835, %v2832
      %2866 = vst.msk [vmem:[%s347 + $0xf0] sm:$0xff] %vm2835, %v2833
      %2867 = vst.msk [vmem:[%s347 + $0xf8] sm:$0xff] %vm2835, %v2834
      %2868 = vst.msk [vmem:[#allocation2] sm:$0xff] %vm2835, 0.0
      %2869 = vst.msk [vmem:[#allocation2 + $0x8] sm:$0xff] %vm2835, 0.0
      %vm2870 = vcmask 58368
      %2871 = vst.msk [vmem:[#allocation2 + $0x10] sm:$0x3] %vm2870, 0.0
      %2872 = vst.msk [vmem:[#allocation2 + $0x18] sm:$0xff] %vm2835, 0.0
      %2873 = vst.msk [vmem:[#allocation2 + $0x20] sm:$0xff] %vm2835, 0.0
      %2874 = vst.msk [vmem:[#allocation2 + $0x28] sm:$0x3] %vm2870, 0.0
      %2875 = vst.msk [vmem:[#allocation2 + $0x30] sm:$0xff] %vm2835, 0.0
      %2876 = vst.msk [vmem:[#allocation2 + $0x38] sm:$0xff] %vm2835, 0.0
      %2877 = vst.msk [vmem:[#allocation2 + $0x40] sm:$0x3] %vm2870, 0.0
      %2878 = vst.msk [vmem:[#allocation2 + $0x48] sm:$0xff] %vm2835, 0.0
      %2879 = vst.msk [vmem:[#allocation2 + $0x50] sm:$0xff] %vm2835, 0.0
      %2880 = vst.msk [vmem:[#allocation2 + $0x58] sm:$0x3] %vm2870, 0.0
      %2881 = vst.msk [vmem:[#allocation2 + $0x60] sm:$0xff] %vm2835, 0.0
      %2882 = vst.msk [vmem:[#allocation2 + $0x68] sm:$0xff] %vm2835, 0.0
      %2883 = vst.msk [vmem:[#allocation2 + $0x70] sm:$0x3] %vm2870, 0.0
      %2884 = vst.msk [vmem:[#allocation2 + $0x78] sm:$0xff] %vm2835, 0.0
      %2885 = vst.msk [vmem:[#allocation2 + $0x80] sm:$0xff] %vm2835, 0.0
      %2886 = vst.msk [vmem:[#allocation2 + $0x88] sm:$0x3] %vm2870, 0.0
      %2887 = vst.msk [vmem:[#allocation2 + $0x90] sm:$0xff] %vm2835, 0.0
      %2888 = vst.msk [vmem:[#allocation2 + $0x98] sm:$0xff] %vm2835, 0.0
      %2889 = vst.msk [vmem:[#allocation2 + $0xa0] sm:$0x3] %vm2870, 0.0
      %2890 = vst.msk [vmem:[#allocation2 + $0xa8] sm:$0xff] %vm2835, 0.0
      %2891 = vst.msk [vmem:[#allocation2 + $0xb0] sm:$0xff] %vm2835, 0.0
      %2892 = vst.msk [vmem:[#allocation2 + $0xb8] sm:$0x3] %vm2870, 0.0
      %2893 = vst.msk [vmem:[#allocation2 + $0xc0] sm:$0xff] %vm2835, 0.0
      %2894 = vst.msk [vmem:[#allocation2 + $0xc8] sm:$0xff] %vm2835, 0.0
      %2895 = vst.msk [vmem:[#allocation2 + $0xd0] sm:$0x3] %vm2870, 0.0
      %2896 = vst.msk [vmem:[#allocation2 + $0xd8] sm:$0xff] %vm2835, 0.0
      %2897 = vst.msk [vmem:[#allocation2 + $0xe0] sm:$0xff] %vm2835, 0.0
      %2898 = vst.msk [vmem:[#allocation2 + $0xe8] sm:$0x3] %vm2870, 0.0
      %2899 = vst.msk [vmem:[#allocation2 + $0xf0] sm:$0xff] %vm2835, 0.0
      %2900 = vst.msk [vmem:[#allocation2 + $0xf8] sm:$0xff] %vm2835, 0.0
      %2901 = vst.msk [vmem:[#allocation2 + $0x100] sm:$0x3] %vm2870, 0.0
      %2902 = vst.msk [vmem:[#allocation2 + $0x108] sm:$0xff] %vm2835, 0.0
      %2903 = vst.msk [vmem:[#allocation2 + $0x110] sm:$0xff] %vm2835, 0.0
      %2904 = vst.msk [vmem:[#allocation2 + $0x118] sm:$0x3] %vm2870, 0.0
      %2905 = vst.msk [vmem:[#allocation2 + $0x120] sm:$0xff] %vm2835, 0.0
      %2906 = vst.msk [vmem:[#allocation2 + $0x128] sm:$0xff] %vm2835, 0.0
      %2907 = vst.msk [vmem:[#allocation2 + $0x130] sm:$0x3] %vm2870, 0.0
      %2908 = vst.msk [vmem:[#allocation2 + $0x138] sm:$0xff] %vm2835, 0.0
      %2909 = vst.msk [vmem:[#allocation2 + $0x140] sm:$0xff] %vm2835, 0.0
      %2910 = vst.msk [vmem:[#allocation2 + $0x148] sm:$0x3] %vm2870, 0.0
      %2911 = vst.msk [vmem:[#allocation2 + $0x150] sm:$0xff] %vm2835, 0.0
      %2912 = vst.msk [vmem:[#allocation2 + $0x158] sm:$0xff] %vm2835, 0.0
      %2913 = vst.msk [vmem:[#allocation2 + $0x160] sm:$0x3] %vm2870, 0.0
      %2914 = vst.msk [vmem:[#allocation2 + $0x168] sm:$0xff] %vm2835, 0.0
      %2915 = vst.msk [vmem:[#allocation2 + $0x170] sm:$0xff] %vm2835, 0.0
      %2916 = vst.msk [vmem:[#allocation2 + $0x178] sm:$0x3] %vm2870, 0.0
      %2917 = vst.msk [vmem:[#allocation2 + $0x180] sm:$0xff] %vm2835, 0.0
      %2918 = vst.msk [vmem:[#allocation2 + $0x188] sm:$0xff] %vm2835, 0.0
      %2919 = vst.msk [vmem:[#allocation2 + $0x190] sm:$0x3] %vm2870, 0.0
      %2920 = vst.msk [vmem:[#allocation2 + $0x198] sm:$0xff] %vm2835, 0.0
      %2921 = vst.msk [vmem:[#allocation2 + $0x1a0] sm:$0xff] %vm2835, 0.0
      %2922 = vst.msk [vmem:[#allocation2 + $0x1a8] sm:$0x3] %vm2870, 0.0
      %v2923 = vmax.f32 %v2803, 0.0
      %v2924 = vmax.f32 %v2804, 0.0
      %v2925 = vmax.f32 %v2805, 0.0
      %v2926 = vmax.f32 %v2806, 0.0
      %v2927 = vmax.f32 %v2807, 0.0
      %v2928 = vmax.f32 %v2808, 0.0
      %v2929 = vmax.f32 %v2809, 0.0
      %v2930 = vmax.f32 %v2810, 0.0
      %v2931 = vmax.f32 %v2811, 0.0
      %v2932 = vmax.f32 %v2812, 0.0
      %v2933 = vmax.f32 %v2813, 0.0
      %v2934 = vmax.f32 %v2814, 0.0
      %v2935 = vmax.f32 %v2815, 0.0
      %v2936 = vmax.f32 %v2816, 0.0
      %v2937 = vmax.f32 %v2817, 0.0
      %v2938 = vmax.f32 %v2818, 0.0
      %v2939 = vmax.f32 %v2819, 0.0
      %v2940 = vmax.f32 %v2820, 0.0
      %v2941 = vmax.f32 %v2821, 0.0
      %v2942 = vmax.f32 %v2822, 0.0
      %v2943 = vmax.f32 %v2823, 0.0
      %v2944 = vmax.f32 %v2824, 0.0
      %v2945 = vmax.f32 %v2825, 0.0
      %v2946 = vmax.f32 %v2826, 0.0
      %v2947 = vmax.f32 %v2827, 0.0
      %v2948 = vmax.f32 %v2828, 0.0
      %v2949 = vmax.f32 %v2829, 0.0
      %v2950 = vmax.f32 %v2830, 0.0
      %v2951 = vmax.f32 %v2831, 0.0
      %v2952 = vmax.f32 %v2832, 0.0
      %v2953 = vmax.f32 %v2833, 0.0
      %v2954 = vmax.f32 %v2834, 0.0
      %s2955 = scalar_lea.vmem [#allocation2], 24
      %2956 = vst.msk [vmem:[%s2955 + $0x1] sm:$0xff] %vm2835, %v2923
      %2957 = vst.msk [vmem:[%s2955 + $0x9] sm:$0xff] %vm2835, %v2924
      %2958 = vst.msk [vmem:[%s2955 + $0x19] sm:$0xff] %vm2835, %v2925
      %2959 = vst.msk [vmem:[%s2955 + $0x21] sm:$0xff] %vm2835, %v2926
      %2960 = vst.msk [vmem:[%s2955 + $0x31] sm:$0xff] %vm2835, %v2927
      %2961 = vst.msk [vmem:[%s2955 + $0x39] sm:$0xff] %vm2835, %v2928
      %2962 = vst.msk [vmem:[%s2955 + $0x49] sm:$0xff] %vm2835, %v2929
      %2963 = vst.msk [vmem:[%s2955 + $0x51] sm:$0xff] %vm2835, %v2930
      %2964 = vst.msk [vmem:[%s2955 + $0x61] sm:$0xff] %vm2835, %v2931
      %2965 = vst.msk [vmem:[%s2955 + $0x69] sm:$0xff] %vm2835, %v2932
      %2966 = vst.msk [vmem:[%s2955 + $0x79] sm:$0xff] %vm2835, %v2933
      %2967 = vst.msk [vmem:[%s2955 + $0x81] sm:$0xff] %vm2835, %v2934
      %2968 = vst.msk [vmem:[%s2955 + $0x91] sm:$0xff] %vm2835, %v2935
      %2969 = vst.msk [vmem:[%s2955 + $0x99] sm:$0xff] %vm2835, %v2936
      %2970 = vst.msk [vmem:[%s2955 + $0xa9] sm:$0xff] %vm2835, %v2937
      %2971 = vst.msk [vmem:[%s2955 + $0xb1] sm:$0xff] %vm2835, %v2938
      %2972 = vst.msk [vmem:[%s2955 + $0xc1] sm:$0xff] %vm2835, %v2939
      %2973 = vst.msk [vmem:[%s2955 + $0xc9] sm:$0xff] %vm2835, %v2940
      %2974 = vst.msk [vmem:[%s2955 + $0xd9] sm:$0xff] %vm2835, %v2941
      %2975 = vst.msk [vmem:[%s2955 + $0xe1] sm:$0xff] %vm2835, %v2942
      %2976 = vst.msk [vmem:[%s2955 + $0xf1] sm:$0xff] %vm2835, %v2943
      %2977 = vst.msk [vmem:[%s2955 + $0xf9] sm:$0xff] %vm2835, %v2944
      %2978 = vst.msk [vmem:[%s2955 + $0x109] sm:$0xff] %vm2835, %v2945
      %2979 = vst.msk [vmem:[%s2955 + $0x111] sm:$0xff] %vm2835, %v2946
      %2980 = vst.msk [vmem:[%s2955 + $0x121] sm:$0xff] %vm2835, %v2947
      %2981 = vst.msk [vmem:[%s2955 + $0x129] sm:$0xff] %vm2835, %v2948
      %2982 = vst.msk [vmem:[%s2955 + $0x139] sm:$0xff] %vm2835, %v2949
      %2983 = vst.msk [vmem:[%s2955 + $0x141] sm:$0xff] %vm2835, %v2950
      %2984 = vst.msk [vmem:[%s2955 + $0x151] sm:$0xff] %vm2835, %v2951
      %2985 = vst.msk [vmem:[%s2955 + $0x159] sm:$0xff] %vm2835, %v2952
      %2986 = vst.msk [vmem:[%s2955 + $0x169] sm:$0xff] %vm2835, %v2953
      %2987 = vst.msk [vmem:[%s2955 + $0x171] sm:$0xff] %vm2835, %v2954
      %v2988 = vld [vmem:[#allocation2] sm:$0xff]
      %v2989 = vld [vmem:[#allocation2 + $0x8] sm:$0xff]
      %v2990 = vld [vmem:[#allocation2 + $0x18] sm:$0xff]
      %v2991 = vld [vmem:[#allocation2 + $0x20] sm:$0xff]
      %v2992 = vld [vmem:[#allocation2 + $0x30] sm:$0xff]
      %v2993 = vld [vmem:[#allocation2 + $0x38] sm:$0xff]
      %v2994 = vld [vmem:[#allocation2 + $0x48] sm:$0xff]
      %v2995 = vld [vmem:[#allocation2 + $0x50] sm:$0xff]
      %v2996 = vld [vmem:[#allocation2 + $0x60] sm:$0xff]
      %v2997 = vld [vmem:[#allocation2 + $0x68] sm:$0xff]
      %v2998 = vld [vmem:[#allocation2 + $0x78] sm:$0xff]
      %v2999 = vld [vmem:[#allocation2 + $0x80] sm:$0xff]
      %v3000 = vld [vmem:[#allocation2 + $0x90] sm:$0xff]
      %v3001 = vld [vmem:[#allocation2 + $0x98] sm:$0xff]
      %v3002 = vld [vmem:[#allocation2 + $0xa8] sm:$0xff]
      %v3003 = vld [vmem:[#allocation2 + $0xb0] sm:$0xff]
      %v3004 = vld [vmem:[#allocation2 + $0xc0] sm:$0xff]
      %v3005 = vld [vmem:[#allocation2 + $0xc8] sm:$0xff]
      %v3006 = vld [vmem:[#allocation2 + $0xd8] sm:$0xff]
      %v3007 = vld [vmem:[#allocation2 + $0xe0] sm:$0xff]
      %v3008 = vld [vmem:[#allocation2 + $0xf0] sm:$0xff]
      %v3009 = vld [vmem:[#allocation2 + $0xf8] sm:$0xff]
      %v3010 = vld [vmem:[#allocation2 + $0x108] sm:$0xff]
      %v3011 = vld [vmem:[#allocation2 + $0x110] sm:$0xff]
      %v3012 = vld [vmem:[#allocation2 + $0x120] sm:$0xff]
      %v3013 = vld [vmem:[#allocation2 + $0x128] sm:$0xff]
      %v3014 = vld [vmem:[#allocation2 + $0x138] sm:$0xff]
      %v3015 = vld [vmem:[#allocation2 + $0x140] sm:$0xff]
      %v3016 = vld [vmem:[#allocation2 + $0x150] sm:$0xff]
      %v3017 = vld [vmem:[#allocation2 + $0x158] sm:$0xff]
      %v3018 = vld [vmem:[#allocation2 + $0x168] sm:$0xff]
      %v3019 = vld [vmem:[#allocation2 + $0x170] sm:$0xff]
      %v3020 = vld [vmem:[%s3] sm:$0xff]
      %v3021 = vld [vmem:[#allocation2 + $0x1] sm:$0xff]
      %v3022 = vld [vmem:[#allocation2 + $0x9] sm:$0xff]
      %v3023 = vld [vmem:[#allocation2 + $0x19] sm:$0xff]
      %v3024 = vld [vmem:[#allocation2 + $0x21] sm:$0xff]
      %v3025 = vld [vmem:[#allocation2 + $0x31] sm:$0xff]
      %v3026 = vld [vmem:[#allocation2 + $0x39] sm:$0xff]
      %v3027 = vld [vmem:[#allocation2 + $0x49] sm:$0xff]
      %v3028 = vld [vmem:[#allocation2 + $0x51] sm:$0xff]
      %v3029 = vld [vmem:[#allocation2 + $0x61] sm:$0xff]
      %v3030 = vld [vmem:[#allocation2 + $0x69] sm:$0xff]
      %v3031 = vld [vmem:[#allocation2 + $0x79] sm:$0xff]
      %v3032 = vld [vmem:[#allocation2 + $0x81] sm:$0xff]
      %v3033 = vld [vmem:[#allocation2 + $0x91] sm:$0xff]
      %v3034 = vld [vmem:[#allocation2 + $0x99] sm:$0xff]
      %v3035 = vld [vmem:[#allocation2 + $0xa9] sm:$0xff]
      %v3036 = vld [vmem:[#allocation2 + $0xb1] sm:$0xff]
      %v3037 = vld [vmem:[#allocation2 + $0xc1] sm:$0xff]
      %v3038 = vld [vmem:[#allocation2 + $0xc9] sm:$0xff]
      %v3039 = vld [vmem:[#allocation2 + $0xd9] sm:$0xff]
      %v3040 = vld [vmem:[#allocation2 + $0xe1] sm:$0xff]
      %v3041 = vld [vmem:[#allocation2 + $0xf1] sm:$0xff]
      %v3042 = vld [vmem:[#allocation2 + $0xf9] sm:$0xff]
      %v3043 = vld [vmem:[#allocation2 + $0x109] sm:$0xff]
      %v3044 = vld [vmem:[#allocation2 + $0x111] sm:$0xff]
      %v3045 = vld [vmem:[#allocation2 + $0x121] sm:$0xff]
      %v3046 = vld [vmem:[#allocation2 + $0x129] sm:$0xff]
      %v3047 = vld [vmem:[#allocation2 + $0x139] sm:$0xff]
      %v3048 = vld [vmem:[#allocation2 + $0x141] sm:$0xff]
      %v3049 = vld [vmem:[#allocation2 + $0x151] sm:$0xff]
      %v3050 = vld [vmem:[#allocation2 + $0x159] sm:$0xff]
      %v3051 = vld [vmem:[#allocation2 + $0x169] sm:$0xff]
      %v3052 = vld [vmem:[#allocation2 + $0x171] sm:$0xff]
      %s3053 = scalar_lea.vmem %s3, 8
      %v3054 = vld [vmem:[%s3053] sm:$0xff]
      %v3056 = vsel %vm2835, %v3021, 0
      %v3059 = vsel %vm2835, %v3022, 0
      %v3062 = vsel %vm2835, %v3023, 0
      %v3065 = vsel %vm2835, %v3024, 0
      %v3068 = vsel %vm2835, %v3025, 0
      %v3071 = vsel %vm2835, %v3026, 0
      %v3074 = vsel %vm2835, %v3027, 0
      %v3077 = vsel %vm2835, %v3028, 0
      %v3080 = vsel %vm2835, %v3029, 0
      %v3083 = vsel %vm2835, %v3030, 0
      %v3086 = vsel %vm2835, %v3031, 0
      %v3089 = vsel %vm2835, %v3032, 0
      %v3092 = vsel %vm2835, %v3033, 0
      %v3095 = vsel %vm2835, %v3034, 0
      %v3098 = vsel %vm2835, %v3035, 0
      %v3101 = vsel %vm2835, %v3036, 0
      %v3104 = vsel %vm2835, %v3037, 0
      %v3107 = vsel %vm2835, %v3038, 0
      %v3110 = vsel %vm2835, %v3039, 0
      %v3113 = vsel %vm2835, %v3040, 0
      %v3116 = vsel %vm2835, %v3041, 0
      %v3119 = vsel %vm2835, %v3042, 0
      %v3122 = vsel %vm2835, %v3043, 0
      %v3125 = vsel %vm2835, %v3044, 0
      %v3128 = vsel %vm2835, %v3045, 0
      %v3131 = vsel %vm2835, %v3046, 0
      %v3134 = vsel %vm2835, %v3047, 0
      %v3137 = vsel %vm2835, %v3048, 0
      %v3140 = vsel %vm2835, %v3049, 0
      %v3143 = vsel %vm2835, %v3050, 0
      %v3146 = vsel %vm2835, %v3051, 0
      %v3149 = vsel %vm2835, %v3052, 0
      %3151 = vmatpush.msra.mxu0 0.0
      %3152 = vmatpush.msra.mxu0 0.0
      %3153 = vmatpush.msra.mxu0 0.0
      %3154 = vmatpush.msra.mxu0 0.0
      %3155 = vmatpush.msra.mxu0 0.0
      %3156 = vmatpush.msra.mxu0 0.0
      %3157 = vmatpush.msra.mxu0 0.0
      %3158 = vmatpush.msra.mxu0 0.0
      %3159 = vmatpush.msra.mxu0 0.0
      %3160 = vmatpush.msra.mxu0 0.0
      %3161 = vmatpush.msra.mxu0 0.0
      %3162 = vmatpush.msra.mxu0 0.0
      %3163 = vmatpush.msra.mxu0 0.0
      %3164 = vmatpush.msra.mxu0 0.0
      %3165 = vmatpush.msra.mxu0 0.0
      %3166 = vmatpush.msra.mxu0 %v3054
      %3167 = vmatmul.f32.gmra.mxu0 %v3056
      %v3168 = vpop.f32.mrf.mxu0
      %v3169 = vadd.f32 0.0, %v3168
      %3170 = vmatmul.f32.gmra.mxu0 %v3059
      %v3171 = vpop.f32.mrf.mxu0
      %v3172 = vadd.f32 0.0, %v3171
      %3173 = vmatmul.f32.gmra.mxu0 %v3062
      %v3174 = vpop.f32.mrf.mxu0
      %v3175 = vadd.f32 0.0, %v3174
      %3176 = vmatmul.f32.gmra.mxu0 %v3065
      %v3177 = vpop.f32.mrf.mxu0
      %v3178 = vadd.f32 0.0, %v3177
      %3179 = vmatmul.f32.gmra.mxu0 %v3068
      %v3180 = vpop.f32.mrf.mxu0
      %v3181 = vadd.f32 0.0, %v3180
      %3182 = vmatmul.f32.gmra.mxu0 %v3071
      %v3183 = vpop.f32.mrf.mxu0
      %v3184 = vadd.f32 0.0, %v3183
      %3185 = vmatmul.f32.gmra.mxu0 %v3074
      %v3186 = vpop.f32.mrf.mxu0
      %v3187 = vadd.f32 0.0, %v3186
      %3188 = vmatmul.f32.gmra.mxu0 %v3077
      %v3189 = vpop.f32.mrf.mxu0
      %v3190 = vadd.f32 0.0, %v3189
      %3191 = vmatmul.f32.gmra.mxu0 %v3080
      %v3192 = vpop.f32.mrf.mxu0
      %v3193 = vadd.f32 0.0, %v3192
      %3194 = vmatmul.f32.gmra.mxu0 %v3083
      %v3195 = vpop.f32.mrf.mxu0
      %v3196 = vadd.f32 0.0, %v3195
      %3197 = vmatmul.f32.gmra.mxu0 %v3086
      %v3198 = vpop.f32.mrf.mxu0
      %v3199 = vadd.f32 0.0, %v3198
      %3200 = vmatmul.f32.gmra.mxu0 %v3089
      %v3201 = vpop.f32.mrf.mxu0
      %v3202 = vadd.f32 0.0, %v3201
      %3203 = vmatmul.f32.gmra.mxu0 %v3092
      %v3204 = vpop.f32.mrf.mxu0
      %v3205 = vadd.f32 0.0, %v3204
      %3206 = vmatmul.f32.gmra.mxu0 %v3095
      %v3207 = vpop.f32.mrf.mxu0
      %v3208 = vadd.f32 0.0, %v3207
      %3209 = vmatmul.f32.gmra.mxu0 %v3098
      %v3210 = vpop.f32.mrf.mxu0
      %v3211 = vadd.f32 0.0, %v3210
      %3212 = vmatmul.f32.gmra.mxu0 %v3101
      %v3213 = vpop.f32.mrf.mxu0
      %v3214 = vadd.f32 0.0, %v3213
      %3215 = vmatmul.f32.gmra.mxu0 %v3104
      %v3216 = vpop.f32.mrf.mxu0
      %v3217 = vadd.f32 0.0, %v3216
      %3218 = vmatmul.f32.gmra.mxu0 %v3107
      %v3219 = vpop.f32.mrf.mxu0
      %v3220 = vadd.f32 0.0, %v3219
      %3221 = vmatmul.f32.gmra.mxu0 %v3110
      %v3222 = vpop.f32.mrf.mxu0
      %v3223 = vadd.f32 0.0, %v3222
      %3224 = vmatmul.f32.gmra.mxu0 %v3113
      %v3225 = vpop.f32.mrf.mxu0
      %v3226 = vadd.f32 0.0, %v3225
      %3227 = vmatmul.f32.gmra.mxu0 %v3116
      %v3228 = vpop.f32.mrf.mxu0
      %v3229 = vadd.f32 0.0, %v3228
      %3230 = vmatmul.f32.gmra.mxu0 %v3119
      %v3231 = vpop.f32.mrf.mxu0
      %v3232 = vadd.f32 0.0, %v3231
      %3233 = vmatmul.f32.gmra.mxu0 %v3122
      %v3234 = vpop.f32.mrf.mxu0
      %v3235 = vadd.f32 0.0, %v3234
      %3236 = vmatmul.f32.gmra.mxu0 %v3125
      %v3237 = vpop.f32.mrf.mxu0
      %v3238 = vadd.f32 0.0, %v3237
      %3239 = vmatmul.f32.gmra.mxu0 %v3128
      %v3240 = vpop.f32.mrf.mxu0
      %v3241 = vadd.f32 0.0, %v3240
      %3242 = vmatmul.f32.gmra.mxu0 %v3131
      %v3243 = vpop.f32.mrf.mxu0
      %v3244 = vadd.f32 0.0, %v3243
      %3245 = vmatmul.f32.gmra.mxu0 %v3134
      %v3246 = vpop.f32.mrf.mxu0
      %v3247 = vadd.f32 0.0, %v3246
      %3248 = vmatmul.f32.gmra.mxu0 %v3137
      %v3249 = vpop.f32.mrf.mxu0
      %v3250 = vadd.f32 0.0, %v3249
      %3251 = vmatmul.f32.gmra.mxu0 %v3140
      %v3252 = vpop.f32.mrf.mxu0
      %v3253 = vadd.f32 0.0, %v3252
      %3254 = vmatmul.f32.gmra.mxu0 %v3143
      %v3255 = vpop.f32.mrf.mxu0
      %v3256 = vadd.f32 0.0, %v3255
      %3257 = vmatmul.f32.gmra.mxu0 %v3146
      %v3258 = vpop.f32.mrf.mxu0
      %v3259 = vadd.f32 0.0, %v3258
      %3260 = vmatmul.f32.gmra.mxu0 %v3149
      %v3261 = vpop.f32.mrf.mxu0
      %v3262 = vadd.f32 0.0, %v3261
      %3263 = vdwg.mxu0
      %v3265 = vsel %vm2835, %v2988, 0
      %v3268 = vsel %vm2835, %v2989, 0
      %v3271 = vsel %vm2835, %v2990, 0
      %v3274 = vsel %vm2835, %v2991, 0
      %v3277 = vsel %vm2835, %v2992, 0
      %v3280 = vsel %vm2835, %v2993, 0
      %v3283 = vsel %vm2835, %v2994, 0
      %v3286 = vsel %vm2835, %v2995, 0
      %v3289 = vsel %vm2835, %v2996, 0
      %v3292 = vsel %vm2835, %v2997, 0
      %v3295 = vsel %vm2835, %v2998, 0
      %v3298 = vsel %vm2835, %v2999, 0
      %v3301 = vsel %vm2835, %v3000, 0
      %v3304 = vsel %vm2835, %v3001, 0
      %v3307 = vsel %vm2835, %v3002, 0
      %v3310 = vsel %vm2835, %v3003, 0
      %v3313 = vsel %vm2835, %v3004, 0
      %v3316 = vsel %vm2835, %v3005, 0
      %v3319 = vsel %vm2835, %v3006, 0
      %v3322 = vsel %vm2835, %v3007, 0
      %v3325 = vsel %vm2835, %v3008, 0
      %v3328 = vsel %vm2835, %v3009, 0
      %v3331 = vsel %vm2835, %v3010, 0
      %v3334 = vsel %vm2835, %v3011, 0
      %v3337 = vsel %vm2835, %v3012, 0
      %v3340 = vsel %vm2835, %v3013, 0
      %v3343 = vsel %vm2835, %v3014, 0
      %v3346 = vsel %vm2835, %v3015, 0
      %v3349 = vsel %vm2835, %v3016, 0
      %v3352 = vsel %vm2835, %v3017, 0
      %v3355 = vsel %vm2835, %v3018, 0
      %v3358 = vsel %vm2835, %v3019, 0
      %3360 = vmatpush.msra.mxu0 0.0
      %3361 = vmatpush.msra.mxu0 0.0
      %3362 = vmatpush.msra.mxu0 0.0
      %3363 = vmatpush.msra.mxu0 0.0
      %3364 = vmatpush.msra.mxu0 0.0
      %3365 = vmatpush.msra.mxu0 0.0
      %3366 = vmatpush.msra.mxu0 0.0
      %3367 = vmatpush.msra.mxu0 0.0
      %3368 = vmatpush.msra.mxu0 0.0
      %3369 = vmatpush.msra.mxu0 0.0
      %3370 = vmatpush.msra.mxu0 0.0
      %3371 = vmatpush.msra.mxu0 0.0
      %3372 = vmatpush.msra.mxu0 0.0
      %3373 = vmatpush.msra.mxu0 0.0
      %3374 = vmatpush.msra.mxu0 0.0
      %3375 = vmatpush.msra.mxu0 %v3020
      %3376 = vmatmul.f32.gmra.mxu0 %v3265
      %v3377 = vpop.f32.mrf.mxu0
      %v3378 = vadd.f32 %v3169, %v3377
      %3379 = vmatmul.f32.gmra.mxu0 %v3268
      %v3380 = vpop.f32.mrf.mxu0
      %v3381 = vadd.f32 %v3172, %v3380
      %3382 = vmatmul.f32.gmra.mxu0 %v3271
      %v3383 = vpop.f32.mrf.mxu0
      %v3384 = vadd.f32 %v3175, %v3383
      %3385 = vmatmul.f32.gmra.mxu0 %v3274
      %v3386 = vpop.f32.mrf.mxu0
      %v3387 = vadd.f32 %v3178, %v3386
      %3388 = vmatmul.f32.gmra.mxu0 %v3277
      %v3389 = vpop.f32.mrf.mxu0
      %v3390 = vadd.f32 %v3181, %v3389
      %3391 = vmatmul.f32.gmra.mxu0 %v3280
      %v3392 = vpop.f32.mrf.mxu0
      %v3393 = vadd.f32 %v3184, %v3392
      %3394 = vmatmul.f32.gmra.mxu0 %v3283
      %v3395 = vpop.f32.mrf.mxu0
      %v3396 = vadd.f32 %v3187, %v3395
      %3397 = vmatmul.f32.gmra.mxu0 %v3286
      %v3398 = vpop.f32.mrf.mxu0
      %v3399 = vadd.f32 %v3190, %v3398
      %3400 = vmatmul.f32.gmra.mxu0 %v3289
      %v3401 = vpop.f32.mrf.mxu0
      %v3402 = vadd.f32 %v3193, %v3401
      %3403 = vmatmul.f32.gmra.mxu0 %v3292
      %v3404 = vpop.f32.mrf.mxu0
      %v3405 = vadd.f32 %v3196, %v3404
      %3406 = vmatmul.f32.gmra.mxu0 %v3295
      %v3407 = vpop.f32.mrf.mxu0
      %v3408 = vadd.f32 %v3199, %v3407
      %3409 = vmatmul.f32.gmra.mxu0 %v3298
      %v3410 = vpop.f32.mrf.mxu0
      %v3411 = vadd.f32 %v3202, %v3410
      %3412 = vmatmul.f32.gmra.mxu0 %v3301
      %v3413 = vpop.f32.mrf.mxu0
      %v3414 = vadd.f32 %v3205, %v3413
      %3415 = vmatmul.f32.gmra.mxu0 %v3304
      %v3416 = vpop.f32.mrf.mxu0
      %v3417 = vadd.f32 %v3208, %v3416
      %3418 = vmatmul.f32.gmra.mxu0 %v3307
      %v3419 = vpop.f32.mrf.mxu0
      %v3420 = vadd.f32 %v3211, %v3419
      %3421 = vmatmul.f32.gmra.mxu0 %v3310
      %v3422 = vpop.f32.mrf.mxu0
      %v3423 = vadd.f32 %v3214, %v3422
      %3424 = vmatmul.f32.gmra.mxu0 %v3313
      %v3425 = vpop.f32.mrf.mxu0
      %v3426 = vadd.f32 %v3217, %v3425
      %3427 = vmatmul.f32.gmra.mxu0 %v3316
      %v3428 = vpop.f32.mrf.mxu0
      %v3429 = vadd.f32 %v3220, %v3428
      %3430 = vmatmul.f32.gmra.mxu0 %v3319
      %v3431 = vpop.f32.mrf.mxu0
      %v3432 = vadd.f32 %v3223, %v3431
      %3433 = vmatmul.f32.gmra.mxu0 %v3322
      %v3434 = vpop.f32.mrf.mxu0
      %v3435 = vadd.f32 %v3226, %v3434
      %3436 = vmatmul.f32.gmra.mxu0 %v3325
      %v3437 = vpop.f32.mrf.mxu0
      %v3438 = vadd.f32 %v3229, %v3437
      %3439 = vmatmul.f32.gmra.mxu0 %v3328
      %v3440 = vpop.f32.mrf.mxu0
      %v3441 = vadd.f32 %v3232, %v3440
      %3442 = vmatmul.f32.gmra.mxu0 %v3331
      %v3443 = vpop.f32.mrf.mxu0
      %v3444 = vadd.f32 %v3235, %v3443
      %3445 = vmatmul.f32.gmra.mxu0 %v3334
      %v3446 = vpop.f32.mrf.mxu0
      %v3447 = vadd.f32 %v3238, %v3446
      %3448 = vmatmul.f32.gmra.mxu0 %v3337
      %v3449 = vpop.f32.mrf.mxu0
      %v3450 = vadd.f32 %v3241, %v3449
      %3451 = vmatmul.f32.gmra.mxu0 %v3340
      %v3452 = vpop.f32.mrf.mxu0
      %v3453 = vadd.f32 %v3244, %v3452
      %3454 = vmatmul.f32.gmra.mxu0 %v3343
      %v3455 = vpop.f32.mrf.mxu0
      %v3456 = vadd.f32 %v3247, %v3455
      %3457 = vmatmul.f32.gmra.mxu0 %v3346
      %v3458 = vpop.f32.mrf.mxu0
      %v3459 = vadd.f32 %v3250, %v3458
      %3460 = vmatmul.f32.gmra.mxu0 %v3349
      %v3461 = vpop.f32.mrf.mxu0
      %v3462 = vadd.f32 %v3253, %v3461
      %3463 = vmatmul.f32.gmra.mxu0 %v3352
      %v3464 = vpop.f32.mrf.mxu0
      %v3465 = vadd.f32 %v3256, %v3464
      %3466 = vmatmul.f32.gmra.mxu0 %v3355
      %v3467 = vpop.f32.mrf.mxu0
      %v3468 = vadd.f32 %v3259, %v3467
      %3469 = vmatmul.f32.gmra.mxu0 %v3358
      %v3470 = vpop.f32.mrf.mxu0
      %v3471 = vadd.f32 %v3262, %v3470
      %3472 = vdwg.mxu0
      %v3473 = vld [vmem:[#allocation2 + $0x2] sm:$0xff]
      %v3474 = vld [vmem:[#allocation2 + $0xa] sm:$0xff]
      %v3475 = vld [vmem:[#allocation2 + $0x1a] sm:$0xff]
      %v3476 = vld [vmem:[#allocation2 + $0x22] sm:$0xff]
      %v3477 = vld [vmem:[#allocation2 + $0x32] sm:$0xff]
      %v3478 = vld [vmem:[#allocation2 + $0x3a] sm:$0xff]
      %v3479 = vld [vmem:[#allocation2 + $0x4a] sm:$0xff]
      %v3480 = vld [vmem:[#allocation2 + $0x52] sm:$0xff]
      %v3481 = vld [vmem:[#allocation2 + $0x62] sm:$0xff]
      %v3482 = vld [vmem:[#allocation2 + $0x6a] sm:$0xff]
      %v3483 = vld [vmem:[#allocation2 + $0x7a] sm:$0xff]
      %v3484 = vld [vmem:[#allocation2 + $0x82] sm:$0xff]
      %v3485 = vld [vmem:[#allocation2 + $0x92] sm:$0xff]
      %v3486 = vld [vmem:[#allocation2 + $0x9a] sm:$0xff]
      %v3487 = vld [vmem:[#allocation2 + $0xaa] sm:$0xff]
      %v3488 = vld [vmem:[#allocation2 + $0xb2] sm:$0xff]
      %v3489 = vld [vmem:[#allocation2 + $0xc2] sm:$0xff]
      %v3490 = vld [vmem:[#allocation2 + $0xca] sm:$0xff]
      %v3491 = vld [vmem:[#allocation2 + $0xda] sm:$0xff]
      %v3492 = vld [vmem:[#allocation2 + $0xe2] sm:$0xff]
      %v3493 = vld [vmem:[#allocation2 + $0xf2] sm:$0xff]
      %v3494 = vld [vmem:[#allocation2 + $0xfa] sm:$0xff]
      %v3495 = vld [vmem:[#allocation2 + $0x10a] sm:$0xff]
      %v3496 = vld [vmem:[#allocation2 + $0x112] sm:$0xff]
      %v3497 = vld [vmem:[#allocation2 + $0x122] sm:$0xff]
      %v3498 = vld [vmem:[#allocation2 + $0x12a] sm:$0xff]
      %v3499 = vld [vmem:[#allocation2 + $0x13a] sm:$0xff]
      %v3500 = vld [vmem:[#allocation2 + $0x142] sm:$0xff]
      %v3501 = vld [vmem:[#allocation2 + $0x152] sm:$0xff]
      %v3502 = vld [vmem:[#allocation2 + $0x15a] sm:$0xff]
      %v3503 = vld [vmem:[#allocation2 + $0x16a] sm:$0xff]
      %v3504 = vld [vmem:[#allocation2 + $0x172] sm:$0xff]
      %s3505 = scalar_lea.vmem %s3, 16
      %v3506 = vld [vmem:[%s3505] sm:$0xff]
      %v3508 = vsel %vm2835, %v3473, 0
      %v3511 = vsel %vm2835, %v3474, 0
      %v3514 = vsel %vm2835, %v3475, 0
      %v3517 = vsel %vm2835, %v3476, 0
      %v3520 = vsel %vm2835, %v3477, 0
      %v3523 = vsel %vm2835, %v3478, 0
      %v3526 = vsel %vm2835, %v3479, 0
      %v3529 = vsel %vm2835, %v3480, 0
      %v3532 = vsel %vm2835, %v3481, 0
      %v3535 = vsel %vm2835, %v3482, 0
      %v3538 = vsel %vm2835, %v3483, 0
      %v3541 = vsel %vm2835, %v3484, 0
      %v3544 = vsel %vm2835, %v3485, 0
      %v3547 = vsel %vm2835, %v3486, 0
      %v3550 = vsel %vm2835, %v3487, 0
      %v3553 = vsel %vm2835, %v3488, 0
      %v3556 = vsel %vm2835, %v3489, 0
      %v3559 = vsel %vm2835, %v3490, 0
      %v3562 = vsel %vm2835, %v3491, 0
      %v3565 = vsel %vm2835, %v3492, 0
      %v3568 = vsel %vm2835, %v3493, 0
      %v3571 = vsel %vm2835, %v3494, 0
      %v3574 = vsel %vm2835, %v3495, 0
      %v3577 = vsel %vm2835, %v3496, 0
      %v3580 = vsel %vm2835, %v3497, 0
      %v3583 = vsel %vm2835, %v3498, 0
      %v3586 = vsel %vm2835, %v3499, 0
      %v3589 = vsel %vm2835, %v3500, 0
      %v3592 = vsel %vm2835, %v3501, 0
      %v3595 = vsel %vm2835, %v3502, 0
      %v3598 = vsel %vm2835, %v3503, 0
      %v3601 = vsel %vm2835, %v3504, 0
      %3603 = vmatpush.msra.mxu0 0.0
      %3604 = vmatpush.msra.mxu0 0.0
      %3605 = vmatpush.msra.mxu0 0.0
      %3606 = vmatpush.msra.mxu0 0.0
      %3607 = vmatpush.msra.mxu0 0.0
      %3608 = vmatpush.msra.mxu0 0.0
      %3609 = vmatpush.msra.mxu0 0.0
      %3610 = vmatpush.msra.mxu0 0.0
      %3611 = vmatpush.msra.mxu0 0.0
      %3612 = vmatpush.msra.mxu0 0.0
      %3613 = vmatpush.msra.mxu0 0.0
      %3614 = vmatpush.msra.mxu0 0.0
      %3615 = vmatpush.msra.mxu0 0.0
      %3616 = vmatpush.msra.mxu0 0.0
      %3617 = vmatpush.msra.mxu0 0.0
      %3618 = vmatpush.msra.mxu0 %v3506
      %3619 = vmatmul.f32.gmra.mxu0 %v3508
      %v3620 = vpop.f32.mrf.mxu0
      %v3621 = vadd.f32 0.0, %v3620
      %3622 = vmatmul.f32.gmra.mxu0 %v3511
      %v3623 = vpop.f32.mrf.mxu0
      %v3624 = vadd.f32 0.0, %v3623
      %3625 = vmatmul.f32.gmra.mxu0 %v3514
      %v3626 = vpop.f32.mrf.mxu0
      %v3627 = vadd.f32 0.0, %v3626
      %3628 = vmatmul.f32.gmra.mxu0 %v3517
      %v3629 = vpop.f32.mrf.mxu0
      %v3630 = vadd.f32 0.0, %v3629
      %3631 = vmatmul.f32.gmra.mxu0 %v3520
      %v3632 = vpop.f32.mrf.mxu0
      %v3633 = vadd.f32 0.0, %v3632
      %3634 = vmatmul.f32.gmra.mxu0 %v3523
      %v3635 = vpop.f32.mrf.mxu0
      %v3636 = vadd.f32 0.0, %v3635
      %3637 = vmatmul.f32.gmra.mxu0 %v3526
      %v3638 = vpop.f32.mrf.mxu0
      %v3639 = vadd.f32 0.0, %v3638
      %3640 = vmatmul.f32.gmra.mxu0 %v3529
      %v3641 = vpop.f32.mrf.mxu0
      %v3642 = vadd.f32 0.0, %v3641
      %3643 = vmatmul.f32.gmra.mxu0 %v3532
      %v3644 = vpop.f32.mrf.mxu0
      %v3645 = vadd.f32 0.0, %v3644
      %3646 = vmatmul.f32.gmra.mxu0 %v3535
      %v3647 = vpop.f32.mrf.mxu0
      %v3648 = vadd.f32 0.0, %v3647
      %3649 = vmatmul.f32.gmra.mxu0 %v3538
      %v3650 = vpop.f32.mrf.mxu0
      %v3651 = vadd.f32 0.0, %v3650
      %3652 = vmatmul.f32.gmra.mxu0 %v3541
      %v3653 = vpop.f32.mrf.mxu0
      %v3654 = vadd.f32 0.0, %v3653
      %3655 = vmatmul.f32.gmra.mxu0 %v3544
      %v3656 = vpop.f32.mrf.mxu0
      %v3657 = vadd.f32 0.0, %v3656
      %3658 = vmatmul.f32.gmra.mxu0 %v3547
      %v3659 = vpop.f32.mrf.mxu0
      %v3660 = vadd.f32 0.0, %v3659
      %3661 = vmatmul.f32.gmra.mxu0 %v3550
      %v3662 = vpop.f32.mrf.mxu0
      %v3663 = vadd.f32 0.0, %v3662
      %3664 = vmatmul.f32.gmra.mxu0 %v3553
      %v3665 = vpop.f32.mrf.mxu0
      %v3666 = vadd.f32 0.0, %v3665
      %3667 = vmatmul.f32.gmra.mxu0 %v3556
      %v3668 = vpop.f32.mrf.mxu0
      %v3669 = vadd.f32 0.0, %v3668
      %3670 = vmatmul.f32.gmra.mxu0 %v3559
      %v3671 = vpop.f32.mrf.mxu0
      %v3672 = vadd.f32 0.0, %v3671
      %3673 = vmatmul.f32.gmra.mxu0 %v3562
      %v3674 = vpop.f32.mrf.mxu0
      %v3675 = vadd.f32 0.0, %v3674
      %3676 = vmatmul.f32.gmra.mxu0 %v3565
      %v3677 = vpop.f32.mrf.mxu0
      %v3678 = vadd.f32 0.0, %v3677
      %3679 = vmatmul.f32.gmra.mxu0 %v3568
      %v3680 = vpop.f32.mrf.mxu0
      %v3681 = vadd.f32 0.0, %v3680
      %3682 = vmatmul.f32.gmra.mxu0 %v3571
      %v3683 = vpop.f32.mrf.mxu0
      %v3684 = vadd.f32 0.0, %v3683
      %3685 = vmatmul.f32.gmra.mxu0 %v3574
      %v3686 = vpop.f32.mrf.mxu0
      %v3687 = vadd.f32 0.0, %v3686
      %3688 = vmatmul.f32.gmra.mxu0 %v3577
      %v3689 = vpop.f32.mrf.mxu0
      %v3690 = vadd.f32 0.0, %v3689
      %3691 = vmatmul.f32.gmra.mxu0 %v3580
      %v3692 = vpop.f32.mrf.mxu0
      %v3693 = vadd.f32 0.0, %v3692
      %3694 = vmatmul.f32.gmra.mxu0 %v3583
      %v3695 = vpop.f32.mrf.mxu0
      %v3696 = vadd.f32 0.0, %v3695
      %3697 = vmatmul.f32.gmra.mxu0 %v3586
      %v3698 = vpop.f32.mrf.mxu0
      %v3699 = vadd.f32 0.0, %v3698
      %3700 = vmatmul.f32.gmra.mxu0 %v3589
      %v3701 = vpop.f32.mrf.mxu0
      %v3702 = vadd.f32 0.0, %v3701
      %3703 = vmatmul.f32.gmra.mxu0 %v3592
      %v3704 = vpop.f32.mrf.mxu0
      %v3705 = vadd.f32 0.0, %v3704
      %3706 = vmatmul.f32.gmra.mxu0 %v3595
      %v3707 = vpop.f32.mrf.mxu0
      %v3708 = vadd.f32 0.0, %v3707
      %3709 = vmatmul.f32.gmra.mxu0 %v3598
      %v3710 = vpop.f32.mrf.mxu0
      %v3711 = vadd.f32 0.0, %v3710
      %3712 = vmatmul.f32.gmra.mxu0 %v3601
      %v3713 = vpop.f32.mrf.mxu0
      %v3714 = vadd.f32 0.0, %v3713
      %3715 = vdwg.mxu0
      %v3716 = vadd.f32 %v3378, %v3621
      %v3717 = vadd.f32 %v3381, %v3624
      %v3718 = vadd.f32 %v3384, %v3627
      %v3719 = vadd.f32 %v3387, %v3630
      %v3720 = vadd.f32 %v3390, %v3633
      %v3721 = vadd.f32 %v3393, %v3636
      %v3722 = vadd.f32 %v3396, %v3639
      %v3723 = vadd.f32 %v3399, %v3642
      %v3724 = vadd.f32 %v3402, %v3645
      %v3725 = vadd.f32 %v3405, %v3648
      %v3726 = vadd.f32 %v3408, %v3651
      %v3727 = vadd.f32 %v3411, %v3654
      %v3728 = vadd.f32 %v3414, %v3657
      %v3729 = vadd.f32 %v3417, %v3660
      %v3730 = vadd.f32 %v3420, %v3663
      %v3731 = vadd.f32 %v3423, %v3666
      %v3732 = vadd.f32 %v3426, %v3669
      %v3733 = vadd.f32 %v3429, %v3672
      %v3734 = vadd.f32 %v3432, %v3675
      %v3735 = vadd.f32 %v3435, %v3678
      %v3736 = vadd.f32 %v3438, %v3681
      %v3737 = vadd.f32 %v3441, %v3684
      %v3738 = vadd.f32 %v3444, %v3687
      %v3739 = vadd.f32 %v3447, %v3690
      %v3740 = vadd.f32 %v3450, %v3693
      %v3741 = vadd.f32 %v3453, %v3696
      %v3742 = vadd.f32 %v3456, %v3699
      %v3743 = vadd.f32 %v3459, %v3702
      %v3744 = vadd.f32 %v3462, %v3705
      %v3745 = vadd.f32 %v3465, %v3708
      %v3746 = vadd.f32 %v3468, %v3711
      %v3747 = vadd.f32 %v3471, %v3714
      %v3748 = vld [vmem:[%s2955] sm:$0xff]
      %v3749 = vld [vmem:[%s2955 + $0x8] sm:$0xff]
      %v3750 = vld [vmem:[%s2955 + $0x18] sm:$0xff]
      %v3751 = vld [vmem:[%s2955 + $0x20] sm:$0xff]
      %v3752 = vld [vmem:[%s2955 + $0x30] sm:$0xff]
      %v3753 = vld [vmem:[%s2955 + $0x38] sm:$0xff]
      %v3754 = vld [vmem:[%s2955 + $0x48] sm:$0xff]
      %v3755 = vld [vmem:[%s2955 + $0x50] sm:$0xff]
      %v3756 = vld [vmem:[%s2955 + $0x60] sm:$0xff]
      %v3757 = vld [vmem:[%s2955 + $0x68] sm:$0xff]
      %v3758 = vld [vmem:[%s2955 + $0x78] sm:$0xff]
      %v3759 = vld [vmem:[%s2955 + $0x80] sm:$0xff]
      %v3760 = vld [vmem:[%s2955 + $0x90] sm:$0xff]
      %v3761 = vld [vmem:[%s2955 + $0x98] sm:$0xff]
      %v3762 = vld [vmem:[%s2955 + $0xa8] sm:$0xff]
      %v3763 = vld [vmem:[%s2955 + $0xb0] sm:$0xff]
      %v3764 = vld [vmem:[%s2955 + $0xc0] sm:$0xff]
      %v3765 = vld [vmem:[%s2955 + $0xc8] sm:$0xff]
      %v3766 = vld [vmem:[%s2955 + $0xd8] sm:$0xff]
      %v3767 = vld [vmem:[%s2955 + $0xe0] sm:$0xff]
      %v3768 = vld [vmem:[%s2955 + $0xf0] sm:$0xff]
      %v3769 = vld [vmem:[%s2955 + $0xf8] sm:$0xff]
      %v3770 = vld [vmem:[%s2955 + $0x108] sm:$0xff]
      %v3771 = vld [vmem:[%s2955 + $0x110] sm:$0xff]
      %v3772 = vld [vmem:[%s2955 + $0x120] sm:$0xff]
      %v3773 = vld [vmem:[%s2955 + $0x128] sm:$0xff]
      %v3774 = vld [vmem:[%s2955 + $0x138] sm:$0xff]
      %v3775 = vld [vmem:[%s2955 + $0x140] sm:$0xff]
      %v3776 = vld [vmem:[%s2955 + $0x150] sm:$0xff]
      %v3777 = vld [vmem:[%s2955 + $0x158] sm:$0xff]
      %v3778 = vld [vmem:[%s2955 + $0x168] sm:$0xff]
      %v3779 = vld [vmem:[%s2955 + $0x170] sm:$0xff]
      %s3780 = scalar_lea.vmem %s3, 24
      %v3781 = vld [vmem:[%s3780] sm:$0xff]
      %v3783 = vsel %vm2835, %v3748, 0
      %v3786 = vsel %vm2835, %v3749, 0
      %v3789 = vsel %vm2835, %v3750, 0
      %v3792 = vsel %vm2835, %v3751, 0
      %v3795 = vsel %vm2835, %v3752, 0
      %v3798 = vsel %vm2835, %v3753, 0
      %v3801 = vsel %vm2835, %v3754, 0
      %v3804 = vsel %vm2835, %v3755, 0
      %v3807 = vsel %vm2835, %v3756, 0
      %v3810 = vsel %vm2835, %v3757, 0
      %v3813 = vsel %vm2835, %v3758, 0
      %v3816 = vsel %vm2835, %v3759, 0
      %v3819 = vsel %vm2835, %v3760, 0
      %v3822 = vsel %vm2835, %v3761, 0
      %v3825 = vsel %vm2835, %v3762, 0
      %v3828 = vsel %vm2835, %v3763, 0
      %v3831 = vsel %vm2835, %v3764, 0
      %v3834 = vsel %vm2835, %v3765, 0
      %v3837 = vsel %vm2835, %v3766, 0
      %v3840 = vsel %vm2835, %v3767, 0
      %v3843 = vsel %vm2835, %v3768, 0
      %v3846 = vsel %vm2835, %v3769, 0
      %v3849 = vsel %vm2835, %v3770, 0
      %v3852 = vsel %vm2835, %v3771, 0
      %v3855 = vsel %vm2835, %v3772, 0
      %v3858 = vsel %vm2835, %v3773, 0
      %v3861 = vsel %vm2835, %v3774, 0
      %v3864 = vsel %vm2835, %v3775, 0
      %v3867 = vsel %vm2835, %v3776, 0
      %v3870 = vsel %vm2835, %v3777, 0
      %v3873 = vsel %vm2835, %v3778, 0
      %v3876 = vsel %vm2835, %v3779, 0
      %3878 = vmatpush.msra.mxu0 0.0
      %3879 = vmatpush.msra.mxu0 0.0
      %3880 = vmatpush.msra.mxu0 0.0
      %3881 = vmatpush.msra.mxu0 0.0
      %3882 = vmatpush.msra.mxu0 0.0
      %3883 = vmatpush.msra.mxu0 0.0
      %3884 = vmatpush.msra.mxu0 0.0
      %3885 = vmatpush.msra.mxu0 0.0
      %3886 = vmatpush.msra.mxu0 0.0
      %3887 = vmatpush.msra.mxu0 0.0
      %3888 = vmatpush.msra.mxu0 0.0
      %3889 = vmatpush.msra.mxu0 0.0
      %3890 = vmatpush.msra.mxu0 0.0
      %3891 = vmatpush.msra.mxu0 0.0
      %3892 = vmatpush.msra.mxu0 0.0
      %3893 = vmatpush.msra.mxu0 %v3781
      %3894 = vmatmul.f32.gmra.mxu0 %v3783
      %v3895 = vpop.f32.mrf.mxu0
      %v3896 = vadd.f32 0.0, %v3895
      %3897 = vmatmul.f32.gmra.mxu0 %v3786
      %v3898 = vpop.f32.mrf.mxu0
      %v3899 = vadd.f32 0.0, %v3898
      %3900 = vmatmul.f32.gmra.mxu0 %v3789
      %v3901 = vpop.f32.mrf.mxu0
      %v3902 = vadd.f32 0.0, %v3901
      %3903 = vmatmul.f32.gmra.mxu0 %v3792
      %v3904 = vpop.f32.mrf.mxu0
      %v3905 = vadd.f32 0.0, %v3904
      %3906 = vmatmul.f32.gmra.mxu0 %v3795
      %v3907 = vpop.f32.mrf.mxu0
      %v3908 = vadd.f32 0.0, %v3907
      %3909 = vmatmul.f32.gmra.mxu0 %v3798
      %v3910 = vpop.f32.mrf.mxu0
      %v3911 = vadd.f32 0.0, %v3910
      %3912 = vmatmul.f32.gmra.mxu0 %v3801
      %v3913 = vpop.f32.mrf.mxu0
      %v3914 = vadd.f32 0.0, %v3913
      %3915 = vmatmul.f32.gmra.mxu0 %v3804
      %v3916 = vpop.f32.mrf.mxu0
      %v3917 = vadd.f32 0.0, %v3916
      %3918 = vmatmul.f32.gmra.mxu0 %v3807
      %v3919 = vpop.f32.mrf.mxu0
      %v3920 = vadd.f32 0.0, %v3919
      %3921 = vmatmul.f32.gmra.mxu0 %v3810
      %v3922 = vpop.f32.mrf.mxu0
      %v3923 = vadd.f32 0.0, %v3922
      %3924 = vmatmul.f32.gmra.mxu0 %v3813
      %v3925 = vpop.f32.mrf.mxu0
      %v3926 = vadd.f32 0.0, %v3925
      %3927 = vmatmul.f32.gmra.mxu0 %v3816
      %v3928 = vpop.f32.mrf.mxu0
      %v3929 = vadd.f32 0.0, %v3928
      %3930 = vmatmul.f32.gmra.mxu0 %v3819
      %v3931 = vpop.f32.mrf.mxu0
      %v3932 = vadd.f32 0.0, %v3931
      %3933 = vmatmul.f32.gmra.mxu0 %v3822
      %v3934 = vpop.f32.mrf.mxu0
      %v3935 = vadd.f32 0.0, %v3934
      %3936 = vmatmul.f32.gmra.mxu0 %v3825
      %v3937 = vpop.f32.mrf.mxu0
      %v3938 = vadd.f32 0.0, %v3937
      %3939 = vmatmul.f32.gmra.mxu0 %v3828
      %v3940 = vpop.f32.mrf.mxu0
      %v3941 = vadd.f32 0.0, %v3940
      %3942 = vmatmul.f32.gmra.mxu0 %v3831
      %v3943 = vpop.f32.mrf.mxu0
      %v3944 = vadd.f32 0.0, %v3943
      %3945 = vmatmul.f32.gmra.mxu0 %v3834
      %v3946 = vpop.f32.mrf.mxu0
      %v3947 = vadd.f32 0.0, %v3946
      %3948 = vmatmul.f32.gmra.mxu0 %v3837
      %v3949 = vpop.f32.mrf.mxu0
      %v3950 = vadd.f32 0.0, %v3949
      %3951 = vmatmul.f32.gmra.mxu0 %v3840
      %v3952 = vpop.f32.mrf.mxu0
      %v3953 = vadd.f32 0.0, %v3952
      %3954 = vmatmul.f32.gmra.mxu0 %v3843
      %v3955 = vpop.f32.mrf.mxu0
      %v3956 = vadd.f32 0.0, %v3955
      %3957 = vmatmul.f32.gmra.mxu0 %v3846
      %v3958 = vpop.f32.mrf.mxu0
      %v3959 = vadd.f32 0.0, %v3958
      %3960 = vmatmul.f32.gmra.mxu0 %v3849
      %v3961 = vpop.f32.mrf.mxu0
      %v3962 = vadd.f32 0.0, %v3961
      %3963 = vmatmul.f32.gmra.mxu0 %v3852
      %v3964 = vpop.f32.mrf.mxu0
      %v3965 = vadd.f32 0.0, %v3964
      %3966 = vmatmul.f32.gmra.mxu0 %v3855
      %v3967 = vpop.f32.mrf.mxu0
      %v3968 = vadd.f32 0.0, %v3967
      %3969 = vmatmul.f32.gmra.mxu0 %v3858
      %v3970 = vpop.f32.mrf.mxu0
      %v3971 = vadd.f32 0.0, %v3970
      %3972 = vmatmul.f32.gmra.mxu0 %v3861
      %v3973 = vpop.f32.mrf.mxu0
      %v3974 = vadd.f32 0.0, %v3973
      %3975 = vmatmul.f32.gmra.mxu0 %v3864
      %v3976 = vpop.f32.mrf.mxu0
      %v3977 = vadd.f32 0.0, %v3976
      %3978 = vmatmul.f32.gmra.mxu0 %v3867
      %v3979 = vpop.f32.mrf.mxu0
      %v3980 = vadd.f32 0.0, %v3979
      %3981 = vmatmul.f32.gmra.mxu0 %v3870
      %v3982 = vpop.f32.mrf.mxu0
      %v3983 = vadd.f32 0.0, %v3982
      %3984 = vmatmul.f32.gmra.mxu0 %v3873
      %v3985 = vpop.f32.mrf.mxu0
      %v3986 = vadd.f32 0.0, %v3985
      %3987 = vmatmul.f32.gmra.mxu0 %v3876
      %v3988 = vpop.f32.mrf.mxu0
      %v3989 = vadd.f32 0.0, %v3988
      %3990 = vdwg.mxu0
      %v3991 = vadd.f32 %v3716, %v3896
      %v3992 = vadd.f32 %v3717, %v3899
      %v3993 = vadd.f32 %v3718, %v3902
      %v3994 = vadd.f32 %v3719, %v3905
      %v3995 = vadd.f32 %v3720, %v3908
      %v3996 = vadd.f32 %v3721, %v3911
      %v3997 = vadd.f32 %v3722, %v3914
      %v3998 = vadd.f32 %v3723, %v3917
      %v3999 = vadd.f32 %v3724, %v3920
      %v4000 = vadd.f32 %v3725, %v3923
      %v4001 = vadd.f32 %v3726, %v3926
      %v4002 = vadd.f32 %v3727, %v3929
      %v4003 = vadd.f32 %v3728, %v3932
      %v4004 = vadd.f32 %v3729, %v3935
      %v4005 = vadd.f32 %v3730, %v3938
      %v4006 = vadd.f32 %v3731, %v3941
      %v4007 = vadd.f32 %v3732, %v3944
      %v4008 = vadd.f32 %v3733, %v3947
      %v4009 = vadd.f32 %v3734, %v3950
      %v4010 = vadd.f32 %v3735, %v3953
      %v4011 = vadd.f32 %v3736, %v3956
      %v4012 = vadd.f32 %v3737, %v3959
      %v4013 = vadd.f32 %v3738, %v3962
      %v4014 = vadd.f32 %v3739, %v3965
      %v4015 = vadd.f32 %v3740, %v3968
      %v4016 = vadd.f32 %v3741, %v3971
      %v4017 = vadd.f32 %v3742, %v3974
      %v4018 = vadd.f32 %v3743, %v3977
      %v4019 = vadd.f32 %v3744, %v3980
      %v4020 = vadd.f32 %v3745, %v3983
      %v4021 = vadd.f32 %v3746, %v3986
      %v4022 = vadd.f32 %v3747, %v3989
      %v4023 = vld [vmem:[%s2955 + $0x1] sm:$0xff]
      %v4024 = vld [vmem:[%s2955 + $0x9] sm:$0xff]
      %v4025 = vld [vmem:[%s2955 + $0x19] sm:$0xff]
      %v4026 = vld [vmem:[%s2955 + $0x21] sm:$0xff]
      %v4027 = vld [vmem:[%s2955 + $0x31] sm:$0xff]
      %v4028 = vld [vmem:[%s2955 + $0x39] sm:$0xff]
      %v4029 = vld [vmem:[%s2955 + $0x49] sm:$0xff]
      %v4030 = vld [vmem:[%s2955 + $0x51] sm:$0xff]
      %v4031 = vld [vmem:[%s2955 + $0x61] sm:$0xff]
      %v4032 = vld [vmem:[%s2955 + $0x69] sm:$0xff]
      %v4033 = vld [vmem:[%s2955 + $0x79] sm:$0xff]
      %v4034 = vld [vmem:[%s2955 + $0x81] sm:$0xff]
      %v4035 = vld [vmem:[%s2955 + $0x91] sm:$0xff]
      %v4036 = vld [vmem:[%s2955 + $0x99] sm:$0xff]
      %v4037 = vld [vmem:[%s2955 + $0xa9] sm:$0xff]
      %v4038 = vld [vmem:[%s2955 + $0xb1] sm:$0xff]
      %v4039 = vld [vmem:[%s2955 + $0xc1] sm:$0xff]
      %v4040 = vld [vmem:[%s2955 + $0xc9] sm:$0xff]
      %v4041 = vld [vmem:[%s2955 + $0xd9] sm:$0xff]
      %v4042 = vld [vmem:[%s2955 + $0xe1] sm:$0xff]
      %v4043 = vld [vmem:[%s2955 + $0xf1] sm:$0xff]
      %v4044 = vld [vmem:[%s2955 + $0xf9] sm:$0xff]
      %v4045 = vld [vmem:[%s2955 + $0x109] sm:$0xff]
      %v4046 = vld [vmem:[%s2955 + $0x111] sm:$0xff]
      %v4047 = vld [vmem:[%s2955 + $0x121] sm:$0xff]
      %v4048 = vld [vmem:[%s2955 + $0x129] sm:$0xff]
      %v4049 = vld [vmem:[%s2955 + $0x139] sm:$0xff]
      %v4050 = vld [vmem:[%s2955 + $0x141] sm:$0xff]
      %v4051 = vld [vmem:[%s2955 + $0x151] sm:$0xff]
      %v4052 = vld [vmem:[%s2955 + $0x159] sm:$0xff]
      %v4053 = vld [vmem:[%s2955 + $0x169] sm:$0xff]
      %v4054 = vld [vmem:[%s2955 + $0x171] sm:$0xff]
      %s4055 = scalar_lea.vmem %s3, 32
      %v4056 = vld [vmem:[%s4055] sm:$0xff]
      %v4058 = vsel %vm2835, %v4023, 0
      %v4061 = vsel %vm2835, %v4024, 0
      %v4064 = vsel %vm2835, %v4025, 0
      %v4067 = vsel %vm2835, %v4026, 0
      %v4070 = vsel %vm2835, %v4027, 0
      %v4073 = vsel %vm2835, %v4028, 0
      %v4076 = vsel %vm2835, %v4029, 0
      %v4079 = vsel %vm2835, %v4030, 0
      %v4082 = vsel %vm2835, %v4031, 0
      %v4085 = vsel %vm2835, %v4032, 0
      %v4088 = vsel %vm2835, %v4033, 0
      %v4091 = vsel %vm2835, %v4034, 0
      %v4094 = vsel %vm2835, %v4035, 0
      %v4097 = vsel %vm2835, %v4036, 0
      %v4100 = vsel %vm2835, %v4037, 0
      %v4103 = vsel %vm2835, %v4038, 0
      %v4106 = vsel %vm2835, %v4039, 0
      %v4109 = vsel %vm2835, %v4040, 0
      %v4112 = vsel %vm2835, %v4041, 0
      %v4115 = vsel %vm2835, %v4042, 0
      %v4118 = vsel %vm2835, %v4043, 0
      %v4121 = vsel %vm2835, %v4044, 0
      %v4124 = vsel %vm2835, %v4045, 0
      %v4127 = vsel %vm2835, %v4046, 0
      %v4130 = vsel %vm2835, %v4047, 0
      %v4133 = vsel %vm2835, %v4048, 0
      %v4136 = vsel %vm2835, %v4049, 0
      %v4139 = vsel %vm2835, %v4050, 0
      %v4142 = vsel %vm2835, %v4051, 0
      %v4145 = vsel %vm2835, %v4052, 0
      %v4148 = vsel %vm2835, %v4053, 0
      %v4151 = vsel %vm2835, %v4054, 0
      %4153 = vmatpush.msra.mxu0 0.0
      %4154 = vmatpush.msra.mxu0 0.0
      %4155 = vmatpush.msra.mxu0 0.0
      %4156 = vmatpush.msra.mxu0 0.0
      %4157 = vmatpush.msra.mxu0 0.0
      %4158 = vmatpush.msra.mxu0 0.0
      %4159 = vmatpush.msra.mxu0 0.0
      %4160 = vmatpush.msra.mxu0 0.0
      %4161 = vmatpush.msra.mxu0 0.0
      %4162 = vmatpush.msra.mxu0 0.0
      %4163 = vmatpush.msra.mxu0 0.0
      %4164 = vmatpush.msra.mxu0 0.0
      %4165 = vmatpush.msra.mxu0 0.0
      %4166 = vmatpush.msra.mxu0 0.0
      %4167 = vmatpush.msra.mxu0 0.0
      %4168 = vmatpush.msra.mxu0 %v4056
      %4169 = vmatmul.f32.gmra.mxu0 %v4058
      %v4170 = vpop.f32.mrf.mxu0
      %v4171 = vadd.f32 0.0, %v4170
      %4172 = vmatmul.f32.gmra.mxu0 %v4061
      %v4173 = vpop.f32.mrf.mxu0
      %v4174 = vadd.f32 0.0, %v4173
      %4175 = vmatmul.f32.gmra.mxu0 %v4064
      %v4176 = vpop.f32.mrf.mxu0
      %v4177 = vadd.f32 0.0, %v4176
      %4178 = vmatmul.f32.gmra.mxu0 %v4067
      %v4179 = vpop.f32.mrf.mxu0
      %v4180 = vadd.f32 0.0, %v4179
      %4181 = vmatmul.f32.gmra.mxu0 %v4070
      %v4182 = vpop.f32.mrf.mxu0
      %v4183 = vadd.f32 0.0, %v4182
      %4184 = vmatmul.f32.gmra.mxu0 %v4073
      %v4185 = vpop.f32.mrf.mxu0
      %v4186 = vadd.f32 0.0, %v4185
      %4187 = vmatmul.f32.gmra.mxu0 %v4076
      %v4188 = vpop.f32.mrf.mxu0
      %v4189 = vadd.f32 0.0, %v4188
      %4190 = vmatmul.f32.gmra.mxu0 %v4079
      %v4191 = vpop.f32.mrf.mxu0
      %v4192 = vadd.f32 0.0, %v4191
      %4193 = vmatmul.f32.gmra.mxu0 %v4082
      %v4194 = vpop.f32.mrf.mxu0
      %v4195 = vadd.f32 0.0, %v4194
      %4196 = vmatmul.f32.gmra.mxu0 %v4085
      %v4197 = vpop.f32.mrf.mxu0
      %v4198 = vadd.f32 0.0, %v4197
      %4199 = vmatmul.f32.gmra.mxu0 %v4088
      %v4200 = vpop.f32.mrf.mxu0
      %v4201 = vadd.f32 0.0, %v4200
      %4202 = vmatmul.f32.gmra.mxu0 %v4091
      %v4203 = vpop.f32.mrf.mxu0
      %v4204 = vadd.f32 0.0, %v4203
      %4205 = vmatmul.f32.gmra.mxu0 %v4094
      %v4206 = vpop.f32.mrf.mxu0
      %v4207 = vadd.f32 0.0, %v4206
      %4208 = vmatmul.f32.gmra.mxu0 %v4097
      %v4209 = vpop.f32.mrf.mxu0
      %v4210 = vadd.f32 0.0, %v4209
      %4211 = vmatmul.f32.gmra.mxu0 %v4100
      %v4212 = vpop.f32.mrf.mxu0
      %v4213 = vadd.f32 0.0, %v4212
      %4214 = vmatmul.f32.gmra.mxu0 %v4103
      %v4215 = vpop.f32.mrf.mxu0
      %v4216 = vadd.f32 0.0, %v4215
      %4217 = vmatmul.f32.gmra.mxu0 %v4106
      %v4218 = vpop.f32.mrf.mxu0
      %v4219 = vadd.f32 0.0, %v4218
      %4220 = vmatmul.f32.gmra.mxu0 %v4109
      %v4221 = vpop.f32.mrf.mxu0
      %v4222 = vadd.f32 0.0, %v4221
      %4223 = vmatmul.f32.gmra.mxu0 %v4112
      %v4224 = vpop.f32.mrf.mxu0
      %v4225 = vadd.f32 0.0, %v4224
      %4226 = vmatmul.f32.gmra.mxu0 %v4115
      %v4227 = vpop.f32.mrf.mxu0
      %v4228 = vadd.f32 0.0, %v4227
      %4229 = vmatmul.f32.gmra.mxu0 %v4118
      %v4230 = vpop.f32.mrf.mxu0
      %v4231 = vadd.f32 0.0, %v4230
      %4232 = vmatmul.f32.gmra.mxu0 %v4121
      %v4233 = vpop.f32.mrf.mxu0
      %v4234 = vadd.f32 0.0, %v4233
      %4235 = vmatmul.f32.gmra.mxu0 %v4124
      %v4236 = vpop.f32.mrf.mxu0
      %v4237 = vadd.f32 0.0, %v4236
      %4238 = vmatmul.f32.gmra.mxu0 %v4127
      %v4239 = vpop.f32.mrf.mxu0
      %v4240 = vadd.f32 0.0, %v4239
      %4241 = vmatmul.f32.gmra.mxu0 %v4130
      %v4242 = vpop.f32.mrf.mxu0
      %v4243 = vadd.f32 0.0, %v4242
      %4244 = vmatmul.f32.gmra.mxu0 %v4133
      %v4245 = vpop.f32.mrf.mxu0
      %v4246 = vadd.f32 0.0, %v4245
      %4247 = vmatmul.f32.gmra.mxu0 %v4136
      %v4248 = vpop.f32.mrf.mxu0
      %v4249 = vadd.f32 0.0, %v4248
      %4250 = vmatmul.f32.gmra.mxu0 %v4139
      %v4251 = vpop.f32.mrf.mxu0
      %v4252 = vadd.f32 0.0, %v4251
      %4253 = vmatmul.f32.gmra.mxu0 %v4142
      %v4254 = vpop.f32.mrf.mxu0
      %v4255 = vadd.f32 0.0, %v4254
      %4256 = vmatmul.f32.gmra.mxu0 %v4145
      %v4257 = vpop.f32.mrf.mxu0
      %v4258 = vadd.f32 0.0, %v4257
      %4259 = vmatmul.f32.gmra.mxu0 %v4148
      %v4260 = vpop.f32.mrf.mxu0
      %v4261 = vadd.f32 0.0, %v4260
      %4262 = vmatmul.f32.gmra.mxu0 %v4151
      %v4263 = vpop.f32.mrf.mxu0
      %v4264 = vadd.f32 0.0, %v4263
      %4265 = vdwg.mxu0
      %v4266 = vadd.f32 %v3991, %v4171
      %v4267 = vadd.f32 %v3992, %v4174
      %v4268 = vadd.f32 %v3993, %v4177
      %v4269 = vadd.f32 %v3994, %v4180
      %v4270 = vadd.f32 %v3995, %v4183
      %v4271 = vadd.f32 %v3996, %v4186
      %v4272 = vadd.f32 %v3997, %v4189
      %v4273 = vadd.f32 %v3998, %v4192
      %v4274 = vadd.f32 %v3999, %v4195
      %v4275 = vadd.f32 %v4000, %v4198
      %v4276 = vadd.f32 %v4001, %v4201
      %v4277 = vadd.f32 %v4002, %v4204
      %v4278 = vadd.f32 %v4003, %v4207
      %v4279 = vadd.f32 %v4004, %v4210
      %v4280 = vadd.f32 %v4005, %v4213
      %v4281 = vadd.f32 %v4006, %v4216
      %v4282 = vadd.f32 %v4007, %v4219
      %v4283 = vadd.f32 %v4008, %v4222
      %v4284 = vadd.f32 %v4009, %v4225
      %v4285 = vadd.f32 %v4010, %v4228
      %v4286 = vadd.f32 %v4011, %v4231
      %v4287 = vadd.f32 %v4012, %v4234
      %v4288 = vadd.f32 %v4013, %v4237
      %v4289 = vadd.f32 %v4014, %v4240
      %v4290 = vadd.f32 %v4015, %v4243
      %v4291 = vadd.f32 %v4016, %v4246
      %v4292 = vadd.f32 %v4017, %v4249
      %v4293 = vadd.f32 %v4018, %v4252
      %v4294 = vadd.f32 %v4019, %v4255
      %v4295 = vadd.f32 %v4020, %v4258
      %v4296 = vadd.f32 %v4021, %v4261
      %v4297 = vadd.f32 %v4022, %v4264
      %v4298 = vld [vmem:[%s2955 + $0x2] sm:$0xff]
      %v4299 = vld [vmem:[%s2955 + $0xa] sm:$0xff]
      %v4300 = vld [vmem:[%s2955 + $0x1a] sm:$0xff]
      %v4301 = vld [vmem:[%s2955 + $0x22] sm:$0xff]
      %v4302 = vld [vmem:[%s2955 + $0x32] sm:$0xff]
      %v4303 = vld [vmem:[%s2955 + $0x3a] sm:$0xff]
      %v4304 = vld [vmem:[%s2955 + $0x4a] sm:$0xff]
      %v4305 = vld [vmem:[%s2955 + $0x52] sm:$0xff]
      %v4306 = vld [vmem:[%s2955 + $0x62] sm:$0xff]
      %v4307 = vld [vmem:[%s2955 + $0x6a] sm:$0xff]
      %v4308 = vld [vmem:[%s2955 + $0x7a] sm:$0xff]
      %v4309 = vld [vmem:[%s2955 + $0x82] sm:$0xff]
      %v4310 = vld [vmem:[%s2955 + $0x92] sm:$0xff]
      %v4311 = vld [vmem:[%s2955 + $0x9a] sm:$0xff]
      %v4312 = vld [vmem:[%s2955 + $0xaa] sm:$0xff]
      %v4313 = vld [vmem:[%s2955 + $0xb2] sm:$0xff]
      %v4314 = vld [vmem:[%s2955 + $0xc2] sm:$0xff]
      %v4315 = vld [vmem:[%s2955 + $0xca] sm:$0xff]
      %v4316 = vld [vmem:[%s2955 + $0xda] sm:$0xff]
      %v4317 = vld [vmem:[%s2955 + $0xe2] sm:$0xff]
      %v4318 = vld [vmem:[%s2955 + $0xf2] sm:$0xff]
      %v4319 = vld [vmem:[%s2955 + $0xfa] sm:$0xff]
      %v4320 = vld [vmem:[%s2955 + $0x10a] sm:$0xff]
      %v4321 = vld [vmem:[%s2955 + $0x112] sm:$0xff]
      %v4322 = vld [vmem:[%s2955 + $0x122] sm:$0xff]
      %v4323 = vld [vmem:[%s2955 + $0x12a] sm:$0xff]
      %v4324 = vld [vmem:[%s2955 + $0x13a] sm:$0xff]
      %v4325 = vld [vmem:[%s2955 + $0x142] sm:$0xff]
      %v4326 = vld [vmem:[%s2955 + $0x152] sm:$0xff]
      %v4327 = vld [vmem:[%s2955 + $0x15a] sm:$0xff]
      %v4328 = vld [vmem:[%s2955 + $0x16a] sm:$0xff]
      %v4329 = vld [vmem:[%s2955 + $0x172] sm:$0xff]
      %s4330 = scalar_lea.vmem %s3, 40
      %v4331 = vld [vmem:[%s4330] sm:$0xff]
      %v4333 = vsel %vm2835, %v4298, 0
      %v4336 = vsel %vm2835, %v4299, 0
      %v4339 = vsel %vm2835, %v4300, 0
      %v4342 = vsel %vm2835, %v4301, 0
      %v4345 = vsel %vm2835, %v4302, 0
      %v4348 = vsel %vm2835, %v4303, 0
      %v4351 = vsel %vm2835, %v4304, 0
      %v4354 = vsel %vm2835, %v4305, 0
      %v4357 = vsel %vm2835, %v4306, 0
      %v4360 = vsel %vm2835, %v4307, 0
      %v4363 = vsel %vm2835, %v4308, 0
      %v4366 = vsel %vm2835, %v4309, 0
      %v4369 = vsel %vm2835, %v4310, 0
      %v4372 = vsel %vm2835, %v4311, 0
      %v4375 = vsel %vm2835, %v4312, 0
      %v4378 = vsel %vm2835, %v4313, 0
      %v4381 = vsel %vm2835, %v4314, 0
      %v4384 = vsel %vm2835, %v4315, 0
      %v4387 = vsel %vm2835, %v4316, 0
      %v4390 = vsel %vm2835, %v4317, 0
      %v4393 = vsel %vm2835, %v4318, 0
      %v4396 = vsel %vm2835, %v4319, 0
      %v4399 = vsel %vm2835, %v4320, 0
      %v4402 = vsel %vm2835, %v4321, 0
      %v4405 = vsel %vm2835, %v4322, 0
      %v4408 = vsel %vm2835, %v4323, 0
      %v4411 = vsel %vm2835, %v4324, 0
      %v4414 = vsel %vm2835, %v4325, 0
      %v4417 = vsel %vm2835, %v4326, 0
      %v4420 = vsel %vm2835, %v4327, 0
      %v4423 = vsel %vm2835, %v4328, 0
      %v4426 = vsel %vm2835, %v4329, 0
      %4428 = vmatpush.msra.mxu0 0.0
      %4429 = vmatpush.msra.mxu0 0.0
      %4430 = vmatpush.msra.mxu0 0.0
      %4431 = vmatpush.msra.mxu0 0.0
      %4432 = vmatpush.msra.mxu0 0.0
      %4433 = vmatpush.msra.mxu0 0.0
      %4434 = vmatpush.msra.mxu0 0.0
      %4435 = vmatpush.msra.mxu0 0.0
      %4436 = vmatpush.msra.mxu0 0.0
      %4437 = vmatpush.msra.mxu0 0.0
      %4438 = vmatpush.msra.mxu0 0.0
      %4439 = vmatpush.msra.mxu0 0.0
      %4440 = vmatpush.msra.mxu0 0.0
      %4441 = vmatpush.msra.mxu0 0.0
      %4442 = vmatpush.msra.mxu0 0.0
      %4443 = vmatpush.msra.mxu0 %v4331
      %4444 = vmatmul.f32.gmra.mxu0 %v4333
      %v4445 = vpop.f32.mrf.mxu0
      %v4446 = vadd.f32 0.0, %v4445
      %4447 = vmatmul.f32.gmra.mxu0 %v4336
      %v4448 = vpop.f32.mrf.mxu0
      %v4449 = vadd.f32 0.0, %v4448
      %4450 = vmatmul.f32.gmra.mxu0 %v4339
      %v4451 = vpop.f32.mrf.mxu0
      %v4452 = vadd.f32 0.0, %v4451
      %4453 = vmatmul.f32.gmra.mxu0 %v4342
      %v4454 = vpop.f32.mrf.mxu0
      %v4455 = vadd.f32 0.0, %v4454
      %4456 = vmatmul.f32.gmra.mxu0 %v4345
      %v4457 = vpop.f32.mrf.mxu0
      %v4458 = vadd.f32 0.0, %v4457
      %4459 = vmatmul.f32.gmra.mxu0 %v4348
      %v4460 = vpop.f32.mrf.mxu0
      %v4461 = vadd.f32 0.0, %v4460
      %4462 = vmatmul.f32.gmra.mxu0 %v4351
      %v4463 = vpop.f32.mrf.mxu0
      %v4464 = vadd.f32 0.0, %v4463
      %4465 = vmatmul.f32.gmra.mxu0 %v4354
      %v4466 = vpop.f32.mrf.mxu0
      %v4467 = vadd.f32 0.0, %v4466
      %4468 = vmatmul.f32.gmra.mxu0 %v4357
      %v4469 = vpop.f32.mrf.mxu0
      %v4470 = vadd.f32 0.0, %v4469
      %4471 = vmatmul.f32.gmra.mxu0 %v4360
      %v4472 = vpop.f32.mrf.mxu0
      %v4473 = vadd.f32 0.0, %v4472
      %4474 = vmatmul.f32.gmra.mxu0 %v4363
      %v4475 = vpop.f32.mrf.mxu0
      %v4476 = vadd.f32 0.0, %v4475
      %4477 = vmatmul.f32.gmra.mxu0 %v4366
      %v4478 = vpop.f32.mrf.mxu0
      %v4479 = vadd.f32 0.0, %v4478
      %4480 = vmatmul.f32.gmra.mxu0 %v4369
      %v4481 = vpop.f32.mrf.mxu0
      %v4482 = vadd.f32 0.0, %v4481
      %4483 = vmatmul.f32.gmra.mxu0 %v4372
      %v4484 = vpop.f32.mrf.mxu0
      %v4485 = vadd.f32 0.0, %v4484
      %4486 = vmatmul.f32.gmra.mxu0 %v4375
      %v4487 = vpop.f32.mrf.mxu0
      %v4488 = vadd.f32 0.0, %v4487
      %4489 = vmatmul.f32.gmra.mxu0 %v4378
      %v4490 = vpop.f32.mrf.mxu0
      %v4491 = vadd.f32 0.0, %v4490
      %4492 = vmatmul.f32.gmra.mxu0 %v4381
      %v4493 = vpop.f32.mrf.mxu0
      %v4494 = vadd.f32 0.0, %v4493
      %4495 = vmatmul.f32.gmra.mxu0 %v4384
      %v4496 = vpop.f32.mrf.mxu0
      %v4497 = vadd.f32 0.0, %v4496
      %4498 = vmatmul.f32.gmra.mxu0 %v4387
      %v4499 = vpop.f32.mrf.mxu0
      %v4500 = vadd.f32 0.0, %v4499
      %4501 = vmatmul.f32.gmra.mxu0 %v4390
      %v4502 = vpop.f32.mrf.mxu0
      %v4503 = vadd.f32 0.0, %v4502
      %4504 = vmatmul.f32.gmra.mxu0 %v4393
      %v4505 = vpop.f32.mrf.mxu0
      %v4506 = vadd.f32 0.0, %v4505
      %4507 = vmatmul.f32.gmra.mxu0 %v4396
      %v4508 = vpop.f32.mrf.mxu0
      %v4509 = vadd.f32 0.0, %v4508
      %4510 = vmatmul.f32.gmra.mxu0 %v4399
      %v4511 = vpop.f32.mrf.mxu0
      %v4512 = vadd.f32 0.0, %v4511
      %4513 = vmatmul.f32.gmra.mxu0 %v4402
      %v4514 = vpop.f32.mrf.mxu0
      %v4515 = vadd.f32 0.0, %v4514
      %4516 = vmatmul.f32.gmra.mxu0 %v4405
      %v4517 = vpop.f32.mrf.mxu0
      %v4518 = vadd.f32 0.0, %v4517
      %4519 = vmatmul.f32.gmra.mxu0 %v4408
      %v4520 = vpop.f32.mrf.mxu0
      %v4521 = vadd.f32 0.0, %v4520
      %4522 = vmatmul.f32.gmra.mxu0 %v4411
      %v4523 = vpop.f32.mrf.mxu0
      %v4524 = vadd.f32 0.0, %v4523
      %4525 = vmatmul.f32.gmra.mxu0 %v4414
      %v4526 = vpop.f32.mrf.mxu0
      %v4527 = vadd.f32 0.0, %v4526
      %4528 = vmatmul.f32.gmra.mxu0 %v4417
      %v4529 = vpop.f32.mrf.mxu0
      %v4530 = vadd.f32 0.0, %v4529
      %4531 = vmatmul.f32.gmra.mxu0 %v4420
      %v4532 = vpop.f32.mrf.mxu0
      %v4533 = vadd.f32 0.0, %v4532
      %4534 = vmatmul.f32.gmra.mxu0 %v4423
      %v4535 = vpop.f32.mrf.mxu0
      %v4536 = vadd.f32 0.0, %v4535
      %4537 = vmatmul.f32.gmra.mxu0 %v4426
      %v4538 = vpop.f32.mrf.mxu0
      %v4539 = vadd.f32 0.0, %v4538
      %4540 = vdwg.mxu0
      %v4541 = vadd.f32 %v4266, %v4446
      %v4542 = vadd.f32 %v4267, %v4449
      %v4543 = vadd.f32 %v4268, %v4452
      %v4544 = vadd.f32 %v4269, %v4455
      %v4545 = vadd.f32 %v4270, %v4458
      %v4546 = vadd.f32 %v4271, %v4461
      %v4547 = vadd.f32 %v4272, %v4464
      %v4548 = vadd.f32 %v4273, %v4467
      %v4549 = vadd.f32 %v4274, %v4470
      %v4550 = vadd.f32 %v4275, %v4473
      %v4551 = vadd.f32 %v4276, %v4476
      %v4552 = vadd.f32 %v4277, %v4479
      %v4553 = vadd.f32 %v4278, %v4482
      %v4554 = vadd.f32 %v4279, %v4485
      %v4555 = vadd.f32 %v4280, %v4488
      %v4556 = vadd.f32 %v4281, %v4491
      %v4557 = vadd.f32 %v4282, %v4494
      %v4558 = vadd.f32 %v4283, %v4497
      %v4559 = vadd.f32 %v4284, %v4500
      %v4560 = vadd.f32 %v4285, %v4503
      %v4561 = vadd.f32 %v4286, %v4506
      %v4562 = vadd.f32 %v4287, %v4509
      %v4563 = vadd.f32 %v4288, %v4512
      %v4564 = vadd.f32 %v4289, %v4515
      %v4565 = vadd.f32 %v4290, %v4518
      %v4566 = vadd.f32 %v4291, %v4521
      %v4567 = vadd.f32 %v4292, %v4524
      %v4568 = vadd.f32 %v4293, %v4527
      %v4569 = vadd.f32 %v4294, %v4530
      %v4570 = vadd.f32 %v4295, %v4533
      %v4571 = vadd.f32 %v4296, %v4536
      %v4572 = vadd.f32 %v4297, %v4539
      %s4573 = scalar_lea.vmem [#allocation2], 48
      %v4574 = vld [vmem:[%s4573] sm:$0xff]
      %v4575 = vld [vmem:[%s4573 + $0x8] sm:$0xff]
      %v4576 = vld [vmem:[%s4573 + $0x18] sm:$0xff]
      %v4577 = vld [vmem:[%s4573 + $0x20] sm:$0xff]
      %v4578 = vld [vmem:[%s4573 + $0x30] sm:$0xff]
      %v4579 = vld [vmem:[%s4573 + $0x38] sm:$0xff]
      %v4580 = vld [vmem:[%s4573 + $0x48] sm:$0xff]
      %v4581 = vld [vmem:[%s4573 + $0x50] sm:$0xff]
      %v4582 = vld [vmem:[%s4573 + $0x60] sm:$0xff]
      %v4583 = vld [vmem:[%s4573 + $0x68] sm:$0xff]
      %v4584 = vld [vmem:[%s4573 + $0x78] sm:$0xff]
      %v4585 = vld [vmem:[%s4573 + $0x80] sm:$0xff]
      %v4586 = vld [vmem:[%s4573 + $0x90] sm:$0xff]
      %v4587 = vld [vmem:[%s4573 + $0x98] sm:$0xff]
      %v4588 = vld [vmem:[%s4573 + $0xa8] sm:$0xff]
      %v4589 = vld [vmem:[%s4573 + $0xb0] sm:$0xff]
      %v4590 = vld [vmem:[%s4573 + $0xc0] sm:$0xff]
      %v4591 = vld [vmem:[%s4573 + $0xc8] sm:$0xff]
      %v4592 = vld [vmem:[%s4573 + $0xd8] sm:$0xff]
      %v4593 = vld [vmem:[%s4573 + $0xe0] sm:$0xff]
      %v4594 = vld [vmem:[%s4573 + $0xf0] sm:$0xff]
      %v4595 = vld [vmem:[%s4573 + $0xf8] sm:$0xff]
      %v4596 = vld [vmem:[%s4573 + $0x108] sm:$0xff]
      %v4597 = vld [vmem:[%s4573 + $0x110] sm:$0xff]
      %v4598 = vld [vmem:[%s4573 + $0x120] sm:$0xff]
      %v4599 = vld [vmem:[%s4573 + $0x128] sm:$0xff]
      %v4600 = vld [vmem:[%s4573 + $0x138] sm:$0xff]
      %v4601 = vld [vmem:[%s4573 + $0x140] sm:$0xff]
      %v4602 = vld [vmem:[%s4573 + $0x150] sm:$0xff]
      %v4603 = vld [vmem:[%s4573 + $0x158] sm:$0xff]
      %v4604 = vld [vmem:[%s4573 + $0x168] sm:$0xff]
      %v4605 = vld [vmem:[%s4573 + $0x170] sm:$0xff]
      %s4606 = scalar_lea.vmem %s3, 48
      %v4607 = vld [vmem:[%s4606] sm:$0xff]
      %v4609 = vsel %vm2835, %v4574, 0
      %v4612 = vsel %vm2835, %v4575, 0
      %v4615 = vsel %vm2835, %v4576, 0
      %v4618 = vsel %vm2835, %v4577, 0
      %v4621 = vsel %vm2835, %v4578, 0
      %v4624 = vsel %vm2835, %v4579, 0
      %v4627 = vsel %vm2835, %v4580, 0
      %v4630 = vsel %vm2835, %v4581, 0
      %v4633 = vsel %vm2835, %v4582, 0
      %v4636 = vsel %vm2835, %v4583, 0
      %v4639 = vsel %vm2835, %v4584, 0
      %v4642 = vsel %vm2835, %v4585, 0
      %v4645 = vsel %vm2835, %v4586, 0
      %v4648 = vsel %vm2835, %v4587, 0
      %v4651 = vsel %vm2835, %v4588, 0
      %v4654 = vsel %vm2835, %v4589, 0
      %v4657 = vsel %vm2835, %v4590, 0
      %v4660 = vsel %vm2835, %v4591, 0
      %v4663 = vsel %vm2835, %v4592, 0
      %v4666 = vsel %vm2835, %v4593, 0
      %v4669 = vsel %vm2835, %v4594, 0
      %v4672 = vsel %vm2835, %v4595, 0
      %v4675 = vsel %vm2835, %v4596, 0
      %v4678 = vsel %vm2835, %v4597, 0
      %v4681 = vsel %vm2835, %v4598, 0
      %v4684 = vsel %vm2835, %v4599, 0
      %v4687 = vsel %vm2835, %v4600, 0
      %v4690 = vsel %vm2835, %v4601, 0
      %v4693 = vsel %vm2835, %v4602, 0
      %v4696 = vsel %vm2835, %v4603, 0
      %v4699 = vsel %vm2835, %v4604, 0
      %v4702 = vsel %vm2835, %v4605, 0
      %4704 = vmatpush.msra.mxu0 0.0
      %4705 = vmatpush.msra.mxu0 0.0
      %4706 = vmatpush.msra.mxu0 0.0
      %4707 = vmatpush.msra.mxu0 0.0
      %4708 = vmatpush.msra.mxu0 0.0
      %4709 = vmatpush.msra.mxu0 0.0
      %4710 = vmatpush.msra.mxu0 0.0
      %4711 = vmatpush.msra.mxu0 0.0
      %4712 = vmatpush.msra.mxu0 0.0
      %4713 = vmatpush.msra.mxu0 0.0
      %4714 = vmatpush.msra.mxu0 0.0
      %4715 = vmatpush.msra.mxu0 0.0
      %4716 = vmatpush.msra.mxu0 0.0
      %4717 = vmatpush.msra.mxu0 0.0
      %4718 = vmatpush.msra.mxu0 0.0
      %4719 = vmatpush.msra.mxu0 %v4607
      %4720 = vmatmul.f32.gmra.mxu0 %v4609
      %v4721 = vpop.f32.mrf.mxu0
      %v4722 = vadd.f32 0.0, %v4721
      %4723 = vmatmul.f32.gmra.mxu0 %v4612
      %v4724 = vpop.f32.mrf.mxu0
      %v4725 = vadd.f32 0.0, %v4724
      %4726 = vmatmul.f32.gmra.mxu0 %v4615
      %v4727 = vpop.f32.mrf.mxu0
      %v4728 = vadd.f32 0.0, %v4727
      %4729 = vmatmul.f32.gmra.mxu0 %v4618
      %v4730 = vpop.f32.mrf.mxu0
      %v4731 = vadd.f32 0.0, %v4730
      %4732 = vmatmul.f32.gmra.mxu0 %v4621
      %v4733 = vpop.f32.mrf.mxu0
      %v4734 = vadd.f32 0.0, %v4733
      %4735 = vmatmul.f32.gmra.mxu0 %v4624
      %v4736 = vpop.f32.mrf.mxu0
      %v4737 = vadd.f32 0.0, %v4736
      %4738 = vmatmul.f32.gmra.mxu0 %v4627
      %v4739 = vpop.f32.mrf.mxu0
      %v4740 = vadd.f32 0.0, %v4739
      %4741 = vmatmul.f32.gmra.mxu0 %v4630
      %v4742 = vpop.f32.mrf.mxu0
      %v4743 = vadd.f32 0.0, %v4742
      %4744 = vmatmul.f32.gmra.mxu0 %v4633
      %v4745 = vpop.f32.mrf.mxu0
      %v4746 = vadd.f32 0.0, %v4745
      %4747 = vmatmul.f32.gmra.mxu0 %v4636
      %v4748 = vpop.f32.mrf.mxu0
      %v4749 = vadd.f32 0.0, %v4748
      %4750 = vmatmul.f32.gmra.mxu0 %v4639
      %v4751 = vpop.f32.mrf.mxu0
      %v4752 = vadd.f32 0.0, %v4751
      %4753 = vmatmul.f32.gmra.mxu0 %v4642
      %v4754 = vpop.f32.mrf.mxu0
      %v4755 = vadd.f32 0.0, %v4754
      %4756 = vmatmul.f32.gmra.mxu0 %v4645
      %v4757 = vpop.f32.mrf.mxu0
      %v4758 = vadd.f32 0.0, %v4757
      %4759 = vmatmul.f32.gmra.mxu0 %v4648
      %v4760 = vpop.f32.mrf.mxu0
      %v4761 = vadd.f32 0.0, %v4760
      %4762 = vmatmul.f32.gmra.mxu0 %v4651
      %v4763 = vpop.f32.mrf.mxu0
      %v4764 = vadd.f32 0.0, %v4763
      %4765 = vmatmul.f32.gmra.mxu0 %v4654
      %v4766 = vpop.f32.mrf.mxu0
      %v4767 = vadd.f32 0.0, %v4766
      %4768 = vmatmul.f32.gmra.mxu0 %v4657
      %v4769 = vpop.f32.mrf.mxu0
      %v4770 = vadd.f32 0.0, %v4769
      %4771 = vmatmul.f32.gmra.mxu0 %v4660
      %v4772 = vpop.f32.mrf.mxu0
      %v4773 = vadd.f32 0.0, %v4772
      %4774 = vmatmul.f32.gmra.mxu0 %v4663
      %v4775 = vpop.f32.mrf.mxu0
      %v4776 = vadd.f32 0.0, %v4775
      %4777 = vmatmul.f32.gmra.mxu0 %v4666
      %v4778 = vpop.f32.mrf.mxu0
      %v4779 = vadd.f32 0.0, %v4778
      %4780 = vmatmul.f32.gmra.mxu0 %v4669
      %v4781 = vpop.f32.mrf.mxu0
      %v4782 = vadd.f32 0.0, %v4781
      %4783 = vmatmul.f32.gmra.mxu0 %v4672
      %v4784 = vpop.f32.mrf.mxu0
      %v4785 = vadd.f32 0.0, %v4784
      %4786 = vmatmul.f32.gmra.mxu0 %v4675
      %v4787 = vpop.f32.mrf.mxu0
      %v4788 = vadd.f32 0.0, %v4787
      %4789 = vmatmul.f32.gmra.mxu0 %v4678
      %v4790 = vpop.f32.mrf.mxu0
      %v4791 = vadd.f32 0.0, %v4790
      %4792 = vmatmul.f32.gmra.mxu0 %v4681
      %v4793 = vpop.f32.mrf.mxu0
      %v4794 = vadd.f32 0.0, %v4793
      %4795 = vmatmul.f32.gmra.mxu0 %v4684
      %v4796 = vpop.f32.mrf.mxu0
      %v4797 = vadd.f32 0.0, %v4796
      %4798 = vmatmul.f32.gmra.mxu0 %v4687
      %v4799 = vpop.f32.mrf.mxu0
      %v4800 = vadd.f32 0.0, %v4799
      %4801 = vmatmul.f32.gmra.mxu0 %v4690
      %v4802 = vpop.f32.mrf.mxu0
      %v4803 = vadd.f32 0.0, %v4802
      %4804 = vmatmul.f32.gmra.mxu0 %v4693
      %v4805 = vpop.f32.mrf.mxu0
      %v4806 = vadd.f32 0.0, %v4805
      %4807 = vmatmul.f32.gmra.mxu0 %v4696
      %v4808 = vpop.f32.mrf.mxu0
      %v4809 = vadd.f32 0.0, %v4808
      %4810 = vmatmul.f32.gmra.mxu0 %v4699
      %v4811 = vpop.f32.mrf.mxu0
      %v4812 = vadd.f32 0.0, %v4811
      %4813 = vmatmul.f32.gmra.mxu0 %v4702
      %v4814 = vpop.f32.mrf.mxu0
      %v4815 = vadd.f32 0.0, %v4814
      %4816 = vdwg.mxu0
      %v4817 = vadd.f32 %v4541, %v4722
      %v4818 = vadd.f32 %v4542, %v4725
      %v4819 = vadd.f32 %v4543, %v4728
      %v4820 = vadd.f32 %v4544, %v4731
      %v4821 = vadd.f32 %v4545, %v4734
      %v4822 = vadd.f32 %v4546, %v4737
      %v4823 = vadd.f32 %v4547, %v4740
      %v4824 = vadd.f32 %v4548, %v4743
      %v4825 = vadd.f32 %v4549, %v4746
      %v4826 = vadd.f32 %v4550, %v4749
      %v4827 = vadd.f32 %v4551, %v4752
      %v4828 = vadd.f32 %v4552, %v4755
      %v4829 = vadd.f32 %v4553, %v4758
      %v4830 = vadd.f32 %v4554, %v4761
      %v4831 = vadd.f32 %v4555, %v4764
      %v4832 = vadd.f32 %v4556, %v4767
      %v4833 = vadd.f32 %v4557, %v4770
      %v4834 = vadd.f32 %v4558, %v4773
      %v4835 = vadd.f32 %v4559, %v4776
      %v4836 = vadd.f32 %v4560, %v4779
      %v4837 = vadd.f32 %v4561, %v4782
      %v4838 = vadd.f32 %v4562, %v4785
      %v4839 = vadd.f32 %v4563, %v4788
      %v4840 = vadd.f32 %v4564, %v4791
      %v4841 = vadd.f32 %v4565, %v4794
      %v4842 = vadd.f32 %v4566, %v4797
      %v4843 = vadd.f32 %v4567, %v4800
      %v4844 = vadd.f32 %v4568, %v4803
      %v4845 = vadd.f32 %v4569, %v4806
      %v4846 = vadd.f32 %v4570, %v4809
      %v4847 = vadd.f32 %v4571, %v4812
      %v4848 = vadd.f32 %v4572, %v4815
      %v4849 = vld [vmem:[%s4573 + $0x1] sm:$0xff]
      %v4850 = vld [vmem:[%s4573 + $0x9] sm:$0xff]
      %v4851 = vld [vmem:[%s4573 + $0x19] sm:$0xff]
      %v4852 = vld [vmem:[%s4573 + $0x21] sm:$0xff]
      %v4853 = vld [vmem:[%s4573 + $0x31] sm:$0xff]
      %v4854 = vld [vmem:[%s4573 + $0x39] sm:$0xff]
      %v4855 = vld [vmem:[%s4573 + $0x49] sm:$0xff]
      %v4856 = vld [vmem:[%s4573 + $0x51] sm:$0xff]
      %v4857 = vld [vmem:[%s4573 + $0x61] sm:$0xff]
      %v4858 = vld [vmem:[%s4573 + $0x69] sm:$0xff]
      %v4859 = vld [vmem:[%s4573 + $0x79] sm:$0xff]
      %v4860 = vld [vmem:[%s4573 + $0x81] sm:$0xff]
      %v4861 = vld [vmem:[%s4573 + $0x91] sm:$0xff]
      %v4862 = vld [vmem:[%s4573 + $0x99] sm:$0xff]
      %v4863 = vld [vmem:[%s4573 + $0xa9] sm:$0xff]
      %v4864 = vld [vmem:[%s4573 + $0xb1] sm:$0xff]
      %v4865 = vld [vmem:[%s4573 + $0xc1] sm:$0xff]
      %v4866 = vld [vmem:[%s4573 + $0xc9] sm:$0xff]
      %v4867 = vld [vmem:[%s4573 + $0xd9] sm:$0xff]
      %v4868 = vld [vmem:[%s4573 + $0xe1] sm:$0xff]
      %v4869 = vld [vmem:[%s4573 + $0xf1] sm:$0xff]
      %v4870 = vld [vmem:[%s4573 + $0xf9] sm:$0xff]
      %v4871 = vld [vmem:[%s4573 + $0x109] sm:$0xff]
      %v4872 = vld [vmem:[%s4573 + $0x111] sm:$0xff]
      %v4873 = vld [vmem:[%s4573 + $0x121] sm:$0xff]
      %v4874 = vld [vmem:[%s4573 + $0x129] sm:$0xff]
      %v4875 = vld [vmem:[%s4573 + $0x139] sm:$0xff]
      %v4876 = vld [vmem:[%s4573 + $0x141] sm:$0xff]
      %v4877 = vld [vmem:[%s4573 + $0x151] sm:$0xff]
      %v4878 = vld [vmem:[%s4573 + $0x159] sm:$0xff]
      %v4879 = vld [vmem:[%s4573 + $0x169] sm:$0xff]
      %v4880 = vld [vmem:[%s4573 + $0x171] sm:$0xff]
      %s4881 = scalar_lea.vmem %s3, 56
      %v4882 = vld [vmem:[%s4881] sm:$0xff]
      %v4884 = vsel %vm2835, %v4849, 0
      %v4887 = vsel %vm2835, %v4850, 0
      %v4890 = vsel %vm2835, %v4851, 0
      %v4893 = vsel %vm2835, %v4852, 0
      %v4896 = vsel %vm2835, %v4853, 0
      %v4899 = vsel %vm2835, %v4854, 0
      %v4902 = vsel %vm2835, %v4855, 0
      %v4905 = vsel %vm2835, %v4856, 0
      %v4908 = vsel %vm2835, %v4857, 0
      %v4911 = vsel %vm2835, %v4858, 0
      %v4914 = vsel %vm2835, %v4859, 0
      %v4917 = vsel %vm2835, %v4860, 0
      %v4920 = vsel %vm2835, %v4861, 0
      %v4923 = vsel %vm2835, %v4862, 0
      %v4926 = vsel %vm2835, %v4863, 0
      %v4929 = vsel %vm2835, %v4864, 0
      %v4932 = vsel %vm2835, %v4865, 0
      %v4935 = vsel %vm2835, %v4866, 0
      %v4938 = vsel %vm2835, %v4867, 0
      %v4941 = vsel %vm2835, %v4868, 0
      %v4944 = vsel %vm2835, %v4869, 0
      %v4947 = vsel %vm2835, %v4870, 0
      %v4950 = vsel %vm2835, %v4871, 0
      %v4953 = vsel %vm2835, %v4872, 0
      %v4956 = vsel %vm2835, %v4873, 0
      %v4959 = vsel %vm2835, %v4874, 0
      %v4962 = vsel %vm2835, %v4875, 0
      %v4965 = vsel %vm2835, %v4876, 0
      %v4968 = vsel %vm2835, %v4877, 0
      %v4971 = vsel %vm2835, %v4878, 0
      %v4974 = vsel %vm2835, %v4879, 0
      %v4977 = vsel %vm2835, %v4880, 0
      %4979 = vmatpush.msra.mxu0 0.0
      %4980 = vmatpush.msra.mxu0 0.0
      %4981 = vmatpush.msra.mxu0 0.0
      %4982 = vmatpush.msra.mxu0 0.0
      %4983 = vmatpush.msra.mxu0 0.0
      %4984 = vmatpush.msra.mxu0 0.0
      %4985 = vmatpush.msra.mxu0 0.0
      %4986 = vmatpush.msra.mxu0 0.0
      %4987 = vmatpush.msra.mxu0 0.0
      %4988 = vmatpush.msra.mxu0 0.0
      %4989 = vmatpush.msra.mxu0 0.0
      %4990 = vmatpush.msra.mxu0 0.0
      %4991 = vmatpush.msra.mxu0 0.0
      %4992 = vmatpush.msra.mxu0 0.0
      %4993 = vmatpush.msra.mxu0 0.0
      %4994 = vmatpush.msra.mxu0 %v4882
      %4995 = vmatmul.f32.gmra.mxu0 %v4884
      %v4996 = vpop.f32.mrf.mxu0
      %v4997 = vadd.f32 0.0, %v4996
      %4998 = vmatmul.f32.gmra.mxu0 %v4887
      %v4999 = vpop.f32.mrf.mxu0
      %v5000 = vadd.f32 0.0, %v4999
      %5001 = vmatmul.f32.gmra.mxu0 %v4890
      %v5002 = vpop.f32.mrf.mxu0
      %v5003 = vadd.f32 0.0, %v5002
      %5004 = vmatmul.f32.gmra.mxu0 %v4893
      %v5005 = vpop.f32.mrf.mxu0
      %v5006 = vadd.f32 0.0, %v5005
      %5007 = vmatmul.f32.gmra.mxu0 %v4896
      %v5008 = vpop.f32.mrf.mxu0
      %v5009 = vadd.f32 0.0, %v5008
      %5010 = vmatmul.f32.gmra.mxu0 %v4899
      %v5011 = vpop.f32.mrf.mxu0
      %v5012 = vadd.f32 0.0, %v5011
      %5013 = vmatmul.f32.gmra.mxu0 %v4902
      %v5014 = vpop.f32.mrf.mxu0
      %v5015 = vadd.f32 0.0, %v5014
      %5016 = vmatmul.f32.gmra.mxu0 %v4905
      %v5017 = vpop.f32.mrf.mxu0
      %v5018 = vadd.f32 0.0, %v5017
      %5019 = vmatmul.f32.gmra.mxu0 %v4908
      %v5020 = vpop.f32.mrf.mxu0
      %v5021 = vadd.f32 0.0, %v5020
      %5022 = vmatmul.f32.gmra.mxu0 %v4911
      %v5023 = vpop.f32.mrf.mxu0
      %v5024 = vadd.f32 0.0, %v5023
      %5025 = vmatmul.f32.gmra.mxu0 %v4914
      %v5026 = vpop.f32.mrf.mxu0
      %v5027 = vadd.f32 0.0, %v5026
      %5028 = vmatmul.f32.gmra.mxu0 %v4917
      %v5029 = vpop.f32.mrf.mxu0
      %v5030 = vadd.f32 0.0, %v5029
      %5031 = vmatmul.f32.gmra.mxu0 %v4920
      %v5032 = vpop.f32.mrf.mxu0
      %v5033 = vadd.f32 0.0, %v5032
      %5034 = vmatmul.f32.gmra.mxu0 %v4923
      %v5035 = vpop.f32.mrf.mxu0
      %v5036 = vadd.f32 0.0, %v5035
      %5037 = vmatmul.f32.gmra.mxu0 %v4926
      %v5038 = vpop.f32.mrf.mxu0
      %v5039 = vadd.f32 0.0, %v5038
      %5040 = vmatmul.f32.gmra.mxu0 %v4929
      %v5041 = vpop.f32.mrf.mxu0
      %v5042 = vadd.f32 0.0, %v5041
      %5043 = vmatmul.f32.gmra.mxu0 %v4932
      %v5044 = vpop.f32.mrf.mxu0
      %v5045 = vadd.f32 0.0, %v5044
      %5046 = vmatmul.f32.gmra.mxu0 %v4935
      %v5047 = vpop.f32.mrf.mxu0
      %v5048 = vadd.f32 0.0, %v5047
      %5049 = vmatmul.f32.gmra.mxu0 %v4938
      %v5050 = vpop.f32.mrf.mxu0
      %v5051 = vadd.f32 0.0, %v5050
      %5052 = vmatmul.f32.gmra.mxu0 %v4941
      %v5053 = vpop.f32.mrf.mxu0
      %v5054 = vadd.f32 0.0, %v5053
      %5055 = vmatmul.f32.gmra.mxu0 %v4944
      %v5056 = vpop.f32.mrf.mxu0
      %v5057 = vadd.f32 0.0, %v5056
      %5058 = vmatmul.f32.gmra.mxu0 %v4947
      %v5059 = vpop.f32.mrf.mxu0
      %v5060 = vadd.f32 0.0, %v5059
      %5061 = vmatmul.f32.gmra.mxu0 %v4950
      %v5062 = vpop.f32.mrf.mxu0
      %v5063 = vadd.f32 0.0, %v5062
      %5064 = vmatmul.f32.gmra.mxu0 %v4953
      %v5065 = vpop.f32.mrf.mxu0
      %v5066 = vadd.f32 0.0, %v5065
      %5067 = vmatmul.f32.gmra.mxu0 %v4956
      %v5068 = vpop.f32.mrf.mxu0
      %v5069 = vadd.f32 0.0, %v5068
      %5070 = vmatmul.f32.gmra.mxu0 %v4959
      %v5071 = vpop.f32.mrf.mxu0
      %v5072 = vadd.f32 0.0, %v5071
      %5073 = vmatmul.f32.gmra.mxu0 %v4962
      %v5074 = vpop.f32.mrf.mxu0
      %v5075 = vadd.f32 0.0, %v5074
      %5076 = vmatmul.f32.gmra.mxu0 %v4965
      %v5077 = vpop.f32.mrf.mxu0
      %v5078 = vadd.f32 0.0, %v5077
      %5079 = vmatmul.f32.gmra.mxu0 %v4968
      %v5080 = vpop.f32.mrf.mxu0
      %v5081 = vadd.f32 0.0, %v5080
      %5082 = vmatmul.f32.gmra.mxu0 %v4971
      %v5083 = vpop.f32.mrf.mxu0
      %v5084 = vadd.f32 0.0, %v5083
      %5085 = vmatmul.f32.gmra.mxu0 %v4974
      %v5086 = vpop.f32.mrf.mxu0
      %v5087 = vadd.f32 0.0, %v5086
      %5088 = vmatmul.f32.gmra.mxu0 %v4977
      %v5089 = vpop.f32.mrf.mxu0
      %v5090 = vadd.f32 0.0, %v5089
      %5091 = vdwg.mxu0
      %v5092 = vadd.f32 %v4817, %v4997
      %v5093 = vadd.f32 %v4818, %v5000
      %v5094 = vadd.f32 %v4819, %v5003
      %v5095 = vadd.f32 %v4820, %v5006
      %v5096 = vadd.f32 %v4821, %v5009
      %v5097 = vadd.f32 %v4822, %v5012
      %v5098 = vadd.f32 %v4823, %v5015
      %v5099 = vadd.f32 %v4824, %v5018
      %v5100 = vadd.f32 %v4825, %v5021
      %v5101 = vadd.f32 %v4826, %v5024
      %v5102 = vadd.f32 %v4827, %v5027
      %v5103 = vadd.f32 %v4828, %v5030
      %v5104 = vadd.f32 %v4829, %v5033
      %v5105 = vadd.f32 %v4830, %v5036
      %v5106 = vadd.f32 %v4831, %v5039
      %v5107 = vadd.f32 %v4832, %v5042
      %v5108 = vadd.f32 %v4833, %v5045
      %v5109 = vadd.f32 %v4834, %v5048
      %v5110 = vadd.f32 %v4835, %v5051
      %v5111 = vadd.f32 %v4836, %v5054
      %v5112 = vadd.f32 %v4837, %v5057
      %v5113 = vadd.f32 %v4838, %v5060
      %v5114 = vadd.f32 %v4839, %v5063
      %v5115 = vadd.f32 %v4840, %v5066
      %v5116 = vadd.f32 %v4841, %v5069
      %v5117 = vadd.f32 %v4842, %v5072
      %v5118 = vadd.f32 %v4843, %v5075
      %v5119 = vadd.f32 %v4844, %v5078
      %v5120 = vadd.f32 %v4845, %v5081
      %v5121 = vadd.f32 %v4846, %v5084
      %v5122 = vadd.f32 %v4847, %v5087
      %v5123 = vadd.f32 %v4848, %v5090
      %v5124 = vld [vmem:[%s4573 + $0x2] sm:$0xff]
      %v5125 = vld [vmem:[%s4573 + $0xa] sm:$0xff]
      %v5126 = vld [vmem:[%s4573 + $0x1a] sm:$0xff]
      %v5127 = vld [vmem:[%s4573 + $0x22] sm:$0xff]
      %v5128 = vld [vmem:[%s4573 + $0x32] sm:$0xff]
      %v5129 = vld [vmem:[%s4573 + $0x3a] sm:$0xff]
      %v5130 = vld [vmem:[%s4573 + $0x4a] sm:$0xff]
      %v5131 = vld [vmem:[%s4573 + $0x52] sm:$0xff]
      %v5132 = vld [vmem:[%s4573 + $0x62] sm:$0xff]
      %v5133 = vld [vmem:[%s4573 + $0x6a] sm:$0xff]
      %v5134 = vld [vmem:[%s4573 + $0x7a] sm:$0xff]
      %v5135 = vld [vmem:[%s4573 + $0x82] sm:$0xff]
      %v5136 = vld [vmem:[%s4573 + $0x92] sm:$0xff]
      %v5137 = vld [vmem:[%s4573 + $0x9a] sm:$0xff]
      %v5138 = vld [vmem:[%s4573 + $0xaa] sm:$0xff]
      %v5139 = vld [vmem:[%s4573 + $0xb2] sm:$0xff]
      %v5140 = vld [vmem:[%s4573 + $0xc2] sm:$0xff]
      %v5141 = vld [vmem:[%s4573 + $0xca] sm:$0xff]
      %v5142 = vld [vmem:[%s4573 + $0xda] sm:$0xff]
      %v5143 = vld [vmem:[%s4573 + $0xe2] sm:$0xff]
      %v5144 = vld [vmem:[%s4573 + $0xf2] sm:$0xff]
      %v5145 = vld [vmem:[%s4573 + $0xfa] sm:$0xff]
      %v5146 = vld [vmem:[%s4573 + $0x10a] sm:$0xff]
      %v5147 = vld [vmem:[%s4573 + $0x112] sm:$0xff]
      %v5148 = vld [vmem:[%s4573 + $0x122] sm:$0xff]
      %v5149 = vld [vmem:[%s4573 + $0x12a] sm:$0xff]
      %v5150 = vld [vmem:[%s4573 + $0x13a] sm:$0xff]
      %v5151 = vld [vmem:[%s4573 + $0x142] sm:$0xff]
      %v5152 = vld [vmem:[%s4573 + $0x152] sm:$0xff]
      %v5153 = vld [vmem:[%s4573 + $0x15a] sm:$0xff]
      %v5154 = vld [vmem:[%s4573 + $0x16a] sm:$0xff]
      %v5155 = vld [vmem:[%s4573 + $0x172] sm:$0xff]
      %s5156 = scalar_lea.vmem %s3, 64
      %v5157 = vld [vmem:[%s5156] sm:$0xff]
      %v5159 = vsel %vm2835, %v5124, 0
      %v5162 = vsel %vm2835, %v5125, 0
      %v5165 = vsel %vm2835, %v5126, 0
      %v5168 = vsel %vm2835, %v5127, 0
      %v5171 = vsel %vm2835, %v5128, 0
      %v5174 = vsel %vm2835, %v5129, 0
      %v5177 = vsel %vm2835, %v5130, 0
      %v5180 = vsel %vm2835, %v5131, 0
      %v5183 = vsel %vm2835, %v5132, 0
      %v5186 = vsel %vm2835, %v5133, 0
      %v5189 = vsel %vm2835, %v5134, 0
      %v5192 = vsel %vm2835, %v5135, 0
      %v5195 = vsel %vm2835, %v5136, 0
      %v5198 = vsel %vm2835, %v5137, 0
      %v5201 = vsel %vm2835, %v5138, 0
      %v5204 = vsel %vm2835, %v5139, 0
      %v5207 = vsel %vm2835, %v5140, 0
      %v5210 = vsel %vm2835, %v5141, 0
      %v5213 = vsel %vm2835, %v5142, 0
      %v5216 = vsel %vm2835, %v5143, 0
      %v5219 = vsel %vm2835, %v5144, 0
      %v5222 = vsel %vm2835, %v5145, 0
      %v5225 = vsel %vm2835, %v5146, 0
      %v5228 = vsel %vm2835, %v5147, 0
      %v5231 = vsel %vm2835, %v5148, 0
      %v5234 = vsel %vm2835, %v5149, 0
      %v5237 = vsel %vm2835, %v5150, 0
      %v5240 = vsel %vm2835, %v5151, 0
      %v5243 = vsel %vm2835, %v5152, 0
      %v5246 = vsel %vm2835, %v5153, 0
      %v5249 = vsel %vm2835, %v5154, 0
      %v5252 = vsel %vm2835, %v5155, 0
      %5254 = vmatpush.msra.mxu0 0.0
      %5255 = vmatpush.msra.mxu0 0.0
      %5256 = vmatpush.msra.mxu0 0.0
      %5257 = vmatpush.msra.mxu0 0.0
      %5258 = vmatpush.msra.mxu0 0.0
      %5259 = vmatpush.msra.mxu0 0.0
      %5260 = vmatpush.msra.mxu0 0.0
      %5261 = vmatpush.msra.mxu0 0.0
      %5262 = vmatpush.msra.mxu0 0.0
      %5263 = vmatpush.msra.mxu0 0.0
      %5264 = vmatpush.msra.mxu0 0.0
      %5265 = vmatpush.msra.mxu0 0.0
      %5266 = vmatpush.msra.mxu0 0.0
      %5267 = vmatpush.msra.mxu0 0.0
      %5268 = vmatpush.msra.mxu0 0.0
      %5269 = vmatpush.msra.mxu0 %v5157
      %5270 = vmatmul.f32.gmra.mxu0 %v5159
      %v5271 = vpop.f32.mrf.mxu0
      %v5272 = vadd.f32 0.0, %v5271
      %5273 = vmatmul.f32.gmra.mxu0 %v5162
      %v5274 = vpop.f32.mrf.mxu0
      %v5275 = vadd.f32 0.0, %v5274
      %5276 = vmatmul.f32.gmra.mxu0 %v5165
      %v5277 = vpop.f32.mrf.mxu0
      %v5278 = vadd.f32 0.0, %v5277
      %5279 = vmatmul.f32.gmra.mxu0 %v5168
      %v5280 = vpop.f32.mrf.mxu0
      %v5281 = vadd.f32 0.0, %v5280
      %5282 = vmatmul.f32.gmra.mxu0 %v5171
      %v5283 = vpop.f32.mrf.mxu0
      %v5284 = vadd.f32 0.0, %v5283
      %5285 = vmatmul.f32.gmra.mxu0 %v5174
      %v5286 = vpop.f32.mrf.mxu0
      %v5287 = vadd.f32 0.0, %v5286
      %5288 = vmatmul.f32.gmra.mxu0 %v5177
      %v5289 = vpop.f32.mrf.mxu0
      %v5290 = vadd.f32 0.0, %v5289
      %5291 = vmatmul.f32.gmra.mxu0 %v5180
      %v5292 = vpop.f32.mrf.mxu0
      %v5293 = vadd.f32 0.0, %v5292
      %5294 = vmatmul.f32.gmra.mxu0 %v5183
      %v5295 = vpop.f32.mrf.mxu0
      %v5296 = vadd.f32 0.0, %v5295
      %5297 = vmatmul.f32.gmra.mxu0 %v5186
      %v5298 = vpop.f32.mrf.mxu0
      %v5299 = vadd.f32 0.0, %v5298
      %5300 = vmatmul.f32.gmra.mxu0 %v5189
      %v5301 = vpop.f32.mrf.mxu0
      %v5302 = vadd.f32 0.0, %v5301
      %5303 = vmatmul.f32.gmra.mxu0 %v5192
      %v5304 = vpop.f32.mrf.mxu0
      %v5305 = vadd.f32 0.0, %v5304
      %5306 = vmatmul.f32.gmra.mxu0 %v5195
      %v5307 = vpop.f32.mrf.mxu0
      %v5308 = vadd.f32 0.0, %v5307
      %5309 = vmatmul.f32.gmra.mxu0 %v5198
      %v5310 = vpop.f32.mrf.mxu0
      %v5311 = vadd.f32 0.0, %v5310
      %5312 = vmatmul.f32.gmra.mxu0 %v5201
      %v5313 = vpop.f32.mrf.mxu0
      %v5314 = vadd.f32 0.0, %v5313
      %5315 = vmatmul.f32.gmra.mxu0 %v5204
      %v5316 = vpop.f32.mrf.mxu0
      %v5317 = vadd.f32 0.0, %v5316
      %5318 = vmatmul.f32.gmra.mxu0 %v5207
      %v5319 = vpop.f32.mrf.mxu0
      %v5320 = vadd.f32 0.0, %v5319
      %5321 = vmatmul.f32.gmra.mxu0 %v5210
      %v5322 = vpop.f32.mrf.mxu0
      %v5323 = vadd.f32 0.0, %v5322
      %5324 = vmatmul.f32.gmra.mxu0 %v5213
      %v5325 = vpop.f32.mrf.mxu0
      %v5326 = vadd.f32 0.0, %v5325
      %5327 = vmatmul.f32.gmra.mxu0 %v5216
      %v5328 = vpop.f32.mrf.mxu0
      %v5329 = vadd.f32 0.0, %v5328
      %5330 = vmatmul.f32.gmra.mxu0 %v5219
      %v5331 = vpop.f32.mrf.mxu0
      %v5332 = vadd.f32 0.0, %v5331
      %5333 = vmatmul.f32.gmra.mxu0 %v5222
      %v5334 = vpop.f32.mrf.mxu0
      %v5335 = vadd.f32 0.0, %v5334
      %5336 = vmatmul.f32.gmra.mxu0 %v5225
      %v5337 = vpop.f32.mrf.mxu0
      %v5338 = vadd.f32 0.0, %v5337
      %5339 = vmatmul.f32.gmra.mxu0 %v5228
      %v5340 = vpop.f32.mrf.mxu0
      %v5341 = vadd.f32 0.0, %v5340
      %5342 = vmatmul.f32.gmra.mxu0 %v5231
      %v5343 = vpop.f32.mrf.mxu0
      %v5344 = vadd.f32 0.0, %v5343
      %5345 = vmatmul.f32.gmra.mxu0 %v5234
      %v5346 = vpop.f32.mrf.mxu0
      %v5347 = vadd.f32 0.0, %v5346
      %5348 = vmatmul.f32.gmra.mxu0 %v5237
      %v5349 = vpop.f32.mrf.mxu0
      %v5350 = vadd.f32 0.0, %v5349
      %5351 = vmatmul.f32.gmra.mxu0 %v5240
      %v5352 = vpop.f32.mrf.mxu0
      %v5353 = vadd.f32 0.0, %v5352
      %5354 = vmatmul.f32.gmra.mxu0 %v5243
      %v5355 = vpop.f32.mrf.mxu0
      %v5356 = vadd.f32 0.0, %v5355
      %5357 = vmatmul.f32.gmra.mxu0 %v5246
      %v5358 = vpop.f32.mrf.mxu0
      %v5359 = vadd.f32 0.0, %v5358
      %5360 = vmatmul.f32.gmra.mxu0 %v5249
      %v5361 = vpop.f32.mrf.mxu0
      %v5362 = vadd.f32 0.0, %v5361
      %5363 = vmatmul.f32.gmra.mxu0 %v5252
      %v5364 = vpop.f32.mrf.mxu0
      %v5365 = vadd.f32 0.0, %v5364
      %5366 = vdwg.mxu0
      %v5367 = vadd.f32 %v5092, %v5272
      %v5368 = vadd.f32 %v5093, %v5275
      %v5369 = vadd.f32 %v5094, %v5278
      %v5370 = vadd.f32 %v5095, %v5281
      %v5371 = vadd.f32 %v5096, %v5284
      %v5372 = vadd.f32 %v5097, %v5287
      %v5373 = vadd.f32 %v5098, %v5290
      %v5374 = vadd.f32 %v5099, %v5293
      %v5375 = vadd.f32 %v5100, %v5296
      %v5376 = vadd.f32 %v5101, %v5299
      %v5377 = vadd.f32 %v5102, %v5302
      %v5378 = vadd.f32 %v5103, %v5305
      %v5379 = vadd.f32 %v5104, %v5308
      %v5380 = vadd.f32 %v5105, %v5311
      %v5381 = vadd.f32 %v5106, %v5314
      %v5382 = vadd.f32 %v5107, %v5317
      %v5383 = vadd.f32 %v5108, %v5320
      %v5384 = vadd.f32 %v5109, %v5323
      %v5385 = vadd.f32 %v5110, %v5326
      %v5386 = vadd.f32 %v5111, %v5329
      %v5387 = vadd.f32 %v5112, %v5332
      %v5388 = vadd.f32 %v5113, %v5335
      %v5389 = vadd.f32 %v5114, %v5338
      %v5390 = vadd.f32 %v5115, %v5341
      %v5391 = vadd.f32 %v5116, %v5344
      %v5392 = vadd.f32 %v5117, %v5347
      %v5393 = vadd.f32 %v5118, %v5350
      %v5394 = vadd.f32 %v5119, %v5353
      %v5395 = vadd.f32 %v5120, %v5356
      %v5396 = vadd.f32 %v5121, %v5359
      %v5397 = vadd.f32 %v5122, %v5362
      %v5398 = vadd.f32 %v5123, %v5365
      %v5399 = vld [vmem:[%s4] sm:$0x1]
      %v5401 = vperm.slane %v5399, 0
      %v5403 = vadd.f32 %v5367, %v5401
      %v5404 = vadd.f32 %v5368, %v5401
      %v5405 = vadd.f32 %v5369, %v5401
      %v5406 = vadd.f32 %v5370, %v5401
      %v5407 = vadd.f32 %v5371, %v5401
      %v5408 = vadd.f32 %v5372, %v5401
      %v5409 = vadd.f32 %v5373, %v5401
      %v5410 = vadd.f32 %v5374, %v5401
      %v5411 = vadd.f32 %v5375, %v5401
      %v5412 = vadd.f32 %v5376, %v5401
      %v5413 = vadd.f32 %v5377, %v5401
      %v5414 = vadd.f32 %v5378, %v5401
      %v5415 = vadd.f32 %v5379, %v5401
      %v5416 = vadd.f32 %v5380, %v5401
      %v5417 = vadd.f32 %v5381, %v5401
      %v5418 = vadd.f32 %v5382, %v5401
      %v5419 = vadd.f32 %v5383, %v5401
      %v5420 = vadd.f32 %v5384, %v5401
      %v5421 = vadd.f32 %v5385, %v5401
      %v5422 = vadd.f32 %v5386, %v5401
      %v5423 = vadd.f32 %v5387, %v5401
      %v5424 = vadd.f32 %v5388, %v5401
      %v5425 = vadd.f32 %v5389, %v5401
      %v5426 = vadd.f32 %v5390, %v5401
      %v5427 = vadd.f32 %v5391, %v5401
      %v5428 = vadd.f32 %v5392, %v5401
      %v5429 = vadd.f32 %v5393, %v5401
      %v5430 = vadd.f32 %v5394, %v5401
      %v5431 = vadd.f32 %v5395, %v5401
      %v5432 = vadd.f32 %v5396, %v5401
      %v5433 = vadd.f32 %v5397, %v5401
      %v5434 = vadd.f32 %v5398, %v5401
      %vm5435 = vcmask 130048
      %5436 = vst.msk [vmem:[%s352] sm:$0xff] %vm5435, %v5403
      %5437 = vst.msk [vmem:[%s352 + $0x8] sm:$0xff] %vm5435, %v5404
      %5438 = vst.msk [vmem:[%s352 + $0x10] sm:$0xff] %vm5435, %v5405
      %5439 = vst.msk [vmem:[%s352 + $0x18] sm:$0xff] %vm5435, %v5406
      %5440 = vst.msk [vmem:[%s352 + $0x20] sm:$0xff] %vm5435, %v5407
      %5441 = vst.msk [vmem:[%s352 + $0x28] sm:$0xff] %vm5435, %v5408
      %5442 = vst.msk [vmem:[%s352 + $0x30] sm:$0xff] %vm5435, %v5409
      %5443 = vst.msk [vmem:[%s352 + $0x38] sm:$0xff] %vm5435, %v5410
      %5444 = vst.msk [vmem:[%s352 + $0x40] sm:$0xff] %vm5435, %v5411
      %5445 = vst.msk [vmem:[%s352 + $0x48] sm:$0xff] %vm5435, %v5412
      %5446 = vst.msk [vmem:[%s352 + $0x50] sm:$0xff] %vm5435, %v5413
      %5447 = vst.msk [vmem:[%s352 + $0x58] sm:$0xff] %vm5435, %v5414
      %5448 = vst.msk [vmem:[%s352 + $0x60] sm:$0xff] %vm5435, %v5415
      %5449 = vst.msk [vmem:[%s352 + $0x68] sm:$0xff] %vm5435, %v5416
      %5450 = vst.msk [vmem:[%s352 + $0x70] sm:$0xff] %vm5435, %v5417
      %5451 = vst.msk [vmem:[%s352 + $0x78] sm:$0xff] %vm5435, %v5418
      %5452 = vst.msk [vmem:[%s352 + $0x80] sm:$0xff] %vm5435, %v5419
      %5453 = vst.msk [vmem:[%s352 + $0x88] sm:$0xff] %vm5435, %v5420
      %5454 = vst.msk [vmem:[%s352 + $0x90] sm:$0xff] %vm5435, %v5421
      %5455 = vst.msk [vmem:[%s352 + $0x98] sm:$0xff] %vm5435, %v5422
      %5456 = vst.msk [vmem:[%s352 + $0xa0] sm:$0xff] %vm5435, %v5423
      %5457 = vst.msk [vmem:[%s352 + $0xa8] sm:$0xff] %vm5435, %v5424
      %5458 = vst.msk [vmem:[%s352 + $0xb0] sm:$0xff] %vm5435, %v5425
      %5459 = vst.msk [vmem:[%s352 + $0xb8] sm:$0xff] %vm5435, %v5426
      %5460 = vst.msk [vmem:[%s352 + $0xc0] sm:$0xff] %vm5435, %v5427
      %5461 = vst.msk [vmem:[%s352 + $0xc8] sm:$0xff] %vm5435, %v5428
      %5462 = vst.msk [vmem:[%s352 + $0xd0] sm:$0xff] %vm5435, %v5429
      %5463 = vst.msk [vmem:[%s352 + $0xd8] sm:$0xff] %vm5435, %v5430
      %5464 = vst.msk [vmem:[%s352 + $0xe0] sm:$0xff] %vm5435, %v5431
      %5465 = vst.msk [vmem:[%s352 + $0xe8] sm:$0xff] %vm5435, %v5432
      %5466 = vst.msk [vmem:[%s352 + $0xf0] sm:$0xff] %vm5435, %v5433
      %5467 = vst.msk [vmem:[%s352 + $0xf8] sm:$0xff] %vm5435, %v5434
      %5468 = vst.msk [vmem:[#allocation3] sm:$0xff] %vm5435, 0.0
      %5469 = vst.msk [vmem:[#allocation3 + $0x8] sm:$0xff] %vm5435, 0.0
      %vm5470 = vcmask 123904
      %5471 = vst.msk [vmem:[#allocation3 + $0x10] sm:$0x3] %vm5470, 0.0
      %5472 = vst.msk [vmem:[#allocation3 + $0x18] sm:$0xff] %vm5435, 0.0
      %5473 = vst.msk [vmem:[#allocation3 + $0x20] sm:$0xff] %vm5435, 0.0
      %5474 = vst.msk [vmem:[#allocation3 + $0x28] sm:$0x3] %vm5470, 0.0
      %5475 = vst.msk [vmem:[#allocation3 + $0x30] sm:$0xff] %vm5435, 0.0
      %5476 = vst.msk [vmem:[#allocation3 + $0x38] sm:$0xff] %vm5435, 0.0
      %5477 = vst.msk [vmem:[#allocation3 + $0x40] sm:$0x3] %vm5470, 0.0
      %5478 = vst.msk [vmem:[#allocation3 + $0x48] sm:$0xff] %vm5435, 0.0
      %5479 = vst.msk [vmem:[#allocation3 + $0x50] sm:$0xff] %vm5435, 0.0
      %5480 = vst.msk [vmem:[#allocation3 + $0x58] sm:$0x3] %vm5470, 0.0
      %5481 = vst.msk [vmem:[#allocation3 + $0x60] sm:$0xff] %vm5435, 0.0
      %5482 = vst.msk [vmem:[#allocation3 + $0x68] sm:$0xff] %vm5435, 0.0
      %5483 = vst.msk [vmem:[#allocation3 + $0x70] sm:$0x3] %vm5470, 0.0
      %5484 = vst.msk [vmem:[#allocation3 + $0x78] sm:$0xff] %vm5435, 0.0
      %5485 = vst.msk [vmem:[#allocation3 + $0x80] sm:$0xff] %vm5435, 0.0
      %5486 = vst.msk [vmem:[#allocation3 + $0x88] sm:$0x3] %vm5470, 0.0
      %5487 = vst.msk [vmem:[#allocation3 + $0x90] sm:$0xff] %vm5435, 0.0
      %5488 = vst.msk [vmem:[#allocation3 + $0x98] sm:$0xff] %vm5435, 0.0
      %5489 = vst.msk [vmem:[#allocation3 + $0xa0] sm:$0x3] %vm5470, 0.0
      %5490 = vst.msk [vmem:[#allocation3 + $0xa8] sm:$0xff] %vm5435, 0.0
      %5491 = vst.msk [vmem:[#allocation3 + $0xb0] sm:$0xff] %vm5435, 0.0
      %5492 = vst.msk [vmem:[#allocation3 + $0xb8] sm:$0x3] %vm5470, 0.0
      %5493 = vst.msk [vmem:[#allocation3 + $0xc0] sm:$0xff] %vm5435, 0.0
      %5494 = vst.msk [vmem:[#allocation3 + $0xc8] sm:$0xff] %vm5435, 0.0
      %5495 = vst.msk [vmem:[#allocation3 + $0xd0] sm:$0x3] %vm5470, 0.0
      %5496 = vst.msk [vmem:[#allocation3 + $0xd8] sm:$0xff] %vm5435, 0.0
      %5497 = vst.msk [vmem:[#allocation3 + $0xe0] sm:$0xff] %vm5435, 0.0
      %5498 = vst.msk [vmem:[#allocation3 + $0xe8] sm:$0x3] %vm5470, 0.0
      %5499 = vst.msk [vmem:[#allocation3 + $0xf0] sm:$0xff] %vm5435, 0.0
      %5500 = vst.msk [vmem:[#allocation3 + $0xf8] sm:$0xff] %vm5435, 0.0
      %5501 = vst.msk [vmem:[#allocation3 + $0x100] sm:$0x3] %vm5470, 0.0
      %5502 = vst.msk [vmem:[#allocation3 + $0x108] sm:$0xff] %vm5435, 0.0
      %5503 = vst.msk [vmem:[#allocation3 + $0x110] sm:$0xff] %vm5435, 0.0
      %5504 = vst.msk [vmem:[#allocation3 + $0x118] sm:$0x3] %vm5470, 0.0
      %5505 = vst.msk [vmem:[#allocation3 + $0x120] sm:$0xff] %vm5435, 0.0
      %5506 = vst.msk [vmem:[#allocation3 + $0x128] sm:$0xff] %vm5435, 0.0
      %5507 = vst.msk [vmem:[#allocation3 + $0x130] sm:$0x3] %vm5470, 0.0
      %5508 = vst.msk [vmem:[#allocation3 + $0x138] sm:$0xff] %vm5435, 0.0
      %5509 = vst.msk [vmem:[#allocation3 + $0x140] sm:$0xff] %vm5435, 0.0
      %5510 = vst.msk [vmem:[#allocation3 + $0x148] sm:$0x3] %vm5470, 0.0
      %5511 = vst.msk [vmem:[#allocation3 + $0x150] sm:$0xff] %vm5435, 0.0
      %5512 = vst.msk [vmem:[#allocation3 + $0x158] sm:$0xff] %vm5435, 0.0
      %5513 = vst.msk [vmem:[#allocation3 + $0x160] sm:$0x3] %vm5470, 0.0
      %5514 = vst.msk [vmem:[#allocation3 + $0x168] sm:$0xff] %vm5435, 0.0
      %5515 = vst.msk [vmem:[#allocation3 + $0x170] sm:$0xff] %vm5435, 0.0
      %5516 = vst.msk [vmem:[#allocation3 + $0x178] sm:$0x3] %vm5470, 0.0
      %5517 = vst.msk [vmem:[#allocation3 + $0x180] sm:$0xff] %vm5435, 0.0
      %5518 = vst.msk [vmem:[#allocation3 + $0x188] sm:$0xff] %vm5435, 0.0
      %5519 = vst.msk [vmem:[#allocation3 + $0x190] sm:$0x3] %vm5470, 0.0
      %5520 = vst.msk [vmem:[#allocation3 + $0x198] sm:$0xff] %vm5435, 0.0
      %5521 = vst.msk [vmem:[#allocation3 + $0x1a0] sm:$0xff] %vm5435, 0.0
      %5522 = vst.msk [vmem:[#allocation3 + $0x1a8] sm:$0x3] %vm5470, 0.0
      %v5523 = vmax.f32 %v5403, 0.0
      %v5524 = vmax.f32 %v5404, 0.0
      %v5525 = vmax.f32 %v5405, 0.0
      %v5526 = vmax.f32 %v5406, 0.0
      %v5527 = vmax.f32 %v5407, 0.0
      %v5528 = vmax.f32 %v5408, 0.0
      %v5529 = vmax.f32 %v5409, 0.0
      %v5530 = vmax.f32 %v5410, 0.0
      %v5531 = vmax.f32 %v5411, 0.0
      %v5532 = vmax.f32 %v5412, 0.0
      %v5533 = vmax.f32 %v5413, 0.0
      %v5534 = vmax.f32 %v5414, 0.0
      %v5535 = vmax.f32 %v5415, 0.0
      %v5536 = vmax.f32 %v5416, 0.0
      %v5537 = vmax.f32 %v5417, 0.0
      %v5538 = vmax.f32 %v5418, 0.0
      %v5539 = vmax.f32 %v5419, 0.0
      %v5540 = vmax.f32 %v5420, 0.0
      %v5541 = vmax.f32 %v5421, 0.0
      %v5542 = vmax.f32 %v5422, 0.0
      %v5543 = vmax.f32 %v5423, 0.0
      %v5544 = vmax.f32 %v5424, 0.0
      %v5545 = vmax.f32 %v5425, 0.0
      %v5546 = vmax.f32 %v5426, 0.0
      %v5547 = vmax.f32 %v5427, 0.0
      %v5548 = vmax.f32 %v5428, 0.0
      %v5549 = vmax.f32 %v5429, 0.0
      %v5550 = vmax.f32 %v5430, 0.0
      %v5551 = vmax.f32 %v5431, 0.0
      %v5552 = vmax.f32 %v5432, 0.0
      %v5553 = vmax.f32 %v5433, 0.0
      %v5554 = vmax.f32 %v5434, 0.0
      %s5555 = scalar_lea.vmem [#allocation3], 24
      %5556 = vst.msk [vmem:[%s5555 + $0x1] sm:$0xff] %vm5435, %v5523
      %5557 = vst.msk [vmem:[%s5555 + $0x9] sm:$0xff] %vm5435, %v5524
      %5558 = vst.msk [vmem:[%s5555 + $0x19] sm:$0xff] %vm5435, %v5525
      %5559 = vst.msk [vmem:[%s5555 + $0x21] sm:$0xff] %vm5435, %v5526
      %5560 = vst.msk [vmem:[%s5555 + $0x31] sm:$0xff] %vm5435, %v5527
      %5561 = vst.msk [vmem:[%s5555 + $0x39] sm:$0xff] %vm5435, %v5528
      %5562 = vst.msk [vmem:[%s5555 + $0x49] sm:$0xff] %vm5435, %v5529
      %5563 = vst.msk [vmem:[%s5555 + $0x51] sm:$0xff] %vm5435, %v5530
      %5564 = vst.msk [vmem:[%s5555 + $0x61] sm:$0xff] %vm5435, %v5531
      %5565 = vst.msk [vmem:[%s5555 + $0x69] sm:$0xff] %vm5435, %v5532
      %5566 = vst.msk [vmem:[%s5555 + $0x79] sm:$0xff] %vm5435, %v5533
      %5567 = vst.msk [vmem:[%s5555 + $0x81] sm:$0xff] %vm5435, %v5534
      %5568 = vst.msk [vmem:[%s5555 + $0x91] sm:$0xff] %vm5435, %v5535
      %5569 = vst.msk [vmem:[%s5555 + $0x99] sm:$0xff] %vm5435, %v5536
      %5570 = vst.msk [vmem:[%s5555 + $0xa9] sm:$0xff] %vm5435, %v5537
      %5571 = vst.msk [vmem:[%s5555 + $0xb1] sm:$0xff] %vm5435, %v5538
      %5572 = vst.msk [vmem:[%s5555 + $0xc1] sm:$0xff] %vm5435, %v5539
      %5573 = vst.msk [vmem:[%s5555 + $0xc9] sm:$0xff] %vm5435, %v5540
      %5574 = vst.msk [vmem:[%s5555 + $0xd9] sm:$0xff] %vm5435, %v5541
      %5575 = vst.msk [vmem:[%s5555 + $0xe1] sm:$0xff] %vm5435, %v5542
      %5576 = vst.msk [vmem:[%s5555 + $0xf1] sm:$0xff] %vm5435, %v5543
      %5577 = vst.msk [vmem:[%s5555 + $0xf9] sm:$0xff] %vm5435, %v5544
      %5578 = vst.msk [vmem:[%s5555 + $0x109] sm:$0xff] %vm5435, %v5545
      %5579 = vst.msk [vmem:[%s5555 + $0x111] sm:$0xff] %vm5435, %v5546
      %5580 = vst.msk [vmem:[%s5555 + $0x121] sm:$0xff] %vm5435, %v5547
      %5581 = vst.msk [vmem:[%s5555 + $0x129] sm:$0xff] %vm5435, %v5548
      %5582 = vst.msk [vmem:[%s5555 + $0x139] sm:$0xff] %vm5435, %v5549
      %5583 = vst.msk [vmem:[%s5555 + $0x141] sm:$0xff] %vm5435, %v5550
      %5584 = vst.msk [vmem:[%s5555 + $0x151] sm:$0xff] %vm5435, %v5551
      %5585 = vst.msk [vmem:[%s5555 + $0x159] sm:$0xff] %vm5435, %v5552
      %5586 = vst.msk [vmem:[%s5555 + $0x169] sm:$0xff] %vm5435, %v5553
      %5587 = vst.msk [vmem:[%s5555 + $0x171] sm:$0xff] %vm5435, %v5554
      %v5588 = vld [vmem:[#allocation3] sm:$0xff]
      %v5589 = vld [vmem:[#allocation3 + $0x8] sm:$0xff]
      %v5590 = vld [vmem:[#allocation3 + $0x18] sm:$0xff]
      %v5591 = vld [vmem:[#allocation3 + $0x20] sm:$0xff]
      %v5592 = vld [vmem:[#allocation3 + $0x30] sm:$0xff]
      %v5593 = vld [vmem:[#allocation3 + $0x38] sm:$0xff]
      %v5594 = vld [vmem:[#allocation3 + $0x48] sm:$0xff]
      %v5595 = vld [vmem:[#allocation3 + $0x50] sm:$0xff]
      %v5596 = vld [vmem:[#allocation3 + $0x60] sm:$0xff]
      %v5597 = vld [vmem:[#allocation3 + $0x68] sm:$0xff]
      %v5598 = vld [vmem:[#allocation3 + $0x78] sm:$0xff]
      %v5599 = vld [vmem:[#allocation3 + $0x80] sm:$0xff]
      %v5600 = vld [vmem:[#allocation3 + $0x90] sm:$0xff]
      %v5601 = vld [vmem:[#allocation3 + $0x98] sm:$0xff]
      %v5602 = vld [vmem:[#allocation3 + $0xa8] sm:$0xff]
      %v5603 = vld [vmem:[#allocation3 + $0xb0] sm:$0xff]
      %v5604 = vld [vmem:[#allocation3 + $0xc0] sm:$0xff]
      %v5605 = vld [vmem:[#allocation3 + $0xc8] sm:$0xff]
      %v5606 = vld [vmem:[#allocation3 + $0xd8] sm:$0xff]
      %v5607 = vld [vmem:[#allocation3 + $0xe0] sm:$0xff]
      %v5608 = vld [vmem:[#allocation3 + $0xf0] sm:$0xff]
      %v5609 = vld [vmem:[#allocation3 + $0xf8] sm:$0xff]
      %v5610 = vld [vmem:[#allocation3 + $0x108] sm:$0xff]
      %v5611 = vld [vmem:[#allocation3 + $0x110] sm:$0xff]
      %v5612 = vld [vmem:[#allocation3 + $0x120] sm:$0xff]
      %v5613 = vld [vmem:[#allocation3 + $0x128] sm:$0xff]
      %v5614 = vld [vmem:[#allocation3 + $0x138] sm:$0xff]
      %v5615 = vld [vmem:[#allocation3 + $0x140] sm:$0xff]
      %v5616 = vld [vmem:[#allocation3 + $0x150] sm:$0xff]
      %v5617 = vld [vmem:[#allocation3 + $0x158] sm:$0xff]
      %v5618 = vld [vmem:[#allocation3 + $0x168] sm:$0xff]
      %v5619 = vld [vmem:[#allocation3 + $0x170] sm:$0xff]
      %v5620 = vld [vmem:[%s5] sm:$0xff]
      %v5621 = vld [vmem:[%s5 + $0x8] sm:$0xff]
      %v5622 = vld [vmem:[#allocation3 + $0x1] sm:$0xff]
      %v5623 = vld [vmem:[#allocation3 + $0x9] sm:$0xff]
      %v5624 = vld [vmem:[#allocation3 + $0x19] sm:$0xff]
      %v5625 = vld [vmem:[#allocation3 + $0x21] sm:$0xff]
      %v5626 = vld [vmem:[#allocation3 + $0x31] sm:$0xff]
      %v5627 = vld [vmem:[#allocation3 + $0x39] sm:$0xff]
      %v5628 = vld [vmem:[#allocation3 + $0x49] sm:$0xff]
      %v5629 = vld [vmem:[#allocation3 + $0x51] sm:$0xff]
      %v5630 = vld [vmem:[#allocation3 + $0x61] sm:$0xff]
      %v5631 = vld [vmem:[#allocation3 + $0x69] sm:$0xff]
      %v5632 = vld [vmem:[#allocation3 + $0x79] sm:$0xff]
      %v5633 = vld [vmem:[#allocation3 + $0x81] sm:$0xff]
      %v5634 = vld [vmem:[#allocation3 + $0x91] sm:$0xff]
      %v5635 = vld [vmem:[#allocation3 + $0x99] sm:$0xff]
      %v5636 = vld [vmem:[#allocation3 + $0xa9] sm:$0xff]
      %v5637 = vld [vmem:[#allocation3 + $0xb1] sm:$0xff]
      %v5638 = vld [vmem:[#allocation3 + $0xc1] sm:$0xff]
      %v5639 = vld [vmem:[#allocation3 + $0xc9] sm:$0xff]
      %v5640 = vld [vmem:[#allocation3 + $0xd9] sm:$0xff]
      %v5641 = vld [vmem:[#allocation3 + $0xe1] sm:$0xff]
      %v5642 = vld [vmem:[#allocation3 + $0xf1] sm:$0xff]
      %v5643 = vld [vmem:[#allocation3 + $0xf9] sm:$0xff]
      %v5644 = vld [vmem:[#allocation3 + $0x109] sm:$0xff]
      %v5645 = vld [vmem:[#allocation3 + $0x111] sm:$0xff]
      %v5646 = vld [vmem:[#allocation3 + $0x121] sm:$0xff]
      %v5647 = vld [vmem:[#allocation3 + $0x129] sm:$0xff]
      %v5648 = vld [vmem:[#allocation3 + $0x139] sm:$0xff]
      %v5649 = vld [vmem:[#allocation3 + $0x141] sm:$0xff]
      %v5650 = vld [vmem:[#allocation3 + $0x151] sm:$0xff]
      %v5651 = vld [vmem:[#allocation3 + $0x159] sm:$0xff]
      %v5652 = vld [vmem:[#allocation3 + $0x169] sm:$0xff]
      %v5653 = vld [vmem:[#allocation3 + $0x171] sm:$0xff]
      %s5654 = scalar_lea.vmem %s5, 16
      %v5655 = vld [vmem:[%s5654] sm:$0xff]
      %v5656 = vld [vmem:[%s5654 + $0x8] sm:$0xff]
      %v5658 = vsel %vm5435, %v5622, 0
      %v5661 = vsel %vm5435, %v5623, 0
      %v5664 = vsel %vm5435, %v5624, 0
      %v5667 = vsel %vm5435, %v5625, 0
      %v5670 = vsel %vm5435, %v5626, 0
      %v5673 = vsel %vm5435, %v5627, 0
      %v5676 = vsel %vm5435, %v5628, 0
      %v5679 = vsel %vm5435, %v5629, 0
      %v5682 = vsel %vm5435, %v5630, 0
      %v5685 = vsel %vm5435, %v5631, 0
      %v5688 = vsel %vm5435, %v5632, 0
      %v5691 = vsel %vm5435, %v5633, 0
      %v5694 = vsel %vm5435, %v5634, 0
      %v5697 = vsel %vm5435, %v5635, 0
      %v5700 = vsel %vm5435, %v5636, 0
      %v5703 = vsel %vm5435, %v5637, 0
      %v5706 = vsel %vm5435, %v5638, 0
      %v5709 = vsel %vm5435, %v5639, 0
      %v5712 = vsel %vm5435, %v5640, 0
      %v5715 = vsel %vm5435, %v5641, 0
      %v5718 = vsel %vm5435, %v5642, 0
      %v5721 = vsel %vm5435, %v5643, 0
      %v5724 = vsel %vm5435, %v5644, 0
      %v5727 = vsel %vm5435, %v5645, 0
      %v5730 = vsel %vm5435, %v5646, 0
      %v5733 = vsel %vm5435, %v5647, 0
      %v5736 = vsel %vm5435, %v5648, 0
      %v5739 = vsel %vm5435, %v5649, 0
      %v5742 = vsel %vm5435, %v5650, 0
      %v5745 = vsel %vm5435, %v5651, 0
      %v5748 = vsel %vm5435, %v5652, 0
      %v5751 = vsel %vm5435, %v5653, 0
      %5753 = vmatpush.msra.mxu0 0.0
      %5754 = vmatpush.msra.mxu0 0.0
      %5755 = vmatpush.msra.mxu0 0.0
      %5756 = vmatpush.msra.mxu0 0.0
      %5757 = vmatpush.msra.mxu0 0.0
      %5758 = vmatpush.msra.mxu0 0.0
      %5759 = vmatpush.msra.mxu0 0.0
      %5760 = vmatpush.msra.mxu0 0.0
      %5761 = vmatpush.msra.mxu0 0.0
      %5762 = vmatpush.msra.mxu0 0.0
      %5763 = vmatpush.msra.mxu0 0.0
      %5764 = vmatpush.msra.mxu0 0.0
      %5765 = vmatpush.msra.mxu0 0.0
      %5766 = vmatpush.msra.mxu0 0.0
      %5767 = vmatpush.msra.mxu0 %v5656
      %5768 = vmatpush.msra.mxu0 %v5655
      %5769 = vmatmul.f32.gmra.mxu0 %v5658
      %v5770 = vpop.f32.mrf.mxu0
      %v5771 = vadd.f32 0.0, %v5770
      %5772 = vmatmul.f32.gmra.mxu0 %v5661
      %v5773 = vpop.f32.mrf.mxu0
      %v5774 = vadd.f32 0.0, %v5773
      %5775 = vmatmul.f32.gmra.mxu0 %v5664
      %v5776 = vpop.f32.mrf.mxu0
      %v5777 = vadd.f32 0.0, %v5776
      %5778 = vmatmul.f32.gmra.mxu0 %v5667
      %v5779 = vpop.f32.mrf.mxu0
      %v5780 = vadd.f32 0.0, %v5779
      %5781 = vmatmul.f32.gmra.mxu0 %v5670
      %v5782 = vpop.f32.mrf.mxu0
      %v5783 = vadd.f32 0.0, %v5782
      %5784 = vmatmul.f32.gmra.mxu0 %v5673
      %v5785 = vpop.f32.mrf.mxu0
      %v5786 = vadd.f32 0.0, %v5785
      %5787 = vmatmul.f32.gmra.mxu0 %v5676
      %v5788 = vpop.f32.mrf.mxu0
      %v5789 = vadd.f32 0.0, %v5788
      %5790 = vmatmul.f32.gmra.mxu0 %v5679
      %v5791 = vpop.f32.mrf.mxu0
      %v5792 = vadd.f32 0.0, %v5791
      %5793 = vmatmul.f32.gmra.mxu0 %v5682
      %v5794 = vpop.f32.mrf.mxu0
      %v5795 = vadd.f32 0.0, %v5794
      %5796 = vmatmul.f32.gmra.mxu0 %v5685
      %v5797 = vpop.f32.mrf.mxu0
      %v5798 = vadd.f32 0.0, %v5797
      %5799 = vmatmul.f32.gmra.mxu0 %v5688
      %v5800 = vpop.f32.mrf.mxu0
      %v5801 = vadd.f32 0.0, %v5800
      %5802 = vmatmul.f32.gmra.mxu0 %v5691
      %v5803 = vpop.f32.mrf.mxu0
      %v5804 = vadd.f32 0.0, %v5803
      %5805 = vmatmul.f32.gmra.mxu0 %v5694
      %v5806 = vpop.f32.mrf.mxu0
      %v5807 = vadd.f32 0.0, %v5806
      %5808 = vmatmul.f32.gmra.mxu0 %v5697
      %v5809 = vpop.f32.mrf.mxu0
      %v5810 = vadd.f32 0.0, %v5809
      %5811 = vmatmul.f32.gmra.mxu0 %v5700
      %v5812 = vpop.f32.mrf.mxu0
      %v5813 = vadd.f32 0.0, %v5812
      %5814 = vmatmul.f32.gmra.mxu0 %v5703
      %v5815 = vpop.f32.mrf.mxu0
      %v5816 = vadd.f32 0.0, %v5815
      %5817 = vmatmul.f32.gmra.mxu0 %v5706
      %v5818 = vpop.f32.mrf.mxu0
      %v5819 = vadd.f32 0.0, %v5818
      %5820 = vmatmul.f32.gmra.mxu0 %v5709
      %v5821 = vpop.f32.mrf.mxu0
      %v5822 = vadd.f32 0.0, %v5821
      %5823 = vmatmul.f32.gmra.mxu0 %v5712
      %v5824 = vpop.f32.mrf.mxu0
      %v5825 = vadd.f32 0.0, %v5824
      %5826 = vmatmul.f32.gmra.mxu0 %v5715
      %v5827 = vpop.f32.mrf.mxu0
      %v5828 = vadd.f32 0.0, %v5827
      %5829 = vmatmul.f32.gmra.mxu0 %v5718
      %v5830 = vpop.f32.mrf.mxu0
      %v5831 = vadd.f32 0.0, %v5830
      %5832 = vmatmul.f32.gmra.mxu0 %v5721
      %v5833 = vpop.f32.mrf.mxu0
      %v5834 = vadd.f32 0.0, %v5833
      %5835 = vmatmul.f32.gmra.mxu0 %v5724
      %v5836 = vpop.f32.mrf.mxu0
      %v5837 = vadd.f32 0.0, %v5836
      %5838 = vmatmul.f32.gmra.mxu0 %v5727
      %v5839 = vpop.f32.mrf.mxu0
      %v5840 = vadd.f32 0.0, %v5839
      %5841 = vmatmul.f32.gmra.mxu0 %v5730
      %v5842 = vpop.f32.mrf.mxu0
      %v5843 = vadd.f32 0.0, %v5842
      %5844 = vmatmul.f32.gmra.mxu0 %v5733
      %v5845 = vpop.f32.mrf.mxu0
      %v5846 = vadd.f32 0.0, %v5845
      %5847 = vmatmul.f32.gmra.mxu0 %v5736
      %v5848 = vpop.f32.mrf.mxu0
      %v5849 = vadd.f32 0.0, %v5848
      %5850 = vmatmul.f32.gmra.mxu0 %v5739
      %v5851 = vpop.f32.mrf.mxu0
      %v5852 = vadd.f32 0.0, %v5851
      %5853 = vmatmul.f32.gmra.mxu0 %v5742
      %v5854 = vpop.f32.mrf.mxu0
      %v5855 = vadd.f32 0.0, %v5854
      %5856 = vmatmul.f32.gmra.mxu0 %v5745
      %v5857 = vpop.f32.mrf.mxu0
      %v5858 = vadd.f32 0.0, %v5857
      %5859 = vmatmul.f32.gmra.mxu0 %v5748
      %v5860 = vpop.f32.mrf.mxu0
      %v5861 = vadd.f32 0.0, %v5860
      %5862 = vmatmul.f32.gmra.mxu0 %v5751
      %v5863 = vpop.f32.mrf.mxu0
      %v5864 = vadd.f32 0.0, %v5863
      %5865 = vdwg.mxu0
      %v5867 = vsel %vm5435, %v5588, 0
      %v5870 = vsel %vm5435, %v5589, 0
      %v5873 = vsel %vm5435, %v5590, 0
      %v5876 = vsel %vm5435, %v5591, 0
      %v5879 = vsel %vm5435, %v5592, 0
      %v5882 = vsel %vm5435, %v5593, 0
      %v5885 = vsel %vm5435, %v5594, 0
      %v5888 = vsel %vm5435, %v5595, 0
      %v5891 = vsel %vm5435, %v5596, 0
      %v5894 = vsel %vm5435, %v5597, 0
      %v5897 = vsel %vm5435, %v5598, 0
      %v5900 = vsel %vm5435, %v5599, 0
      %v5903 = vsel %vm5435, %v5600, 0
      %v5906 = vsel %vm5435, %v5601, 0
      %v5909 = vsel %vm5435, %v5602, 0
      %v5912 = vsel %vm5435, %v5603, 0
      %v5915 = vsel %vm5435, %v5604, 0
      %v5918 = vsel %vm5435, %v5605, 0
      %v5921 = vsel %vm5435, %v5606, 0
      %v5924 = vsel %vm5435, %v5607, 0
      %v5927 = vsel %vm5435, %v5608, 0
      %v5930 = vsel %vm5435, %v5609, 0
      %v5933 = vsel %vm5435, %v5610, 0
      %v5936 = vsel %vm5435, %v5611, 0
      %v5939 = vsel %vm5435, %v5612, 0
      %v5942 = vsel %vm5435, %v5613, 0
      %v5945 = vsel %vm5435, %v5614, 0
      %v5948 = vsel %vm5435, %v5615, 0
      %v5951 = vsel %vm5435, %v5616, 0
      %v5954 = vsel %vm5435, %v5617, 0
      %v5957 = vsel %vm5435, %v5618, 0
      %v5960 = vsel %vm5435, %v5619, 0
      %5962 = vmatpush.msra.mxu0 0.0
      %5963 = vmatpush.msra.mxu0 0.0
      %5964 = vmatpush.msra.mxu0 0.0
      %5965 = vmatpush.msra.mxu0 0.0
      %5966 = vmatpush.msra.mxu0 0.0
      %5967 = vmatpush.msra.mxu0 0.0
      %5968 = vmatpush.msra.mxu0 0.0
      %5969 = vmatpush.msra.mxu0 0.0
      %5970 = vmatpush.msra.mxu0 0.0
      %5971 = vmatpush.msra.mxu0 0.0
      %5972 = vmatpush.msra.mxu0 0.0
      %5973 = vmatpush.msra.mxu0 0.0
      %5974 = vmatpush.msra.mxu0 0.0
      %5975 = vmatpush.msra.mxu0 0.0
      %5976 = vmatpush.msra.mxu0 %v5621
      %5977 = vmatpush.msra.mxu0 %v5620
      %5978 = vmatmul.f32.gmra.mxu0 %v5867
      %v5979 = vpop.f32.mrf.mxu0
      %v5980 = vadd.f32 %v5771, %v5979
      %5981 = vmatmul.f32.gmra.mxu0 %v5870
      %v5982 = vpop.f32.mrf.mxu0
      %v5983 = vadd.f32 %v5774, %v5982
      %5984 = vmatmul.f32.gmra.mxu0 %v5873
      %v5985 = vpop.f32.mrf.mxu0
      %v5986 = vadd.f32 %v5777, %v5985
      %5987 = vmatmul.f32.gmra.mxu0 %v5876
      %v5988 = vpop.f32.mrf.mxu0
      %v5989 = vadd.f32 %v5780, %v5988
      %5990 = vmatmul.f32.gmra.mxu0 %v5879
      %v5991 = vpop.f32.mrf.mxu0
      %v5992 = vadd.f32 %v5783, %v5991
      %5993 = vmatmul.f32.gmra.mxu0 %v5882
      %v5994 = vpop.f32.mrf.mxu0
      %v5995 = vadd.f32 %v5786, %v5994
      %5996 = vmatmul.f32.gmra.mxu0 %v5885
      %v5997 = vpop.f32.mrf.mxu0
      %v5998 = vadd.f32 %v5789, %v5997
      %5999 = vmatmul.f32.gmra.mxu0 %v5888
      %v6000 = vpop.f32.mrf.mxu0
      %v6001 = vadd.f32 %v5792, %v6000
      %6002 = vmatmul.f32.gmra.mxu0 %v5891
      %v6003 = vpop.f32.mrf.mxu0
      %v6004 = vadd.f32 %v5795, %v6003
      %6005 = vmatmul.f32.gmra.mxu0 %v5894
      %v6006 = vpop.f32.mrf.mxu0
      %v6007 = vadd.f32 %v5798, %v6006
      %6008 = vmatmul.f32.gmra.mxu0 %v5897
      %v6009 = vpop.f32.mrf.mxu0
      %v6010 = vadd.f32 %v5801, %v6009
      %6011 = vmatmul.f32.gmra.mxu0 %v5900
      %v6012 = vpop.f32.mrf.mxu0
      %v6013 = vadd.f32 %v5804, %v6012
      %6014 = vmatmul.f32.gmra.mxu0 %v5903
      %v6015 = vpop.f32.mrf.mxu0
      %v6016 = vadd.f32 %v5807, %v6015
      %6017 = vmatmul.f32.gmra.mxu0 %v5906
      %v6018 = vpop.f32.mrf.mxu0
      %v6019 = vadd.f32 %v5810, %v6018
      %6020 = vmatmul.f32.gmra.mxu0 %v5909
      %v6021 = vpop.f32.mrf.mxu0
      %v6022 = vadd.f32 %v5813, %v6021
      %6023 = vmatmul.f32.gmra.mxu0 %v5912
      %v6024 = vpop.f32.mrf.mxu0
      %v6025 = vadd.f32 %v5816, %v6024
      %6026 = vmatmul.f32.gmra.mxu0 %v5915
      %v6027 = vpop.f32.mrf.mxu0
      %v6028 = vadd.f32 %v5819, %v6027
      %6029 = vmatmul.f32.gmra.mxu0 %v5918
      %v6030 = vpop.f32.mrf.mxu0
      %v6031 = vadd.f32 %v5822, %v6030
      %6032 = vmatmul.f32.gmra.mxu0 %v5921
      %v6033 = vpop.f32.mrf.mxu0
      %v6034 = vadd.f32 %v5825, %v6033
      %6035 = vmatmul.f32.gmra.mxu0 %v5924
      %v6036 = vpop.f32.mrf.mxu0
      %v6037 = vadd.f32 %v5828, %v6036
      %6038 = vmatmul.f32.gmra.mxu0 %v5927
      %v6039 = vpop.f32.mrf.mxu0
      %v6040 = vadd.f32 %v5831, %v6039
      %6041 = vmatmul.f32.gmra.mxu0 %v5930
      %v6042 = vpop.f32.mrf.mxu0
      %v6043 = vadd.f32 %v5834, %v6042
      %6044 = vmatmul.f32.gmra.mxu0 %v5933
      %v6045 = vpop.f32.mrf.mxu0
      %v6046 = vadd.f32 %v5837, %v6045
      %6047 = vmatmul.f32.gmra.mxu0 %v5936
      %v6048 = vpop.f32.mrf.mxu0
      %v6049 = vadd.f32 %v5840, %v6048
      %6050 = vmatmul.f32.gmra.mxu0 %v5939
      %v6051 = vpop.f32.mrf.mxu0
      %v6052 = vadd.f32 %v5843, %v6051
      %6053 = vmatmul.f32.gmra.mxu0 %v5942
      %v6054 = vpop.f32.mrf.mxu0
      %v6055 = vadd.f32 %v5846, %v6054
      %6056 = vmatmul.f32.gmra.mxu0 %v5945
      %v6057 = vpop.f32.mrf.mxu0
      %v6058 = vadd.f32 %v5849, %v6057
      %6059 = vmatmul.f32.gmra.mxu0 %v5948
      %v6060 = vpop.f32.mrf.mxu0
      %v6061 = vadd.f32 %v5852, %v6060
      %6062 = vmatmul.f32.gmra.mxu0 %v5951
      %v6063 = vpop.f32.mrf.mxu0
      %v6064 = vadd.f32 %v5855, %v6063
      %6065 = vmatmul.f32.gmra.mxu0 %v5954
      %v6066 = vpop.f32.mrf.mxu0
      %v6067 = vadd.f32 %v5858, %v6066
      %6068 = vmatmul.f32.gmra.mxu0 %v5957
      %v6069 = vpop.f32.mrf.mxu0
      %v6070 = vadd.f32 %v5861, %v6069
      %6071 = vmatmul.f32.gmra.mxu0 %v5960
      %v6072 = vpop.f32.mrf.mxu0
      %v6073 = vadd.f32 %v5864, %v6072
      %6074 = vdwg.mxu0
      %v6075 = vld [vmem:[#allocation3 + $0x2] sm:$0xff]
      %v6076 = vld [vmem:[#allocation3 + $0xa] sm:$0xff]
      %v6077 = vld [vmem:[#allocation3 + $0x1a] sm:$0xff]
      %v6078 = vld [vmem:[#allocation3 + $0x22] sm:$0xff]
      %v6079 = vld [vmem:[#allocation3 + $0x32] sm:$0xff]
      %v6080 = vld [vmem:[#allocation3 + $0x3a] sm:$0xff]
      %v6081 = vld [vmem:[#allocation3 + $0x4a] sm:$0xff]
      %v6082 = vld [vmem:[#allocation3 + $0x52] sm:$0xff]
      %v6083 = vld [vmem:[#allocation3 + $0x62] sm:$0xff]
      %v6084 = vld [vmem:[#allocation3 + $0x6a] sm:$0xff]
      %v6085 = vld [vmem:[#allocation3 + $0x7a] sm:$0xff]
      %v6086 = vld [vmem:[#allocation3 + $0x82] sm:$0xff]
      %v6087 = vld [vmem:[#allocation3 + $0x92] sm:$0xff]
      %v6088 = vld [vmem:[#allocation3 + $0x9a] sm:$0xff]
      %v6089 = vld [vmem:[#allocation3 + $0xaa] sm:$0xff]
      %v6090 = vld [vmem:[#allocation3 + $0xb2] sm:$0xff]
      %v6091 = vld [vmem:[#allocation3 + $0xc2] sm:$0xff]
      %v6092 = vld [vmem:[#allocation3 + $0xca] sm:$0xff]
      %v6093 = vld [vmem:[#allocation3 + $0xda] sm:$0xff]
      %v6094 = vld [vmem:[#allocation3 + $0xe2] sm:$0xff]
      %v6095 = vld [vmem:[#allocation3 + $0xf2] sm:$0xff]
      %v6096 = vld [vmem:[#allocation3 + $0xfa] sm:$0xff]
      %v6097 = vld [vmem:[#allocation3 + $0x10a] sm:$0xff]
      %v6098 = vld [vmem:[#allocation3 + $0x112] sm:$0xff]
      %v6099 = vld [vmem:[#allocation3 + $0x122] sm:$0xff]
      %v6100 = vld [vmem:[#allocation3 + $0x12a] sm:$0xff]
      %v6101 = vld [vmem:[#allocation3 + $0x13a] sm:$0xff]
      %v6102 = vld [vmem:[#allocation3 + $0x142] sm:$0xff]
      %v6103 = vld [vmem:[#allocation3 + $0x152] sm:$0xff]
      %v6104 = vld [vmem:[#allocation3 + $0x15a] sm:$0xff]
      %v6105 = vld [vmem:[#allocation3 + $0x16a] sm:$0xff]
      %v6106 = vld [vmem:[#allocation3 + $0x172] sm:$0xff]
      %s6107 = scalar_lea.vmem %s5, 32
      %v6108 = vld [vmem:[%s6107] sm:$0xff]
      %v6109 = vld [vmem:[%s6107 + $0x8] sm:$0xff]
      %v6111 = vsel %vm5435, %v6075, 0
      %v6114 = vsel %vm5435, %v6076, 0
      %v6117 = vsel %vm5435, %v6077, 0
      %v6120 = vsel %vm5435, %v6078, 0
      %v6123 = vsel %vm5435, %v6079, 0
      %v6126 = vsel %vm5435, %v6080, 0
      %v6129 = vsel %vm5435, %v6081, 0
      %v6132 = vsel %vm5435, %v6082, 0
      %v6135 = vsel %vm5435, %v6083, 0
      %v6138 = vsel %vm5435, %v6084, 0
      %v6141 = vsel %vm5435, %v6085, 0
      %v6144 = vsel %vm5435, %v6086, 0
      %v6147 = vsel %vm5435, %v6087, 0
      %v6150 = vsel %vm5435, %v6088, 0
      %v6153 = vsel %vm5435, %v6089, 0
      %v6156 = vsel %vm5435, %v6090, 0
      %v6159 = vsel %vm5435, %v6091, 0
      %v6162 = vsel %vm5435, %v6092, 0
      %v6165 = vsel %vm5435, %v6093, 0
      %v6168 = vsel %vm5435, %v6094, 0
      %v6171 = vsel %vm5435, %v6095, 0
      %v6174 = vsel %vm5435, %v6096, 0
      %v6177 = vsel %vm5435, %v6097, 0
      %v6180 = vsel %vm5435, %v6098, 0
      %v6183 = vsel %vm5435, %v6099, 0
      %v6186 = vsel %vm5435, %v6100, 0
      %v6189 = vsel %vm5435, %v6101, 0
      %v6192 = vsel %vm5435, %v6102, 0
      %v6195 = vsel %vm5435, %v6103, 0
      %v6198 = vsel %vm5435, %v6104, 0
      %v6201 = vsel %vm5435, %v6105, 0
      %v6204 = vsel %vm5435, %v6106, 0
      %6206 = vmatpush.msra.mxu0 0.0
      %6207 = vmatpush.msra.mxu0 0.0
      %6208 = vmatpush.msra.mxu0 0.0
      %6209 = vmatpush.msra.mxu0 0.0
      %6210 = vmatpush.msra.mxu0 0.0
      %6211 = vmatpush.msra.mxu0 0.0
      %6212 = vmatpush.msra.mxu0 0.0
      %6213 = vmatpush.msra.mxu0 0.0
      %6214 = vmatpush.msra.mxu0 0.0
      %6215 = vmatpush.msra.mxu0 0.0
      %6216 = vmatpush.msra.mxu0 0.0
      %6217 = vmatpush.msra.mxu0 0.0
      %6218 = vmatpush.msra.mxu0 0.0
      %6219 = vmatpush.msra.mxu0 0.0
      %6220 = vmatpush.msra.mxu0 %v6109
      %6221 = vmatpush.msra.mxu0 %v6108
      %6222 = vmatmul.f32.gmra.mxu0 %v6111
      %v6223 = vpop.f32.mrf.mxu0
      %v6224 = vadd.f32 0.0, %v6223
      %6225 = vmatmul.f32.gmra.mxu0 %v6114
      %v6226 = vpop.f32.mrf.mxu0
      %v6227 = vadd.f32 0.0, %v6226
      %6228 = vmatmul.f32.gmra.mxu0 %v6117
      %v6229 = vpop.f32.mrf.mxu0
      %v6230 = vadd.f32 0.0, %v6229
      %6231 = vmatmul.f32.gmra.mxu0 %v6120
      %v6232 = vpop.f32.mrf.mxu0
      %v6233 = vadd.f32 0.0, %v6232
      %6234 = vmatmul.f32.gmra.mxu0 %v6123
      %v6235 = vpop.f32.mrf.mxu0
      %v6236 = vadd.f32 0.0, %v6235
      %6237 = vmatmul.f32.gmra.mxu0 %v6126
      %v6238 = vpop.f32.mrf.mxu0
      %v6239 = vadd.f32 0.0, %v6238
      %6240 = vmatmul.f32.gmra.mxu0 %v6129
      %v6241 = vpop.f32.mrf.mxu0
      %v6242 = vadd.f32 0.0, %v6241
      %6243 = vmatmul.f32.gmra.mxu0 %v6132
      %v6244 = vpop.f32.mrf.mxu0
      %v6245 = vadd.f32 0.0, %v6244
      %6246 = vmatmul.f32.gmra.mxu0 %v6135
      %v6247 = vpop.f32.mrf.mxu0
      %v6248 = vadd.f32 0.0, %v6247
      %6249 = vmatmul.f32.gmra.mxu0 %v6138
      %v6250 = vpop.f32.mrf.mxu0
      %v6251 = vadd.f32 0.0, %v6250
      %6252 = vmatmul.f32.gmra.mxu0 %v6141
      %v6253 = vpop.f32.mrf.mxu0
      %v6254 = vadd.f32 0.0, %v6253
      %6255 = vmatmul.f32.gmra.mxu0 %v6144
      %v6256 = vpop.f32.mrf.mxu0
      %v6257 = vadd.f32 0.0, %v6256
      %6258 = vmatmul.f32.gmra.mxu0 %v6147
      %v6259 = vpop.f32.mrf.mxu0
      %v6260 = vadd.f32 0.0, %v6259
      %6261 = vmatmul.f32.gmra.mxu0 %v6150
      %v6262 = vpop.f32.mrf.mxu0
      %v6263 = vadd.f32 0.0, %v6262
      %6264 = vmatmul.f32.gmra.mxu0 %v6153
      %v6265 = vpop.f32.mrf.mxu0
      %v6266 = vadd.f32 0.0, %v6265
      %6267 = vmatmul.f32.gmra.mxu0 %v6156
      %v6268 = vpop.f32.mrf.mxu0
      %v6269 = vadd.f32 0.0, %v6268
      %6270 = vmatmul.f32.gmra.mxu0 %v6159
      %v6271 = vpop.f32.mrf.mxu0
      %v6272 = vadd.f32 0.0, %v6271
      %6273 = vmatmul.f32.gmra.mxu0 %v6162
      %v6274 = vpop.f32.mrf.mxu0
      %v6275 = vadd.f32 0.0, %v6274
      %6276 = vmatmul.f32.gmra.mxu0 %v6165
      %v6277 = vpop.f32.mrf.mxu0
      %v6278 = vadd.f32 0.0, %v6277
      %6279 = vmatmul.f32.gmra.mxu0 %v6168
      %v6280 = vpop.f32.mrf.mxu0
      %v6281 = vadd.f32 0.0, %v6280
      %6282 = vmatmul.f32.gmra.mxu0 %v6171
      %v6283 = vpop.f32.mrf.mxu0
      %v6284 = vadd.f32 0.0, %v6283
      %6285 = vmatmul.f32.gmra.mxu0 %v6174
      %v6286 = vpop.f32.mrf.mxu0
      %v6287 = vadd.f32 0.0, %v6286
      %6288 = vmatmul.f32.gmra.mxu0 %v6177
      %v6289 = vpop.f32.mrf.mxu0
      %v6290 = vadd.f32 0.0, %v6289
      %6291 = vmatmul.f32.gmra.mxu0 %v6180
      %v6292 = vpop.f32.mrf.mxu0
      %v6293 = vadd.f32 0.0, %v6292
      %6294 = vmatmul.f32.gmra.mxu0 %v6183
      %v6295 = vpop.f32.mrf.mxu0
      %v6296 = vadd.f32 0.0, %v6295
      %6297 = vmatmul.f32.gmra.mxu0 %v6186
      %v6298 = vpop.f32.mrf.mxu0
      %v6299 = vadd.f32 0.0, %v6298
      %6300 = vmatmul.f32.gmra.mxu0 %v6189
      %v6301 = vpop.f32.mrf.mxu0
      %v6302 = vadd.f32 0.0, %v6301
      %6303 = vmatmul.f32.gmra.mxu0 %v6192
      %v6304 = vpop.f32.mrf.mxu0
      %v6305 = vadd.f32 0.0, %v6304
      %6306 = vmatmul.f32.gmra.mxu0 %v6195
      %v6307 = vpop.f32.mrf.mxu0
      %v6308 = vadd.f32 0.0, %v6307
      %6309 = vmatmul.f32.gmra.mxu0 %v6198
      %v6310 = vpop.f32.mrf.mxu0
      %v6311 = vadd.f32 0.0, %v6310
      %6312 = vmatmul.f32.gmra.mxu0 %v6201
      %v6313 = vpop.f32.mrf.mxu0
      %v6314 = vadd.f32 0.0, %v6313
      %6315 = vmatmul.f32.gmra.mxu0 %v6204
      %v6316 = vpop.f32.mrf.mxu0
      %v6317 = vadd.f32 0.0, %v6316
      %6318 = vdwg.mxu0
      %v6319 = vadd.f32 %v5980, %v6224
      %v6320 = vadd.f32 %v5983, %v6227
      %v6321 = vadd.f32 %v5986, %v6230
      %v6322 = vadd.f32 %v5989, %v6233
      %v6323 = vadd.f32 %v5992, %v6236
      %v6324 = vadd.f32 %v5995, %v6239
      %v6325 = vadd.f32 %v5998, %v6242
      %v6326 = vadd.f32 %v6001, %v6245
      %v6327 = vadd.f32 %v6004, %v6248
      %v6328 = vadd.f32 %v6007, %v6251
      %v6329 = vadd.f32 %v6010, %v6254
      %v6330 = vadd.f32 %v6013, %v6257
      %v6331 = vadd.f32 %v6016, %v6260
      %v6332 = vadd.f32 %v6019, %v6263
      %v6333 = vadd.f32 %v6022, %v6266
      %v6334 = vadd.f32 %v6025, %v6269
      %v6335 = vadd.f32 %v6028, %v6272
      %v6336 = vadd.f32 %v6031, %v6275
      %v6337 = vadd.f32 %v6034, %v6278
      %v6338 = vadd.f32 %v6037, %v6281
      %v6339 = vadd.f32 %v6040, %v6284
      %v6340 = vadd.f32 %v6043, %v6287
      %v6341 = vadd.f32 %v6046, %v6290
      %v6342 = vadd.f32 %v6049, %v6293
      %v6343 = vadd.f32 %v6052, %v6296
      %v6344 = vadd.f32 %v6055, %v6299
      %v6345 = vadd.f32 %v6058, %v6302
      %v6346 = vadd.f32 %v6061, %v6305
      %v6347 = vadd.f32 %v6064, %v6308
      %v6348 = vadd.f32 %v6067, %v6311
      %v6349 = vadd.f32 %v6070, %v6314
      %v6350 = vadd.f32 %v6073, %v6317
      %v6351 = vld [vmem:[%s5555] sm:$0xff]
      %v6352 = vld [vmem:[%s5555 + $0x8] sm:$0xff]
      %v6353 = vld [vmem:[%s5555 + $0x18] sm:$0xff]
      %v6354 = vld [vmem:[%s5555 + $0x20] sm:$0xff]
      %v6355 = vld [vmem:[%s5555 + $0x30] sm:$0xff]
      %v6356 = vld [vmem:[%s5555 + $0x38] sm:$0xff]
      %v6357 = vld [vmem:[%s5555 + $0x48] sm:$0xff]
      %v6358 = vld [vmem:[%s5555 + $0x50] sm:$0xff]
      %v6359 = vld [vmem:[%s5555 + $0x60] sm:$0xff]
      %v6360 = vld [vmem:[%s5555 + $0x68] sm:$0xff]
      %v6361 = vld [vmem:[%s5555 + $0x78] sm:$0xff]
      %v6362 = vld [vmem:[%s5555 + $0x80] sm:$0xff]
      %v6363 = vld [vmem:[%s5555 + $0x90] sm:$0xff]
      %v6364 = vld [vmem:[%s5555 + $0x98] sm:$0xff]
      %v6365 = vld [vmem:[%s5555 + $0xa8] sm:$0xff]
      %v6366 = vld [vmem:[%s5555 + $0xb0] sm:$0xff]
      %v6367 = vld [vmem:[%s5555 + $0xc0] sm:$0xff]
      %v6368 = vld [vmem:[%s5555 + $0xc8] sm:$0xff]
      %v6369 = vld [vmem:[%s5555 + $0xd8] sm:$0xff]
      %v6370 = vld [vmem:[%s5555 + $0xe0] sm:$0xff]
      %v6371 = vld [vmem:[%s5555 + $0xf0] sm:$0xff]
      %v6372 = vld [vmem:[%s5555 + $0xf8] sm:$0xff]
      %v6373 = vld [vmem:[%s5555 + $0x108] sm:$0xff]
      %v6374 = vld [vmem:[%s5555 + $0x110] sm:$0xff]
      %v6375 = vld [vmem:[%s5555 + $0x120] sm:$0xff]
      %v6376 = vld [vmem:[%s5555 + $0x128] sm:$0xff]
      %v6377 = vld [vmem:[%s5555 + $0x138] sm:$0xff]
      %v6378 = vld [vmem:[%s5555 + $0x140] sm:$0xff]
      %v6379 = vld [vmem:[%s5555 + $0x150] sm:$0xff]
      %v6380 = vld [vmem:[%s5555 + $0x158] sm:$0xff]
      %v6381 = vld [vmem:[%s5555 + $0x168] sm:$0xff]
      %v6382 = vld [vmem:[%s5555 + $0x170] sm:$0xff]
      %s6383 = scalar_lea.vmem %s5, 48
      %v6384 = vld [vmem:[%s6383] sm:$0xff]
      %v6385 = vld [vmem:[%s6383 + $0x8] sm:$0xff]
      %v6387 = vsel %vm5435, %v6351, 0
      %v6390 = vsel %vm5435, %v6352, 0
      %v6393 = vsel %vm5435, %v6353, 0
      %v6396 = vsel %vm5435, %v6354, 0
      %v6399 = vsel %vm5435, %v6355, 0
      %v6402 = vsel %vm5435, %v6356, 0
      %v6405 = vsel %vm5435, %v6357, 0
      %v6408 = vsel %vm5435, %v6358, 0
      %v6411 = vsel %vm5435, %v6359, 0
      %v6414 = vsel %vm5435, %v6360, 0
      %v6417 = vsel %vm5435, %v6361, 0
      %v6420 = vsel %vm5435, %v6362, 0
      %v6423 = vsel %vm5435, %v6363, 0
      %v6426 = vsel %vm5435, %v6364, 0
      %v6429 = vsel %vm5435, %v6365, 0
      %v6432 = vsel %vm5435, %v6366, 0
      %v6435 = vsel %vm5435, %v6367, 0
      %v6438 = vsel %vm5435, %v6368, 0
      %v6441 = vsel %vm5435, %v6369, 0
      %v6444 = vsel %vm5435, %v6370, 0
      %v6447 = vsel %vm5435, %v6371, 0
      %v6450 = vsel %vm5435, %v6372, 0
      %v6453 = vsel %vm5435, %v6373, 0
      %v6456 = vsel %vm5435, %v6374, 0
      %v6459 = vsel %vm5435, %v6375, 0
      %v6462 = vsel %vm5435, %v6376, 0
      %v6465 = vsel %vm5435, %v6377, 0
      %v6468 = vsel %vm5435, %v6378, 0
      %v6471 = vsel %vm5435, %v6379, 0
      %v6474 = vsel %vm5435, %v6380, 0
      %v6477 = vsel %vm5435, %v6381, 0
      %v6480 = vsel %vm5435, %v6382, 0
      %6482 = vmatpush.msra.mxu0 0.0
      %6483 = vmatpush.msra.mxu0 0.0
      %6484 = vmatpush.msra.mxu0 0.0
      %6485 = vmatpush.msra.mxu0 0.0
      %6486 = vmatpush.msra.mxu0 0.0
      %6487 = vmatpush.msra.mxu0 0.0
      %6488 = vmatpush.msra.mxu0 0.0
      %6489 = vmatpush.msra.mxu0 0.0
      %6490 = vmatpush.msra.mxu0 0.0
      %6491 = vmatpush.msra.mxu0 0.0
      %6492 = vmatpush.msra.mxu0 0.0
      %6493 = vmatpush.msra.mxu0 0.0
      %6494 = vmatpush.msra.mxu0 0.0
      %6495 = vmatpush.msra.mxu0 0.0
      %6496 = vmatpush.msra.mxu0 %v6385
      %6497 = vmatpush.msra.mxu0 %v6384
      %6498 = vmatmul.f32.gmra.mxu0 %v6387
      %v6499 = vpop.f32.mrf.mxu0
      %v6500 = vadd.f32 0.0, %v6499
      %6501 = vmatmul.f32.gmra.mxu0 %v6390
      %v6502 = vpop.f32.mrf.mxu0
      %v6503 = vadd.f32 0.0, %v6502
      %6504 = vmatmul.f32.gmra.mxu0 %v6393
      %v6505 = vpop.f32.mrf.mxu0
      %v6506 = vadd.f32 0.0, %v6505
      %6507 = vmatmul.f32.gmra.mxu0 %v6396
      %v6508 = vpop.f32.mrf.mxu0
      %v6509 = vadd.f32 0.0, %v6508
      %6510 = vmatmul.f32.gmra.mxu0 %v6399
      %v6511 = vpop.f32.mrf.mxu0
      %v6512 = vadd.f32 0.0, %v6511
      %6513 = vmatmul.f32.gmra.mxu0 %v6402
      %v6514 = vpop.f32.mrf.mxu0
      %v6515 = vadd.f32 0.0, %v6514
      %6516 = vmatmul.f32.gmra.mxu0 %v6405
      %v6517 = vpop.f32.mrf.mxu0
      %v6518 = vadd.f32 0.0, %v6517
      %6519 = vmatmul.f32.gmra.mxu0 %v6408
      %v6520 = vpop.f32.mrf.mxu0
      %v6521 = vadd.f32 0.0, %v6520
      %6522 = vmatmul.f32.gmra.mxu0 %v6411
      %v6523 = vpop.f32.mrf.mxu0
      %v6524 = vadd.f32 0.0, %v6523
      %6525 = vmatmul.f32.gmra.mxu0 %v6414
      %v6526 = vpop.f32.mrf.mxu0
      %v6527 = vadd.f32 0.0, %v6526
      %6528 = vmatmul.f32.gmra.mxu0 %v6417
      %v6529 = vpop.f32.mrf.mxu0
      %v6530 = vadd.f32 0.0, %v6529
      %6531 = vmatmul.f32.gmra.mxu0 %v6420
      %v6532 = vpop.f32.mrf.mxu0
      %v6533 = vadd.f32 0.0, %v6532
      %6534 = vmatmul.f32.gmra.mxu0 %v6423
      %v6535 = vpop.f32.mrf.mxu0
      %v6536 = vadd.f32 0.0, %v6535
      %6537 = vmatmul.f32.gmra.mxu0 %v6426
      %v6538 = vpop.f32.mrf.mxu0
      %v6539 = vadd.f32 0.0, %v6538
      %6540 = vmatmul.f32.gmra.mxu0 %v6429
      %v6541 = vpop.f32.mrf.mxu0
      %v6542 = vadd.f32 0.0, %v6541
      %6543 = vmatmul.f32.gmra.mxu0 %v6432
      %v6544 = vpop.f32.mrf.mxu0
      %v6545 = vadd.f32 0.0, %v6544
      %6546 = vmatmul.f32.gmra.mxu0 %v6435
      %v6547 = vpop.f32.mrf.mxu0
      %v6548 = vadd.f32 0.0, %v6547
      %6549 = vmatmul.f32.gmra.mxu0 %v6438
      %v6550 = vpop.f32.mrf.mxu0
      %v6551 = vadd.f32 0.0, %v6550
      %6552 = vmatmul.f32.gmra.mxu0 %v6441
      %v6553 = vpop.f32.mrf.mxu0
      %v6554 = vadd.f32 0.0, %v6553
      %6555 = vmatmul.f32.gmra.mxu0 %v6444
      %v6556 = vpop.f32.mrf.mxu0
      %v6557 = vadd.f32 0.0, %v6556
      %6558 = vmatmul.f32.gmra.mxu0 %v6447
      %v6559 = vpop.f32.mrf.mxu0
      %v6560 = vadd.f32 0.0, %v6559
      %6561 = vmatmul.f32.gmra.mxu0 %v6450
      %v6562 = vpop.f32.mrf.mxu0
      %v6563 = vadd.f32 0.0, %v6562
      %6564 = vmatmul.f32.gmra.mxu0 %v6453
      %v6565 = vpop.f32.mrf.mxu0
      %v6566 = vadd.f32 0.0, %v6565
      %6567 = vmatmul.f32.gmra.mxu0 %v6456
      %v6568 = vpop.f32.mrf.mxu0
      %v6569 = vadd.f32 0.0, %v6568
      %6570 = vmatmul.f32.gmra.mxu0 %v6459
      %v6571 = vpop.f32.mrf.mxu0
      %v6572 = vadd.f32 0.0, %v6571
      %6573 = vmatmul.f32.gmra.mxu0 %v6462
      %v6574 = vpop.f32.mrf.mxu0
      %v6575 = vadd.f32 0.0, %v6574
      %6576 = vmatmul.f32.gmra.mxu0 %v6465
      %v6577 = vpop.f32.mrf.mxu0
      %v6578 = vadd.f32 0.0, %v6577
      %6579 = vmatmul.f32.gmra.mxu0 %v6468
      %v6580 = vpop.f32.mrf.mxu0
      %v6581 = vadd.f32 0.0, %v6580
      %6582 = vmatmul.f32.gmra.mxu0 %v6471
      %v6583 = vpop.f32.mrf.mxu0
      %v6584 = vadd.f32 0.0, %v6583
      %6585 = vmatmul.f32.gmra.mxu0 %v6474
      %v6586 = vpop.f32.mrf.mxu0
      %v6587 = vadd.f32 0.0, %v6586
      %6588 = vmatmul.f32.gmra.mxu0 %v6477
      %v6589 = vpop.f32.mrf.mxu0
      %v6590 = vadd.f32 0.0, %v6589
      %6591 = vmatmul.f32.gmra.mxu0 %v6480
      %v6592 = vpop.f32.mrf.mxu0
      %v6593 = vadd.f32 0.0, %v6592
      %6594 = vdwg.mxu0
      %v6595 = vadd.f32 %v6319, %v6500
      %v6596 = vadd.f32 %v6320, %v6503
      %v6597 = vadd.f32 %v6321, %v6506
      %v6598 = vadd.f32 %v6322, %v6509
      %v6599 = vadd.f32 %v6323, %v6512
      %v6600 = vadd.f32 %v6324, %v6515
      %v6601 = vadd.f32 %v6325, %v6518
      %v6602 = vadd.f32 %v6326, %v6521
      %v6603 = vadd.f32 %v6327, %v6524
      %v6604 = vadd.f32 %v6328, %v6527
      %v6605 = vadd.f32 %v6329, %v6530
      %v6606 = vadd.f32 %v6330, %v6533
      %v6607 = vadd.f32 %v6331, %v6536
      %v6608 = vadd.f32 %v6332, %v6539
      %v6609 = vadd.f32 %v6333, %v6542
      %v6610 = vadd.f32 %v6334, %v6545
      %v6611 = vadd.f32 %v6335, %v6548
      %v6612 = vadd.f32 %v6336, %v6551
      %v6613 = vadd.f32 %v6337, %v6554
      %v6614 = vadd.f32 %v6338, %v6557
      %v6615 = vadd.f32 %v6339, %v6560
      %v6616 = vadd.f32 %v6340, %v6563
      %v6617 = vadd.f32 %v6341, %v6566
      %v6618 = vadd.f32 %v6342, %v6569
      %v6619 = vadd.f32 %v6343, %v6572
      %v6620 = vadd.f32 %v6344, %v6575
      %v6621 = vadd.f32 %v6345, %v6578
      %v6622 = vadd.f32 %v6346, %v6581
      %v6623 = vadd.f32 %v6347, %v6584
      %v6624 = vadd.f32 %v6348, %v6587
      %v6625 = vadd.f32 %v6349, %v6590
      %v6626 = vadd.f32 %v6350, %v6593
      %v6627 = vld [vmem:[%s5555 + $0x1] sm:$0xff]
      %v6628 = vld [vmem:[%s5555 + $0x9] sm:$0xff]
      %v6629 = vld [vmem:[%s5555 + $0x19] sm:$0xff]
      %v6630 = vld [vmem:[%s5555 + $0x21] sm:$0xff]
      %v6631 = vld [vmem:[%s5555 + $0x31] sm:$0xff]
      %v6632 = vld [vmem:[%s5555 + $0x39] sm:$0xff]
      %v6633 = vld [vmem:[%s5555 + $0x49] sm:$0xff]
      %v6634 = vld [vmem:[%s5555 + $0x51] sm:$0xff]
      %v6635 = vld [vmem:[%s5555 + $0x61] sm:$0xff]
      %v6636 = vld [vmem:[%s5555 + $0x69] sm:$0xff]
      %v6637 = vld [vmem:[%s5555 + $0x79] sm:$0xff]
      %v6638 = vld [vmem:[%s5555 + $0x81] sm:$0xff]
      %v6639 = vld [vmem:[%s5555 + $0x91] sm:$0xff]
      %v6640 = vld [vmem:[%s5555 + $0x99] sm:$0xff]
      %v6641 = vld [vmem:[%s5555 + $0xa9] sm:$0xff]
      %v6642 = vld [vmem:[%s5555 + $0xb1] sm:$0xff]
      %v6643 = vld [vmem:[%s5555 + $0xc1] sm:$0xff]
      %v6644 = vld [vmem:[%s5555 + $0xc9] sm:$0xff]
      %v6645 = vld [vmem:[%s5555 + $0xd9] sm:$0xff]
      %v6646 = vld [vmem:[%s5555 + $0xe1] sm:$0xff]
      %v6647 = vld [vmem:[%s5555 + $0xf1] sm:$0xff]
      %v6648 = vld [vmem:[%s5555 + $0xf9] sm:$0xff]
      %v6649 = vld [vmem:[%s5555 + $0x109] sm:$0xff]
      %v6650 = vld [vmem:[%s5555 + $0x111] sm:$0xff]
      %v6651 = vld [vmem:[%s5555 + $0x121] sm:$0xff]
      %v6652 = vld [vmem:[%s5555 + $0x129] sm:$0xff]
      %v6653 = vld [vmem:[%s5555 + $0x139] sm:$0xff]
      %v6654 = vld [vmem:[%s5555 + $0x141] sm:$0xff]
      %v6655 = vld [vmem:[%s5555 + $0x151] sm:$0xff]
      %v6656 = vld [vmem:[%s5555 + $0x159] sm:$0xff]
      %v6657 = vld [vmem:[%s5555 + $0x169] sm:$0xff]
      %v6658 = vld [vmem:[%s5555 + $0x171] sm:$0xff]
      %s6659 = scalar_lea.vmem %s5, 64
      %v6660 = vld [vmem:[%s6659] sm:$0xff]
      %v6661 = vld [vmem:[%s6659 + $0x8] sm:$0xff]
      %v6663 = vsel %vm5435, %v6627, 0
      %v6666 = vsel %vm5435, %v6628, 0
      %v6669 = vsel %vm5435, %v6629, 0
      %v6672 = vsel %vm5435, %v6630, 0
      %v6675 = vsel %vm5435, %v6631, 0
      %v6678 = vsel %vm5435, %v6632, 0
      %v6681 = vsel %vm5435, %v6633, 0
      %v6684 = vsel %vm5435, %v6634, 0
      %v6687 = vsel %vm5435, %v6635, 0
      %v6690 = vsel %vm5435, %v6636, 0
      %v6693 = vsel %vm5435, %v6637, 0
      %v6696 = vsel %vm5435, %v6638, 0
      %v6699 = vsel %vm5435, %v6639, 0
      %v6702 = vsel %vm5435, %v6640, 0
      %v6705 = vsel %vm5435, %v6641, 0
      %v6708 = vsel %vm5435, %v6642, 0
      %v6711 = vsel %vm5435, %v6643, 0
      %v6714 = vsel %vm5435, %v6644, 0
      %v6717 = vsel %vm5435, %v6645, 0
      %v6720 = vsel %vm5435, %v6646, 0
      %v6723 = vsel %vm5435, %v6647, 0
      %v6726 = vsel %vm5435, %v6648, 0
      %v6729 = vsel %vm5435, %v6649, 0
      %v6732 = vsel %vm5435, %v6650, 0
      %v6735 = vsel %vm5435, %v6651, 0
      %v6738 = vsel %vm5435, %v6652, 0
      %v6741 = vsel %vm5435, %v6653, 0
      %v6744 = vsel %vm5435, %v6654, 0
      %v6747 = vsel %vm5435, %v6655, 0
      %v6750 = vsel %vm5435, %v6656, 0
      %v6753 = vsel %vm5435, %v6657, 0
      %v6756 = vsel %vm5435, %v6658, 0
      %6758 = vmatpush.msra.mxu0 0.0
      %6759 = vmatpush.msra.mxu0 0.0
      %6760 = vmatpush.msra.mxu0 0.0
      %6761 = vmatpush.msra.mxu0 0.0
      %6762 = vmatpush.msra.mxu0 0.0
      %6763 = vmatpush.msra.mxu0 0.0
      %6764 = vmatpush.msra.mxu0 0.0
      %6765 = vmatpush.msra.mxu0 0.0
      %6766 = vmatpush.msra.mxu0 0.0
      %6767 = vmatpush.msra.mxu0 0.0
      %6768 = vmatpush.msra.mxu0 0.0
      %6769 = vmatpush.msra.mxu0 0.0
      %6770 = vmatpush.msra.mxu0 0.0
      %6771 = vmatpush.msra.mxu0 0.0
      %6772 = vmatpush.msra.mxu0 %v6661
      %6773 = vmatpush.msra.mxu0 %v6660
      %6774 = vmatmul.f32.gmra.mxu0 %v6663
      %v6775 = vpop.f32.mrf.mxu0
      %v6776 = vadd.f32 0.0, %v6775
      %6777 = vmatmul.f32.gmra.mxu0 %v6666
      %v6778 = vpop.f32.mrf.mxu0
      %v6779 = vadd.f32 0.0, %v6778
      %6780 = vmatmul.f32.gmra.mxu0 %v6669
      %v6781 = vpop.f32.mrf.mxu0
      %v6782 = vadd.f32 0.0, %v6781
      %6783 = vmatmul.f32.gmra.mxu0 %v6672
      %v6784 = vpop.f32.mrf.mxu0
      %v6785 = vadd.f32 0.0, %v6784
      %6786 = vmatmul.f32.gmra.mxu0 %v6675
      %v6787 = vpop.f32.mrf.mxu0
      %v6788 = vadd.f32 0.0, %v6787
      %6789 = vmatmul.f32.gmra.mxu0 %v6678
      %v6790 = vpop.f32.mrf.mxu0
      %v6791 = vadd.f32 0.0, %v6790
      %6792 = vmatmul.f32.gmra.mxu0 %v6681
      %v6793 = vpop.f32.mrf.mxu0
      %v6794 = vadd.f32 0.0, %v6793
      %6795 = vmatmul.f32.gmra.mxu0 %v6684
      %v6796 = vpop.f32.mrf.mxu0
      %v6797 = vadd.f32 0.0, %v6796
      %6798 = vmatmul.f32.gmra.mxu0 %v6687
      %v6799 = vpop.f32.mrf.mxu0
      %v6800 = vadd.f32 0.0, %v6799
      %6801 = vmatmul.f32.gmra.mxu0 %v6690
      %v6802 = vpop.f32.mrf.mxu0
      %v6803 = vadd.f32 0.0, %v6802
      %6804 = vmatmul.f32.gmra.mxu0 %v6693
      %v6805 = vpop.f32.mrf.mxu0
      %v6806 = vadd.f32 0.0, %v6805
      %6807 = vmatmul.f32.gmra.mxu0 %v6696
      %v6808 = vpop.f32.mrf.mxu0
      %v6809 = vadd.f32 0.0, %v6808
      %6810 = vmatmul.f32.gmra.mxu0 %v6699
      %v6811 = vpop.f32.mrf.mxu0
      %v6812 = vadd.f32 0.0, %v6811
      %6813 = vmatmul.f32.gmra.mxu0 %v6702
      %v6814 = vpop.f32.mrf.mxu0
      %v6815 = vadd.f32 0.0, %v6814
      %6816 = vmatmul.f32.gmra.mxu0 %v6705
      %v6817 = vpop.f32.mrf.mxu0
      %v6818 = vadd.f32 0.0, %v6817
      %6819 = vmatmul.f32.gmra.mxu0 %v6708
      %v6820 = vpop.f32.mrf.mxu0
      %v6821 = vadd.f32 0.0, %v6820
      %6822 = vmatmul.f32.gmra.mxu0 %v6711
      %v6823 = vpop.f32.mrf.mxu0
      %v6824 = vadd.f32 0.0, %v6823
      %6825 = vmatmul.f32.gmra.mxu0 %v6714
      %v6826 = vpop.f32.mrf.mxu0
      %v6827 = vadd.f32 0.0, %v6826
      %6828 = vmatmul.f32.gmra.mxu0 %v6717
      %v6829 = vpop.f32.mrf.mxu0
      %v6830 = vadd.f32 0.0, %v6829
      %6831 = vmatmul.f32.gmra.mxu0 %v6720
      %v6832 = vpop.f32.mrf.mxu0
      %v6833 = vadd.f32 0.0, %v6832
      %6834 = vmatmul.f32.gmra.mxu0 %v6723
      %v6835 = vpop.f32.mrf.mxu0
      %v6836 = vadd.f32 0.0, %v6835
      %6837 = vmatmul.f32.gmra.mxu0 %v6726
      %v6838 = vpop.f32.mrf.mxu0
      %v6839 = vadd.f32 0.0, %v6838
      %6840 = vmatmul.f32.gmra.mxu0 %v6729
      %v6841 = vpop.f32.mrf.mxu0
      %v6842 = vadd.f32 0.0, %v6841
      %6843 = vmatmul.f32.gmra.mxu0 %v6732
      %v6844 = vpop.f32.mrf.mxu0
      %v6845 = vadd.f32 0.0, %v6844
      %6846 = vmatmul.f32.gmra.mxu0 %v6735
      %v6847 = vpop.f32.mrf.mxu0
      %v6848 = vadd.f32 0.0, %v6847
      %6849 = vmatmul.f32.gmra.mxu0 %v6738
      %v6850 = vpop.f32.mrf.mxu0
      %v6851 = vadd.f32 0.0, %v6850
      %6852 = vmatmul.f32.gmra.mxu0 %v6741
      %v6853 = vpop.f32.mrf.mxu0
      %v6854 = vadd.f32 0.0, %v6853
      %6855 = vmatmul.f32.gmra.mxu0 %v6744
      %v6856 = vpop.f32.mrf.mxu0
      %v6857 = vadd.f32 0.0, %v6856
      %6858 = vmatmul.f32.gmra.mxu0 %v6747
      %v6859 = vpop.f32.mrf.mxu0
      %v6860 = vadd.f32 0.0, %v6859
      %6861 = vmatmul.f32.gmra.mxu0 %v6750
      %v6862 = vpop.f32.mrf.mxu0
      %v6863 = vadd.f32 0.0, %v6862
      %6864 = vmatmul.f32.gmra.mxu0 %v6753
      %v6865 = vpop.f32.mrf.mxu0
      %v6866 = vadd.f32 0.0, %v6865
      %6867 = vmatmul.f32.gmra.mxu0 %v6756
      %v6868 = vpop.f32.mrf.mxu0
      %v6869 = vadd.f32 0.0, %v6868
      %6870 = vdwg.mxu0
      %v6871 = vadd.f32 %v6595, %v6776
      %v6872 = vadd.f32 %v6596, %v6779
      %v6873 = vadd.f32 %v6597, %v6782
      %v6874 = vadd.f32 %v6598, %v6785
      %v6875 = vadd.f32 %v6599, %v6788
      %v6876 = vadd.f32 %v6600, %v6791
      %v6877 = vadd.f32 %v6601, %v6794
      %v6878 = vadd.f32 %v6602, %v6797
      %v6879 = vadd.f32 %v6603, %v6800
      %v6880 = vadd.f32 %v6604, %v6803
      %v6881 = vadd.f32 %v6605, %v6806
      %v6882 = vadd.f32 %v6606, %v6809
      %v6883 = vadd.f32 %v6607, %v6812
      %v6884 = vadd.f32 %v6608, %v6815
      %v6885 = vadd.f32 %v6609, %v6818
      %v6886 = vadd.f32 %v6610, %v6821
      %v6887 = vadd.f32 %v6611, %v6824
      %v6888 = vadd.f32 %v6612, %v6827
      %v6889 = vadd.f32 %v6613, %v6830
      %v6890 = vadd.f32 %v6614, %v6833
      %v6891 = vadd.f32 %v6615, %v6836
      %v6892 = vadd.f32 %v6616, %v6839
      %v6893 = vadd.f32 %v6617, %v6842
      %v6894 = vadd.f32 %v6618, %v6845
      %v6895 = vadd.f32 %v6619, %v6848
      %v6896 = vadd.f32 %v6620, %v6851
      %v6897 = vadd.f32 %v6621, %v6854
      %v6898 = vadd.f32 %v6622, %v6857
      %v6899 = vadd.f32 %v6623, %v6860
      %v6900 = vadd.f32 %v6624, %v6863
      %v6901 = vadd.f32 %v6625, %v6866
      %v6902 = vadd.f32 %v6626, %v6869
      %v6903 = vld [vmem:[%s5555 + $0x2] sm:$0xff]
      %v6904 = vld [vmem:[%s5555 + $0xa] sm:$0xff]
      %v6905 = vld [vmem:[%s5555 + $0x1a] sm:$0xff]
      %v6906 = vld [vmem:[%s5555 + $0x22] sm:$0xff]
      %v6907 = vld [vmem:[%s5555 + $0x32] sm:$0xff]
      %v6908 = vld [vmem:[%s5555 + $0x3a] sm:$0xff]
      %v6909 = vld [vmem:[%s5555 + $0x4a] sm:$0xff]
      %v6910 = vld [vmem:[%s5555 + $0x52] sm:$0xff]
      %v6911 = vld [vmem:[%s5555 + $0x62] sm:$0xff]
      %v6912 = vld [vmem:[%s5555 + $0x6a] sm:$0xff]
      %v6913 = vld [vmem:[%s5555 + $0x7a] sm:$0xff]
      %v6914 = vld [vmem:[%s5555 + $0x82] sm:$0xff]
      %v6915 = vld [vmem:[%s5555 + $0x92] sm:$0xff]
      %v6916 = vld [vmem:[%s5555 + $0x9a] sm:$0xff]
      %v6917 = vld [vmem:[%s5555 + $0xaa] sm:$0xff]
      %v6918 = vld [vmem:[%s5555 + $0xb2] sm:$0xff]
      %v6919 = vld [vmem:[%s5555 + $0xc2] sm:$0xff]
      %v6920 = vld [vmem:[%s5555 + $0xca] sm:$0xff]
      %v6921 = vld [vmem:[%s5555 + $0xda] sm:$0xff]
      %v6922 = vld [vmem:[%s5555 + $0xe2] sm:$0xff]
      %v6923 = vld [vmem:[%s5555 + $0xf2] sm:$0xff]
      %v6924 = vld [vmem:[%s5555 + $0xfa] sm:$0xff]
      %v6925 = vld [vmem:[%s5555 + $0x10a] sm:$0xff]
      %v6926 = vld [vmem:[%s5555 + $0x112] sm:$0xff]
      %v6927 = vld [vmem:[%s5555 + $0x122] sm:$0xff]
      %v6928 = vld [vmem:[%s5555 + $0x12a] sm:$0xff]
      %v6929 = vld [vmem:[%s5555 + $0x13a] sm:$0xff]
      %v6930 = vld [vmem:[%s5555 + $0x142] sm:$0xff]
      %v6931 = vld [vmem:[%s5555 + $0x152] sm:$0xff]
      %v6932 = vld [vmem:[%s5555 + $0x15a] sm:$0xff]
      %v6933 = vld [vmem:[%s5555 + $0x16a] sm:$0xff]
      %v6934 = vld [vmem:[%s5555 + $0x172] sm:$0xff]
      %s6935 = scalar_lea.vmem %s5, 80
      %v6936 = vld [vmem:[%s6935] sm:$0xff]
      %v6937 = vld [vmem:[%s6935 + $0x8] sm:$0xff]
      %v6939 = vsel %vm5435, %v6903, 0
      %v6942 = vsel %vm5435, %v6904, 0
      %v6945 = vsel %vm5435, %v6905, 0
      %v6948 = vsel %vm5435, %v6906, 0
      %v6951 = vsel %vm5435, %v6907, 0
      %v6954 = vsel %vm5435, %v6908, 0
      %v6957 = vsel %vm5435, %v6909, 0
      %v6960 = vsel %vm5435, %v6910, 0
      %v6963 = vsel %vm5435, %v6911, 0
      %v6966 = vsel %vm5435, %v6912, 0
      %v6969 = vsel %vm5435, %v6913, 0
      %v6972 = vsel %vm5435, %v6914, 0
      %v6975 = vsel %vm5435, %v6915, 0
      %v6978 = vsel %vm5435, %v6916, 0
      %v6981 = vsel %vm5435, %v6917, 0
      %v6984 = vsel %vm5435, %v6918, 0
      %v6987 = vsel %vm5435, %v6919, 0
      %v6990 = vsel %vm5435, %v6920, 0
      %v6993 = vsel %vm5435, %v6921, 0
      %v6996 = vsel %vm5435, %v6922, 0
      %v6999 = vsel %vm5435, %v6923, 0
      %v7002 = vsel %vm5435, %v6924, 0
      %v7005 = vsel %vm5435, %v6925, 0
      %v7008 = vsel %vm5435, %v6926, 0
      %v7011 = vsel %vm5435, %v6927, 0
      %v7014 = vsel %vm5435, %v6928, 0
      %v7017 = vsel %vm5435, %v6929, 0
      %v7020 = vsel %vm5435, %v6930, 0
      %v7023 = vsel %vm5435, %v6931, 0
      %v7026 = vsel %vm5435, %v6932, 0
      %v7029 = vsel %vm5435, %v6933, 0
      %v7032 = vsel %vm5435, %v6934, 0
      %7034 = vmatpush.msra.mxu0 0.0
      %7035 = vmatpush.msra.mxu0 0.0
      %7036 = vmatpush.msra.mxu0 0.0
      %7037 = vmatpush.msra.mxu0 0.0
      %7038 = vmatpush.msra.mxu0 0.0
      %7039 = vmatpush.msra.mxu0 0.0
      %7040 = vmatpush.msra.mxu0 0.0
      %7041 = vmatpush.msra.mxu0 0.0
      %7042 = vmatpush.msra.mxu0 0.0
      %7043 = vmatpush.msra.mxu0 0.0
      %7044 = vmatpush.msra.mxu0 0.0
      %7045 = vmatpush.msra.mxu0 0.0
      %7046 = vmatpush.msra.mxu0 0.0
      %7047 = vmatpush.msra.mxu0 0.0
      %7048 = vmatpush.msra.mxu0 %v6937
      %7049 = vmatpush.msra.mxu0 %v6936
      %7050 = vmatmul.f32.gmra.mxu0 %v6939
      %v7051 = vpop.f32.mrf.mxu0
      %v7052 = vadd.f32 0.0, %v7051
      %7053 = vmatmul.f32.gmra.mxu0 %v6942
      %v7054 = vpop.f32.mrf.mxu0
      %v7055 = vadd.f32 0.0, %v7054
      %7056 = vmatmul.f32.gmra.mxu0 %v6945
      %v7057 = vpop.f32.mrf.mxu0
      %v7058 = vadd.f32 0.0, %v7057
      %7059 = vmatmul.f32.gmra.mxu0 %v6948
      %v7060 = vpop.f32.mrf.mxu0
      %v7061 = vadd.f32 0.0, %v7060
      %7062 = vmatmul.f32.gmra.mxu0 %v6951
      %v7063 = vpop.f32.mrf.mxu0
      %v7064 = vadd.f32 0.0, %v7063
      %7065 = vmatmul.f32.gmra.mxu0 %v6954
      %v7066 = vpop.f32.mrf.mxu0
      %v7067 = vadd.f32 0.0, %v7066
      %7068 = vmatmul.f32.gmra.mxu0 %v6957
      %v7069 = vpop.f32.mrf.mxu0
      %v7070 = vadd.f32 0.0, %v7069
      %7071 = vmatmul.f32.gmra.mxu0 %v6960
      %v7072 = vpop.f32.mrf.mxu0
      %v7073 = vadd.f32 0.0, %v7072
      %7074 = vmatmul.f32.gmra.mxu0 %v6963
      %v7075 = vpop.f32.mrf.mxu0
      %v7076 = vadd.f32 0.0, %v7075
      %7077 = vmatmul.f32.gmra.mxu0 %v6966
      %v7078 = vpop.f32.mrf.mxu0
      %v7079 = vadd.f32 0.0, %v7078
      %7080 = vmatmul.f32.gmra.mxu0 %v6969
      %v7081 = vpop.f32.mrf.mxu0
      %v7082 = vadd.f32 0.0, %v7081
      %7083 = vmatmul.f32.gmra.mxu0 %v6972
      %v7084 = vpop.f32.mrf.mxu0
      %v7085 = vadd.f32 0.0, %v7084
      %7086 = vmatmul.f32.gmra.mxu0 %v6975
      %v7087 = vpop.f32.mrf.mxu0
      %v7088 = vadd.f32 0.0, %v7087
      %7089 = vmatmul.f32.gmra.mxu0 %v6978
      %v7090 = vpop.f32.mrf.mxu0
      %v7091 = vadd.f32 0.0, %v7090
      %7092 = vmatmul.f32.gmra.mxu0 %v6981
      %v7093 = vpop.f32.mrf.mxu0
      %v7094 = vadd.f32 0.0, %v7093
      %7095 = vmatmul.f32.gmra.mxu0 %v6984
      %v7096 = vpop.f32.mrf.mxu0
      %v7097 = vadd.f32 0.0, %v7096
      %7098 = vmatmul.f32.gmra.mxu0 %v6987
      %v7099 = vpop.f32.mrf.mxu0
      %v7100 = vadd.f32 0.0, %v7099
      %7101 = vmatmul.f32.gmra.mxu0 %v6990
      %v7102 = vpop.f32.mrf.mxu0
      %v7103 = vadd.f32 0.0, %v7102
      %7104 = vmatmul.f32.gmra.mxu0 %v6993
      %v7105 = vpop.f32.mrf.mxu0
      %v7106 = vadd.f32 0.0, %v7105
      %7107 = vmatmul.f32.gmra.mxu0 %v6996
      %v7108 = vpop.f32.mrf.mxu0
      %v7109 = vadd.f32 0.0, %v7108
      %7110 = vmatmul.f32.gmra.mxu0 %v6999
      %v7111 = vpop.f32.mrf.mxu0
      %v7112 = vadd.f32 0.0, %v7111
      %7113 = vmatmul.f32.gmra.mxu0 %v7002
      %v7114 = vpop.f32.mrf.mxu0
      %v7115 = vadd.f32 0.0, %v7114
      %7116 = vmatmul.f32.gmra.mxu0 %v7005
      %v7117 = vpop.f32.mrf.mxu0
      %v7118 = vadd.f32 0.0, %v7117
      %7119 = vmatmul.f32.gmra.mxu0 %v7008
      %v7120 = vpop.f32.mrf.mxu0
      %v7121 = vadd.f32 0.0, %v7120
      %7122 = vmatmul.f32.gmra.mxu0 %v7011
      %v7123 = vpop.f32.mrf.mxu0
      %v7124 = vadd.f32 0.0, %v7123
      %7125 = vmatmul.f32.gmra.mxu0 %v7014
      %v7126 = vpop.f32.mrf.mxu0
      %v7127 = vadd.f32 0.0, %v7126
      %7128 = vmatmul.f32.gmra.mxu0 %v7017
      %v7129 = vpop.f32.mrf.mxu0
      %v7130 = vadd.f32 0.0, %v7129
      %7131 = vmatmul.f32.gmra.mxu0 %v7020
      %v7132 = vpop.f32.mrf.mxu0
      %v7133 = vadd.f32 0.0, %v7132
      %7134 = vmatmul.f32.gmra.mxu0 %v7023
      %v7135 = vpop.f32.mrf.mxu0
      %v7136 = vadd.f32 0.0, %v7135
      %7137 = vmatmul.f32.gmra.mxu0 %v7026
      %v7138 = vpop.f32.mrf.mxu0
      %v7139 = vadd.f32 0.0, %v7138
      %7140 = vmatmul.f32.gmra.mxu0 %v7029
      %v7141 = vpop.f32.mrf.mxu0
      %v7142 = vadd.f32 0.0, %v7141
      %7143 = vmatmul.f32.gmra.mxu0 %v7032
      %v7144 = vpop.f32.mrf.mxu0
      %v7145 = vadd.f32 0.0, %v7144
      %7146 = vdwg.mxu0
      %v7147 = vadd.f32 %v6871, %v7052
      %v7148 = vadd.f32 %v6872, %v7055
      %v7149 = vadd.f32 %v6873, %v7058
      %v7150 = vadd.f32 %v6874, %v7061
      %v7151 = vadd.f32 %v6875, %v7064
      %v7152 = vadd.f32 %v6876, %v7067
      %v7153 = vadd.f32 %v6877, %v7070
      %v7154 = vadd.f32 %v6878, %v7073
      %v7155 = vadd.f32 %v6879, %v7076
      %v7156 = vadd.f32 %v6880, %v7079
      %v7157 = vadd.f32 %v6881, %v7082
      %v7158 = vadd.f32 %v6882, %v7085
      %v7159 = vadd.f32 %v6883, %v7088
      %v7160 = vadd.f32 %v6884, %v7091
      %v7161 = vadd.f32 %v6885, %v7094
      %v7162 = vadd.f32 %v6886, %v7097
      %v7163 = vadd.f32 %v6887, %v7100
      %v7164 = vadd.f32 %v6888, %v7103
      %v7165 = vadd.f32 %v6889, %v7106
      %v7166 = vadd.f32 %v6890, %v7109
      %v7167 = vadd.f32 %v6891, %v7112
      %v7168 = vadd.f32 %v6892, %v7115
      %v7169 = vadd.f32 %v6893, %v7118
      %v7170 = vadd.f32 %v6894, %v7121
      %v7171 = vadd.f32 %v6895, %v7124
      %v7172 = vadd.f32 %v6896, %v7127
      %v7173 = vadd.f32 %v6897, %v7130
      %v7174 = vadd.f32 %v6898, %v7133
      %v7175 = vadd.f32 %v6899, %v7136
      %v7176 = vadd.f32 %v6900, %v7139
      %v7177 = vadd.f32 %v6901, %v7142
      %v7178 = vadd.f32 %v6902, %v7145
      %s7179 = scalar_lea.vmem [#allocation3], 48
      %v7180 = vld [vmem:[%s7179] sm:$0xff]
      %v7181 = vld [vmem:[%s7179 + $0x8] sm:$0xff]
      %v7182 = vld [vmem:[%s7179 + $0x18] sm:$0xff]
      %v7183 = vld [vmem:[%s7179 + $0x20] sm:$0xff]
      %v7184 = vld [vmem:[%s7179 + $0x30] sm:$0xff]
      %v7185 = vld [vmem:[%s7179 + $0x38] sm:$0xff]
      %v7186 = vld [vmem:[%s7179 + $0x48] sm:$0xff]
      %v7187 = vld [vmem:[%s7179 + $0x50] sm:$0xff]
      %v7188 = vld [vmem:[%s7179 + $0x60] sm:$0xff]
      %v7189 = vld [vmem:[%s7179 + $0x68] sm:$0xff]
      %v7190 = vld [vmem:[%s7179 + $0x78] sm:$0xff]
      %v7191 = vld [vmem:[%s7179 + $0x80] sm:$0xff]
      %v7192 = vld [vmem:[%s7179 + $0x90] sm:$0xff]
      %v7193 = vld [vmem:[%s7179 + $0x98] sm:$0xff]
      %v7194 = vld [vmem:[%s7179 + $0xa8] sm:$0xff]
      %v7195 = vld [vmem:[%s7179 + $0xb0] sm:$0xff]
      %v7196 = vld [vmem:[%s7179 + $0xc0] sm:$0xff]
      %v7197 = vld [vmem:[%s7179 + $0xc8] sm:$0xff]
      %v7198 = vld [vmem:[%s7179 + $0xd8] sm:$0xff]
      %v7199 = vld [vmem:[%s7179 + $0xe0] sm:$0xff]
      %v7200 = vld [vmem:[%s7179 + $0xf0] sm:$0xff]
      %v7201 = vld [vmem:[%s7179 + $0xf8] sm:$0xff]
      %v7202 = vld [vmem:[%s7179 + $0x108] sm:$0xff]
      %v7203 = vld [vmem:[%s7179 + $0x110] sm:$0xff]
      %v7204 = vld [vmem:[%s7179 + $0x120] sm:$0xff]
      %v7205 = vld [vmem:[%s7179 + $0x128] sm:$0xff]
      %v7206 = vld [vmem:[%s7179 + $0x138] sm:$0xff]
      %v7207 = vld [vmem:[%s7179 + $0x140] sm:$0xff]
      %v7208 = vld [vmem:[%s7179 + $0x150] sm:$0xff]
      %v7209 = vld [vmem:[%s7179 + $0x158] sm:$0xff]
      %v7210 = vld [vmem:[%s7179 + $0x168] sm:$0xff]
      %v7211 = vld [vmem:[%s7179 + $0x170] sm:$0xff]
      %s7212 = scalar_lea.vmem %s5, 96
      %v7213 = vld [vmem:[%s7212] sm:$0xff]
      %v7214 = vld [vmem:[%s7212 + $0x8] sm:$0xff]
      %v7216 = vsel %vm5435, %v7180, 0
      %v7219 = vsel %vm5435, %v7181, 0
      %v7222 = vsel %vm5435, %v7182, 0
      %v7225 = vsel %vm5435, %v7183, 0
      %v7228 = vsel %vm5435, %v7184, 0
      %v7231 = vsel %vm5435, %v7185, 0
      %v7234 = vsel %vm5435, %v7186, 0
      %v7237 = vsel %vm5435, %v7187, 0
      %v7240 = vsel %vm5435, %v7188, 0
      %v7243 = vsel %vm5435, %v7189, 0
      %v7246 = vsel %vm5435, %v7190, 0
      %v7249 = vsel %vm5435, %v7191, 0
      %v7252 = vsel %vm5435, %v7192, 0
      %v7255 = vsel %vm5435, %v7193, 0
      %v7258 = vsel %vm5435, %v7194, 0
      %v7261 = vsel %vm5435, %v7195, 0
      %v7264 = vsel %vm5435, %v7196, 0
      %v7267 = vsel %vm5435, %v7197, 0
      %v7270 = vsel %vm5435, %v7198, 0
      %v7273 = vsel %vm5435, %v7199, 0
      %v7276 = vsel %vm5435, %v7200, 0
      %v7279 = vsel %vm5435, %v7201, 0
      %v7282 = vsel %vm5435, %v7202, 0
      %v7285 = vsel %vm5435, %v7203, 0
      %v7288 = vsel %vm5435, %v7204, 0
      %v7291 = vsel %vm5435, %v7205, 0
      %v7294 = vsel %vm5435, %v7206, 0
      %v7297 = vsel %vm5435, %v7207, 0
      %v7300 = vsel %vm5435, %v7208, 0
      %v7303 = vsel %vm5435, %v7209, 0
      %v7306 = vsel %vm5435, %v7210, 0
      %v7309 = vsel %vm5435, %v7211, 0
      %7311 = vmatpush.msra.mxu0 0.0
      %7312 = vmatpush.msra.mxu0 0.0
      %7313 = vmatpush.msra.mxu0 0.0
      %7314 = vmatpush.msra.mxu0 0.0
      %7315 = vmatpush.msra.mxu0 0.0
      %7316 = vmatpush.msra.mxu0 0.0
      %7317 = vmatpush.msra.mxu0 0.0
      %7318 = vmatpush.msra.mxu0 0.0
      %7319 = vmatpush.msra.mxu0 0.0
      %7320 = vmatpush.msra.mxu0 0.0
      %7321 = vmatpush.msra.mxu0 0.0
      %7322 = vmatpush.msra.mxu0 0.0
      %7323 = vmatpush.msra.mxu0 0.0
      %7324 = vmatpush.msra.mxu0 0.0
      %7325 = vmatpush.msra.mxu0 %v7214
      %7326 = vmatpush.msra.mxu0 %v7213
      %7327 = vmatmul.f32.gmra.mxu0 %v7216
      %v7328 = vpop.f32.mrf.mxu0
      %v7329 = vadd.f32 0.0, %v7328
      %7330 = vmatmul.f32.gmra.mxu0 %v7219
      %v7331 = vpop.f32.mrf.mxu0
      %v7332 = vadd.f32 0.0, %v7331
      %7333 = vmatmul.f32.gmra.mxu0 %v7222
      %v7334 = vpop.f32.mrf.mxu0
      %v7335 = vadd.f32 0.0, %v7334
      %7336 = vmatmul.f32.gmra.mxu0 %v7225
      %v7337 = vpop.f32.mrf.mxu0
      %v7338 = vadd.f32 0.0, %v7337
      %7339 = vmatmul.f32.gmra.mxu0 %v7228
      %v7340 = vpop.f32.mrf.mxu0
      %v7341 = vadd.f32 0.0, %v7340
      %7342 = vmatmul.f32.gmra.mxu0 %v7231
      %v7343 = vpop.f32.mrf.mxu0
      %v7344 = vadd.f32 0.0, %v7343
      %7345 = vmatmul.f32.gmra.mxu0 %v7234
      %v7346 = vpop.f32.mrf.mxu0
      %v7347 = vadd.f32 0.0, %v7346
      %7348 = vmatmul.f32.gmra.mxu0 %v7237
      %v7349 = vpop.f32.mrf.mxu0
      %v7350 = vadd.f32 0.0, %v7349
      %7351 = vmatmul.f32.gmra.mxu0 %v7240
      %v7352 = vpop.f32.mrf.mxu0
      %v7353 = vadd.f32 0.0, %v7352
      %7354 = vmatmul.f32.gmra.mxu0 %v7243
      %v7355 = vpop.f32.mrf.mxu0
      %v7356 = vadd.f32 0.0, %v7355
      %7357 = vmatmul.f32.gmra.mxu0 %v7246
      %v7358 = vpop.f32.mrf.mxu0
      %v7359 = vadd.f32 0.0, %v7358
      %7360 = vmatmul.f32.gmra.mxu0 %v7249
      %v7361 = vpop.f32.mrf.mxu0
      %v7362 = vadd.f32 0.0, %v7361
      %7363 = vmatmul.f32.gmra.mxu0 %v7252
      %v7364 = vpop.f32.mrf.mxu0
      %v7365 = vadd.f32 0.0, %v7364
      %7366 = vmatmul.f32.gmra.mxu0 %v7255
      %v7367 = vpop.f32.mrf.mxu0
      %v7368 = vadd.f32 0.0, %v7367
      %7369 = vmatmul.f32.gmra.mxu0 %v7258
      %v7370 = vpop.f32.mrf.mxu0
      %v7371 = vadd.f32 0.0, %v7370
      %7372 = vmatmul.f32.gmra.mxu0 %v7261
      %v7373 = vpop.f32.mrf.mxu0
      %v7374 = vadd.f32 0.0, %v7373
      %7375 = vmatmul.f32.gmra.mxu0 %v7264
      %v7376 = vpop.f32.mrf.mxu0
      %v7377 = vadd.f32 0.0, %v7376
      %7378 = vmatmul.f32.gmra.mxu0 %v7267
      %v7379 = vpop.f32.mrf.mxu0
      %v7380 = vadd.f32 0.0, %v7379
      %7381 = vmatmul.f32.gmra.mxu0 %v7270
      %v7382 = vpop.f32.mrf.mxu0
      %v7383 = vadd.f32 0.0, %v7382
      %7384 = vmatmul.f32.gmra.mxu0 %v7273
      %v7385 = vpop.f32.mrf.mxu0
      %v7386 = vadd.f32 0.0, %v7385
      %7387 = vmatmul.f32.gmra.mxu0 %v7276
      %v7388 = vpop.f32.mrf.mxu0
      %v7389 = vadd.f32 0.0, %v7388
      %7390 = vmatmul.f32.gmra.mxu0 %v7279
      %v7391 = vpop.f32.mrf.mxu0
      %v7392 = vadd.f32 0.0, %v7391
      %7393 = vmatmul.f32.gmra.mxu0 %v7282
      %v7394 = vpop.f32.mrf.mxu0
      %v7395 = vadd.f32 0.0, %v7394
      %7396 = vmatmul.f32.gmra.mxu0 %v7285
      %v7397 = vpop.f32.mrf.mxu0
      %v7398 = vadd.f32 0.0, %v7397
      %7399 = vmatmul.f32.gmra.mxu0 %v7288
      %v7400 = vpop.f32.mrf.mxu0
      %v7401 = vadd.f32 0.0, %v7400
      %7402 = vmatmul.f32.gmra.mxu0 %v7291
      %v7403 = vpop.f32.mrf.mxu0
      %v7404 = vadd.f32 0.0, %v7403
      %7405 = vmatmul.f32.gmra.mxu0 %v7294
      %v7406 = vpop.f32.mrf.mxu0
      %v7407 = vadd.f32 0.0, %v7406
      %7408 = vmatmul.f32.gmra.mxu0 %v7297
      %v7409 = vpop.f32.mrf.mxu0
      %v7410 = vadd.f32 0.0, %v7409
      %7411 = vmatmul.f32.gmra.mxu0 %v7300
      %v7412 = vpop.f32.mrf.mxu0
      %v7413 = vadd.f32 0.0, %v7412
      %7414 = vmatmul.f32.gmra.mxu0 %v7303
      %v7415 = vpop.f32.mrf.mxu0
      %v7416 = vadd.f32 0.0, %v7415
      %7417 = vmatmul.f32.gmra.mxu0 %v7306
      %v7418 = vpop.f32.mrf.mxu0
      %v7419 = vadd.f32 0.0, %v7418
      %7420 = vmatmul.f32.gmra.mxu0 %v7309
      %v7421 = vpop.f32.mrf.mxu0
      %v7422 = vadd.f32 0.0, %v7421
      %7423 = vdwg.mxu0
      %v7424 = vadd.f32 %v7147, %v7329
      %v7425 = vadd.f32 %v7148, %v7332
      %v7426 = vadd.f32 %v7149, %v7335
      %v7427 = vadd.f32 %v7150, %v7338
      %v7428 = vadd.f32 %v7151, %v7341
      %v7429 = vadd.f32 %v7152, %v7344
      %v7430 = vadd.f32 %v7153, %v7347
      %v7431 = vadd.f32 %v7154, %v7350
      %v7432 = vadd.f32 %v7155, %v7353
      %v7433 = vadd.f32 %v7156, %v7356
      %v7434 = vadd.f32 %v7157, %v7359
      %v7435 = vadd.f32 %v7158, %v7362
      %v7436 = vadd.f32 %v7159, %v7365
      %v7437 = vadd.f32 %v7160, %v7368
      %v7438 = vadd.f32 %v7161, %v7371
      %v7439 = vadd.f32 %v7162, %v7374
      %v7440 = vadd.f32 %v7163, %v7377
      %v7441 = vadd.f32 %v7164, %v7380
      %v7442 = vadd.f32 %v7165, %v7383
      %v7443 = vadd.f32 %v7166, %v7386
      %v7444 = vadd.f32 %v7167, %v7389
      %v7445 = vadd.f32 %v7168, %v7392
      %v7446 = vadd.f32 %v7169, %v7395
      %v7447 = vadd.f32 %v7170, %v7398
      %v7448 = vadd.f32 %v7171, %v7401
      %v7449 = vadd.f32 %v7172, %v7404
      %v7450 = vadd.f32 %v7173, %v7407
      %v7451 = vadd.f32 %v7174, %v7410
      %v7452 = vadd.f32 %v7175, %v7413
      %v7453 = vadd.f32 %v7176, %v7416
      %v7454 = vadd.f32 %v7177, %v7419
      %v7455 = vadd.f32 %v7178, %v7422
      %v7456 = vld [vmem:[%s7179 + $0x1] sm:$0xff]
      %v7457 = vld [vmem:[%s7179 + $0x9] sm:$0xff]
      %v7458 = vld [vmem:[%s7179 + $0x19] sm:$0xff]
      %v7459 = vld [vmem:[%s7179 + $0x21] sm:$0xff]
      %v7460 = vld [vmem:[%s7179 + $0x31] sm:$0xff]
      %v7461 = vld [vmem:[%s7179 + $0x39] sm:$0xff]
      %v7462 = vld [vmem:[%s7179 + $0x49] sm:$0xff]
      %v7463 = vld [vmem:[%s7179 + $0x51] sm:$0xff]
      %v7464 = vld [vmem:[%s7179 + $0x61] sm:$0xff]
      %v7465 = vld [vmem:[%s7179 + $0x69] sm:$0xff]
      %v7466 = vld [vmem:[%s7179 + $0x79] sm:$0xff]
      %v7467 = vld [vmem:[%s7179 + $0x81] sm:$0xff]
      %v7468 = vld [vmem:[%s7179 + $0x91] sm:$0xff]
      %v7469 = vld [vmem:[%s7179 + $0x99] sm:$0xff]
      %v7470 = vld [vmem:[%s7179 + $0xa9] sm:$0xff]
      %v7471 = vld [vmem:[%s7179 + $0xb1] sm:$0xff]
      %v7472 = vld [vmem:[%s7179 + $0xc1] sm:$0xff]
      %v7473 = vld [vmem:[%s7179 + $0xc9] sm:$0xff]
      %v7474 = vld [vmem:[%s7179 + $0xd9] sm:$0xff]
      %v7475 = vld [vmem:[%s7179 + $0xe1] sm:$0xff]
      %v7476 = vld [vmem:[%s7179 + $0xf1] sm:$0xff]
      %v7477 = vld [vmem:[%s7179 + $0xf9] sm:$0xff]
      %v7478 = vld [vmem:[%s7179 + $0x109] sm:$0xff]
      %v7479 = vld [vmem:[%s7179 + $0x111] sm:$0xff]
      %v7480 = vld [vmem:[%s7179 + $0x121] sm:$0xff]
      %v7481 = vld [vmem:[%s7179 + $0x129] sm:$0xff]
      %v7482 = vld [vmem:[%s7179 + $0x139] sm:$0xff]
      %v7483 = vld [vmem:[%s7179 + $0x141] sm:$0xff]
      %v7484 = vld [vmem:[%s7179 + $0x151] sm:$0xff]
      %v7485 = vld [vmem:[%s7179 + $0x159] sm:$0xff]
      %v7486 = vld [vmem:[%s7179 + $0x169] sm:$0xff]
      %v7487 = vld [vmem:[%s7179 + $0x171] sm:$0xff]
      %s7488 = scalar_lea.vmem %s5, 112
      %v7489 = vld [vmem:[%s7488] sm:$0xff]
      %v7490 = vld [vmem:[%s7488 + $0x8] sm:$0xff]
      %v7492 = vsel %vm5435, %v7456, 0
      %v7495 = vsel %vm5435, %v7457, 0
      %v7498 = vsel %vm5435, %v7458, 0
      %v7501 = vsel %vm5435, %v7459, 0
      %v7504 = vsel %vm5435, %v7460, 0
      %v7507 = vsel %vm5435, %v7461, 0
      %v7510 = vsel %vm5435, %v7462, 0
      %v7513 = vsel %vm5435, %v7463, 0
      %v7516 = vsel %vm5435, %v7464, 0
      %v7519 = vsel %vm5435, %v7465, 0
      %v7522 = vsel %vm5435, %v7466, 0
      %v7525 = vsel %vm5435, %v7467, 0
      %v7528 = vsel %vm5435, %v7468, 0
      %v7531 = vsel %vm5435, %v7469, 0
      %v7534 = vsel %vm5435, %v7470, 0
      %v7537 = vsel %vm5435, %v7471, 0
      %v7540 = vsel %vm5435, %v7472, 0
      %v7543 = vsel %vm5435, %v7473, 0
      %v7546 = vsel %vm5435, %v7474, 0
      %v7549 = vsel %vm5435, %v7475, 0
      %v7552 = vsel %vm5435, %v7476, 0
      %v7555 = vsel %vm5435, %v7477, 0
      %v7558 = vsel %vm5435, %v7478, 0
      %v7561 = vsel %vm5435, %v7479, 0
      %v7564 = vsel %vm5435, %v7480, 0
      %v7567 = vsel %vm5435, %v7481, 0
      %v7570 = vsel %vm5435, %v7482, 0
      %v7573 = vsel %vm5435, %v7483, 0
      %v7576 = vsel %vm5435, %v7484, 0
      %v7579 = vsel %vm5435, %v7485, 0
      %v7582 = vsel %vm5435, %v7486, 0
      %v7585 = vsel %vm5435, %v7487, 0
      %7587 = vmatpush.msra.mxu0 0.0
      %7588 = vmatpush.msra.mxu0 0.0
      %7589 = vmatpush.msra.mxu0 0.0
      %7590 = vmatpush.msra.mxu0 0.0
      %7591 = vmatpush.msra.mxu0 0.0
      %7592 = vmatpush.msra.mxu0 0.0
      %7593 = vmatpush.msra.mxu0 0.0
      %7594 = vmatpush.msra.mxu0 0.0
      %7595 = vmatpush.msra.mxu0 0.0
      %7596 = vmatpush.msra.mxu0 0.0
      %7597 = vmatpush.msra.mxu0 0.0
      %7598 = vmatpush.msra.mxu0 0.0
      %7599 = vmatpush.msra.mxu0 0.0
      %7600 = vmatpush.msra.mxu0 0.0
      %7601 = vmatpush.msra.mxu0 %v7490
      %7602 = vmatpush.msra.mxu0 %v7489
      %7603 = vmatmul.f32.gmra.mxu0 %v7492
      %v7604 = vpop.f32.mrf.mxu0
      %v7605 = vadd.f32 0.0, %v7604
      %7606 = vmatmul.f32.gmra.mxu0 %v7495
      %v7607 = vpop.f32.mrf.mxu0
      %v7608 = vadd.f32 0.0, %v7607
      %7609 = vmatmul.f32.gmra.mxu0 %v7498
      %v7610 = vpop.f32.mrf.mxu0
      %v7611 = vadd.f32 0.0, %v7610
      %7612 = vmatmul.f32.gmra.mxu0 %v7501
      %v7613 = vpop.f32.mrf.mxu0
      %v7614 = vadd.f32 0.0, %v7613
      %7615 = vmatmul.f32.gmra.mxu0 %v7504
      %v7616 = vpop.f32.mrf.mxu0
      %v7617 = vadd.f32 0.0, %v7616
      %7618 = vmatmul.f32.gmra.mxu0 %v7507
      %v7619 = vpop.f32.mrf.mxu0
      %v7620 = vadd.f32 0.0, %v7619
      %7621 = vmatmul.f32.gmra.mxu0 %v7510
      %v7622 = vpop.f32.mrf.mxu0
      %v7623 = vadd.f32 0.0, %v7622
      %7624 = vmatmul.f32.gmra.mxu0 %v7513
      %v7625 = vpop.f32.mrf.mxu0
      %v7626 = vadd.f32 0.0, %v7625
      %7627 = vmatmul.f32.gmra.mxu0 %v7516
      %v7628 = vpop.f32.mrf.mxu0
      %v7629 = vadd.f32 0.0, %v7628
      %7630 = vmatmul.f32.gmra.mxu0 %v7519
      %v7631 = vpop.f32.mrf.mxu0
      %v7632 = vadd.f32 0.0, %v7631
      %7633 = vmatmul.f32.gmra.mxu0 %v7522
      %v7634 = vpop.f32.mrf.mxu0
      %v7635 = vadd.f32 0.0, %v7634
      %7636 = vmatmul.f32.gmra.mxu0 %v7525
      %v7637 = vpop.f32.mrf.mxu0
      %v7638 = vadd.f32 0.0, %v7637
      %7639 = vmatmul.f32.gmra.mxu0 %v7528
      %v7640 = vpop.f32.mrf.mxu0
      %v7641 = vadd.f32 0.0, %v7640
      %7642 = vmatmul.f32.gmra.mxu0 %v7531
      %v7643 = vpop.f32.mrf.mxu0
      %v7644 = vadd.f32 0.0, %v7643
      %7645 = vmatmul.f32.gmra.mxu0 %v7534
      %v7646 = vpop.f32.mrf.mxu0
      %v7647 = vadd.f32 0.0, %v7646
      %7648 = vmatmul.f32.gmra.mxu0 %v7537
      %v7649 = vpop.f32.mrf.mxu0
      %v7650 = vadd.f32 0.0, %v7649
      %7651 = vmatmul.f32.gmra.mxu0 %v7540
      %v7652 = vpop.f32.mrf.mxu0
      %v7653 = vadd.f32 0.0, %v7652
      %7654 = vmatmul.f32.gmra.mxu0 %v7543
      %v7655 = vpop.f32.mrf.mxu0
      %v7656 = vadd.f32 0.0, %v7655
      %7657 = vmatmul.f32.gmra.mxu0 %v7546
      %v7658 = vpop.f32.mrf.mxu0
      %v7659 = vadd.f32 0.0, %v7658
      %7660 = vmatmul.f32.gmra.mxu0 %v7549
      %v7661 = vpop.f32.mrf.mxu0
      %v7662 = vadd.f32 0.0, %v7661
      %7663 = vmatmul.f32.gmra.mxu0 %v7552
      %v7664 = vpop.f32.mrf.mxu0
      %v7665 = vadd.f32 0.0, %v7664
      %7666 = vmatmul.f32.gmra.mxu0 %v7555
      %v7667 = vpop.f32.mrf.mxu0
      %v7668 = vadd.f32 0.0, %v7667
      %7669 = vmatmul.f32.gmra.mxu0 %v7558
      %v7670 = vpop.f32.mrf.mxu0
      %v7671 = vadd.f32 0.0, %v7670
      %7672 = vmatmul.f32.gmra.mxu0 %v7561
      %v7673 = vpop.f32.mrf.mxu0
      %v7674 = vadd.f32 0.0, %v7673
      %7675 = vmatmul.f32.gmra.mxu0 %v7564
      %v7676 = vpop.f32.mrf.mxu0
      %v7677 = vadd.f32 0.0, %v7676
      %7678 = vmatmul.f32.gmra.mxu0 %v7567
      %v7679 = vpop.f32.mrf.mxu0
      %v7680 = vadd.f32 0.0, %v7679
      %7681 = vmatmul.f32.gmra.mxu0 %v7570
      %v7682 = vpop.f32.mrf.mxu0
      %v7683 = vadd.f32 0.0, %v7682
      %7684 = vmatmul.f32.gmra.mxu0 %v7573
      %v7685 = vpop.f32.mrf.mxu0
      %v7686 = vadd.f32 0.0, %v7685
      %7687 = vmatmul.f32.gmra.mxu0 %v7576
      %v7688 = vpop.f32.mrf.mxu0
      %v7689 = vadd.f32 0.0, %v7688
      %7690 = vmatmul.f32.gmra.mxu0 %v7579
      %v7691 = vpop.f32.mrf.mxu0
      %v7692 = vadd.f32 0.0, %v7691
      %7693 = vmatmul.f32.gmra.mxu0 %v7582
      %v7694 = vpop.f32.mrf.mxu0
      %v7695 = vadd.f32 0.0, %v7694
      %7696 = vmatmul.f32.gmra.mxu0 %v7585
      %v7697 = vpop.f32.mrf.mxu0
      %v7698 = vadd.f32 0.0, %v7697
      %7699 = vdwg.mxu0
      %v7700 = vadd.f32 %v7424, %v7605
      %v7701 = vadd.f32 %v7425, %v7608
      %v7702 = vadd.f32 %v7426, %v7611
      %v7703 = vadd.f32 %v7427, %v7614
      %v7704 = vadd.f32 %v7428, %v7617
      %v7705 = vadd.f32 %v7429, %v7620
      %v7706 = vadd.f32 %v7430, %v7623
      %v7707 = vadd.f32 %v7431, %v7626
      %v7708 = vadd.f32 %v7432, %v7629
      %v7709 = vadd.f32 %v7433, %v7632
      %v7710 = vadd.f32 %v7434, %v7635
      %v7711 = vadd.f32 %v7435, %v7638
      %v7712 = vadd.f32 %v7436, %v7641
      %v7713 = vadd.f32 %v7437, %v7644
      %v7714 = vadd.f32 %v7438, %v7647
      %v7715 = vadd.f32 %v7439, %v7650
      %v7716 = vadd.f32 %v7440, %v7653
      %v7717 = vadd.f32 %v7441, %v7656
      %v7718 = vadd.f32 %v7442, %v7659
      %v7719 = vadd.f32 %v7443, %v7662
      %v7720 = vadd.f32 %v7444, %v7665
      %v7721 = vadd.f32 %v7445, %v7668
      %v7722 = vadd.f32 %v7446, %v7671
      %v7723 = vadd.f32 %v7447, %v7674
      %v7724 = vadd.f32 %v7448, %v7677
      %v7725 = vadd.f32 %v7449, %v7680
      %v7726 = vadd.f32 %v7450, %v7683
      %v7727 = vadd.f32 %v7451, %v7686
      %v7728 = vadd.f32 %v7452, %v7689
      %v7729 = vadd.f32 %v7453, %v7692
      %v7730 = vadd.f32 %v7454, %v7695
      %v7731 = vadd.f32 %v7455, %v7698
      %v7732 = vld [vmem:[%s7179 + $0x2] sm:$0xff]
      %v7733 = vld [vmem:[%s7179 + $0xa] sm:$0xff]
      %v7734 = vld [vmem:[%s7179 + $0x1a] sm:$0xff]
      %v7735 = vld [vmem:[%s7179 + $0x22] sm:$0xff]
      %v7736 = vld [vmem:[%s7179 + $0x32] sm:$0xff]
      %v7737 = vld [vmem:[%s7179 + $0x3a] sm:$0xff]
      %v7738 = vld [vmem:[%s7179 + $0x4a] sm:$0xff]
      %v7739 = vld [vmem:[%s7179 + $0x52] sm:$0xff]
      %v7740 = vld [vmem:[%s7179 + $0x62] sm:$0xff]
      %v7741 = vld [vmem:[%s7179 + $0x6a] sm:$0xff]
      %v7742 = vld [vmem:[%s7179 + $0x7a] sm:$0xff]
      %v7743 = vld [vmem:[%s7179 + $0x82] sm:$0xff]
      %v7744 = vld [vmem:[%s7179 + $0x92] sm:$0xff]
      %v7745 = vld [vmem:[%s7179 + $0x9a] sm:$0xff]
      %v7746 = vld [vmem:[%s7179 + $0xaa] sm:$0xff]
      %v7747 = vld [vmem:[%s7179 + $0xb2] sm:$0xff]
      %v7748 = vld [vmem:[%s7179 + $0xc2] sm:$0xff]
      %v7749 = vld [vmem:[%s7179 + $0xca] sm:$0xff]
      %v7750 = vld [vmem:[%s7179 + $0xda] sm:$0xff]
      %v7751 = vld [vmem:[%s7179 + $0xe2] sm:$0xff]
      %v7752 = vld [vmem:[%s7179 + $0xf2] sm:$0xff]
      %v7753 = vld [vmem:[%s7179 + $0xfa] sm:$0xff]
      %v7754 = vld [vmem:[%s7179 + $0x10a] sm:$0xff]
      %v7755 = vld [vmem:[%s7179 + $0x112] sm:$0xff]
      %v7756 = vld [vmem:[%s7179 + $0x122] sm:$0xff]
      %v7757 = vld [vmem:[%s7179 + $0x12a] sm:$0xff]
      %v7758 = vld [vmem:[%s7179 + $0x13a] sm:$0xff]
      %v7759 = vld [vmem:[%s7179 + $0x142] sm:$0xff]
      %v7760 = vld [vmem:[%s7179 + $0x152] sm:$0xff]
      %v7761 = vld [vmem:[%s7179 + $0x15a] sm:$0xff]
      %v7762 = vld [vmem:[%s7179 + $0x16a] sm:$0xff]
      %v7763 = vld [vmem:[%s7179 + $0x172] sm:$0xff]
      %s7764 = scalar_lea.vmem %s5, 128
      %v7765 = vld [vmem:[%s7764] sm:$0xff]
      %v7766 = vld [vmem:[%s7764 + $0x8] sm:$0xff]
      %v7768 = vsel %vm5435, %v7732, 0
      %v7771 = vsel %vm5435, %v7733, 0
      %v7774 = vsel %vm5435, %v7734, 0
      %v7777 = vsel %vm5435, %v7735, 0
      %v7780 = vsel %vm5435, %v7736, 0
      %v7783 = vsel %vm5435, %v7737, 0
      %v7786 = vsel %vm5435, %v7738, 0
      %v7789 = vsel %vm5435, %v7739, 0
      %v7792 = vsel %vm5435, %v7740, 0
      %v7795 = vsel %vm5435, %v7741, 0
      %v7798 = vsel %vm5435, %v7742, 0
      %v7801 = vsel %vm5435, %v7743, 0
      %v7804 = vsel %vm5435, %v7744, 0
      %v7807 = vsel %vm5435, %v7745, 0
      %v7810 = vsel %vm5435, %v7746, 0
      %v7813 = vsel %vm5435, %v7747, 0
      %v7816 = vsel %vm5435, %v7748, 0
      %v7819 = vsel %vm5435, %v7749, 0
      %v7822 = vsel %vm5435, %v7750, 0
      %v7825 = vsel %vm5435, %v7751, 0
      %v7828 = vsel %vm5435, %v7752, 0
      %v7831 = vsel %vm5435, %v7753, 0
      %v7834 = vsel %vm5435, %v7754, 0
      %v7837 = vsel %vm5435, %v7755, 0
      %v7840 = vsel %vm5435, %v7756, 0
      %v7843 = vsel %vm5435, %v7757, 0
      %v7846 = vsel %vm5435, %v7758, 0
      %v7849 = vsel %vm5435, %v7759, 0
      %v7852 = vsel %vm5435, %v7760, 0
      %v7855 = vsel %vm5435, %v7761, 0
      %v7858 = vsel %vm5435, %v7762, 0
      %v7861 = vsel %vm5435, %v7763, 0
      %7863 = vmatpush.msra.mxu0 0.0
      %7864 = vmatpush.msra.mxu0 0.0
      %7865 = vmatpush.msra.mxu0 0.0
      %7866 = vmatpush.msra.mxu0 0.0
      %7867 = vmatpush.msra.mxu0 0.0
      %7868 = vmatpush.msra.mxu0 0.0
      %7869 = vmatpush.msra.mxu0 0.0
      %7870 = vmatpush.msra.mxu0 0.0
      %7871 = vmatpush.msra.mxu0 0.0
      %7872 = vmatpush.msra.mxu0 0.0
      %7873 = vmatpush.msra.mxu0 0.0
      %7874 = vmatpush.msra.mxu0 0.0
      %7875 = vmatpush.msra.mxu0 0.0
      %7876 = vmatpush.msra.mxu0 0.0
      %7877 = vmatpush.msra.mxu0 %v7766
      %7878 = vmatpush.msra.mxu0 %v7765
      %7879 = vmatmul.f32.gmra.mxu0 %v7768
      %v7880 = vpop.f32.mrf.mxu0
      %v7881 = vadd.f32 0.0, %v7880
      %7882 = vmatmul.f32.gmra.mxu0 %v7771
      %v7883 = vpop.f32.mrf.mxu0
      %v7884 = vadd.f32 0.0, %v7883
      %7885 = vmatmul.f32.gmra.mxu0 %v7774
      %v7886 = vpop.f32.mrf.mxu0
      %v7887 = vadd.f32 0.0, %v7886
      %7888 = vmatmul.f32.gmra.mxu0 %v7777
      %v7889 = vpop.f32.mrf.mxu0
      %v7890 = vadd.f32 0.0, %v7889
      %7891 = vmatmul.f32.gmra.mxu0 %v7780
      %v7892 = vpop.f32.mrf.mxu0
      %v7893 = vadd.f32 0.0, %v7892
      %7894 = vmatmul.f32.gmra.mxu0 %v7783
      %v7895 = vpop.f32.mrf.mxu0
      %v7896 = vadd.f32 0.0, %v7895
      %7897 = vmatmul.f32.gmra.mxu0 %v7786
      %v7898 = vpop.f32.mrf.mxu0
      %v7899 = vadd.f32 0.0, %v7898
      %7900 = vmatmul.f32.gmra.mxu0 %v7789
      %v7901 = vpop.f32.mrf.mxu0
      %v7902 = vadd.f32 0.0, %v7901
      %7903 = vmatmul.f32.gmra.mxu0 %v7792
      %v7904 = vpop.f32.mrf.mxu0
      %v7905 = vadd.f32 0.0, %v7904
      %7906 = vmatmul.f32.gmra.mxu0 %v7795
      %v7907 = vpop.f32.mrf.mxu0
      %v7908 = vadd.f32 0.0, %v7907
      %7909 = vmatmul.f32.gmra.mxu0 %v7798
      %v7910 = vpop.f32.mrf.mxu0
      %v7911 = vadd.f32 0.0, %v7910
      %7912 = vmatmul.f32.gmra.mxu0 %v7801
      %v7913 = vpop.f32.mrf.mxu0
      %v7914 = vadd.f32 0.0, %v7913
      %7915 = vmatmul.f32.gmra.mxu0 %v7804
      %v7916 = vpop.f32.mrf.mxu0
      %v7917 = vadd.f32 0.0, %v7916
      %7918 = vmatmul.f32.gmra.mxu0 %v7807
      %v7919 = vpop.f32.mrf.mxu0
      %v7920 = vadd.f32 0.0, %v7919
      %7921 = vmatmul.f32.gmra.mxu0 %v7810
      %v7922 = vpop.f32.mrf.mxu0
      %v7923 = vadd.f32 0.0, %v7922
      %7924 = vmatmul.f32.gmra.mxu0 %v7813
      %v7925 = vpop.f32.mrf.mxu0
      %v7926 = vadd.f32 0.0, %v7925
      %7927 = vmatmul.f32.gmra.mxu0 %v7816
      %v7928 = vpop.f32.mrf.mxu0
      %v7929 = vadd.f32 0.0, %v7928
      %7930 = vmatmul.f32.gmra.mxu0 %v7819
      %v7931 = vpop.f32.mrf.mxu0
      %v7932 = vadd.f32 0.0, %v7931
      %7933 = vmatmul.f32.gmra.mxu0 %v7822
      %v7934 = vpop.f32.mrf.mxu0
      %v7935 = vadd.f32 0.0, %v7934
      %7936 = vmatmul.f32.gmra.mxu0 %v7825
      %v7937 = vpop.f32.mrf.mxu0
      %v7938 = vadd.f32 0.0, %v7937
      %7939 = vmatmul.f32.gmra.mxu0 %v7828
      %v7940 = vpop.f32.mrf.mxu0
      %v7941 = vadd.f32 0.0, %v7940
      %7942 = vmatmul.f32.gmra.mxu0 %v7831
      %v7943 = vpop.f32.mrf.mxu0
      %v7944 = vadd.f32 0.0, %v7943
      %7945 = vmatmul.f32.gmra.mxu0 %v7834
      %v7946 = vpop.f32.mrf.mxu0
      %v7947 = vadd.f32 0.0, %v7946
      %7948 = vmatmul.f32.gmra.mxu0 %v7837
      %v7949 = vpop.f32.mrf.mxu0
      %v7950 = vadd.f32 0.0, %v7949
      %7951 = vmatmul.f32.gmra.mxu0 %v7840
      %v7952 = vpop.f32.mrf.mxu0
      %v7953 = vadd.f32 0.0, %v7952
      %7954 = vmatmul.f32.gmra.mxu0 %v7843
      %v7955 = vpop.f32.mrf.mxu0
      %v7956 = vadd.f32 0.0, %v7955
      %7957 = vmatmul.f32.gmra.mxu0 %v7846
      %v7958 = vpop.f32.mrf.mxu0
      %v7959 = vadd.f32 0.0, %v7958
      %7960 = vmatmul.f32.gmra.mxu0 %v7849
      %v7961 = vpop.f32.mrf.mxu0
      %v7962 = vadd.f32 0.0, %v7961
      %7963 = vmatmul.f32.gmra.mxu0 %v7852
      %v7964 = vpop.f32.mrf.mxu0
      %v7965 = vadd.f32 0.0, %v7964
      %7966 = vmatmul.f32.gmra.mxu0 %v7855
      %v7967 = vpop.f32.mrf.mxu0
      %v7968 = vadd.f32 0.0, %v7967
      %7969 = vmatmul.f32.gmra.mxu0 %v7858
      %v7970 = vpop.f32.mrf.mxu0
      %v7971 = vadd.f32 0.0, %v7970
      %7972 = vmatmul.f32.gmra.mxu0 %v7861
      %v7973 = vpop.f32.mrf.mxu0
      %v7974 = vadd.f32 0.0, %v7973
      %7975 = vdwg.mxu0
      %v7976 = vadd.f32 %v7700, %v7881
      %v7977 = vadd.f32 %v7701, %v7884
      %v7978 = vadd.f32 %v7702, %v7887
      %v7979 = vadd.f32 %v7703, %v7890
      %v7980 = vadd.f32 %v7704, %v7893
      %v7981 = vadd.f32 %v7705, %v7896
      %v7982 = vadd.f32 %v7706, %v7899
      %v7983 = vadd.f32 %v7707, %v7902
      %v7984 = vadd.f32 %v7708, %v7905
      %v7985 = vadd.f32 %v7709, %v7908
      %v7986 = vadd.f32 %v7710, %v7911
      %v7987 = vadd.f32 %v7711, %v7914
      %v7988 = vadd.f32 %v7712, %v7917
      %v7989 = vadd.f32 %v7713, %v7920
      %v7990 = vadd.f32 %v7714, %v7923
      %v7991 = vadd.f32 %v7715, %v7926
      %v7992 = vadd.f32 %v7716, %v7929
      %v7993 = vadd.f32 %v7717, %v7932
      %v7994 = vadd.f32 %v7718, %v7935
      %v7995 = vadd.f32 %v7719, %v7938
      %v7996 = vadd.f32 %v7720, %v7941
      %v7997 = vadd.f32 %v7721, %v7944
      %v7998 = vadd.f32 %v7722, %v7947
      %v7999 = vadd.f32 %v7723, %v7950
      %v8000 = vadd.f32 %v7724, %v7953
      %v8001 = vadd.f32 %v7725, %v7956
      %v8002 = vadd.f32 %v7726, %v7959
      %v8003 = vadd.f32 %v7727, %v7962
      %v8004 = vadd.f32 %v7728, %v7965
      %v8005 = vadd.f32 %v7729, %v7968
      %v8006 = vadd.f32 %v7730, %v7971
      %v8007 = vadd.f32 %v7731, %v7974
      %v8008 = vld [vmem:[%s6] sm:$0x1]
      %v8010 = vperm.slane %v8008, 0
      %v8012 = vadd.f32 %v7976, %v8010
      %v8013 = vadd.f32 %v7977, %v8010
      %v8014 = vadd.f32 %v7978, %v8010
      %v8015 = vadd.f32 %v7979, %v8010
      %v8016 = vadd.f32 %v7980, %v8010
      %v8017 = vadd.f32 %v7981, %v8010
      %v8018 = vadd.f32 %v7982, %v8010
      %v8019 = vadd.f32 %v7983, %v8010
      %v8020 = vadd.f32 %v7984, %v8010
      %v8021 = vadd.f32 %v7985, %v8010
      %v8022 = vadd.f32 %v7986, %v8010
      %v8023 = vadd.f32 %v7987, %v8010
      %v8024 = vadd.f32 %v7988, %v8010
      %v8025 = vadd.f32 %v7989, %v8010
      %v8026 = vadd.f32 %v7990, %v8010
      %v8027 = vadd.f32 %v7991, %v8010
      %v8028 = vadd.f32 %v7992, %v8010
      %v8029 = vadd.f32 %v7993, %v8010
      %v8030 = vadd.f32 %v7994, %v8010
      %v8031 = vadd.f32 %v7995, %v8010
      %v8032 = vadd.f32 %v7996, %v8010
      %v8033 = vadd.f32 %v7997, %v8010
      %v8034 = vadd.f32 %v7998, %v8010
      %v8035 = vadd.f32 %v7999, %v8010
      %v8036 = vadd.f32 %v8000, %v8010
      %v8037 = vadd.f32 %v8001, %v8010
      %v8038 = vadd.f32 %v8002, %v8010
      %v8039 = vadd.f32 %v8003, %v8010
      %v8040 = vadd.f32 %v8004, %v8010
      %v8041 = vadd.f32 %v8005, %v8010
      %v8042 = vadd.f32 %v8006, %v8010
      %v8043 = vadd.f32 %v8007, %v8010
      %8044 = vst.msk [vmem:[%s357] sm:$0xff] %vm5435, %v8012
      %8045 = vst.msk [vmem:[%s357 + $0x8] sm:$0xff] %vm5435, %v8013
      %8046 = vst.msk [vmem:[%s357 + $0x10] sm:$0xff] %vm5435, %v8014
      %8047 = vst.msk [vmem:[%s357 + $0x18] sm:$0xff] %vm5435, %v8015
      %8048 = vst.msk [vmem:[%s357 + $0x20] sm:$0xff] %vm5435, %v8016
      %8049 = vst.msk [vmem:[%s357 + $0x28] sm:$0xff] %vm5435, %v8017
      %8050 = vst.msk [vmem:[%s357 + $0x30] sm:$0xff] %vm5435, %v8018
      %8051 = vst.msk [vmem:[%s357 + $0x38] sm:$0xff] %vm5435, %v8019
      %8052 = vst.msk [vmem:[%s357 + $0x40] sm:$0xff] %vm5435, %v8020
      %8053 = vst.msk [vmem:[%s357 + $0x48] sm:$0xff] %vm5435, %v8021
      %8054 = vst.msk [vmem:[%s357 + $0x50] sm:$0xff] %vm5435, %v8022
      %8055 = vst.msk [vmem:[%s357 + $0x58] sm:$0xff] %vm5435, %v8023
      %8056 = vst.msk [vmem:[%s357 + $0x60] sm:$0xff] %vm5435, %v8024
      %8057 = vst.msk [vmem:[%s357 + $0x68] sm:$0xff] %vm5435, %v8025
      %8058 = vst.msk [vmem:[%s357 + $0x70] sm:$0xff] %vm5435, %v8026
      %8059 = vst.msk [vmem:[%s357 + $0x78] sm:$0xff] %vm5435, %v8027
      %8060 = vst.msk [vmem:[%s357 + $0x80] sm:$0xff] %vm5435, %v8028
      %8061 = vst.msk [vmem:[%s357 + $0x88] sm:$0xff] %vm5435, %v8029
      %8062 = vst.msk [vmem:[%s357 + $0x90] sm:$0xff] %vm5435, %v8030
      %8063 = vst.msk [vmem:[%s357 + $0x98] sm:$0xff] %vm5435, %v8031
      %8064 = vst.msk [vmem:[%s357 + $0xa0] sm:$0xff] %vm5435, %v8032
      %8065 = vst.msk [vmem:[%s357 + $0xa8] sm:$0xff] %vm5435, %v8033
      %8066 = vst.msk [vmem:[%s357 + $0xb0] sm:$0xff] %vm5435, %v8034
      %8067 = vst.msk [vmem:[%s357 + $0xb8] sm:$0xff] %vm5435, %v8035
      %8068 = vst.msk [vmem:[%s357 + $0xc0] sm:$0xff] %vm5435, %v8036
      %8069 = vst.msk [vmem:[%s357 + $0xc8] sm:$0xff] %vm5435, %v8037
      %8070 = vst.msk [vmem:[%s357 + $0xd0] sm:$0xff] %vm5435, %v8038
      %8071 = vst.msk [vmem:[%s357 + $0xd8] sm:$0xff] %vm5435, %v8039
      %8072 = vst.msk [vmem:[%s357 + $0xe0] sm:$0xff] %vm5435, %v8040
      %8073 = vst.msk [vmem:[%s357 + $0xe8] sm:$0xff] %vm5435, %v8041
      %8074 = vst.msk [vmem:[%s357 + $0xf0] sm:$0xff] %vm5435, %v8042
      %8075 = vst.msk [vmem:[%s357 + $0xf8] sm:$0xff] %vm5435, %v8043
      %p8076 = scmp.lt.s32.totalorder %s21, 1
      %s8077 = scalar_select %p8076, %s21, 1
      %s8078 = smul.addr %s8077, 32
      %s8079 = smul.addr %s8078, 8
      %s8080 = scalar_lea.vmem %s7, %s8079
      %p8081 = scmp.lt.s32.totalorder %s21, 1
      %s8082 = scalar_select %p8081, %s21, 1
      %s8083 = smul.addr %s8082, 32
      %s8084 = smul.addr %s8083, 8
      %s8085 = scalar_lea.vmem %s8, %s8084
      %p8086 = scmp.lt.s32.totalorder %s21, 1
      %s8087 = scalar_select %p8086, %s21, 1
      %s8088 = smul.addr %s8087, 32
      %s8089 = smul.addr %s8088, 8
      %s8090 = scalar_lea.vmem %s9, %s8089
      // Predicated region
      $region49: #{_forward_impl.1} parent=47 // pred_check
        %p8091 = pneg %p191
      $region50: #{_forward_impl.1} parent=47 // pred_check_branch
        %8093 = sbr.rel (%p8091) target = $region52
      $region51: #{_forward_impl.1} parent=47 // pred_region
        _
      $region52: #{_forward_impl.1} parent=47 // pred_fallthru
        _
      // Predicated region
      $region53: #{_forward_impl.1} parent=47 // pred_check
        %p8094 = pneg %p217
      $region54: #{_forward_impl.1} parent=47 // pred_check_branch
        %8096 = sbr.rel (%p8094) target = $region56
      $region55: #{_forward_impl.1} parent=47 // pred_region
        _
      $region56: #{_forward_impl.1} parent=47 // pred_fallthru
        _
      // Predicated region
      $region57: #{_forward_impl.1} parent=47 // pred_check
        %p8097 = pneg %p243
      $region58: #{_forward_impl.1} parent=47 // pred_check_branch
        %8099 = sbr.rel (%p8097) target = $region60
      $region59: #{_forward_impl.1} parent=47 // pred_region
        _
      $region60: #{_forward_impl.1} parent=47 // pred_fallthru
        _
    $region48: #{_forward_impl.1} parent=5 // pred_fallthru
      _
    %p8100 = scmp.le.s32.totalorder 2, %s16
    // Predicated region
    $region61: #{_forward_impl.1} parent=5 // pred_check
      %p8101 = pneg %p8100
    $region62: #{_forward_impl.1} parent=5 // pred_check_branch
      %8103 = sbr.rel (%p8101) target = $region64
    $region63: #{_forward_impl.1} parent=5 // pred_region
      %s8104 = ssub.s32 %s16, 2
      // Predicated region
      $region65: #{_forward_impl.1} parent=63 // pred_check
        %p8105 = pneg %p197
      $region66: #{_forward_impl.1} parent=63 // pred_check_branch
        %8107 = sbr.rel (%p8105) target = $region68
      $region67: #{_forward_impl.1} parent=63 // pred_region
        %p8108 = scmp.lt.s32.totalorder %s22, 1
        %s8109 = scalar_select %p8108, %s22, 1
        %s8110 = smul.addr %s8109, 32
        %s8111 = smul.addr %s8110, 8
        %s8112 = scalar_lea.vmem %s7, %s8111
      $region68: #{_forward_impl.1} parent=63 // pred_fallthru
        _
      // Predicated region
      $region69: #{_forward_impl.1} parent=63 // pred_check
        %p8113 = pneg %p223
      $region70: #{_forward_impl.1} parent=63 // pred_check_branch
        %8115 = sbr.rel (%p8113) target = $region72
      $region71: #{_forward_impl.1} parent=63 // pred_region
        %p8116 = scmp.lt.s32.totalorder %s22, 1
        %s8117 = scalar_select %p8116, %s22, 1
        %s8118 = smul.addr %s8117, 32
        %s8119 = smul.addr %s8118, 8
        %s8120 = scalar_lea.vmem %s8, %s8119
      $region72: #{_forward_impl.1} parent=63 // pred_fallthru
        _
      // Predicated region
      $region73: #{_forward_impl.1} parent=63 // pred_check
        %p8121 = pneg %p249
      $region74: #{_forward_impl.1} parent=63 // pred_check_branch
        %8123 = sbr.rel (%p8121) target = $region76
      $region75: #{_forward_impl.1} parent=63 // pred_region
        %p8124 = scmp.lt.s32.totalorder %s22, 1
        %s8125 = scalar_select %p8124, %s22, 1
        %s8126 = smul.addr %s8125, 32
        %s8127 = smul.addr %s8126, 8
        %s8128 = scalar_lea.vmem %s9, %s8127
      $region76: #{_forward_impl.1} parent=63 // pred_fallthru
        _
    $region64: #{_forward_impl.1} parent=5 // pred_fallthru
      _
  $region6: #{_forward_impl.1} parent=0 // loop_footer
    %s20 = sadd.s32 1, %s16
  $region7: #{_forward_impl.1} parent=0 // loop_footer_branch
    %15 = sbr.rel target = $region3
  $region8: #{_forward_impl.1} parent=0 // loop_exit
    _

</llo_original>
